<compile_context>
chip_gen: v7x
topology: tpu7x:2x2x1
jax: 0.10.0
libtpu: 0.0.40
codegen_flags: <defaults>
</compile_context>

<pallas_src>
import jax
import jax.numpy as jnp
from jax.experimental import pallas as pl
from jax.experimental.pallas import tpu as pltpu


# ------------------------- geometry of the conv stack -------------------------
_CONV_KSP = [(8, 4, 0), (4, 2, 1), (3, 1, 0), (3, 1, 0)]   # (kernel, stride, pad)
_CONV_CH = [32, 64, 64, 128]                               # out channels per conv
_FC_HIDDEN = 512
_LANE = 128                                                # padded channel width


def _conv_out(n, k, s, p):
    return (n + 2 * p - k) // s + 1


# ------------------------------ fused Pallas kernel ---------------------------
def _build_fused_forward(B, H, W, num_actions):
    """Build a callable(p1, prep) -> (B, num_actions) running conv1..fc2 in one
    pallas_call."""
    O1 = _conv_out(H, *_CONV_KSP[0])
    O2 = _conv_out(O1, *_CONV_KSP[1])
    O3 = _conv_out(O2, *_CONV_KSP[2])
    O4 = _conv_out(O3, *_CONV_KSP[3])
    K2, K3, K4 = 4, 3, 3
    assert H == W, "square inputs only"
    assert O4 == 1, "flatten below assumes the conv stack ends at 1x1 spatial"
    # conv2 (padding=1) must only ever touch the top/left padding border, and
    # its w-block reads must stay inside the 8-slot groups / valid data range.
    assert O1 % 2 == 1 and 2 * (O2 - 1) + K2 - 1 <= O1
    assert (K2 - 1) // 2 + O2 - 1 <= min(7, (O1 + 1) // 2 - 1)

    PH = O1 + 2                    # conv2 input height after padding=1
    GROUP = 2 * 8                  # rows per padded-h line: 2 parities x 8 w-blocks
    M1 = B * PH * GROUP            # rows of res1 (conv1 output in padded layout)
    L = _LANE

    def kernel(p1_ref, w1_ref, b1_ref, w2_ref, b2_ref, w3_ref, b3_ref,
               w4_ref, b4_ref, wf1_ref, bf1_ref, wf2_ref, bf2_ref,
               o_ref,
               res1, patch2, res2, patch3, res3, patch4):

        def mm(lhs, w_ref, b_ref, relu):
            # bf16 MXU inputs, f32 accumulate; bias + ReLU in f32 (v5e-safe).
            acc = jnp.dot(lhs.astype(jnp.bfloat16), w_ref[...],
                          preferred_element_type=jnp.float32)
            acc = acc + b_ref[...]
            if relu:
                acc = jnp.maximum(acc, 0.0)
            return acc

        # -------- conv1: one matmul, output lands directly in act1 layout ------
        # res1 row = ((b*PH + h_pad)*2 + wp)*8 + wb,  padded w = 2*wb + wp.
        res1[...] = mm(p1_ref[...], w1_ref, b1_ref, True)

        # p1's border/pad rows are zero, but matmul+bias+ReLU maps a zero row to
        # ReLU(b1) != 0, so re-zero the padding cells conv2 actually reads: the
        # whole h_pad = 0 line and the (wp=0, wb=0) <-> w_pad = 0 column.
        ztop = jnp.zeros((GROUP, L), jnp.float32)
        zrow = jnp.zeros((1, L), jnp.float32)
        for b in range(B):
            base = b * PH * GROUP
            res1[base:base + GROUP, :] = ztop
            for h in range(1, O1 + 1):
                r = base + h * GROUP
                res1[r:r + 1, :] = zrow

        # -------- conv2: 4x4, stride 2, padding 1 ------------------------------
        # patch2 rows: one 8-sublane group per (b, oh2); first O2 rows are real.
        for b in range(B):
            for i in range(K2):
                for j in range(K2):
                    col = (i * K2 + j) * L
                    wp, wb0 = j % 2, j // 2
                    for oh in range(O2):
                        src = (b * PH + 2 * oh + i) * GROUP + wp * 8 + wb0
                        dst = (b * O2 + oh) * 8
                        patch2[dst:dst + O2, col:col + L] = res1[src:src + O2, :]
        res2[...] = mm(patch2[...], w2_ref, b2_ref, True)        # (B*O2*8, 128)

        # -------- conv3: 3x3, stride 1 -----------------------------------------
        for b in range(B):
            for i in range(K3):
                for j in range(K3):
                    col = (i * K3 + j) * L
                    for oh in range(O3):
                        src = (b * O2 + oh + i) * 8 + j
                        dst = (b * O3 + oh) * 8
                        patch3[dst:dst + O3, col:col + L] = res2[src:src + O3, :]
        res3[...] = mm(patch3[...], w3_ref, b3_ref, True)        # (B*O3*8, 128)

        # -------- conv4: 3x3, stride 1 -> 1x1 spatial ---------------------------
        for b in range(B):
            for i in range(K4):
                for j in range(K4):
                    col = (i * K4 + j) * L
                    src = (b * O3 + i) * 8 + j
                    patch4[b:b + 1, col:col + L] = res3[src:src + 1, :]
        hid = mm(patch4[...], w4_ref, b4_ref, True)              # (B, 128) == flatten

        # -------- FC head -------------------------------------------------------
        hid = mm(hid, wf1_ref, bf1_ref, True)                    # (B, 512)
        o_ref[...] = mm(hid, wf2_ref, bf2_ref, False).astype(o_ref.dtype)

    vmem = pltpu.MemorySpace.VMEM
    scratch_shapes = [
        pltpu.VMEM((M1, L), jnp.float32),                        # res1 (act1 layout)
        pltpu.VMEM((B * O2 * 8, K2 * K2 * L), jnp.float32),      # patch2
        pltpu.VMEM((B * O2 * 8, L), jnp.float32),                # res2
        pltpu.VMEM((B * O3 * 8, K3 * K3 * L), jnp.float32),      # patch3
        pltpu.VMEM((B * O3 * 8, L), jnp.float32),                # res3
        pltpu.VMEM((B, K4 * K4 * L), jnp.float32),               # patch4
    ]
    call = pl.pallas_call(
        kernel,
        out_shape=jax.ShapeDtypeStruct((B, num_actions), jnp.float32),
        in_specs=[pl.BlockSpec(memory_space=vmem)] * 13,
        out_specs=pl.BlockSpec(memory_space=vmem),
        scratch_shapes=scratch_shapes,
    )

    def run(p1, prep):
        return call(p1, prep["w1"], prep["b1"], prep["w2"], prep["b2"],
                    prep["w3"], prep["b3"], prep["w4"], prep["b4"],
                    prep["wf1"], prep["bf1"], prep["wf2"], prep["bf2"])

    return run


# ------------------------------ conv1 patch prologue --------------------------
def _conv1_patches(x):
    """im2col for conv1 (k=8, s=4), emitted directly in the kernel's res1 row
    layout: rows ordered (b, h_pad, w_parity, w_block in 8 slots), where
    h_pad = oh1 + 1 and padded w = ow1 + 1 = 2*w_block + w_parity (conv2's
    padding=1).  K is ordered (c, kh, kw) to match w1.  Border / unused slots
    are zero rows."""
    B, C, H, W = x.shape
    k, s, _ = _CONV_KSP[0]
    o = _conv_out(H, k, s, 0)
    cols = []
    for i in range(k):
        for j in range(k):
            cols.append(x[:, :, i:i + s * (o - 1) + 1:s, j:j + s * (o - 1) + 1:s])
    p = jnp.stack(cols, axis=0).reshape(k, k, B, C, o, o)
    p = p.transpose(2, 4, 5, 3, 0, 1).reshape(B, o, o, C * k * k)   # (B, oh, ow, K)
    ph = o + 2
    ne = (o + 1) // 2           # even ow1 -> w_parity 1, w_block 0..ne-1
    no = o - ne                 # odd  ow1 -> w_parity 0, w_block 1..no
    buf = jnp.zeros((B, ph, 2, 8, C * k * k), p.dtype)
    buf = buf.at[:, 1:1 + o, 1, 0:ne, :].set(p[:, :, 0::2, :])
    buf = buf.at[:, 1:1 + o, 0, 1:1 + no, :].set(p[:, :, 1::2, :])
    return buf.reshape(B * ph * 2 * 8, C * k * k).astype(jnp.bfloat16)


# ------------------------------- forward wrappers -----------------------------
def _forward_impl(x, prep):
    B, _, H, W = x.shape
    num_actions = prep["wf2"].shape[1]
    p1 = _conv1_patches(x)
    run = _build_fused_forward(B, H, W, num_actions)
    return run(p1, prep)


dqn_forward = jax.jit(_forward_impl)


def prepare_params(params):
    """One-time weight re-layout: bf16 (K, N) matrices and f32 (1, N) biases,
    with conv channels / taps zero-padded to 128 lanes so in-kernel im2col
    copies are full-lane tiles (the zero K rows / N cols are exact no-ops)."""
    (w1, b1), (w2, b2), (w3, b3), (w4, b4) = params["convs"]
    wf1, bf1 = params["fc1"]
    wf2, bf2 = params["fc2"]
    L = _LANE

    def conv1_w(w):             # (Cout, Cin, 8, 8) -> (Cin*64, 128); K = (c, kh, kw)
        m = w.reshape(w.shape[0], -1).T
        m = jnp.pad(m, ((0, 0), (0, L - m.shape[1])))
        return m.astype(jnp.bfloat16)

    def conv_w(w):              # (Cout, Cin, kh, kw) -> (kh*kw*128, 128); K = (tap, c)
        kh, kw = w.shape[2], w.shape[3]
        t = w.transpose(2, 3, 1, 0)                         # (kh, kw, Cin, Cout)
        t = jnp.pad(t, ((0, 0), (0, 0),
                        (0, L - t.shape[2]), (0, L - t.shape[3])))
        return t.reshape(kh * kw * L, L).astype(jnp.bfloat16)

    def bias_pad(b, n):
        return jnp.pad(b, (0, n - b.shape[0])).reshape(1, n).astype(jnp.float32)

    return {
        "w1": conv1_w(w1), "b1": bias_pad(b1, L),
        "w2": conv_w(w2), "b2": bias_pad(b2, L),
        "w3": conv_w(w3), "b3": bias_pad(b3, L),
        "w4": conv_w(w4), "b4": bias_pad(b4, L),
        "wf1": wf1.T.astype(jnp.bfloat16), "bf1": bf1.reshape(1, -1).astype(jnp.float32),
        "wf2": wf2.T.astype(jnp.bfloat16), "bf2": bf2.reshape(1, -1).astype(jnp.float32),
    }


def reference_forward(x, params):
    """Pure-JAX (f32, HIGHEST precision) reference of the same forward pass."""
    y = x
    for (w, b), (_, s, p) in zip(params["convs"], _CONV_KSP):
        y = jax.lax.conv_general_dilated(
            y, w, window_strides=(s, s), padding=[(p, p), (p, p)],
            dimension_numbers=("NCHW", "OIHW", "NCHW"),
            precision=jax.lax.Precision.HIGHEST)
        y = jnp.maximum(y + b.reshape(1, -1, 1, 1), 0.0)
    y = y.reshape(y.shape[0], -1)
    w1, b1 = params["fc1"]
    w2, b2 = params["fc2"]
    y = jnp.maximum(
        jnp.dot(y, w1.T, precision=jax.lax.Precision.HIGHEST) + b1, 0.0)
    return jnp.dot(y, w2.T, precision=jax.lax.Precision.HIGHEST) + b2


# ------------------------------- parameter init -------------------------------
def init_params(key, in_channels, num_actions, conv_flat):
    """PyTorch-default-style uniform(-1/sqrt(fan_in), 1/sqrt(fan_in))."""
    def u(k, shape, fan_in):
        bound = 1.0 / (fan_in ** 0.5)
        return jax.random.uniform(k, shape, jnp.float32, -bound, bound)

    conv_cfgs = [(in_channels, 32, 8), (32, 64, 4), (64, 64, 3), (64, 128, 3)]
    keys = jax.random.split(key, 2 * len(conv_cfgs) + 4)
    convs, i = [], 0
    for cin, cout, k in conv_cfgs:
        fan = cin * k * k
        convs.append((u(keys[i], (cout, cin, k, k), fan), u(keys[i + 1], (cout,), fan)))
        i += 2
    fc1 = (u(keys[i], (_FC_HIDDEN, conv_flat), conv_flat),
           u(keys[i + 1], (_FC_HIDDEN,), conv_flat))
    i += 2
    fc2 = (u(keys[i], (num_actions, _FC_HIDDEN), _FC_HIDDEN),
           u(keys[i + 1], (num_actions,), _FC_HIDDEN))
    return {"convs": convs, "fc1": fc1, "fc2": fc2}


# ----------------------------------- main -------------------------------------
if __name__ == "__main__":
    key = jax.random.PRNGKey(0)
    kx, kp = jax.random.split(key)

    # input_shape=(4, 48, 48), num_actions=6.
    # Conv spatial chain: 48 -> 11 -> 5 -> 3 -> 1, so conv_output_size = 128.
    B, C, H, W = 2, 4, 48, 48
    num_actions = 6
    conv_flat = _CONV_CH[-1] * 1 * 1

    x = jax.random.normal(kx, (B, C, H, W), jnp.float32)
    params = init_params(kp, C, num_actions, conv_flat)
    prep = prepare_params(params)

    q = jax.block_until_ready(dqn_forward(x, prep))
    assert q.shape == (B, num_actions), q.shape

    q_ref = reference_forward(x, params)
    err = float(jnp.max(jnp.abs(q - q_ref)))
    # bf16 MXU inputs with f32 accumulation vs a full-f32 reference: real wiring
    # bugs show up as O(0.1-1) errors, rounding stays well below 5e-2.
    if err > 5e-2:
        raise AssertionError(f"Pallas output mismatch vs JAX reference: max|diff|={err}")

    print("KERNEL_OK")
</pallas_src>

<mosaic_0001>
module attributes {stable_mosaic.version = 11 : i64} {
  func.func @kernel(%arg0: memref<416x256xbf16, #tpu.memory_space<vmem>>, %arg1: memref<256x128xbf16, #tpu.memory_space<vmem>>, %arg2: memref<1x128xf32, #tpu.memory_space<vmem>>, %arg3: memref<2048x128xbf16, #tpu.memory_space<vmem>>, %arg4: memref<1x128xf32, #tpu.memory_space<vmem>>, %arg5: memref<1152x128xbf16, #tpu.memory_space<vmem>>, %arg6: memref<1x128xf32, #tpu.memory_space<vmem>>, %arg7: memref<1152x128xbf16, #tpu.memory_space<vmem>>, %arg8: memref<1x128xf32, #tpu.memory_space<vmem>>, %arg9: memref<128x512xbf16, #tpu.memory_space<vmem>>, %arg10: memref<1x512xf32, #tpu.memory_space<vmem>>, %arg11: memref<512x6xbf16, #tpu.memory_space<vmem>>, %arg12: memref<1x6xf32, #tpu.memory_space<vmem>>, %arg13: memref<2x6xf32, #tpu.memory_space<vmem>>, %arg14: memref<416x128xf32, #tpu.memory_space<vmem>>, %arg15: memref<80x2048xf32, #tpu.memory_space<vmem>>, %arg16: memref<80x128xf32, #tpu.memory_space<vmem>>, %arg17: memref<48x1152xf32, #tpu.memory_space<vmem>>, %arg18: memref<48x128xf32, #tpu.memory_space<vmem>>, %arg19: memref<2x1152xf32, #tpu.memory_space<vmem>>) attributes {dimension_semantics = [], scalar_prefetch = 0 : i64, scratch_operands = 6 : i64, tpu.core_type = #tpu.core_type<tc>} {
    %c0 = arith.constant 0 : index
    %c0_0 = arith.constant 0 : index
    %0 = vector.load %arg0[%c0, %c0_0] : memref<416x256xbf16, #tpu.memory_space<vmem>>, vector<416x256xbf16>
    %c0_1 = arith.constant 0 : index
    %c0_2 = arith.constant 0 : index
    %1 = vector.load %arg1[%c0_1, %c0_2] : memref<256x128xbf16, #tpu.memory_space<vmem>>, vector<256x128xbf16>
    %cst = arith.constant dense<0.000000e+00> : vector<416x128xf32>
    %2 = tpu.matmul %0, %1, %cst {dimension_numbers = #tpu.dot_dimension_numbers<[1], [0], [0], [1], [0, 0, 1, 1], [], []>} : vector<416x256xbf16>, vector<256x128xbf16>, vector<416x128xf32> -> vector<416x128xf32>
    %c0_3 = arith.constant 0 : index
    %c0_4 = arith.constant 0 : index
    %3 = vector.load %arg2[%c0_3, %c0_4] : memref<1x128xf32, #tpu.memory_space<vmem>>, vector<1x128xf32>
    %4 = vector.broadcast %3 : vector<1x128xf32> to vector<416x128xf32>
    %5 = arith.addf %2, %4 : vector<416x128xf32>
    %cst_5 = arith.constant 0.000000e+00 : f32
    %6 = vector.broadcast %cst_5 : f32 to vector<416x128xf32>
    %7 = arith.maximumf %5, %6 : vector<416x128xf32>
    %c0_6 = arith.constant 0 : index
    %c0_7 = arith.constant 0 : index
    %8 = vector.load %arg14[%c0_6, %c0_7] : memref<416x128xf32, #tpu.memory_space<vmem>>, vector<416x128xf32>
    tpu.vector_store %arg14[%c0_6, %c0_7], %7 {strides = array<i32>} : memref<416x128xf32, #tpu.memory_space<vmem>>, vector<416x128xf32>,
    %cst_8 = arith.constant 0.000000e+00 : f32
    %9 = vector.broadcast %cst_8 : f32 to vector<16x128xf32>
    %cst_9 = arith.constant 0.000000e+00 : f32
    %10 = vector.broadcast %cst_9 : f32 to vector<1x128xf32>
    %c0_10 = arith.constant 0 : index
    %c0_11 = arith.constant 0 : index
    %11 = vector.load %arg14[%c0_10, %c0_11] : memref<416x128xf32, #tpu.memory_space<vmem>>, vector<16x128xf32>
    tpu.vector_store %arg14[%c0_10, %c0_11], %9 {strides = array<i32>} : memref<416x128xf32, #tpu.memory_space<vmem>>, vector<16x128xf32>,
    %c16 = arith.constant 16 : index
    %c0_12 = arith.constant 0 : index
    %12 = vector.load %arg14[%c16, %c0_12] : memref<416x128xf32, #tpu.memory_space<vmem>>, vector<1x128xf32>
    tpu.vector_store %arg14[%c16, %c0_12], %10 {strides = array<i32>} : memref<416x128xf32, #tpu.memory_space<vmem>>, vector<1x128xf32>,
    %c32 = arith.constant 32 : index
    %c0_13 = arith.constant 0 : index
    %13 = vector.load %arg14[%c32, %c0_13] : memref<416x128xf32, #tpu.memory_space<vmem>>, vector<1x128xf32>
    tpu.vector_store %arg14[%c32, %c0_13], %10 {strides = array<i32>} : memref<416x128xf32, #tpu.memory_space<vmem>>, vector<1x128xf32>,
    %c48 = arith.constant 48 : index
    %c0_14 = arith.constant 0 : index
    %14 = vector.load %arg14[%c48, %c0_14] : memref<416x128xf32, #tpu.memory_space<vmem>>, vector<1x128xf32>
    tpu.vector_store %arg14[%c48, %c0_14], %10 {strides = array<i32>} : memref<416x128xf32, #tpu.memory_space<vmem>>, vector<1x128xf32>,
    %c64 = arith.constant 64 : index
    %c0_15 = arith.constant 0 : index
    %15 = vector.load %arg14[%c64, %c0_15] : memref<416x128xf32, #tpu.memory_space<vmem>>, vector<1x128xf32>
    tpu.vector_store %arg14[%c64, %c0_15], %10 {strides = array<i32>} : memref<416x128xf32, #tpu.memory_space<vmem>>, vector<1x128xf32>,
    %c80 = arith.constant 80 : index
    %c0_16 = arith.constant 0 : index
    %16 = vector.load %arg14[%c80, %c0_16] : memref<416x128xf32, #tpu.memory_space<vmem>>, vector<1x128xf32>
    tpu.vector_store %arg14[%c80, %c0_16], %10 {strides = array<i32>} : memref<416x128xf32, #tpu.memory_space<vmem>>, vector<1x128xf32>,
    %c96 = arith.constant 96 : index
    %c0_17 = arith.constant 0 : index
    %17 = vector.load %arg14[%c96, %c0_17] : memref<416x128xf32, #tpu.memory_space<vmem>>, vector<1x128xf32>
    tpu.vector_store %arg14[%c96, %c0_17], %10 {strides = array<i32>} : memref<416x128xf32, #tpu.memory_space<vmem>>, vector<1x128xf32>,
    %c112 = arith.constant 112 : index
    %c0_18 = arith.constant 0 : index
    %18 = vector.load %arg14[%c112, %c0_18] : memref<416x128xf32, #tpu.memory_space<vmem>>, vector<1x128xf32>
    tpu.vector_store %arg14[%c112, %c0_18], %10 {strides = array<i32>} : memref<416x128xf32, #tpu.memory_space<vmem>>, vector<1x128xf32>,
    %c128 = arith.constant 128 : index
    %c0_19 = arith.constant 0 : index
    %19 = vector.load %arg14[%c128, %c0_19] : memref<416x128xf32, #tpu.memory_space<vmem>>, vector<1x128xf32>
    tpu.vector_store %arg14[%c128, %c0_19], %10 {strides = array<i32>} : memref<416x128xf32, #tpu.memory_space<vmem>>, vector<1x128xf32>,
    %c144 = arith.constant 144 : index
    %c0_20 = arith.constant 0 : index
    %20 = vector.load %arg14[%c144, %c0_20] : memref<416x128xf32, #tpu.memory_space<vmem>>, vector<1x128xf32>
    tpu.vector_store %arg14[%c144, %c0_20], %10 {strides = array<i32>} : memref<416x128xf32, #tpu.memory_space<vmem>>, vector<1x128xf32>,
    %c160 = arith.constant 160 : index
    %c0_21 = arith.constant 0 : index
    %21 = vector.load %arg14[%c160, %c0_21] : memref<416x128xf32, #tpu.memory_space<vmem>>, vector<1x128xf32>
    tpu.vector_store %arg14[%c160, %c0_21], %10 {strides = array<i32>} : memref<416x128xf32, #tpu.memory_space<vmem>>, vector<1x128xf32>,
    %c176 = arith.constant 176 : index
    %c0_22 = arith.constant 0 : index
    %22 = vector.load %arg14[%c176, %c0_22] : memref<416x128xf32, #tpu.memory_space<vmem>>, vector<1x128xf32>
    tpu.vector_store %arg14[%c176, %c0_22], %10 {strides = array<i32>} : memref<416x128xf32, #tpu.memory_space<vmem>>, vector<1x128xf32>,
    %c208 = arith.constant 208 : index
    %c0_23 = arith.constant 0 : index
    %23 = vector.load %arg14[%c208, %c0_23] : memref<416x128xf32, #tpu.memory_space<vmem>>, vector<16x128xf32>
    tpu.vector_store %arg14[%c208, %c0_23], %9 {strides = array<i32>} : memref<416x128xf32, #tpu.memory_space<vmem>>, vector<16x128xf32>,
    %c224 = arith.constant 224 : index
    %c0_24 = arith.constant 0 : index
    %24 = vector.load %arg14[%c224, %c0_24] : memref<416x128xf32, #tpu.memory_space<vmem>>, vector<1x128xf32>
    tpu.vector_store %arg14[%c224, %c0_24], %10 {strides = array<i32>} : memref<416x128xf32, #tpu.memory_space<vmem>>, vector<1x128xf32>,
    %c240 = arith.constant 240 : index
    %c0_25 = arith.constant 0 : index
    %25 = vector.load %arg14[%c240, %c0_25] : memref<416x128xf32, #tpu.memory_space<vmem>>, vector<1x128xf32>
    tpu.vector_store %arg14[%c240, %c0_25], %10 {strides = array<i32>} : memref<416x128xf32, #tpu.memory_space<vmem>>, vector<1x128xf32>,
    %c256 = arith.constant 256 : index
    %c0_26 = arith.constant 0 : index
    %26 = vector.load %arg14[%c256, %c0_26] : memref<416x128xf32, #tpu.memory_space<vmem>>, vector<1x128xf32>
    tpu.vector_store %arg14[%c256, %c0_26], %10 {strides = array<i32>} : memref<416x128xf32, #tpu.memory_space<vmem>>, vector<1x128xf32>,
    %c272 = arith.constant 272 : index
    %c0_27 = arith.constant 0 : index
    %27 = vector.load %arg14[%c272, %c0_27] : memref<416x128xf32, #tpu.memory_space<vmem>>, vector<1x128xf32>
    tpu.vector_store %arg14[%c272, %c0_27], %10 {strides = array<i32>} : memref<416x128xf32, #tpu.memory_space<vmem>>, vector<1x128xf32>,
    %c288 = arith.constant 288 : index
    %c0_28 = arith.constant 0 : index
    %28 = vector.load %arg14[%c288, %c0_28] : memref<416x128xf32, #tpu.memory_space<vmem>>, vector<1x128xf32>
    tpu.vector_store %arg14[%c288, %c0_28], %10 {strides = array<i32>} : memref<416x128xf32, #tpu.memory_space<vmem>>, vector<1x128xf32>,
    %c304 = arith.constant 304 : index
    %c0_29 = arith.constant 0 : index
    %29 = vector.load %arg14[%c304, %c0_29] : memref<416x128xf32, #tpu.memory_space<vmem>>, vector<1x128xf32>
    tpu.vector_store %arg14[%c304, %c0_29], %10 {strides = array<i32>} : memref<416x128xf32, #tpu.memory_space<vmem>>, vector<1x128xf32>,
    %c320 = arith.constant 320 : index
    %c0_30 = arith.constant 0 : index
    %30 = vector.load %arg14[%c320, %c0_30] : memref<416x128xf32, #tpu.memory_space<vmem>>, vector<1x128xf32>
    tpu.vector_store %arg14[%c320, %c0_30], %10 {strides = array<i32>} : memref<416x128xf32, #tpu.memory_space<vmem>>, vector<1x128xf32>,
    %c336 = arith.constant 336 : index
    %c0_31 = arith.constant 0 : index
    %31 = vector.load %arg14[%c336, %c0_31] : memref<416x128xf32, #tpu.memory_space<vmem>>, vector<1x128xf32>
    tpu.vector_store %arg14[%c336, %c0_31], %10 {strides = array<i32>} : memref<416x128xf32, #tpu.memory_space<vmem>>, vector<1x128xf32>,
    %c352 = arith.constant 352 : index
    %c0_32 = arith.constant 0 : index
    %32 = vector.load %arg14[%c352, %c0_32] : memref<416x128xf32, #tpu.memory_space<vmem>>, vector<1x128xf32>
    tpu.vector_store %arg14[%c352, %c0_32], %10 {strides = array<i32>} : memref<416x128xf32, #tpu.memory_space<vmem>>, vector<1x128xf32>,
    %c368 = arith.constant 368 : index
    %c0_33 = arith.constant 0 : index
    %33 = vector.load %arg14[%c368, %c0_33] : memref<416x128xf32, #tpu.memory_space<vmem>>, vector<1x128xf32>
    tpu.vector_store %arg14[%c368, %c0_33], %10 {strides = array<i32>} : memref<416x128xf32, #tpu.memory_space<vmem>>, vector<1x128xf32>,
    %c384 = arith.constant 384 : index
    %c0_34 = arith.constant 0 : index
    %34 = vector.load %arg14[%c384, %c0_34] : memref<416x128xf32, #tpu.memory_space<vmem>>, vector<1x128xf32>
    tpu.vector_store %arg14[%c384, %c0_34], %10 {strides = array<i32>} : memref<416x128xf32, #tpu.memory_space<vmem>>, vector<1x128xf32>,
    %c0_35 = arith.constant 0 : index
    %c0_36 = arith.constant 0 : index
    %35 = vector.load %arg14[%c0_35, %c0_36] : memref<416x128xf32, #tpu.memory_space<vmem>>, vector<5x128xf32>
    %c0_37 = arith.constant 0 : index
    %c0_38 = arith.constant 0 : index
    %36 = vector.load %arg15[%c0_37, %c0_38] : memref<80x2048xf32, #tpu.memory_space<vmem>>, vector<5x128xf32>
    tpu.vector_store %arg15[%c0_37, %c0_38], %35 {strides = array<i32>} : memref<80x2048xf32, #tpu.memory_space<vmem>>, vector<5x128xf32>,
    %c32_39 = arith.constant 32 : index
    %c0_40 = arith.constant 0 : index
    %37 = vector.load %arg14[%c32_39, %c0_40] : memref<416x128xf32, #tpu.memory_space<vmem>>, vector<5x128xf32>
    %c8 = arith.constant 8 : index
    %c0_41 = arith.constant 0 : index
    %38 = vector.load %arg15[%c8, %c0_41] : memref<80x2048xf32, #tpu.memory_space<vmem>>, vector<5x128xf32>
    tpu.vector_store %arg15[%c8, %c0_41], %37 {strides = array<i32>} : memref<80x2048xf32, #tpu.memory_space<vmem>>, vector<5x128xf32>,
    %c64_42 = arith.constant 64 : index
    %c0_43 = arith.constant 0 : index
    %39 = vector.load %arg14[%c64_42, %c0_43] : memref<416x128xf32, #tpu.memory_space<vmem>>, vector<5x128xf32>
    %c16_44 = arith.constant 16 : index
    %c0_45 = arith.constant 0 : index
    %40 = vector.load %arg15[%c16_44, %c0_45] : memref<80x2048xf32, #tpu.memory_space<vmem>>, vector<5x128xf32>
    tpu.vector_store %arg15[%c16_44, %c0_45], %39 {strides = array<i32>} : memref<80x2048xf32, #tpu.memory_space<vmem>>, vector<5x128xf32>,
    %c96_46 = arith.constant 96 : index
    %c0_47 = arith.constant 0 : index
    %41 = vector.load %arg14[%c96_46, %c0_47] : memref<416x128xf32, #tpu.memory_space<vmem>>, vector<5x128xf32>
    %c24 = arith.constant 24 : index
    %c0_48 = arith.constant 0 : index
    %42 = vector.load %arg15[%c24, %c0_48] : memref<80x2048xf32, #tpu.memory_space<vmem>>, vector<5x128xf32>
    tpu.vector_store %arg15[%c24, %c0_48], %41 {strides = array<i32>} : memref<80x2048xf32, #tpu.memory_space<vmem>>, vector<5x128xf32>,
    %c128_49 = arith.constant 128 : index
    %c0_50 = arith.constant 0 : index
    %43 = vector.load %arg14[%c128_49, %c0_50] : memref<416x128xf32, #tpu.memory_space<vmem>>, vector<5x128xf32>
    %c32_51 = arith.constant 32 : index
    %c0_52 = arith.constant 0 : index
    %44 = vector.load %arg15[%c32_51, %c0_52] : memref<80x2048xf32, #tpu.memory_space<vmem>>, vector<5x128xf32>
    tpu.vector_store %arg15[%c32_51, %c0_52], %43 {strides = array<i32>} : memref<80x2048xf32, #tpu.memory_space<vmem>>, vector<5x128xf32>,
    %c8_53 = arith.constant 8 : index
    %c0_54 = arith.constant 0 : index
    %45 = vector.load %arg14[%c8_53, %c0_54] : memref<416x128xf32, #tpu.memory_space<vmem>>, vector<5x128xf32>
    %c0_55 = arith.constant 0 : index
    %c128_56 = arith.constant 128 : index
    %46 = vector.load %arg15[%c0_55, %c128_56] : memref<80x2048xf32, #tpu.memory_space<vmem>>, vector<5x128xf32>
    tpu.vector_store %arg15[%c0_55, %c128_56], %45 {strides = array<i32>} : memref<80x2048xf32, #tpu.memory_space<vmem>>, vector<5x128xf32>,
    %c40 = arith.constant 40 : index
    %c0_57 = arith.constant 0 : index
    %47 = vector.load %arg14[%c40, %c0_57] : memref<416x128xf32, #tpu.memory_space<vmem>>, vector<5x128xf32>
    %c8_58 = arith.constant 8 : index
    %c128_59 = arith.constant 128 : index
    %48 = vector.load %arg15[%c8_58, %c128_59] : memref<80x2048xf32, #tpu.memory_space<vmem>>, vector<5x128xf32>
    tpu.vector_store %arg15[%c8_58, %c128_59], %47 {strides = array<i32>} : memref<80x2048xf32, #tpu.memory_space<vmem>>, vector<5x128xf32>,
    %c72 = arith.constant 72 : index
    %c0_60 = arith.constant 0 : index
    %49 = vector.load %arg14[%c72, %c0_60] : memref<416x128xf32, #tpu.memory_space<vmem>>, vector<5x128xf32>
    %c16_61 = arith.constant 16 : index
    %c128_62 = arith.constant 128 : index
    %50 = vector.load %arg15[%c16_61, %c128_62] : memref<80x2048xf32, #tpu.memory_space<vmem>>, vector<5x128xf32>
    tpu.vector_store %arg15[%c16_61, %c128_62], %49 {strides = array<i32>} : memref<80x2048xf32, #tpu.memory_space<vmem>>, vector<5x128xf32>,
    %c104 = arith.constant 104 : index
    %c0_63 = arith.constant 0 : index
    %51 = vector.load %arg14[%c104, %c0_63] : memref<416x128xf32, #tpu.memory_space<vmem>>, vector<5x128xf32>
    %c24_64 = arith.constant 24 : index
    %c128_65 = arith.constant 128 : index
    %52 = vector.load %arg15[%c24_64, %c128_65] : memref<80x2048xf32, #tpu.memory_space<vmem>>, vector<5x128xf32>
    tpu.vector_store %arg15[%c24_64, %c128_65], %51 {strides = array<i32>} : memref<80x2048xf32, #tpu.memory_space<vmem>>, vector<5x128xf32>,
    %c136 = arith.constant 136 : index
    %c0_66 = arith.constant 0 : index
    %53 = vector.load %arg14[%c136, %c0_66] : memref<416x128xf32, #tpu.memory_space<vmem>>, vector<5x128xf32>
    %c32_67 = arith.constant 32 : index
    %c128_68 = arith.constant 128 : index
    %54 = vector.load %arg15[%c32_67, %c128_68] : memref<80x2048xf32, #tpu.memory_space<vmem>>, vector<5x128xf32>
    tpu.vector_store %arg15[%c32_67, %c128_68], %53 {strides = array<i32>} : memref<80x2048xf32, #tpu.memory_space<vmem>>, vector<5x128xf32>,
    %c1 = arith.constant 1 : index
    %c0_69 = arith.constant 0 : index
    %55 = vector.load %arg14[%c1, %c0_69] : memref<416x128xf32, #tpu.memory_space<vmem>>, vector<5x128xf32>
    %c0_70 = arith.constant 0 : index
    %c256_71 = arith.constant 256 : index
    %56 = vector.load %arg15[%c0_70, %c256_71] : memref<80x2048xf32, #tpu.memory_space<vmem>>, vector<5x128xf32>
    tpu.vector_store %arg15[%c0_70, %c256_71], %55 {strides = array<i32>} : memref<80x2048xf32, #tpu.memory_space<vmem>>, vector<5x128xf32>,
    %c33 = arith.constant 33 : index
    %c0_72 = arith.constant 0 : index
    %57 = vector.load %arg14[%c33, %c0_72] : memref<416x128xf32, #tpu.memory_space<vmem>>, vector<5x128xf32>
    %c8_73 = arith.constant 8 : index
    %c256_74 = arith.constant 256 : index
    %58 = vector.load %arg15[%c8_73, %c256_74] : memref<80x2048xf32, #tpu.memory_space<vmem>>, vector<5x128xf32>
    tpu.vector_store %arg15[%c8_73, %c256_74], %57 {strides = array<i32>} : memref<80x2048xf32, #tpu.memory_space<vmem>>, vector<5x128xf32>,
    %c65 = arith.constant 65 : index
    %c0_75 = arith.constant 0 : index
    %59 = vector.load %arg14[%c65, %c0_75] : memref<416x128xf32, #tpu.memory_space<vmem>>, vector<5x128xf32>
    %c16_76 = arith.constant 16 : index
    %c256_77 = arith.constant 256 : index
    %60 = vector.load %arg15[%c16_76, %c256_77] : memref<80x2048xf32, #tpu.memory_space<vmem>>, vector<5x128xf32>
    tpu.vector_store %arg15[%c16_76, %c256_77], %59 {strides = array<i32>} : memref<80x2048xf32, #tpu.memory_space<vmem>>, vector<5x128xf32>,
    %c97 = arith.constant 97 : index
    %c0_78 = arith.constant 0 : index
    %61 = vector.load %arg14[%c97, %c0_78] : memref<416x128xf32, #tpu.memory_space<vmem>>, vector<5x128xf32>
    %c24_79 = arith.constant 24 : index
    %c256_80 = arith.constant 256 : index
    %62 = vector.load %arg15[%c24_79, %c256_80] : memref<80x2048xf32, #tpu.memory_space<vmem>>, vector<5x128xf32>
    tpu.vector_store %arg15[%c24_79, %c256_80], %61 {strides = array<i32>} : memref<80x2048xf32, #tpu.memory_space<vmem>>, vector<5x128xf32>,
    %c129 = arith.constant 129 : index
    %c0_81 = arith.constant 0 : index
    %63 = vector.load %arg14[%c129, %c0_81] : memref<416x128xf32, #tpu.memory_space<vmem>>, vector<5x128xf32>
    %c32_82 = arith.constant 32 : index
    %c256_83 = arith.constant 256 : index
    %64 = vector.load %arg15[%c32_82, %c256_83] : memref<80x2048xf32, #tpu.memory_space<vmem>>, vector<5x128xf32>
    tpu.vector_store %arg15[%c32_82, %c256_83], %63 {strides = array<i32>} : memref<80x2048xf32, #tpu.memory_space<vmem>>, vector<5x128xf32>,
    %c9 = arith.constant 9 : index
    %c0_84 = arith.constant 0 : index
    %65 = vector.load %arg14[%c9, %c0_84] : memref<416x128xf32, #tpu.memory_space<vmem>>, vector<5x128xf32>
    %c0_85 = arith.constant 0 : index
    %c384_86 = arith.constant 384 : index
    %66 = vector.load %arg15[%c0_85, %c384_86] : memref<80x2048xf32, #tpu.memory_space<vmem>>, vector<5x128xf32>
    tpu.vector_store %arg15[%c0_85, %c384_86], %65 {strides = array<i32>} : memref<80x2048xf32, #tpu.memory_space<vmem>>, vector<5x128xf32>,
    %c41 = arith.constant 41 : index
    %c0_87 = arith.constant 0 : index
    %67 = vector.load %arg14[%c41, %c0_87] : memref<416x128xf32, #tpu.memory_space<vmem>>, vector<5x128xf32>
    %c8_88 = arith.constant 8 : index
    %c384_89 = arith.constant 384 : index
    %68 = vector.load %arg15[%c8_88, %c384_89] : memref<80x2048xf32, #tpu.memory_space<vmem>>, vector<5x128xf32>
    tpu.vector_store %arg15[%c8_88, %c384_89], %67 {strides = array<i32>} : memref<80x2048xf32, #tpu.memory_space<vmem>>, vector<5x128xf32>,
    %c73 = arith.constant 73 : index
    %c0_90 = arith.constant 0 : index
    %69 = vector.load %arg14[%c73, %c0_90] : memref<416x128xf32, #tpu.memory_space<vmem>>, vector<5x128xf32>
    %c16_91 = arith.constant 16 : index
    %c384_92 = arith.constant 384 : index
    %70 = vector.load %arg15[%c16_91, %c384_92] : memref<80x2048xf32, #tpu.memory_space<vmem>>, vector<5x128xf32>
    tpu.vector_store %arg15[%c16_91, %c384_92], %69 {strides = array<i32>} : memref<80x2048xf32, #tpu.memory_space<vmem>>, vector<5x128xf32>,
    %c105 = arith.constant 105 : index
    %c0_93 = arith.constant 0 : index
    %71 = vector.load %arg14[%c105, %c0_93] : memref<416x128xf32, #tpu.memory_space<vmem>>, vector<5x128xf32>
    %c24_94 = arith.constant 24 : index
    %c384_95 = arith.constant 384 : index
    %72 = vector.load %arg15[%c24_94, %c384_95] : memref<80x2048xf32, #tpu.memory_space<vmem>>, vector<5x128xf32>
    tpu.vector_store %arg15[%c24_94, %c384_95], %71 {strides = array<i32>} : memref<80x2048xf32, #tpu.memory_space<vmem>>, vector<5x128xf32>,
    %c137 = arith.constant 137 : index
    %c0_96 = arith.constant 0 : index
    %73 = vector.load %arg14[%c137, %c0_96] : memref<416x128xf32, #tpu.memory_space<vmem>>, vector<5x128xf32>
    %c32_97 = arith.constant 32 : index
    %c384_98 = arith.constant 384 : index
    %74 = vector.load %arg15[%c32_97, %c384_98] : memref<80x2048xf32, #tpu.memory_space<vmem>>, vector<5x128xf32>
    tpu.vector_store %arg15[%c32_97, %c384_98], %73 {strides = array<i32>} : memref<80x2048xf32, #tpu.memory_space<vmem>>, vector<5x128xf32>,
    %c16_99 = arith.constant 16 : index
    %c0_100 = arith.constant 0 : index
    %75 = vector.load %arg14[%c16_99, %c0_100] : memref<416x128xf32, #tpu.memory_space<vmem>>, vector<5x128xf32>
    %c0_101 = arith.constant 0 : index
    %c512 = arith.constant 512 : index
    %76 = vector.load %arg15[%c0_101, %c512] : memref<80x2048xf32, #tpu.memory_space<vmem>>, vector<5x128xf32>
    tpu.vector_store %arg15[%c0_101, %c512], %75 {strides = array<i32>} : memref<80x2048xf32, #tpu.memory_space<vmem>>, vector<5x128xf32>,
    %c48_102 = arith.constant 48 : index
    %c0_103 = arith.constant 0 : index
    %77 = vector.load %arg14[%c48_102, %c0_103] : memref<416x128xf32, #tpu.memory_space<vmem>>, vector<5x128xf32>
    %c8_104 = arith.constant 8 : index
    %c512_105 = arith.constant 512 : index
    %78 = vector.load %arg15[%c8_104, %c512_105] : memref<80x2048xf32, #tpu.memory_space<vmem>>, vector<5x128xf32>
    tpu.vector_store %arg15[%c8_104, %c512_105], %77 {strides = array<i32>} : memref<80x2048xf32, #tpu.memory_space<vmem>>, vector<5x128xf32>,
    %c80_106 = arith.constant 80 : index
    %c0_107 = arith.constant 0 : index
    %79 = vector.load %arg14[%c80_106, %c0_107] : memref<416x128xf32, #tpu.memory_space<vmem>>, vector<5x128xf32>
    %c16_108 = arith.constant 16 : index
    %c512_109 = arith.constant 512 : index
    %80 = vector.load %arg15[%c16_108, %c512_109] : memref<80x2048xf32, #tpu.memory_space<vmem>>, vector<5x128xf32>
    tpu.vector_store %arg15[%c16_108, %c512_109], %79 {strides = array<i32>} : memref<80x2048xf32, #tpu.memory_space<vmem>>, vector<5x128xf32>,
    %c112_110 = arith.constant 112 : index
    %c0_111 = arith.constant 0 : index
    %81 = vector.load %arg14[%c112_110, %c0_111] : memref<416x128xf32, #tpu.memory_space<vmem>>, vector<5x128xf32>
    %c24_112 = arith.constant 24 : index
    %c512_113 = arith.constant 512 : index
    %82 = vector.load %arg15[%c24_112, %c512_113] : memref<80x2048xf32, #tpu.memory_space<vmem>>, vector<5x128xf32>
    tpu.vector_store %arg15[%c24_112, %c512_113], %81 {strides = array<i32>} : memref<80x2048xf32, #tpu.memory_space<vmem>>, vector<5x128xf32>,
    %c144_114 = arith.constant 144 : index
    %c0_115 = arith.constant 0 : index
    %83 = vector.load %arg14[%c144_114, %c0_115] : memref<416x128xf32, #tpu.memory_space<vmem>>, vector<5x128xf32>
    %c32_116 = arith.constant 32 : index
    %c512_117 = arith.constant 512 : index
    %84 = vector.load %arg15[%c32_116, %c512_117] : memref<80x2048xf32, #tpu.memory_space<vmem>>, vector<5x128xf32>
    tpu.vector_store %arg15[%c32_116, %c512_117], %83 {strides = array<i32>} : memref<80x2048xf32, #tpu.memory_space<vmem>>, vector<5x128xf32>,
    %c24_118 = arith.constant 24 : index
    %c0_119 = arith.constant 0 : index
    %85 = vector.load %arg14[%c24_118, %c0_119] : memref<416x128xf32, #tpu.memory_space<vmem>>, vector<5x128xf32>
    %c0_120 = arith.constant 0 : index
    %c640 = arith.constant 640 : index
    %86 = vector.load %arg15[%c0_120, %c640] : memref<80x2048xf32, #tpu.memory_space<vmem>>, vector<5x128xf32>
    tpu.vector_store %arg15[%c0_120, %c640], %85 {strides = array<i32>} : memref<80x2048xf32, #tpu.memory_space<vmem>>, vector<5x128xf32>,
    %c56 = arith.constant 56 : index
    %c0_121 = arith.constant 0 : index
    %87 = vector.load %arg14[%c56, %c0_121] : memref<416x128xf32, #tpu.memory_space<vmem>>, vector<5x128xf32>
    %c8_122 = arith.constant 8 : index
    %c640_123 = arith.constant 640 : index
    %88 = vector.load %arg15[%c8_122, %c640_123] : memref<80x2048xf32, #tpu.memory_space<vmem>>, vector<5x128xf32>
    tpu.vector_store %arg15[%c8_122, %c640_123], %87 {strides = array<i32>} : memref<80x2048xf32, #tpu.memory_space<vmem>>, vector<5x128xf32>,
    %c88 = arith.constant 88 : index
    %c0_124 = arith.constant 0 : index
    %89 = vector.load %arg14[%c88, %c0_124] : memref<416x128xf32, #tpu.memory_space<vmem>>, vector<5x128xf32>
    %c16_125 = arith.constant 16 : index
    %c640_126 = arith.constant 640 : index
    %90 = vector.load %arg15[%c16_125, %c640_126] : memref<80x2048xf32, #tpu.memory_space<vmem>>, vector<5x128xf32>
    tpu.vector_store %arg15[%c16_125, %c640_126], %89 {strides = array<i32>} : memref<80x2048xf32, #tpu.memory_space<vmem>>, vector<5x128xf32>,
    %c120 = arith.constant 120 : index
    %c0_127 = arith.constant 0 : index
    %91 = vector.load %arg14[%c120, %c0_127] : memref<416x128xf32, #tpu.memory_space<vmem>>, vector<5x128xf32>
    %c24_128 = arith.constant 24 : index
    %c640_129 = arith.constant 640 : index
    %92 = vector.load %arg15[%c24_128, %c640_129] : memref<80x2048xf32, #tpu.memory_space<vmem>>, vector<5x128xf32>
    tpu.vector_store %arg15[%c24_128, %c640_129], %91 {strides = array<i32>} : memref<80x2048xf32, #tpu.memory_space<vmem>>, vector<5x128xf32>,
    %c152 = arith.constant 152 : index
    %c0_130 = arith.constant 0 : index
    %93 = vector.load %arg14[%c152, %c0_130] : memref<416x128xf32, #tpu.memory_space<vmem>>, vector<5x128xf32>
    %c32_131 = arith.constant 32 : index
    %c640_132 = arith.constant 640 : index
    %94 = vector.load %arg15[%c32_131, %c640_132] : memref<80x2048xf32, #tpu.memory_space<vmem>>, vector<5x128xf32>
    tpu.vector_store %arg15[%c32_131, %c640_132], %93 {strides = array<i32>} : memref<80x2048xf32, #tpu.memory_space<vmem>>, vector<5x128xf32>,
    %c17 = arith.constant 17 : index
    %c0_133 = arith.constant 0 : index
    %95 = vector.load %arg14[%c17, %c0_133] : memref<416x128xf32, #tpu.memory_space<vmem>>, vector<5x128xf32>
    %c0_134 = arith.constant 0 : index
    %c768 = arith.constant 768 : index
    %96 = vector.load %arg15[%c0_134, %c768] : memref<80x2048xf32, #tpu.memory_space<vmem>>, vector<5x128xf32>
    tpu.vector_store %arg15[%c0_134, %c768], %95 {strides = array<i32>} : memref<80x2048xf32, #tpu.memory_space<vmem>>, vector<5x128xf32>,
    %c49 = arith.constant 49 : index
    %c0_135 = arith.constant 0 : index
    %97 = vector.load %arg14[%c49, %c0_135] : memref<416x128xf32, #tpu.memory_space<vmem>>, vector<5x128xf32>
    %c8_136 = arith.constant 8 : index
    %c768_137 = arith.constant 768 : index
    %98 = vector.load %arg15[%c8_136, %c768_137] : memref<80x2048xf32, #tpu.memory_space<vmem>>, vector<5x128xf32>
    tpu.vector_store %arg15[%c8_136, %c768_137], %97 {strides = array<i32>} : memref<80x2048xf32, #tpu.memory_space<vmem>>, vector<5x128xf32>,
    %c81 = arith.constant 81 : index
    %c0_138 = arith.constant 0 : index
    %99 = vector.load %arg14[%c81, %c0_138] : memref<416x128xf32, #tpu.memory_space<vmem>>, vector<5x128xf32>
    %c16_139 = arith.constant 16 : index
    %c768_140 = arith.constant 768 : index
    %100 = vector.load %arg15[%c16_139, %c768_140] : memref<80x2048xf32, #tpu.memory_space<vmem>>, vector<5x128xf32>
    tpu.vector_store %arg15[%c16_139, %c768_140], %99 {strides = array<i32>} : memref<80x2048xf32, #tpu.memory_space<vmem>>, vector<5x128xf32>,
    %c113 = arith.constant 113 : index
    %c0_141 = arith.constant 0 : index
    %101 = vector.load %arg14[%c113, %c0_141] : memref<416x128xf32, #tpu.memory_space<vmem>>, vector<5x128xf32>
    %c24_142 = arith.constant 24 : index
    %c768_143 = arith.constant 768 : index
    %102 = vector.load %arg15[%c24_142, %c768_143] : memref<80x2048xf32, #tpu.memory_space<vmem>>, vector<5x128xf32>
    tpu.vector_store %arg15[%c24_142, %c768_143], %101 {strides = array<i32>} : memref<80x2048xf32, #tpu.memory_space<vmem>>, vector<5x128xf32>,
    %c145 = arith.constant 145 : index
    %c0_144 = arith.constant 0 : index
    %103 = vector.load %arg14[%c145, %c0_144] : memref<416x128xf32, #tpu.memory_space<vmem>>, vector<5x128xf32>
    %c32_145 = arith.constant 32 : index
    %c768_146 = arith.constant 768 : index
    %104 = vector.load %arg15[%c32_145, %c768_146] : memref<80x2048xf32, #tpu.memory_space<vmem>>, vector<5x128xf32>
    tpu.vector_store %arg15[%c32_145, %c768_146], %103 {strides = array<i32>} : memref<80x2048xf32, #tpu.memory_space<vmem>>, vector<5x128xf32>,
    %c25 = arith.constant 25 : index
    %c0_147 = arith.constant 0 : index
    %105 = vector.load %arg14[%c25, %c0_147] : memref<416x128xf32, #tpu.memory_space<vmem>>, vector<5x128xf32>
    %c0_148 = arith.constant 0 : index
    %c896 = arith.constant 896 : index
    %106 = vector.load %arg15[%c0_148, %c896] : memref<80x2048xf32, #tpu.memory_space<vmem>>, vector<5x128xf32>
    tpu.vector_store %arg15[%c0_148, %c896], %105 {strides = array<i32>} : memref<80x2048xf32, #tpu.memory_space<vmem>>, vector<5x128xf32>,
    %c57 = arith.constant 57 : index
    %c0_149 = arith.constant 0 : index
    %107 = vector.load %arg14[%c57, %c0_149] : memref<416x128xf32, #tpu.memory_space<vmem>>, vector<5x128xf32>
    %c8_150 = arith.constant 8 : index
    %c896_151 = arith.constant 896 : index
    %108 = vector.load %arg15[%c8_150, %c896_151] : memref<80x2048xf32, #tpu.memory_space<vmem>>, vector<5x128xf32>
    tpu.vector_store %arg15[%c8_150, %c896_151], %107 {strides = array<i32>} : memref<80x2048xf32, #tpu.memory_space<vmem>>, vector<5x128xf32>,
    %c89 = arith.constant 89 : index
    %c0_152 = arith.constant 0 : index
    %109 = vector.load %arg14[%c89, %c0_152] : memref<416x128xf32, #tpu.memory_space<vmem>>, vector<5x128xf32>
    %c16_153 = arith.constant 16 : index
    %c896_154 = arith.constant 896 : index
    %110 = vector.load %arg15[%c16_153, %c896_154] : memref<80x2048xf32, #tpu.memory_space<vmem>>, vector<5x128xf32>
    tpu.vector_store %arg15[%c16_153, %c896_154], %109 {strides = array<i32>} : memref<80x2048xf32, #tpu.memory_space<vmem>>, vector<5x128xf32>,
    %c121 = arith.constant 121 : index
    %c0_155 = arith.constant 0 : index
    %111 = vector.load %arg14[%c121, %c0_155] : memref<416x128xf32, #tpu.memory_space<vmem>>, vector<5x128xf32>
    %c24_156 = arith.constant 24 : index
    %c896_157 = arith.constant 896 : index
    %112 = vector.load %arg15[%c24_156, %c896_157] : memref<80x2048xf32, #tpu.memory_space<vmem>>, vector<5x128xf32>
    tpu.vector_store %arg15[%c24_156, %c896_157], %111 {strides = array<i32>} : memref<80x2048xf32, #tpu.memory_space<vmem>>, vector<5x128xf32>,
    %c153 = arith.constant 153 : index
    %c0_158 = arith.constant 0 : index
    %113 = vector.load %arg14[%c153, %c0_158] : memref<416x128xf32, #tpu.memory_space<vmem>>, vector<5x128xf32>
    %c32_159 = arith.constant 32 : index
    %c896_160 = arith.constant 896 : index
    %114 = vector.load %arg15[%c32_159, %c896_160] : memref<80x2048xf32, #tpu.memory_space<vmem>>, vector<5x128xf32>
    tpu.vector_store %arg15[%c32_159, %c896_160], %113 {strides = array<i32>} : memref<80x2048xf32, #tpu.memory_space<vmem>>, vector<5x128xf32>,
    %c32_161 = arith.constant 32 : index
    %c0_162 = arith.constant 0 : index
    %115 = vector.load %arg14[%c32_161, %c0_162] : memref<416x128xf32, #tpu.memory_space<vmem>>, vector<5x128xf32>
    %c0_163 = arith.constant 0 : index
    %c1024 = arith.constant 1024 : index
    %116 = vector.load %arg15[%c0_163, %c1024] : memref<80x2048xf32, #tpu.memory_space<vmem>>, vector<5x128xf32>
    tpu.vector_store %arg15[%c0_163, %c1024], %115 {strides = array<i32>} : memref<80x2048xf32, #tpu.memory_space<vmem>>, vector<5x128xf32>,
    %c64_164 = arith.constant 64 : index
    %c0_165 = arith.constant 0 : index
    %117 = vector.load %arg14[%c64_164, %c0_165] : memref<416x128xf32, #tpu.memory_space<vmem>>, vector<5x128xf32>
    %c8_166 = arith.constant 8 : index
    %c1024_167 = arith.constant 1024 : index
    %118 = vector.load %arg15[%c8_166, %c1024_167] : memref<80x2048xf32, #tpu.memory_space<vmem>>, vector<5x128xf32>
    tpu.vector_store %arg15[%c8_166, %c1024_167], %117 {strides = array<i32>} : memref<80x2048xf32, #tpu.memory_space<vmem>>, vector<5x128xf32>,
    %c96_168 = arith.constant 96 : index
    %c0_169 = arith.constant 0 : index
    %119 = vector.load %arg14[%c96_168, %c0_169] : memref<416x128xf32, #tpu.memory_space<vmem>>, vector<5x128xf32>
    %c16_170 = arith.constant 16 : index
    %c1024_171 = arith.constant 1024 : index
    %120 = vector.load %arg15[%c16_170, %c1024_171] : memref<80x2048xf32, #tpu.memory_space<vmem>>, vector<5x128xf32>
    tpu.vector_store %arg15[%c16_170, %c1024_171], %119 {strides = array<i32>} : memref<80x2048xf32, #tpu.memory_space<vmem>>, vector<5x128xf32>,
    %c128_172 = arith.constant 128 : index
    %c0_173 = arith.constant 0 : index
    %121 = vector.load %arg14[%c128_172, %c0_173] : memref<416x128xf32, #tpu.memory_space<vmem>>, vector<5x128xf32>
    %c24_174 = arith.constant 24 : index
    %c1024_175 = arith.constant 1024 : index
    %122 = vector.load %arg15[%c24_174, %c1024_175] : memref<80x2048xf32, #tpu.memory_space<vmem>>, vector<5x128xf32>
    tpu.vector_store %arg15[%c24_174, %c1024_175], %121 {strides = array<i32>} : memref<80x2048xf32, #tpu.memory_space<vmem>>, vector<5x128xf32>,
    %c160_176 = arith.constant 160 : index
    %c0_177 = arith.constant 0 : index
    %123 = vector.load %arg14[%c160_176, %c0_177] : memref<416x128xf32, #tpu.memory_space<vmem>>, vector<5x128xf32>
    %c32_178 = arith.constant 32 : index
    %c1024_179 = arith.constant 1024 : index
    %124 = vector.load %arg15[%c32_178, %c1024_179] : memref<80x2048xf32, #tpu.memory_space<vmem>>, vector<5x128xf32>
    tpu.vector_store %arg15[%c32_178, %c1024_179], %123 {strides = array<i32>} : memref<80x2048xf32, #tpu.memory_space<vmem>>, vector<5x128xf32>,
    %c40_180 = arith.constant 40 : index
    %c0_181 = arith.constant 0 : index
    %125 = vector.load %arg14[%c40_180, %c0_181] : memref<416x128xf32, #tpu.memory_space<vmem>>, vector<5x128xf32>
    %c0_182 = arith.constant 0 : index
    %c1152 = arith.constant 1152 : index
    %126 = vector.load %arg15[%c0_182, %c1152] : memref<80x2048xf32, #tpu.memory_space<vmem>>, vector<5x128xf32>
    tpu.vector_store %arg15[%c0_182, %c1152], %125 {strides = array<i32>} : memref<80x2048xf32, #tpu.memory_space<vmem>>, vector<5x128xf32>,
    %c72_183 = arith.constant 72 : index
    %c0_184 = arith.constant 0 : index
    %127 = vector.load %arg14[%c72_183, %c0_184] : memref<416x128xf32, #tpu.memory_space<vmem>>, vector<5x128xf32>
    %c8_185 = arith.constant 8 : index
    %c1152_186 = arith.constant 1152 : index
    %128 = vector.load %arg15[%c8_185, %c1152_186] : memref<80x2048xf32, #tpu.memory_space<vmem>>, vector<5x128xf32>
    tpu.vector_store %arg15[%c8_185, %c1152_186], %127 {strides = array<i32>} : memref<80x2048xf32, #tpu.memory_space<vmem>>, vector<5x128xf32>,
    %c104_187 = arith.constant 104 : index
    %c0_188 = arith.constant 0 : index
    %129 = vector.load %arg14[%c104_187, %c0_188] : memref<416x128xf32, #tpu.memory_space<vmem>>, vector<5x128xf32>
    %c16_189 = arith.constant 16 : index
    %c1152_190 = arith.constant 1152 : index
    %130 = vector.load %arg15[%c16_189, %c1152_190] : memref<80x2048xf32, #tpu.memory_space<vmem>>, vector<5x128xf32>
    tpu.vector_store %arg15[%c16_189, %c1152_190], %129 {strides = array<i32>} : memref<80x2048xf32, #tpu.memory_space<vmem>>, vector<5x128xf32>,
    %c136_191 = arith.constant 136 : index
    %c0_192 = arith.constant 0 : index
    %131 = vector.load %arg14[%c136_191, %c0_192] : memref<416x128xf32, #tpu.memory_space<vmem>>, vector<5x128xf32>
    %c24_193 = arith.constant 24 : index
    %c1152_194 = arith.constant 1152 : index
    %132 = vector.load %arg15[%c24_193, %c1152_194] : memref<80x2048xf32, #tpu.memory_space<vmem>>, vector<5x128xf32>
    tpu.vector_store %arg15[%c24_193, %c1152_194], %131 {strides = array<i32>} : memref<80x2048xf32, #tpu.memory_space<vmem>>, vector<5x128xf32>,
    %c168 = arith.constant 168 : index
    %c0_195 = arith.constant 0 : index
    %133 = vector.load %arg14[%c168, %c0_195] : memref<416x128xf32, #tpu.memory_space<vmem>>, vector<5x128xf32>
    %c32_196 = arith.constant 32 : index
    %c1152_197 = arith.constant 1152 : index
    %134 = vector.load %arg15[%c32_196, %c1152_197] : memref<80x2048xf32, #tpu.memory_space<vmem>>, vector<5x128xf32>
    tpu.vector_store %arg15[%c32_196, %c1152_197], %133 {strides = array<i32>} : memref<80x2048xf32, #tpu.memory_space<vmem>>, vector<5x128xf32>,
    %c33_198 = arith.constant 33 : index
    %c0_199 = arith.constant 0 : index
    %135 = vector.load %arg14[%c33_198, %c0_199] : memref<416x128xf32, #tpu.memory_space<vmem>>, vector<5x128xf32>
    %c0_200 = arith.constant 0 : index
    %c1280 = arith.constant 1280 : index
    %136 = vector.load %arg15[%c0_200, %c1280] : memref<80x2048xf32, #tpu.memory_space<vmem>>, vector<5x128xf32>
    tpu.vector_store %arg15[%c0_200, %c1280], %135 {strides = array<i32>} : memref<80x2048xf32, #tpu.memory_space<vmem>>, vector<5x128xf32>,
    %c65_201 = arith.constant 65 : index
    %c0_202 = arith.constant 0 : index
    %137 = vector.load %arg14[%c65_201, %c0_202] : memref<416x128xf32, #tpu.memory_space<vmem>>, vector<5x128xf32>
    %c8_203 = arith.constant 8 : index
    %c1280_204 = arith.constant 1280 : index
    %138 = vector.load %arg15[%c8_203, %c1280_204] : memref<80x2048xf32, #tpu.memory_space<vmem>>, vector<5x128xf32>
    tpu.vector_store %arg15[%c8_203, %c1280_204], %137 {strides = array<i32>} : memref<80x2048xf32, #tpu.memory_space<vmem>>, vector<5x128xf32>,
    %c97_205 = arith.constant 97 : index
    %c0_206 = arith.constant 0 : index
    %139 = vector.load %arg14[%c97_205, %c0_206] : memref<416x128xf32, #tpu.memory_space<vmem>>, vector<5x128xf32>
    %c16_207 = arith.constant 16 : index
    %c1280_208 = arith.constant 1280 : index
    %140 = vector.load %arg15[%c16_207, %c1280_208] : memref<80x2048xf32, #tpu.memory_space<vmem>>, vector<5x128xf32>
    tpu.vector_store %arg15[%c16_207, %c1280_208], %139 {strides = array<i32>} : memref<80x2048xf32, #tpu.memory_space<vmem>>, vector<5x128xf32>,
    %c129_209 = arith.constant 129 : index
    %c0_210 = arith.constant 0 : index
    %141 = vector.load %arg14[%c129_209, %c0_210] : memref<416x128xf32, #tpu.memory_space<vmem>>, vector<5x128xf32>
    %c24_211 = arith.constant 24 : index
    %c1280_212 = arith.constant 1280 : index
    %142 = vector.load %arg15[%c24_211, %c1280_212] : memref<80x2048xf32, #tpu.memory_space<vmem>>, vector<5x128xf32>
    tpu.vector_store %arg15[%c24_211, %c1280_212], %141 {strides = array<i32>} : memref<80x2048xf32, #tpu.memory_space<vmem>>, vector<5x128xf32>,
    %c161 = arith.constant 161 : index
    %c0_213 = arith.constant 0 : index
    %143 = vector.load %arg14[%c161, %c0_213] : memref<416x128xf32, #tpu.memory_space<vmem>>, vector<5x128xf32>
    %c32_214 = arith.constant 32 : index
    %c1280_215 = arith.constant 1280 : index
    %144 = vector.load %arg15[%c32_214, %c1280_215] : memref<80x2048xf32, #tpu.memory_space<vmem>>, vector<5x128xf32>
    tpu.vector_store %arg15[%c32_214, %c1280_215], %143 {strides = array<i32>} : memref<80x2048xf32, #tpu.memory_space<vmem>>, vector<5x128xf32>,
    %c41_216 = arith.constant 41 : index
    %c0_217 = arith.constant 0 : index
    %145 = vector.load %arg14[%c41_216, %c0_217] : memref<416x128xf32, #tpu.memory_space<vmem>>, vector<5x128xf32>
    %c0_218 = arith.constant 0 : index
    %c1408 = arith.constant 1408 : index
    %146 = vector.load %arg15[%c0_218, %c1408] : memref<80x2048xf32, #tpu.memory_space<vmem>>, vector<5x128xf32>
    tpu.vector_store %arg15[%c0_218, %c1408], %145 {strides = array<i32>} : memref<80x2048xf32, #tpu.memory_space<vmem>>, vector<5x128xf32>,
    %c73_219 = arith.constant 73 : index
    %c0_220 = arith.constant 0 : index
    %147 = vector.load %arg14[%c73_219, %c0_220] : memref<416x128xf32, #tpu.memory_space<vmem>>, vector<5x128xf32>
    %c8_221 = arith.constant 8 : index
    %c1408_222 = arith.constant 1408 : index
    %148 = vector.load %arg15[%c8_221, %c1408_222] : memref<80x2048xf32, #tpu.memory_space<vmem>>, vector<5x128xf32>
    tpu.vector_store %arg15[%c8_221, %c1408_222], %147 {strides = array<i32>} : memref<80x2048xf32, #tpu.memory_space<vmem>>, vector<5x128xf32>,
    %c105_223 = arith.constant 105 : index
    %c0_224 = arith.constant 0 : index
    %149 = vector.load %arg14[%c105_223, %c0_224] : memref<416x128xf32, #tpu.memory_space<vmem>>, vector<5x128xf32>
    %c16_225 = arith.constant 16 : index
    %c1408_226 = arith.constant 1408 : index
    %150 = vector.load %arg15[%c16_225, %c1408_226] : memref<80x2048xf32, #tpu.memory_space<vmem>>, vector<5x128xf32>
    tpu.vector_store %arg15[%c16_225, %c1408_226], %149 {strides = array<i32>} : memref<80x2048xf32, #tpu.memory_space<vmem>>, vector<5x128xf32>,
    %c137_227 = arith.constant 137 : index
    %c0_228 = arith.constant 0 : index
    %151 = vector.load %arg14[%c137_227, %c0_228] : memref<416x128xf32, #tpu.memory_space<vmem>>, vector<5x128xf32>
    %c24_229 = arith.constant 24 : index
    %c1408_230 = arith.constant 1408 : index
    %152 = vector.load %arg15[%c24_229, %c1408_230] : memref<80x2048xf32, #tpu.memory_space<vmem>>, vector<5x128xf32>
    tpu.vector_store %arg15[%c24_229, %c1408_230], %151 {strides = array<i32>} : memref<80x2048xf32, #tpu.memory_space<vmem>>, vector<5x128xf32>,
    %c169 = arith.constant 169 : index
    %c0_231 = arith.constant 0 : index
    %153 = vector.load %arg14[%c169, %c0_231] : memref<416x128xf32, #tpu.memory_space<vmem>>, vector<5x128xf32>
    %c32_232 = arith.constant 32 : index
    %c1408_233 = arith.constant 1408 : index
    %154 = vector.load %arg15[%c32_232, %c1408_233] : memref<80x2048xf32, #tpu.memory_space<vmem>>, vector<5x128xf32>
    tpu.vector_store %arg15[%c32_232, %c1408_233], %153 {strides = array<i32>} : memref<80x2048xf32, #tpu.memory_space<vmem>>, vector<5x128xf32>,
    %c48_234 = arith.constant 48 : index
    %c0_235 = arith.constant 0 : index
    %155 = vector.load %arg14[%c48_234, %c0_235] : memref<416x128xf32, #tpu.memory_space<vmem>>, vector<5x128xf32>
    %c0_236 = arith.constant 0 : index
    %c1536 = arith.constant 1536 : index
    %156 = vector.load %arg15[%c0_236, %c1536] : memref<80x2048xf32, #tpu.memory_space<vmem>>, vector<5x128xf32>
    tpu.vector_store %arg15[%c0_236, %c1536], %155 {strides = array<i32>} : memref<80x2048xf32, #tpu.memory_space<vmem>>, vector<5x128xf32>,
    %c80_237 = arith.constant 80 : index
    %c0_238 = arith.constant 0 : index
    %157 = vector.load %arg14[%c80_237, %c0_238] : memref<416x128xf32, #tpu.memory_space<vmem>>, vector<5x128xf32>
    %c8_239 = arith.constant 8 : index
    %c1536_240 = arith.constant 1536 : index
    %158 = vector.load %arg15[%c8_239, %c1536_240] : memref<80x2048xf32, #tpu.memory_space<vmem>>, vector<5x128xf32>
    tpu.vector_store %arg15[%c8_239, %c1536_240], %157 {strides = array<i32>} : memref<80x2048xf32, #tpu.memory_space<vmem>>, vector<5x128xf32>,
    %c112_241 = arith.constant 112 : index
    %c0_242 = arith.constant 0 : index
    %159 = vector.load %arg14[%c112_241, %c0_242] : memref<416x128xf32, #tpu.memory_space<vmem>>, vector<5x128xf32>
    %c16_243 = arith.constant 16 : index
    %c1536_244 = arith.constant 1536 : index
    %160 = vector.load %arg15[%c16_243, %c1536_244] : memref<80x2048xf32, #tpu.memory_space<vmem>>, vector<5x128xf32>
    tpu.vector_store %arg15[%c16_243, %c1536_244], %159 {strides = array<i32>} : memref<80x2048xf32, #tpu.memory_space<vmem>>, vector<5x128xf32>,
    %c144_245 = arith.constant 144 : index
    %c0_246 = arith.constant 0 : index
    %161 = vector.load %arg14[%c144_245, %c0_246] : memref<416x128xf32, #tpu.memory_space<vmem>>, vector<5x128xf32>
    %c24_247 = arith.constant 24 : index
    %c1536_248 = arith.constant 1536 : index
    %162 = vector.load %arg15[%c24_247, %c1536_248] : memref<80x2048xf32, #tpu.memory_space<vmem>>, vector<5x128xf32>
    tpu.vector_store %arg15[%c24_247, %c1536_248], %161 {strides = array<i32>} : memref<80x2048xf32, #tpu.memory_space<vmem>>, vector<5x128xf32>,
    %c176_249 = arith.constant 176 : index
    %c0_250 = arith.constant 0 : index
    %163 = vector.load %arg14[%c176_249, %c0_250] : memref<416x128xf32, #tpu.memory_space<vmem>>, vector<5x128xf32>
    %c32_251 = arith.constant 32 : index
    %c1536_252 = arith.constant 1536 : index
    %164 = vector.load %arg15[%c32_251, %c1536_252] : memref<80x2048xf32, #tpu.memory_space<vmem>>, vector<5x128xf32>
    tpu.vector_store %arg15[%c32_251, %c1536_252], %163 {strides = array<i32>} : memref<80x2048xf32, #tpu.memory_space<vmem>>, vector<5x128xf32>,
    %c56_253 = arith.constant 56 : index
    %c0_254 = arith.constant 0 : index
    %165 = vector.load %arg14[%c56_253, %c0_254] : memref<416x128xf32, #tpu.memory_space<vmem>>, vector<5x128xf32>
    %c0_255 = arith.constant 0 : index
    %c1664 = arith.constant 1664 : index
    %166 = vector.load %arg15[%c0_255, %c1664] : memref<80x2048xf32, #tpu.memory_space<vmem>>, vector<5x128xf32>
    tpu.vector_store %arg15[%c0_255, %c1664], %165 {strides = array<i32>} : memref<80x2048xf32, #tpu.memory_space<vmem>>, vector<5x128xf32>,
    %c88_256 = arith.constant 88 : index
    %c0_257 = arith.constant 0 : index
    %167 = vector.load %arg14[%c88_256, %c0_257] : memref<416x128xf32, #tpu.memory_space<vmem>>, vector<5x128xf32>
    %c8_258 = arith.constant 8 : index
    %c1664_259 = arith.constant 1664 : index
    %168 = vector.load %arg15[%c8_258, %c1664_259] : memref<80x2048xf32, #tpu.memory_space<vmem>>, vector<5x128xf32>
    tpu.vector_store %arg15[%c8_258, %c1664_259], %167 {strides = array<i32>} : memref<80x2048xf32, #tpu.memory_space<vmem>>, vector<5x128xf32>,
    %c120_260 = arith.constant 120 : index
    %c0_261 = arith.constant 0 : index
    %169 = vector.load %arg14[%c120_260, %c0_261] : memref<416x128xf32, #tpu.memory_space<vmem>>, vector<5x128xf32>
    %c16_262 = arith.constant 16 : index
    %c1664_263 = arith.constant 1664 : index
    %170 = vector.load %arg15[%c16_262, %c1664_263] : memref<80x2048xf32, #tpu.memory_space<vmem>>, vector<5x128xf32>
    tpu.vector_store %arg15[%c16_262, %c1664_263], %169 {strides = array<i32>} : memref<80x2048xf32, #tpu.memory_space<vmem>>, vector<5x128xf32>,
    %c152_264 = arith.constant 152 : index
    %c0_265 = arith.constant 0 : index
    %171 = vector.load %arg14[%c152_264, %c0_265] : memref<416x128xf32, #tpu.memory_space<vmem>>, vector<5x128xf32>
    %c24_266 = arith.constant 24 : index
    %c1664_267 = arith.constant 1664 : index
    %172 = vector.load %arg15[%c24_266, %c1664_267] : memref<80x2048xf32, #tpu.memory_space<vmem>>, vector<5x128xf32>
    tpu.vector_store %arg15[%c24_266, %c1664_267], %171 {strides = array<i32>} : memref<80x2048xf32, #tpu.memory_space<vmem>>, vector<5x128xf32>,
    %c184 = arith.constant 184 : index
    %c0_268 = arith.constant 0 : index
    %173 = vector.load %arg14[%c184, %c0_268] : memref<416x128xf32, #tpu.memory_space<vmem>>, vector<5x128xf32>
    %c32_269 = arith.constant 32 : index
    %c1664_270 = arith.constant 1664 : index
    %174 = vector.load %arg15[%c32_269, %c1664_270] : memref<80x2048xf32, #tpu.memory_space<vmem>>, vector<5x128xf32>
    tpu.vector_store %arg15[%c32_269, %c1664_270], %173 {strides = array<i32>} : memref<80x2048xf32, #tpu.memory_space<vmem>>, vector<5x128xf32>,
    %c49_271 = arith.constant 49 : index
    %c0_272 = arith.constant 0 : index
    %175 = vector.load %arg14[%c49_271, %c0_272] : memref<416x128xf32, #tpu.memory_space<vmem>>, vector<5x128xf32>
    %c0_273 = arith.constant 0 : index
    %c1792 = arith.constant 1792 : index
    %176 = vector.load %arg15[%c0_273, %c1792] : memref<80x2048xf32, #tpu.memory_space<vmem>>, vector<5x128xf32>
    tpu.vector_store %arg15[%c0_273, %c1792], %175 {strides = array<i32>} : memref<80x2048xf32, #tpu.memory_space<vmem>>, vector<5x128xf32>,
    %c81_274 = arith.constant 81 : index
    %c0_275 = arith.constant 0 : index
    %177 = vector.load %arg14[%c81_274, %c0_275] : memref<416x128xf32, #tpu.memory_space<vmem>>, vector<5x128xf32>
    %c8_276 = arith.constant 8 : index
    %c1792_277 = arith.constant 1792 : index
    %178 = vector.load %arg15[%c8_276, %c1792_277] : memref<80x2048xf32, #tpu.memory_space<vmem>>, vector<5x128xf32>
    tpu.vector_store %arg15[%c8_276, %c1792_277], %177 {strides = array<i32>} : memref<80x2048xf32, #tpu.memory_space<vmem>>, vector<5x128xf32>,
    %c113_278 = arith.constant 113 : index
    %c0_279 = arith.constant 0 : index
    %179 = vector.load %arg14[%c113_278, %c0_279] : memref<416x128xf32, #tpu.memory_space<vmem>>, vector<5x128xf32>
    %c16_280 = arith.constant 16 : index
    %c1792_281 = arith.constant 1792 : index
    %180 = vector.load %arg15[%c16_280, %c1792_281] : memref<80x2048xf32, #tpu.memory_space<vmem>>, vector<5x128xf32>
    tpu.vector_store %arg15[%c16_280, %c1792_281], %179 {strides = array<i32>} : memref<80x2048xf32, #tpu.memory_space<vmem>>, vector<5x128xf32>,
    %c145_282 = arith.constant 145 : index
    %c0_283 = arith.constant 0 : index
    %181 = vector.load %arg14[%c145_282, %c0_283] : memref<416x128xf32, #tpu.memory_space<vmem>>, vector<5x128xf32>
    %c24_284 = arith.constant 24 : index
    %c1792_285 = arith.constant 1792 : index
    %182 = vector.load %arg15[%c24_284, %c1792_285] : memref<80x2048xf32, #tpu.memory_space<vmem>>, vector<5x128xf32>
    tpu.vector_store %arg15[%c24_284, %c1792_285], %181 {strides = array<i32>} : memref<80x2048xf32, #tpu.memory_space<vmem>>, vector<5x128xf32>,
    %c177 = arith.constant 177 : index
    %c0_286 = arith.constant 0 : index
    %183 = vector.load %arg14[%c177, %c0_286] : memref<416x128xf32, #tpu.memory_space<vmem>>, vector<5x128xf32>
    %c32_287 = arith.constant 32 : index
    %c1792_288 = arith.constant 1792 : index
    %184 = vector.load %arg15[%c32_287, %c1792_288] : memref<80x2048xf32, #tpu.memory_space<vmem>>, vector<5x128xf32>
    tpu.vector_store %arg15[%c32_287, %c1792_288], %183 {strides = array<i32>} : memref<80x2048xf32, #tpu.memory_space<vmem>>, vector<5x128xf32>,
    %c57_289 = arith.constant 57 : index
    %c0_290 = arith.constant 0 : index
    %185 = vector.load %arg14[%c57_289, %c0_290] : memref<416x128xf32, #tpu.memory_space<vmem>>, vector<5x128xf32>
    %c0_291 = arith.constant 0 : index
    %c1920 = arith.constant 1920 : index
    %186 = vector.load %arg15[%c0_291, %c1920] : memref<80x2048xf32, #tpu.memory_space<vmem>>, vector<5x128xf32>
    tpu.vector_store %arg15[%c0_291, %c1920], %185 {strides = array<i32>} : memref<80x2048xf32, #tpu.memory_space<vmem>>, vector<5x128xf32>,
    %c89_292 = arith.constant 89 : index
    %c0_293 = arith.constant 0 : index
    %187 = vector.load %arg14[%c89_292, %c0_293] : memref<416x128xf32, #tpu.memory_space<vmem>>, vector<5x128xf32>
    %c8_294 = arith.constant 8 : index
    %c1920_295 = arith.constant 1920 : index
    %188 = vector.load %arg15[%c8_294, %c1920_295] : memref<80x2048xf32, #tpu.memory_space<vmem>>, vector<5x128xf32>
    tpu.vector_store %arg15[%c8_294, %c1920_295], %187 {strides = array<i32>} : memref<80x2048xf32, #tpu.memory_space<vmem>>, vector<5x128xf32>,
    %c121_296 = arith.constant 121 : index
    %c0_297 = arith.constant 0 : index
    %189 = vector.load %arg14[%c121_296, %c0_297] : memref<416x128xf32, #tpu.memory_space<vmem>>, vector<5x128xf32>
    %c16_298 = arith.constant 16 : index
    %c1920_299 = arith.constant 1920 : index
    %190 = vector.load %arg15[%c16_298, %c1920_299] : memref<80x2048xf32, #tpu.memory_space<vmem>>, vector<5x128xf32>
    tpu.vector_store %arg15[%c16_298, %c1920_299], %189 {strides = array<i32>} : memref<80x2048xf32, #tpu.memory_space<vmem>>, vector<5x128xf32>,
    %c153_300 = arith.constant 153 : index
    %c0_301 = arith.constant 0 : index
    %191 = vector.load %arg14[%c153_300, %c0_301] : memref<416x128xf32, #tpu.memory_space<vmem>>, vector<5x128xf32>
    %c24_302 = arith.constant 24 : index
    %c1920_303 = arith.constant 1920 : index
    %192 = vector.load %arg15[%c24_302, %c1920_303] : memref<80x2048xf32, #tpu.memory_space<vmem>>, vector<5x128xf32>
    tpu.vector_store %arg15[%c24_302, %c1920_303], %191 {strides = array<i32>} : memref<80x2048xf32, #tpu.memory_space<vmem>>, vector<5x128xf32>,
    %c185 = arith.constant 185 : index
    %c0_304 = arith.constant 0 : index
    %193 = vector.load %arg14[%c185, %c0_304] : memref<416x128xf32, #tpu.memory_space<vmem>>, vector<5x128xf32>
    %c32_305 = arith.constant 32 : index
    %c1920_306 = arith.constant 1920 : index
    %194 = vector.load %arg15[%c32_305, %c1920_306] : memref<80x2048xf32, #tpu.memory_space<vmem>>, vector<5x128xf32>
    tpu.vector_store %arg15[%c32_305, %c1920_306], %193 {strides = array<i32>} : memref<80x2048xf32, #tpu.memory_space<vmem>>, vector<5x128xf32>,
    %c208_307 = arith.constant 208 : index
    %c0_308 = arith.constant 0 : index
    %195 = vector.load %arg14[%c208_307, %c0_308] : memref<416x128xf32, #tpu.memory_space<vmem>>, vector<5x128xf32>
    %c40_309 = arith.constant 40 : index
    %c0_310 = arith.constant 0 : index
    %196 = vector.load %arg15[%c40_309, %c0_310] : memref<80x2048xf32, #tpu.memory_space<vmem>>, vector<5x128xf32>
    tpu.vector_store %arg15[%c40_309, %c0_310], %195 {strides = array<i32>} : memref<80x2048xf32, #tpu.memory_space<vmem>>, vector<5x128xf32>,
    %c240_311 = arith.constant 240 : index
    %c0_312 = arith.constant 0 : index
    %197 = vector.load %arg14[%c240_311, %c0_312] : memref<416x128xf32, #tpu.memory_space<vmem>>, vector<5x128xf32>
    %c48_313 = arith.constant 48 : index
    %c0_314 = arith.constant 0 : index
    %198 = vector.load %arg15[%c48_313, %c0_314] : memref<80x2048xf32, #tpu.memory_space<vmem>>, vector<5x128xf32>
    tpu.vector_store %arg15[%c48_313, %c0_314], %197 {strides = array<i32>} : memref<80x2048xf32, #tpu.memory_space<vmem>>, vector<5x128xf32>,
    %c272_315 = arith.constant 272 : index
    %c0_316 = arith.constant 0 : index
    %199 = vector.load %arg14[%c272_315, %c0_316] : memref<416x128xf32, #tpu.memory_space<vmem>>, vector<5x128xf32>
    %c56_317 = arith.constant 56 : index
    %c0_318 = arith.constant 0 : index
    %200 = vector.load %arg15[%c56_317, %c0_318] : memref<80x2048xf32, #tpu.memory_space<vmem>>, vector<5x128xf32>
    tpu.vector_store %arg15[%c56_317, %c0_318], %199 {strides = array<i32>} : memref<80x2048xf32, #tpu.memory_space<vmem>>, vector<5x128xf32>,
    %c304_319 = arith.constant 304 : index
    %c0_320 = arith.constant 0 : index
    %201 = vector.load %arg14[%c304_319, %c0_320] : memref<416x128xf32, #tpu.memory_space<vmem>>, vector<5x128xf32>
    %c64_321 = arith.constant 64 : index
    %c0_322 = arith.constant 0 : index
    %202 = vector.load %arg15[%c64_321, %c0_322] : memref<80x2048xf32, #tpu.memory_space<vmem>>, vector<5x128xf32>
    tpu.vector_store %arg15[%c64_321, %c0_322], %201 {strides = array<i32>} : memref<80x2048xf32, #tpu.memory_space<vmem>>, vector<5x128xf32>,
    %c336_323 = arith.constant 336 : index
    %c0_324 = arith.constant 0 : index
    %203 = vector.load %arg14[%c336_323, %c0_324] : memref<416x128xf32, #tpu.memory_space<vmem>>, vector<5x128xf32>
    %c72_325 = arith.constant 72 : index
    %c0_326 = arith.constant 0 : index
    %204 = vector.load %arg15[%c72_325, %c0_326] : memref<80x2048xf32, #tpu.memory_space<vmem>>, vector<5x128xf32>
    tpu.vector_store %arg15[%c72_325, %c0_326], %203 {strides = array<i32>} : memref<80x2048xf32, #tpu.memory_space<vmem>>, vector<5x128xf32>,
    %c216 = arith.constant 216 : index
    %c0_327 = arith.constant 0 : index
    %205 = vector.load %arg14[%c216, %c0_327] : memref<416x128xf32, #tpu.memory_space<vmem>>, vector<5x128xf32>
    %c40_328 = arith.constant 40 : index
    %c128_329 = arith.constant 128 : index
    %206 = vector.load %arg15[%c40_328, %c128_329] : memref<80x2048xf32, #tpu.memory_space<vmem>>, vector<5x128xf32>
    tpu.vector_store %arg15[%c40_328, %c128_329], %205 {strides = array<i32>} : memref<80x2048xf32, #tpu.memory_space<vmem>>, vector<5x128xf32>,
    %c248 = arith.constant 248 : index
    %c0_330 = arith.constant 0 : index
    %207 = vector.load %arg14[%c248, %c0_330] : memref<416x128xf32, #tpu.memory_space<vmem>>, vector<5x128xf32>
    %c48_331 = arith.constant 48 : index
    %c128_332 = arith.constant 128 : index
    %208 = vector.load %arg15[%c48_331, %c128_332] : memref<80x2048xf32, #tpu.memory_space<vmem>>, vector<5x128xf32>
    tpu.vector_store %arg15[%c48_331, %c128_332], %207 {strides = array<i32>} : memref<80x2048xf32, #tpu.memory_space<vmem>>, vector<5x128xf32>,
    %c280 = arith.constant 280 : index
    %c0_333 = arith.constant 0 : index
    %209 = vector.load %arg14[%c280, %c0_333] : memref<416x128xf32, #tpu.memory_space<vmem>>, vector<5x128xf32>
    %c56_334 = arith.constant 56 : index
    %c128_335 = arith.constant 128 : index
    %210 = vector.load %arg15[%c56_334, %c128_335] : memref<80x2048xf32, #tpu.memory_space<vmem>>, vector<5x128xf32>
    tpu.vector_store %arg15[%c56_334, %c128_335], %209 {strides = array<i32>} : memref<80x2048xf32, #tpu.memory_space<vmem>>, vector<5x128xf32>,
    %c312 = arith.constant 312 : index
    %c0_336 = arith.constant 0 : index
    %211 = vector.load %arg14[%c312, %c0_336] : memref<416x128xf32, #tpu.memory_space<vmem>>, vector<5x128xf32>
    %c64_337 = arith.constant 64 : index
    %c128_338 = arith.constant 128 : index
    %212 = vector.load %arg15[%c64_337, %c128_338] : memref<80x2048xf32, #tpu.memory_space<vmem>>, vector<5x128xf32>
    tpu.vector_store %arg15[%c64_337, %c128_338], %211 {strides = array<i32>} : memref<80x2048xf32, #tpu.memory_space<vmem>>, vector<5x128xf32>,
    %c344 = arith.constant 344 : index
    %c0_339 = arith.constant 0 : index
    %213 = vector.load %arg14[%c344, %c0_339] : memref<416x128xf32, #tpu.memory_space<vmem>>, vector<5x128xf32>
    %c72_340 = arith.constant 72 : index
    %c128_341 = arith.constant 128 : index
    %214 = vector.load %arg15[%c72_340, %c128_341] : memref<80x2048xf32, #tpu.memory_space<vmem>>, vector<5x128xf32>
    tpu.vector_store %arg15[%c72_340, %c128_341], %213 {strides = array<i32>} : memref<80x2048xf32, #tpu.memory_space<vmem>>, vector<5x128xf32>,
    %c209 = arith.constant 209 : index
    %c0_342 = arith.constant 0 : index
    %215 = vector.load %arg14[%c209, %c0_342] : memref<416x128xf32, #tpu.memory_space<vmem>>, vector<5x128xf32>
    %c40_343 = arith.constant 40 : index
    %c256_344 = arith.constant 256 : index
    %216 = vector.load %arg15[%c40_343, %c256_344] : memref<80x2048xf32, #tpu.memory_space<vmem>>, vector<5x128xf32>
    tpu.vector_store %arg15[%c40_343, %c256_344], %215 {strides = array<i32>} : memref<80x2048xf32, #tpu.memory_space<vmem>>, vector<5x128xf32>,
    %c241 = arith.constant 241 : index
    %c0_345 = arith.constant 0 : index
    %217 = vector.load %arg14[%c241, %c0_345] : memref<416x128xf32, #tpu.memory_space<vmem>>, vector<5x128xf32>
    %c48_346 = arith.constant 48 : index
    %c256_347 = arith.constant 256 : index
    %218 = vector.load %arg15[%c48_346, %c256_347] : memref<80x2048xf32, #tpu.memory_space<vmem>>, vector<5x128xf32>
    tpu.vector_store %arg15[%c48_346, %c256_347], %217 {strides = array<i32>} : memref<80x2048xf32, #tpu.memory_space<vmem>>, vector<5x128xf32>,
    %c273 = arith.constant 273 : index
    %c0_348 = arith.constant 0 : index
    %219 = vector.load %arg14[%c273, %c0_348] : memref<416x128xf32, #tpu.memory_space<vmem>>, vector<5x128xf32>
    %c56_349 = arith.constant 56 : index
    %c256_350 = arith.constant 256 : index
    %220 = vector.load %arg15[%c56_349, %c256_350] : memref<80x2048xf32, #tpu.memory_space<vmem>>, vector<5x128xf32>
    tpu.vector_store %arg15[%c56_349, %c256_350], %219 {strides = array<i32>} : memref<80x2048xf32, #tpu.memory_space<vmem>>, vector<5x128xf32>,
    %c305 = arith.constant 305 : index
    %c0_351 = arith.constant 0 : index
    %221 = vector.load %arg14[%c305, %c0_351] : memref<416x128xf32, #tpu.memory_space<vmem>>, vector<5x128xf32>
    %c64_352 = arith.constant 64 : index
    %c256_353 = arith.constant 256 : index
    %222 = vector.load %arg15[%c64_352, %c256_353] : memref<80x2048xf32, #tpu.memory_space<vmem>>, vector<5x128xf32>
    tpu.vector_store %arg15[%c64_352, %c256_353], %221 {strides = array<i32>} : memref<80x2048xf32, #tpu.memory_space<vmem>>, vector<5x128xf32>,
    %c337 = arith.constant 337 : index
    %c0_354 = arith.constant 0 : index
    %223 = vector.load %arg14[%c337, %c0_354] : memref<416x128xf32, #tpu.memory_space<vmem>>, vector<5x128xf32>
    %c72_355 = arith.constant 72 : index
    %c256_356 = arith.constant 256 : index
    %224 = vector.load %arg15[%c72_355, %c256_356] : memref<80x2048xf32, #tpu.memory_space<vmem>>, vector<5x128xf32>
    tpu.vector_store %arg15[%c72_355, %c256_356], %223 {strides = array<i32>} : memref<80x2048xf32, #tpu.memory_space<vmem>>, vector<5x128xf32>,
    %c217 = arith.constant 217 : index
    %c0_357 = arith.constant 0 : index
    %225 = vector.load %arg14[%c217, %c0_357] : memref<416x128xf32, #tpu.memory_space<vmem>>, vector<5x128xf32>
    %c40_358 = arith.constant 40 : index
    %c384_359 = arith.constant 384 : index
    %226 = vector.load %arg15[%c40_358, %c384_359] : memref<80x2048xf32, #tpu.memory_space<vmem>>, vector<5x128xf32>
    tpu.vector_store %arg15[%c40_358, %c384_359], %225 {strides = array<i32>} : memref<80x2048xf32, #tpu.memory_space<vmem>>, vector<5x128xf32>,
    %c249 = arith.constant 249 : index
    %c0_360 = arith.constant 0 : index
    %227 = vector.load %arg14[%c249, %c0_360] : memref<416x128xf32, #tpu.memory_space<vmem>>, vector<5x128xf32>
    %c48_361 = arith.constant 48 : index
    %c384_362 = arith.constant 384 : index
    %228 = vector.load %arg15[%c48_361, %c384_362] : memref<80x2048xf32, #tpu.memory_space<vmem>>, vector<5x128xf32>
    tpu.vector_store %arg15[%c48_361, %c384_362], %227 {strides = array<i32>} : memref<80x2048xf32, #tpu.memory_space<vmem>>, vector<5x128xf32>,
    %c281 = arith.constant 281 : index
    %c0_363 = arith.constant 0 : index
    %229 = vector.load %arg14[%c281, %c0_363] : memref<416x128xf32, #tpu.memory_space<vmem>>, vector<5x128xf32>
    %c56_364 = arith.constant 56 : index
    %c384_365 = arith.constant 384 : index
    %230 = vector.load %arg15[%c56_364, %c384_365] : memref<80x2048xf32, #tpu.memory_space<vmem>>, vector<5x128xf32>
    tpu.vector_store %arg15[%c56_364, %c384_365], %229 {strides = array<i32>} : memref<80x2048xf32, #tpu.memory_space<vmem>>, vector<5x128xf32>,
    %c313 = arith.constant 313 : index
    %c0_366 = arith.constant 0 : index
    %231 = vector.load %arg14[%c313, %c0_366] : memref<416x128xf32, #tpu.memory_space<vmem>>, vector<5x128xf32>
    %c64_367 = arith.constant 64 : index
    %c384_368 = arith.constant 384 : index
    %232 = vector.load %arg15[%c64_367, %c384_368] : memref<80x2048xf32, #tpu.memory_space<vmem>>, vector<5x128xf32>
    tpu.vector_store %arg15[%c64_367, %c384_368], %231 {strides = array<i32>} : memref<80x2048xf32, #tpu.memory_space<vmem>>, vector<5x128xf32>,
    %c345 = arith.constant 345 : index
    %c0_369 = arith.constant 0 : index
    %233 = vector.load %arg14[%c345, %c0_369] : memref<416x128xf32, #tpu.memory_space<vmem>>, vector<5x128xf32>
    %c72_370 = arith.constant 72 : index
    %c384_371 = arith.constant 384 : index
    %234 = vector.load %arg15[%c72_370, %c384_371] : memref<80x2048xf32, #tpu.memory_space<vmem>>, vector<5x128xf32>
    tpu.vector_store %arg15[%c72_370, %c384_371], %233 {strides = array<i32>} : memref<80x2048xf32, #tpu.memory_space<vmem>>, vector<5x128xf32>,
    %c224_372 = arith.constant 224 : index
    %c0_373 = arith.constant 0 : index
    %235 = vector.load %arg14[%c224_372, %c0_373] : memref<416x128xf32, #tpu.memory_space<vmem>>, vector<5x128xf32>
    %c40_374 = arith.constant 40 : index
    %c512_375 = arith.constant 512 : index
    %236 = vector.load %arg15[%c40_374, %c512_375] : memref<80x2048xf32, #tpu.memory_space<vmem>>, vector<5x128xf32>
    tpu.vector_store %arg15[%c40_374, %c512_375], %235 {strides = array<i32>} : memref<80x2048xf32, #tpu.memory_space<vmem>>, vector<5x128xf32>,
    %c256_376 = arith.constant 256 : index
    %c0_377 = arith.constant 0 : index
    %237 = vector.load %arg14[%c256_376, %c0_377] : memref<416x128xf32, #tpu.memory_space<vmem>>, vector<5x128xf32>
    %c48_378 = arith.constant 48 : index
    %c512_379 = arith.constant 512 : index
    %238 = vector.load %arg15[%c48_378, %c512_379] : memref<80x2048xf32, #tpu.memory_space<vmem>>, vector<5x128xf32>
    tpu.vector_store %arg15[%c48_378, %c512_379], %237 {strides = array<i32>} : memref<80x2048xf32, #tpu.memory_space<vmem>>, vector<5x128xf32>,
    %c288_380 = arith.constant 288 : index
    %c0_381 = arith.constant 0 : index
    %239 = vector.load %arg14[%c288_380, %c0_381] : memref<416x128xf32, #tpu.memory_space<vmem>>, vector<5x128xf32>
    %c56_382 = arith.constant 56 : index
    %c512_383 = arith.constant 512 : index
    %240 = vector.load %arg15[%c56_382, %c512_383] : memref<80x2048xf32, #tpu.memory_space<vmem>>, vector<5x128xf32>
    tpu.vector_store %arg15[%c56_382, %c512_383], %239 {strides = array<i32>} : memref<80x2048xf32, #tpu.memory_space<vmem>>, vector<5x128xf32>,
    %c320_384 = arith.constant 320 : index
    %c0_385 = arith.constant 0 : index
    %241 = vector.load %arg14[%c320_384, %c0_385] : memref<416x128xf32, #tpu.memory_space<vmem>>, vector<5x128xf32>
    %c64_386 = arith.constant 64 : index
    %c512_387 = arith.constant 512 : index
    %242 = vector.load %arg15[%c64_386, %c512_387] : memref<80x2048xf32, #tpu.memory_space<vmem>>, vector<5x128xf32>
    tpu.vector_store %arg15[%c64_386, %c512_387], %241 {strides = array<i32>} : memref<80x2048xf32, #tpu.memory_space<vmem>>, vector<5x128xf32>,
    %c352_388 = arith.constant 352 : index
    %c0_389 = arith.constant 0 : index
    %243 = vector.load %arg14[%c352_388, %c0_389] : memref<416x128xf32, #tpu.memory_space<vmem>>, vector<5x128xf32>
    %c72_390 = arith.constant 72 : index
    %c512_391 = arith.constant 512 : index
    %244 = vector.load %arg15[%c72_390, %c512_391] : memref<80x2048xf32, #tpu.memory_space<vmem>>, vector<5x128xf32>
    tpu.vector_store %arg15[%c72_390, %c512_391], %243 {strides = array<i32>} : memref<80x2048xf32, #tpu.memory_space<vmem>>, vector<5x128xf32>,
    %c232 = arith.constant 232 : index
    %c0_392 = arith.constant 0 : index
    %245 = vector.load %arg14[%c232, %c0_392] : memref<416x128xf32, #tpu.memory_space<vmem>>, vector<5x128xf32>
    %c40_393 = arith.constant 40 : index
    %c640_394 = arith.constant 640 : index
    %246 = vector.load %arg15[%c40_393, %c640_394] : memref<80x2048xf32, #tpu.memory_space<vmem>>, vector<5x128xf32>
    tpu.vector_store %arg15[%c40_393, %c640_394], %245 {strides = array<i32>} : memref<80x2048xf32, #tpu.memory_space<vmem>>, vector<5x128xf32>,
    %c264 = arith.constant 264 : index
    %c0_395 = arith.constant 0 : index
    %247 = vector.load %arg14[%c264, %c0_395] : memref<416x128xf32, #tpu.memory_space<vmem>>, vector<5x128xf32>
    %c48_396 = arith.constant 48 : index
    %c640_397 = arith.constant 640 : index
    %248 = vector.load %arg15[%c48_396, %c640_397] : memref<80x2048xf32, #tpu.memory_space<vmem>>, vector<5x128xf32>
    tpu.vector_store %arg15[%c48_396, %c640_397], %247 {strides = array<i32>} : memref<80x2048xf32, #tpu.memory_space<vmem>>, vector<5x128xf32>,
    %c296 = arith.constant 296 : index
    %c0_398 = arith.constant 0 : index
    %249 = vector.load %arg14[%c296, %c0_398] : memref<416x128xf32, #tpu.memory_space<vmem>>, vector<5x128xf32>
    %c56_399 = arith.constant 56 : index
    %c640_400 = arith.constant 640 : index
    %250 = vector.load %arg15[%c56_399, %c640_400] : memref<80x2048xf32, #tpu.memory_space<vmem>>, vector<5x128xf32>
    tpu.vector_store %arg15[%c56_399, %c640_400], %249 {strides = array<i32>} : memref<80x2048xf32, #tpu.memory_space<vmem>>, vector<5x128xf32>,
    %c328 = arith.constant 328 : index
    %c0_401 = arith.constant 0 : index
    %251 = vector.load %arg14[%c328, %c0_401] : memref<416x128xf32, #tpu.memory_space<vmem>>, vector<5x128xf32>
    %c64_402 = arith.constant 64 : index
    %c640_403 = arith.constant 640 : index
    %252 = vector.load %arg15[%c64_402, %c640_403] : memref<80x2048xf32, #tpu.memory_space<vmem>>, vector<5x128xf32>
    tpu.vector_store %arg15[%c64_402, %c640_403], %251 {strides = array<i32>} : memref<80x2048xf32, #tpu.memory_space<vmem>>, vector<5x128xf32>,
    %c360 = arith.constant 360 : index
    %c0_404 = arith.constant 0 : index
    %253 = vector.load %arg14[%c360, %c0_404] : memref<416x128xf32, #tpu.memory_space<vmem>>, vector<5x128xf32>
    %c72_405 = arith.constant 72 : index
    %c640_406 = arith.constant 640 : index
    %254 = vector.load %arg15[%c72_405, %c640_406] : memref<80x2048xf32, #tpu.memory_space<vmem>>, vector<5x128xf32>
    tpu.vector_store %arg15[%c72_405, %c640_406], %253 {strides = array<i32>} : memref<80x2048xf32, #tpu.memory_space<vmem>>, vector<5x128xf32>,
    %c225 = arith.constant 225 : index
    %c0_407 = arith.constant 0 : index
    %255 = vector.load %arg14[%c225, %c0_407] : memref<416x128xf32, #tpu.memory_space<vmem>>, vector<5x128xf32>
    %c40_408 = arith.constant 40 : index
    %c768_409 = arith.constant 768 : index
    %256 = vector.load %arg15[%c40_408, %c768_409] : memref<80x2048xf32, #tpu.memory_space<vmem>>, vector<5x128xf32>
    tpu.vector_store %arg15[%c40_408, %c768_409], %255 {strides = array<i32>} : memref<80x2048xf32, #tpu.memory_space<vmem>>, vector<5x128xf32>,
    %c257 = arith.constant 257 : index
    %c0_410 = arith.constant 0 : index
    %257 = vector.load %arg14[%c257, %c0_410] : memref<416x128xf32, #tpu.memory_space<vmem>>, vector<5x128xf32>
    %c48_411 = arith.constant 48 : index
    %c768_412 = arith.constant 768 : index
    %258 = vector.load %arg15[%c48_411, %c768_412] : memref<80x2048xf32, #tpu.memory_space<vmem>>, vector<5x128xf32>
    tpu.vector_store %arg15[%c48_411, %c768_412], %257 {strides = array<i32>} : memref<80x2048xf32, #tpu.memory_space<vmem>>, vector<5x128xf32>,
    %c289 = arith.constant 289 : index
    %c0_413 = arith.constant 0 : index
    %259 = vector.load %arg14[%c289, %c0_413] : memref<416x128xf32, #tpu.memory_space<vmem>>, vector<5x128xf32>
    %c56_414 = arith.constant 56 : index
    %c768_415 = arith.constant 768 : index
    %260 = vector.load %arg15[%c56_414, %c768_415] : memref<80x2048xf32, #tpu.memory_space<vmem>>, vector<5x128xf32>
    tpu.vector_store %arg15[%c56_414, %c768_415], %259 {strides = array<i32>} : memref<80x2048xf32, #tpu.memory_space<vmem>>, vector<5x128xf32>,
    %c321 = arith.constant 321 : index
    %c0_416 = arith.constant 0 : index
    %261 = vector.load %arg14[%c321, %c0_416] : memref<416x128xf32, #tpu.memory_space<vmem>>, vector<5x128xf32>
    %c64_417 = arith.constant 64 : index
    %c768_418 = arith.constant 768 : index
    %262 = vector.load %arg15[%c64_417, %c768_418] : memref<80x2048xf32, #tpu.memory_space<vmem>>, vector<5x128xf32>
    tpu.vector_store %arg15[%c64_417, %c768_418], %261 {strides = array<i32>} : memref<80x2048xf32, #tpu.memory_space<vmem>>, vector<5x128xf32>,
    %c353 = arith.constant 353 : index
    %c0_419 = arith.constant 0 : index
    %263 = vector.load %arg14[%c353, %c0_419] : memref<416x128xf32, #tpu.memory_space<vmem>>, vector<5x128xf32>
    %c72_420 = arith.constant 72 : index
    %c768_421 = arith.constant 768 : index
    %264 = vector.load %arg15[%c72_420, %c768_421] : memref<80x2048xf32, #tpu.memory_space<vmem>>, vector<5x128xf32>
    tpu.vector_store %arg15[%c72_420, %c768_421], %263 {strides = array<i32>} : memref<80x2048xf32, #tpu.memory_space<vmem>>, vector<5x128xf32>,
    %c233 = arith.constant 233 : index
    %c0_422 = arith.constant 0 : index
    %265 = vector.load %arg14[%c233, %c0_422] : memref<416x128xf32, #tpu.memory_space<vmem>>, vector<5x128xf32>
    %c40_423 = arith.constant 40 : index
    %c896_424 = arith.constant 896 : index
    %266 = vector.load %arg15[%c40_423, %c896_424] : memref<80x2048xf32, #tpu.memory_space<vmem>>, vector<5x128xf32>
    tpu.vector_store %arg15[%c40_423, %c896_424], %265 {strides = array<i32>} : memref<80x2048xf32, #tpu.memory_space<vmem>>, vector<5x128xf32>,
    %c265 = arith.constant 265 : index
    %c0_425 = arith.constant 0 : index
    %267 = vector.load %arg14[%c265, %c0_425] : memref<416x128xf32, #tpu.memory_space<vmem>>, vector<5x128xf32>
    %c48_426 = arith.constant 48 : index
    %c896_427 = arith.constant 896 : index
    %268 = vector.load %arg15[%c48_426, %c896_427] : memref<80x2048xf32, #tpu.memory_space<vmem>>, vector<5x128xf32>
    tpu.vector_store %arg15[%c48_426, %c896_427], %267 {strides = array<i32>} : memref<80x2048xf32, #tpu.memory_space<vmem>>, vector<5x128xf32>,
    %c297 = arith.constant 297 : index
    %c0_428 = arith.constant 0 : index
    %269 = vector.load %arg14[%c297, %c0_428] : memref<416x128xf32, #tpu.memory_space<vmem>>, vector<5x128xf32>
    %c56_429 = arith.constant 56 : index
    %c896_430 = arith.constant 896 : index
    %270 = vector.load %arg15[%c56_429, %c896_430] : memref<80x2048xf32, #tpu.memory_space<vmem>>, vector<5x128xf32>
    tpu.vector_store %arg15[%c56_429, %c896_430], %269 {strides = array<i32>} : memref<80x2048xf32, #tpu.memory_space<vmem>>, vector<5x128xf32>,
    %c329 = arith.constant 329 : index
    %c0_431 = arith.constant 0 : index
    %271 = vector.load %arg14[%c329, %c0_431] : memref<416x128xf32, #tpu.memory_space<vmem>>, vector<5x128xf32>
    %c64_432 = arith.constant 64 : index
    %c896_433 = arith.constant 896 : index
    %272 = vector.load %arg15[%c64_432, %c896_433] : memref<80x2048xf32, #tpu.memory_space<vmem>>, vector<5x128xf32>
    tpu.vector_store %arg15[%c64_432, %c896_433], %271 {strides = array<i32>} : memref<80x2048xf32, #tpu.memory_space<vmem>>, vector<5x128xf32>,
    %c361 = arith.constant 361 : index
    %c0_434 = arith.constant 0 : index
    %273 = vector.load %arg14[%c361, %c0_434] : memref<416x128xf32, #tpu.memory_space<vmem>>, vector<5x128xf32>
    %c72_435 = arith.constant 72 : index
    %c896_436 = arith.constant 896 : index
    %274 = vector.load %arg15[%c72_435, %c896_436] : memref<80x2048xf32, #tpu.memory_space<vmem>>, vector<5x128xf32>
    tpu.vector_store %arg15[%c72_435, %c896_436], %273 {strides = array<i32>} : memref<80x2048xf32, #tpu.memory_space<vmem>>, vector<5x128xf32>,
    %c240_437 = arith.constant 240 : index
    %c0_438 = arith.constant 0 : index
    %275 = vector.load %arg14[%c240_437, %c0_438] : memref<416x128xf32, #tpu.memory_space<vmem>>, vector<5x128xf32>
    %c40_439 = arith.constant 40 : index
    %c1024_440 = arith.constant 1024 : index
    %276 = vector.load %arg15[%c40_439, %c1024_440] : memref<80x2048xf32, #tpu.memory_space<vmem>>, vector<5x128xf32>
    tpu.vector_store %arg15[%c40_439, %c1024_440], %275 {strides = array<i32>} : memref<80x2048xf32, #tpu.memory_space<vmem>>, vector<5x128xf32>,
    %c272_441 = arith.constant 272 : index
    %c0_442 = arith.constant 0 : index
    %277 = vector.load %arg14[%c272_441, %c0_442] : memref<416x128xf32, #tpu.memory_space<vmem>>, vector<5x128xf32>
    %c48_443 = arith.constant 48 : index
    %c1024_444 = arith.constant 1024 : index
    %278 = vector.load %arg15[%c48_443, %c1024_444] : memref<80x2048xf32, #tpu.memory_space<vmem>>, vector<5x128xf32>
    tpu.vector_store %arg15[%c48_443, %c1024_444], %277 {strides = array<i32>} : memref<80x2048xf32, #tpu.memory_space<vmem>>, vector<5x128xf32>,
    %c304_445 = arith.constant 304 : index
    %c0_446 = arith.constant 0 : index
    %279 = vector.load %arg14[%c304_445, %c0_446] : memref<416x128xf32, #tpu.memory_space<vmem>>, vector<5x128xf32>
    %c56_447 = arith.constant 56 : index
    %c1024_448 = arith.constant 1024 : index
    %280 = vector.load %arg15[%c56_447, %c1024_448] : memref<80x2048xf32, #tpu.memory_space<vmem>>, vector<5x128xf32>
    tpu.vector_store %arg15[%c56_447, %c1024_448], %279 {strides = array<i32>} : memref<80x2048xf32, #tpu.memory_space<vmem>>, vector<5x128xf32>,
    %c336_449 = arith.constant 336 : index
    %c0_450 = arith.constant 0 : index
    %281 = vector.load %arg14[%c336_449, %c0_450] : memref<416x128xf32, #tpu.memory_space<vmem>>, vector<5x128xf32>
    %c64_451 = arith.constant 64 : index
    %c1024_452 = arith.constant 1024 : index
    %282 = vector.load %arg15[%c64_451, %c1024_452] : memref<80x2048xf32, #tpu.memory_space<vmem>>, vector<5x128xf32>
    tpu.vector_store %arg15[%c64_451, %c1024_452], %281 {strides = array<i32>} : memref<80x2048xf32, #tpu.memory_space<vmem>>, vector<5x128xf32>,
    %c368_453 = arith.constant 368 : index
    %c0_454 = arith.constant 0 : index
    %283 = vector.load %arg14[%c368_453, %c0_454] : memref<416x128xf32, #tpu.memory_space<vmem>>, vector<5x128xf32>
    %c72_455 = arith.constant 72 : index
    %c1024_456 = arith.constant 1024 : index
    %284 = vector.load %arg15[%c72_455, %c1024_456] : memref<80x2048xf32, #tpu.memory_space<vmem>>, vector<5x128xf32>
    tpu.vector_store %arg15[%c72_455, %c1024_456], %283 {strides = array<i32>} : memref<80x2048xf32, #tpu.memory_space<vmem>>, vector<5x128xf32>,
    %c248_457 = arith.constant 248 : index
    %c0_458 = arith.constant 0 : index
    %285 = vector.load %arg14[%c248_457, %c0_458] : memref<416x128xf32, #tpu.memory_space<vmem>>, vector<5x128xf32>
    %c40_459 = arith.constant 40 : index
    %c1152_460 = arith.constant 1152 : index
    %286 = vector.load %arg15[%c40_459, %c1152_460] : memref<80x2048xf32, #tpu.memory_space<vmem>>, vector<5x128xf32>
    tpu.vector_store %arg15[%c40_459, %c1152_460], %285 {strides = array<i32>} : memref<80x2048xf32, #tpu.memory_space<vmem>>, vector<5x128xf32>,
    %c280_461 = arith.constant 280 : index
    %c0_462 = arith.constant 0 : index
    %287 = vector.load %arg14[%c280_461, %c0_462] : memref<416x128xf32, #tpu.memory_space<vmem>>, vector<5x128xf32>
    %c48_463 = arith.constant 48 : index
    %c1152_464 = arith.constant 1152 : index
    %288 = vector.load %arg15[%c48_463, %c1152_464] : memref<80x2048xf32, #tpu.memory_space<vmem>>, vector<5x128xf32>
    tpu.vector_store %arg15[%c48_463, %c1152_464], %287 {strides = array<i32>} : memref<80x2048xf32, #tpu.memory_space<vmem>>, vector<5x128xf32>,
    %c312_465 = arith.constant 312 : index
    %c0_466 = arith.constant 0 : index
    %289 = vector.load %arg14[%c312_465, %c0_466] : memref<416x128xf32, #tpu.memory_space<vmem>>, vector<5x128xf32>
    %c56_467 = arith.constant 56 : index
    %c1152_468 = arith.constant 1152 : index
    %290 = vector.load %arg15[%c56_467, %c1152_468] : memref<80x2048xf32, #tpu.memory_space<vmem>>, vector<5x128xf32>
    tpu.vector_store %arg15[%c56_467, %c1152_468], %289 {strides = array<i32>} : memref<80x2048xf32, #tpu.memory_space<vmem>>, vector<5x128xf32>,
    %c344_469 = arith.constant 344 : index
    %c0_470 = arith.constant 0 : index
    %291 = vector.load %arg14[%c344_469, %c0_470] : memref<416x128xf32, #tpu.memory_space<vmem>>, vector<5x128xf32>
    %c64_471 = arith.constant 64 : index
    %c1152_472 = arith.constant 1152 : index
    %292 = vector.load %arg15[%c64_471, %c1152_472] : memref<80x2048xf32, #tpu.memory_space<vmem>>, vector<5x128xf32>
    tpu.vector_store %arg15[%c64_471, %c1152_472], %291 {strides = array<i32>} : memref<80x2048xf32, #tpu.memory_space<vmem>>, vector<5x128xf32>,
    %c376 = arith.constant 376 : index
    %c0_473 = arith.constant 0 : index
    %293 = vector.load %arg14[%c376, %c0_473] : memref<416x128xf32, #tpu.memory_space<vmem>>, vector<5x128xf32>
    %c72_474 = arith.constant 72 : index
    %c1152_475 = arith.constant 1152 : index
    %294 = vector.load %arg15[%c72_474, %c1152_475] : memref<80x2048xf32, #tpu.memory_space<vmem>>, vector<5x128xf32>
    tpu.vector_store %arg15[%c72_474, %c1152_475], %293 {strides = array<i32>} : memref<80x2048xf32, #tpu.memory_space<vmem>>, vector<5x128xf32>,
    %c241_476 = arith.constant 241 : index
    %c0_477 = arith.constant 0 : index
    %295 = vector.load %arg14[%c241_476, %c0_477] : memref<416x128xf32, #tpu.memory_space<vmem>>, vector<5x128xf32>
    %c40_478 = arith.constant 40 : index
    %c1280_479 = arith.constant 1280 : index
    %296 = vector.load %arg15[%c40_478, %c1280_479] : memref<80x2048xf32, #tpu.memory_space<vmem>>, vector<5x128xf32>
    tpu.vector_store %arg15[%c40_478, %c1280_479], %295 {strides = array<i32>} : memref<80x2048xf32, #tpu.memory_space<vmem>>, vector<5x128xf32>,
    %c273_480 = arith.constant 273 : index
    %c0_481 = arith.constant 0 : index
    %297 = vector.load %arg14[%c273_480, %c0_481] : memref<416x128xf32, #tpu.memory_space<vmem>>, vector<5x128xf32>
    %c48_482 = arith.constant 48 : index
    %c1280_483 = arith.constant 1280 : index
    %298 = vector.load %arg15[%c48_482, %c1280_483] : memref<80x2048xf32, #tpu.memory_space<vmem>>, vector<5x128xf32>
    tpu.vector_store %arg15[%c48_482, %c1280_483], %297 {strides = array<i32>} : memref<80x2048xf32, #tpu.memory_space<vmem>>, vector<5x128xf32>,
    %c305_484 = arith.constant 305 : index
    %c0_485 = arith.constant 0 : index
    %299 = vector.load %arg14[%c305_484, %c0_485] : memref<416x128xf32, #tpu.memory_space<vmem>>, vector<5x128xf32>
    %c56_486 = arith.constant 56 : index
    %c1280_487 = arith.constant 1280 : index
    %300 = vector.load %arg15[%c56_486, %c1280_487] : memref<80x2048xf32, #tpu.memory_space<vmem>>, vector<5x128xf32>
    tpu.vector_store %arg15[%c56_486, %c1280_487], %299 {strides = array<i32>} : memref<80x2048xf32, #tpu.memory_space<vmem>>, vector<5x128xf32>,
    %c337_488 = arith.constant 337 : index
    %c0_489 = arith.constant 0 : index
    %301 = vector.load %arg14[%c337_488, %c0_489] : memref<416x128xf32, #tpu.memory_space<vmem>>, vector<5x128xf32>
    %c64_490 = arith.constant 64 : index
    %c1280_491 = arith.constant 1280 : index
    %302 = vector.load %arg15[%c64_490, %c1280_491] : memref<80x2048xf32, #tpu.memory_space<vmem>>, vector<5x128xf32>
    tpu.vector_store %arg15[%c64_490, %c1280_491], %301 {strides = array<i32>} : memref<80x2048xf32, #tpu.memory_space<vmem>>, vector<5x128xf32>,
    %c369 = arith.constant 369 : index
    %c0_492 = arith.constant 0 : index
    %303 = vector.load %arg14[%c369, %c0_492] : memref<416x128xf32, #tpu.memory_space<vmem>>, vector<5x128xf32>
    %c72_493 = arith.constant 72 : index
    %c1280_494 = arith.constant 1280 : index
    %304 = vector.load %arg15[%c72_493, %c1280_494] : memref<80x2048xf32, #tpu.memory_space<vmem>>, vector<5x128xf32>
    tpu.vector_store %arg15[%c72_493, %c1280_494], %303 {strides = array<i32>} : memref<80x2048xf32, #tpu.memory_space<vmem>>, vector<5x128xf32>,
    %c249_495 = arith.constant 249 : index
    %c0_496 = arith.constant 0 : index
    %305 = vector.load %arg14[%c249_495, %c0_496] : memref<416x128xf32, #tpu.memory_space<vmem>>, vector<5x128xf32>
    %c40_497 = arith.constant 40 : index
    %c1408_498 = arith.constant 1408 : index
    %306 = vector.load %arg15[%c40_497, %c1408_498] : memref<80x2048xf32, #tpu.memory_space<vmem>>, vector<5x128xf32>
    tpu.vector_store %arg15[%c40_497, %c1408_498], %305 {strides = array<i32>} : memref<80x2048xf32, #tpu.memory_space<vmem>>, vector<5x128xf32>,
    %c281_499 = arith.constant 281 : index
    %c0_500 = arith.constant 0 : index
    %307 = vector.load %arg14[%c281_499, %c0_500] : memref<416x128xf32, #tpu.memory_space<vmem>>, vector<5x128xf32>
    %c48_501 = arith.constant 48 : index
    %c1408_502 = arith.constant 1408 : index
    %308 = vector.load %arg15[%c48_501, %c1408_502] : memref<80x2048xf32, #tpu.memory_space<vmem>>, vector<5x128xf32>
    tpu.vector_store %arg15[%c48_501, %c1408_502], %307 {strides = array<i32>} : memref<80x2048xf32, #tpu.memory_space<vmem>>, vector<5x128xf32>,
    %c313_503 = arith.constant 313 : index
    %c0_504 = arith.constant 0 : index
    %309 = vector.load %arg14[%c313_503, %c0_504] : memref<416x128xf32, #tpu.memory_space<vmem>>, vector<5x128xf32>
    %c56_505 = arith.constant 56 : index
    %c1408_506 = arith.constant 1408 : index
    %310 = vector.load %arg15[%c56_505, %c1408_506] : memref<80x2048xf32, #tpu.memory_space<vmem>>, vector<5x128xf32>
    tpu.vector_store %arg15[%c56_505, %c1408_506], %309 {strides = array<i32>} : memref<80x2048xf32, #tpu.memory_space<vmem>>, vector<5x128xf32>,
    %c345_507 = arith.constant 345 : index
    %c0_508 = arith.constant 0 : index
    %311 = vector.load %arg14[%c345_507, %c0_508] : memref<416x128xf32, #tpu.memory_space<vmem>>, vector<5x128xf32>
    %c64_509 = arith.constant 64 : index
    %c1408_510 = arith.constant 1408 : index
    %312 = vector.load %arg15[%c64_509, %c1408_510] : memref<80x2048xf32, #tpu.memory_space<vmem>>, vector<5x128xf32>
    tpu.vector_store %arg15[%c64_509, %c1408_510], %311 {strides = array<i32>} : memref<80x2048xf32, #tpu.memory_space<vmem>>, vector<5x128xf32>,
    %c377 = arith.constant 377 : index
    %c0_511 = arith.constant 0 : index
    %313 = vector.load %arg14[%c377, %c0_511] : memref<416x128xf32, #tpu.memory_space<vmem>>, vector<5x128xf32>
    %c72_512 = arith.constant 72 : index
    %c1408_513 = arith.constant 1408 : index
    %314 = vector.load %arg15[%c72_512, %c1408_513] : memref<80x2048xf32, #tpu.memory_space<vmem>>, vector<5x128xf32>
    tpu.vector_store %arg15[%c72_512, %c1408_513], %313 {strides = array<i32>} : memref<80x2048xf32, #tpu.memory_space<vmem>>, vector<5x128xf32>,
    %c256_514 = arith.constant 256 : index
    %c0_515 = arith.constant 0 : index
    %315 = vector.load %arg14[%c256_514, %c0_515] : memref<416x128xf32, #tpu.memory_space<vmem>>, vector<5x128xf32>
    %c40_516 = arith.constant 40 : index
    %c1536_517 = arith.constant 1536 : index
    %316 = vector.load %arg15[%c40_516, %c1536_517] : memref<80x2048xf32, #tpu.memory_space<vmem>>, vector<5x128xf32>
    tpu.vector_store %arg15[%c40_516, %c1536_517], %315 {strides = array<i32>} : memref<80x2048xf32, #tpu.memory_space<vmem>>, vector<5x128xf32>,
    %c288_518 = arith.constant 288 : index
    %c0_519 = arith.constant 0 : index
    %317 = vector.load %arg14[%c288_518, %c0_519] : memref<416x128xf32, #tpu.memory_space<vmem>>, vector<5x128xf32>
    %c48_520 = arith.constant 48 : index
    %c1536_521 = arith.constant 1536 : index
    %318 = vector.load %arg15[%c48_520, %c1536_521] : memref<80x2048xf32, #tpu.memory_space<vmem>>, vector<5x128xf32>
    tpu.vector_store %arg15[%c48_520, %c1536_521], %317 {strides = array<i32>} : memref<80x2048xf32, #tpu.memory_space<vmem>>, vector<5x128xf32>,
    %c320_522 = arith.constant 320 : index
    %c0_523 = arith.constant 0 : index
    %319 = vector.load %arg14[%c320_522, %c0_523] : memref<416x128xf32, #tpu.memory_space<vmem>>, vector<5x128xf32>
    %c56_524 = arith.constant 56 : index
    %c1536_525 = arith.constant 1536 : index
    %320 = vector.load %arg15[%c56_524, %c1536_525] : memref<80x2048xf32, #tpu.memory_space<vmem>>, vector<5x128xf32>
    tpu.vector_store %arg15[%c56_524, %c1536_525], %319 {strides = array<i32>} : memref<80x2048xf32, #tpu.memory_space<vmem>>, vector<5x128xf32>,
    %c352_526 = arith.constant 352 : index
    %c0_527 = arith.constant 0 : index
    %321 = vector.load %arg14[%c352_526, %c0_527] : memref<416x128xf32, #tpu.memory_space<vmem>>, vector<5x128xf32>
    %c64_528 = arith.constant 64 : index
    %c1536_529 = arith.constant 1536 : index
    %322 = vector.load %arg15[%c64_528, %c1536_529] : memref<80x2048xf32, #tpu.memory_space<vmem>>, vector<5x128xf32>
    tpu.vector_store %arg15[%c64_528, %c1536_529], %321 {strides = array<i32>} : memref<80x2048xf32, #tpu.memory_space<vmem>>, vector<5x128xf32>,
    %c384_530 = arith.constant 384 : index
    %c0_531 = arith.constant 0 : index
    %323 = vector.load %arg14[%c384_530, %c0_531] : memref<416x128xf32, #tpu.memory_space<vmem>>, vector<5x128xf32>
    %c72_532 = arith.constant 72 : index
    %c1536_533 = arith.constant 1536 : index
    %324 = vector.load %arg15[%c72_532, %c1536_533] : memref<80x2048xf32, #tpu.memory_space<vmem>>, vector<5x128xf32>
    tpu.vector_store %arg15[%c72_532, %c1536_533], %323 {strides = array<i32>} : memref<80x2048xf32, #tpu.memory_space<vmem>>, vector<5x128xf32>,
    %c264_534 = arith.constant 264 : index
    %c0_535 = arith.constant 0 : index
    %325 = vector.load %arg14[%c264_534, %c0_535] : memref<416x128xf32, #tpu.memory_space<vmem>>, vector<5x128xf32>
    %c40_536 = arith.constant 40 : index
    %c1664_537 = arith.constant 1664 : index
    %326 = vector.load %arg15[%c40_536, %c1664_537] : memref<80x2048xf32, #tpu.memory_space<vmem>>, vector<5x128xf32>
    tpu.vector_store %arg15[%c40_536, %c1664_537], %325 {strides = array<i32>} : memref<80x2048xf32, #tpu.memory_space<vmem>>, vector<5x128xf32>,
    %c296_538 = arith.constant 296 : index
    %c0_539 = arith.constant 0 : index
    %327 = vector.load %arg14[%c296_538, %c0_539] : memref<416x128xf32, #tpu.memory_space<vmem>>, vector<5x128xf32>
    %c48_540 = arith.constant 48 : index
    %c1664_541 = arith.constant 1664 : index
    %328 = vector.load %arg15[%c48_540, %c1664_541] : memref<80x2048xf32, #tpu.memory_space<vmem>>, vector<5x128xf32>
    tpu.vector_store %arg15[%c48_540, %c1664_541], %327 {strides = array<i32>} : memref<80x2048xf32, #tpu.memory_space<vmem>>, vector<5x128xf32>,
    %c328_542 = arith.constant 328 : index
    %c0_543 = arith.constant 0 : index
    %329 = vector.load %arg14[%c328_542, %c0_543] : memref<416x128xf32, #tpu.memory_space<vmem>>, vector<5x128xf32>
    %c56_544 = arith.constant 56 : index
    %c1664_545 = arith.constant 1664 : index
    %330 = vector.load %arg15[%c56_544, %c1664_545] : memref<80x2048xf32, #tpu.memory_space<vmem>>, vector<5x128xf32>
    tpu.vector_store %arg15[%c56_544, %c1664_545], %329 {strides = array<i32>} : memref<80x2048xf32, #tpu.memory_space<vmem>>, vector<5x128xf32>,
    %c360_546 = arith.constant 360 : index
    %c0_547 = arith.constant 0 : index
    %331 = vector.load %arg14[%c360_546, %c0_547] : memref<416x128xf32, #tpu.memory_space<vmem>>, vector<5x128xf32>
    %c64_548 = arith.constant 64 : index
    %c1664_549 = arith.constant 1664 : index
    %332 = vector.load %arg15[%c64_548, %c1664_549] : memref<80x2048xf32, #tpu.memory_space<vmem>>, vector<5x128xf32>
    tpu.vector_store %arg15[%c64_548, %c1664_549], %331 {strides = array<i32>} : memref<80x2048xf32, #tpu.memory_space<vmem>>, vector<5x128xf32>,
    %c392 = arith.constant 392 : index
    %c0_550 = arith.constant 0 : index
    %333 = vector.load %arg14[%c392, %c0_550] : memref<416x128xf32, #tpu.memory_space<vmem>>, vector<5x128xf32>
    %c72_551 = arith.constant 72 : index
    %c1664_552 = arith.constant 1664 : index
    %334 = vector.load %arg15[%c72_551, %c1664_552] : memref<80x2048xf32, #tpu.memory_space<vmem>>, vector<5x128xf32>
    tpu.vector_store %arg15[%c72_551, %c1664_552], %333 {strides = array<i32>} : memref<80x2048xf32, #tpu.memory_space<vmem>>, vector<5x128xf32>,
    %c257_553 = arith.constant 257 : index
    %c0_554 = arith.constant 0 : index
    %335 = vector.load %arg14[%c257_553, %c0_554] : memref<416x128xf32, #tpu.memory_space<vmem>>, vector<5x128xf32>
    %c40_555 = arith.constant 40 : index
    %c1792_556 = arith.constant 1792 : index
    %336 = vector.load %arg15[%c40_555, %c1792_556] : memref<80x2048xf32, #tpu.memory_space<vmem>>, vector<5x128xf32>
    tpu.vector_store %arg15[%c40_555, %c1792_556], %335 {strides = array<i32>} : memref<80x2048xf32, #tpu.memory_space<vmem>>, vector<5x128xf32>,
    %c289_557 = arith.constant 289 : index
    %c0_558 = arith.constant 0 : index
    %337 = vector.load %arg14[%c289_557, %c0_558] : memref<416x128xf32, #tpu.memory_space<vmem>>, vector<5x128xf32>
    %c48_559 = arith.constant 48 : index
    %c1792_560 = arith.constant 1792 : index
    %338 = vector.load %arg15[%c48_559, %c1792_560] : memref<80x2048xf32, #tpu.memory_space<vmem>>, vector<5x128xf32>
    tpu.vector_store %arg15[%c48_559, %c1792_560], %337 {strides = array<i32>} : memref<80x2048xf32, #tpu.memory_space<vmem>>, vector<5x128xf32>,
    %c321_561 = arith.constant 321 : index
    %c0_562 = arith.constant 0 : index
    %339 = vector.load %arg14[%c321_561, %c0_562] : memref<416x128xf32, #tpu.memory_space<vmem>>, vector<5x128xf32>
    %c56_563 = arith.constant 56 : index
    %c1792_564 = arith.constant 1792 : index
    %340 = vector.load %arg15[%c56_563, %c1792_564] : memref<80x2048xf32, #tpu.memory_space<vmem>>, vector<5x128xf32>
    tpu.vector_store %arg15[%c56_563, %c1792_564], %339 {strides = array<i32>} : memref<80x2048xf32, #tpu.memory_space<vmem>>, vector<5x128xf32>,
    %c353_565 = arith.constant 353 : index
    %c0_566 = arith.constant 0 : index
    %341 = vector.load %arg14[%c353_565, %c0_566] : memref<416x128xf32, #tpu.memory_space<vmem>>, vector<5x128xf32>
    %c64_567 = arith.constant 64 : index
    %c1792_568 = arith.constant 1792 : index
    %342 = vector.load %arg15[%c64_567, %c1792_568] : memref<80x2048xf32, #tpu.memory_space<vmem>>, vector<5x128xf32>
    tpu.vector_store %arg15[%c64_567, %c1792_568], %341 {strides = array<i32>} : memref<80x2048xf32, #tpu.memory_space<vmem>>, vector<5x128xf32>,
    %c385 = arith.constant 385 : index
    %c0_569 = arith.constant 0 : index
    %343 = vector.load %arg14[%c385, %c0_569] : memref<416x128xf32, #tpu.memory_space<vmem>>, vector<5x128xf32>
    %c72_570 = arith.constant 72 : index
    %c1792_571 = arith.constant 1792 : index
    %344 = vector.load %arg15[%c72_570, %c1792_571] : memref<80x2048xf32, #tpu.memory_space<vmem>>, vector<5x128xf32>
    tpu.vector_store %arg15[%c72_570, %c1792_571], %343 {strides = array<i32>} : memref<80x2048xf32, #tpu.memory_space<vmem>>, vector<5x128xf32>,
    %c265_572 = arith.constant 265 : index
    %c0_573 = arith.constant 0 : index
    %345 = vector.load %arg14[%c265_572, %c0_573] : memref<416x128xf32, #tpu.memory_space<vmem>>, vector<5x128xf32>
    %c40_574 = arith.constant 40 : index
    %c1920_575 = arith.constant 1920 : index
    %346 = vector.load %arg15[%c40_574, %c1920_575] : memref<80x2048xf32, #tpu.memory_space<vmem>>, vector<5x128xf32>
    tpu.vector_store %arg15[%c40_574, %c1920_575], %345 {strides = array<i32>} : memref<80x2048xf32, #tpu.memory_space<vmem>>, vector<5x128xf32>,
    %c297_576 = arith.constant 297 : index
    %c0_577 = arith.constant 0 : index
    %347 = vector.load %arg14[%c297_576, %c0_577] : memref<416x128xf32, #tpu.memory_space<vmem>>, vector<5x128xf32>
    %c48_578 = arith.constant 48 : index
    %c1920_579 = arith.constant 1920 : index
    %348 = vector.load %arg15[%c48_578, %c1920_579] : memref<80x2048xf32, #tpu.memory_space<vmem>>, vector<5x128xf32>
    tpu.vector_store %arg15[%c48_578, %c1920_579], %347 {strides = array<i32>} : memref<80x2048xf32, #tpu.memory_space<vmem>>, vector<5x128xf32>,
    %c329_580 = arith.constant 329 : index
    %c0_581 = arith.constant 0 : index
    %349 = vector.load %arg14[%c329_580, %c0_581] : memref<416x128xf32, #tpu.memory_space<vmem>>, vector<5x128xf32>
    %c56_582 = arith.constant 56 : index
    %c1920_583 = arith.constant 1920 : index
    %350 = vector.load %arg15[%c56_582, %c1920_583] : memref<80x2048xf32, #tpu.memory_space<vmem>>, vector<5x128xf32>
    tpu.vector_store %arg15[%c56_582, %c1920_583], %349 {strides = array<i32>} : memref<80x2048xf32, #tpu.memory_space<vmem>>, vector<5x128xf32>,
    %c361_584 = arith.constant 361 : index
    %c0_585 = arith.constant 0 : index
    %351 = vector.load %arg14[%c361_584, %c0_585] : memref<416x128xf32, #tpu.memory_space<vmem>>, vector<5x128xf32>
    %c64_586 = arith.constant 64 : index
    %c1920_587 = arith.constant 1920 : index
    %352 = vector.load %arg15[%c64_586, %c1920_587] : memref<80x2048xf32, #tpu.memory_space<vmem>>, vector<5x128xf32>
    tpu.vector_store %arg15[%c64_586, %c1920_587], %351 {strides = array<i32>} : memref<80x2048xf32, #tpu.memory_space<vmem>>, vector<5x128xf32>,
    %c393 = arith.constant 393 : index
    %c0_588 = arith.constant 0 : index
    %353 = vector.load %arg14[%c393, %c0_588] : memref<416x128xf32, #tpu.memory_space<vmem>>, vector<5x128xf32>
    %c72_589 = arith.constant 72 : index
    %c1920_590 = arith.constant 1920 : index
    %354 = vector.load %arg15[%c72_589, %c1920_590] : memref<80x2048xf32, #tpu.memory_space<vmem>>, vector<5x128xf32>
    tpu.vector_store %arg15[%c72_589, %c1920_590], %353 {strides = array<i32>} : memref<80x2048xf32, #tpu.memory_space<vmem>>, vector<5x128xf32>,
    %c0_591 = arith.constant 0 : index
    %c0_592 = arith.constant 0 : index
    %355 = vector.load %arg15[%c0_591, %c0_592] : memref<80x2048xf32, #tpu.memory_space<vmem>>, vector<80x2048xf32>
    %356 = arith.truncf %355 : vector<80x2048xf32> to vector<80x2048xbf16>
    %c0_593 = arith.constant 0 : index
    %c0_594 = arith.constant 0 : index
    %357 = vector.load %arg3[%c0_593, %c0_594] : memref<2048x128xbf16, #tpu.memory_space<vmem>>, vector<2048x128xbf16>
    %cst_595 = arith.constant dense<0.000000e+00> : vector<80x128xf32>
    %358 = tpu.matmul %356, %357, %cst_595 {dimension_numbers = #tpu.dot_dimension_numbers<[1], [0], [0], [1], [0, 0, 1, 1], [], []>} : vector<80x2048xbf16>, vector<2048x128xbf16>, vector<80x128xf32> -> vector<80x128xf32>
    %c0_596 = arith.constant 0 : index
    %c0_597 = arith.constant 0 : index
    %359 = vector.load %arg4[%c0_596, %c0_597] : memref<1x128xf32, #tpu.memory_space<vmem>>, vector<1x128xf32>
    %360 = vector.broadcast %359 : vector<1x128xf32> to vector<80x128xf32>
    %361 = arith.addf %358, %360 : vector<80x128xf32>
    %cst_598 = arith.constant 0.000000e+00 : f32
    %362 = vector.broadcast %cst_598 : f32 to vector<80x128xf32>
    %363 = arith.maximumf %361, %362 : vector<80x128xf32>
    %c0_599 = arith.constant 0 : index
    %c0_600 = arith.constant 0 : index
    %364 = vector.load %arg16[%c0_599, %c0_600] : memref<80x128xf32, #tpu.memory_space<vmem>>, vector<80x128xf32>
    tpu.vector_store %arg16[%c0_599, %c0_600], %363 {strides = array<i32>} : memref<80x128xf32, #tpu.memory_space<vmem>>, vector<80x128xf32>,
    %c0_601 = arith.constant 0 : index
    %c0_602 = arith.constant 0 : index
    %365 = vector.load %arg16[%c0_601, %c0_602] : memref<80x128xf32, #tpu.memory_space<vmem>>, vector<3x128xf32>
    %c0_603 = arith.constant 0 : index
    %c0_604 = arith.constant 0 : index
    %366 = vector.load %arg17[%c0_603, %c0_604] : memref<48x1152xf32, #tpu.memory_space<vmem>>, vector<3x128xf32>
    tpu.vector_store %arg17[%c0_603, %c0_604], %365 {strides = array<i32>} : memref<48x1152xf32, #tpu.memory_space<vmem>>, vector<3x128xf32>,
    %c8_605 = arith.constant 8 : index
    %c0_606 = arith.constant 0 : index
    %367 = vector.load %arg16[%c8_605, %c0_606] : memref<80x128xf32, #tpu.memory_space<vmem>>, vector<3x128xf32>
    %c8_607 = arith.constant 8 : index
    %c0_608 = arith.constant 0 : index
    %368 = vector.load %arg17[%c8_607, %c0_608] : memref<48x1152xf32, #tpu.memory_space<vmem>>, vector<3x128xf32>
    tpu.vector_store %arg17[%c8_607, %c0_608], %367 {strides = array<i32>} : memref<48x1152xf32, #tpu.memory_space<vmem>>, vector<3x128xf32>,
    %c16_609 = arith.constant 16 : index
    %c0_610 = arith.constant 0 : index
    %369 = vector.load %arg16[%c16_609, %c0_610] : memref<80x128xf32, #tpu.memory_space<vmem>>, vector<3x128xf32>
    %c16_611 = arith.constant 16 : index
    %c0_612 = arith.constant 0 : index
    %370 = vector.load %arg17[%c16_611, %c0_612] : memref<48x1152xf32, #tpu.memory_space<vmem>>, vector<3x128xf32>
    tpu.vector_store %arg17[%c16_611, %c0_612], %369 {strides = array<i32>} : memref<48x1152xf32, #tpu.memory_space<vmem>>, vector<3x128xf32>,
    %c1_613 = arith.constant 1 : index
    %c0_614 = arith.constant 0 : index
    %371 = vector.load %arg16[%c1_613, %c0_614] : memref<80x128xf32, #tpu.memory_space<vmem>>, vector<3x128xf32>
    %c0_615 = arith.constant 0 : index
    %c128_616 = arith.constant 128 : index
    %372 = vector.load %arg17[%c0_615, %c128_616] : memref<48x1152xf32, #tpu.memory_space<vmem>>, vector<3x128xf32>
    tpu.vector_store %arg17[%c0_615, %c128_616], %371 {strides = array<i32>} : memref<48x1152xf32, #tpu.memory_space<vmem>>, vector<3x128xf32>,
    %c9_617 = arith.constant 9 : index
    %c0_618 = arith.constant 0 : index
    %373 = vector.load %arg16[%c9_617, %c0_618] : memref<80x128xf32, #tpu.memory_space<vmem>>, vector<3x128xf32>
    %c8_619 = arith.constant 8 : index
    %c128_620 = arith.constant 128 : index
    %374 = vector.load %arg17[%c8_619, %c128_620] : memref<48x1152xf32, #tpu.memory_space<vmem>>, vector<3x128xf32>
    tpu.vector_store %arg17[%c8_619, %c128_620], %373 {strides = array<i32>} : memref<48x1152xf32, #tpu.memory_space<vmem>>, vector<3x128xf32>,
    %c17_621 = arith.constant 17 : index
    %c0_622 = arith.constant 0 : index
    %375 = vector.load %arg16[%c17_621, %c0_622] : memref<80x128xf32, #tpu.memory_space<vmem>>, vector<3x128xf32>
    %c16_623 = arith.constant 16 : index
    %c128_624 = arith.constant 128 : index
    %376 = vector.load %arg17[%c16_623, %c128_624] : memref<48x1152xf32, #tpu.memory_space<vmem>>, vector<3x128xf32>
    tpu.vector_store %arg17[%c16_623, %c128_624], %375 {strides = array<i32>} : memref<48x1152xf32, #tpu.memory_space<vmem>>, vector<3x128xf32>,
    %c2 = arith.constant 2 : index
    %c0_625 = arith.constant 0 : index
    %377 = vector.load %arg16[%c2, %c0_625] : memref<80x128xf32, #tpu.memory_space<vmem>>, vector<3x128xf32>
    %c0_626 = arith.constant 0 : index
    %c256_627 = arith.constant 256 : index
    %378 = vector.load %arg17[%c0_626, %c256_627] : memref<48x1152xf32, #tpu.memory_space<vmem>>, vector<3x128xf32>
    tpu.vector_store %arg17[%c0_626, %c256_627], %377 {strides = array<i32>} : memref<48x1152xf32, #tpu.memory_space<vmem>>, vector<3x128xf32>,
    %c10 = arith.constant 10 : index
    %c0_628 = arith.constant 0 : index
    %379 = vector.load %arg16[%c10, %c0_628] : memref<80x128xf32, #tpu.memory_space<vmem>>, vector<3x128xf32>
    %c8_629 = arith.constant 8 : index
    %c256_630 = arith.constant 256 : index
    %380 = vector.load %arg17[%c8_629, %c256_630] : memref<48x1152xf32, #tpu.memory_space<vmem>>, vector<3x128xf32>
    tpu.vector_store %arg17[%c8_629, %c256_630], %379 {strides = array<i32>} : memref<48x1152xf32, #tpu.memory_space<vmem>>, vector<3x128xf32>,
    %c18 = arith.constant 18 : index
    %c0_631 = arith.constant 0 : index
    %381 = vector.load %arg16[%c18, %c0_631] : memref<80x128xf32, #tpu.memory_space<vmem>>, vector<3x128xf32>
    %c16_632 = arith.constant 16 : index
    %c256_633 = arith.constant 256 : index
    %382 = vector.load %arg17[%c16_632, %c256_633] : memref<48x1152xf32, #tpu.memory_space<vmem>>, vector<3x128xf32>
    tpu.vector_store %arg17[%c16_632, %c256_633], %381 {strides = array<i32>} : memref<48x1152xf32, #tpu.memory_space<vmem>>, vector<3x128xf32>,
    %c8_634 = arith.constant 8 : index
    %c0_635 = arith.constant 0 : index
    %383 = vector.load %arg16[%c8_634, %c0_635] : memref<80x128xf32, #tpu.memory_space<vmem>>, vector<3x128xf32>
    %c0_636 = arith.constant 0 : index
    %c384_637 = arith.constant 384 : index
    %384 = vector.load %arg17[%c0_636, %c384_637] : memref<48x1152xf32, #tpu.memory_space<vmem>>, vector<3x128xf32>
    tpu.vector_store %arg17[%c0_636, %c384_637], %383 {strides = array<i32>} : memref<48x1152xf32, #tpu.memory_space<vmem>>, vector<3x128xf32>,
    %c16_638 = arith.constant 16 : index
    %c0_639 = arith.constant 0 : index
    %385 = vector.load %arg16[%c16_638, %c0_639] : memref<80x128xf32, #tpu.memory_space<vmem>>, vector<3x128xf32>
    %c8_640 = arith.constant 8 : index
    %c384_641 = arith.constant 384 : index
    %386 = vector.load %arg17[%c8_640, %c384_641] : memref<48x1152xf32, #tpu.memory_space<vmem>>, vector<3x128xf32>
    tpu.vector_store %arg17[%c8_640, %c384_641], %385 {strides = array<i32>} : memref<48x1152xf32, #tpu.memory_space<vmem>>, vector<3x128xf32>,
    %c24_642 = arith.constant 24 : index
    %c0_643 = arith.constant 0 : index
    %387 = vector.load %arg16[%c24_642, %c0_643] : memref<80x128xf32, #tpu.memory_space<vmem>>, vector<3x128xf32>
    %c16_644 = arith.constant 16 : index
    %c384_645 = arith.constant 384 : index
    %388 = vector.load %arg17[%c16_644, %c384_645] : memref<48x1152xf32, #tpu.memory_space<vmem>>, vector<3x128xf32>
    tpu.vector_store %arg17[%c16_644, %c384_645], %387 {strides = array<i32>} : memref<48x1152xf32, #tpu.memory_space<vmem>>, vector<3x128xf32>,
    %c9_646 = arith.constant 9 : index
    %c0_647 = arith.constant 0 : index
    %389 = vector.load %arg16[%c9_646, %c0_647] : memref<80x128xf32, #tpu.memory_space<vmem>>, vector<3x128xf32>
    %c0_648 = arith.constant 0 : index
    %c512_649 = arith.constant 512 : index
    %390 = vector.load %arg17[%c0_648, %c512_649] : memref<48x1152xf32, #tpu.memory_space<vmem>>, vector<3x128xf32>
    tpu.vector_store %arg17[%c0_648, %c512_649], %389 {strides = array<i32>} : memref<48x1152xf32, #tpu.memory_space<vmem>>, vector<3x128xf32>,
    %c17_650 = arith.constant 17 : index
    %c0_651 = arith.constant 0 : index
    %391 = vector.load %arg16[%c17_650, %c0_651] : memref<80x128xf32, #tpu.memory_space<vmem>>, vector<3x128xf32>
    %c8_652 = arith.constant 8 : index
    %c512_653 = arith.constant 512 : index
    %392 = vector.load %arg17[%c8_652, %c512_653] : memref<48x1152xf32, #tpu.memory_space<vmem>>, vector<3x128xf32>
    tpu.vector_store %arg17[%c8_652, %c512_653], %391 {strides = array<i32>} : memref<48x1152xf32, #tpu.memory_space<vmem>>, vector<3x128xf32>,
    %c25_654 = arith.constant 25 : index
    %c0_655 = arith.constant 0 : index
    %393 = vector.load %arg16[%c25_654, %c0_655] : memref<80x128xf32, #tpu.memory_space<vmem>>, vector<3x128xf32>
    %c16_656 = arith.constant 16 : index
    %c512_657 = arith.constant 512 : index
    %394 = vector.load %arg17[%c16_656, %c512_657] : memref<48x1152xf32, #tpu.memory_space<vmem>>, vector<3x128xf32>
    tpu.vector_store %arg17[%c16_656, %c512_657], %393 {strides = array<i32>} : memref<48x1152xf32, #tpu.memory_space<vmem>>, vector<3x128xf32>,
    %c10_658 = arith.constant 10 : index
    %c0_659 = arith.constant 0 : index
    %395 = vector.load %arg16[%c10_658, %c0_659] : memref<80x128xf32, #tpu.memory_space<vmem>>, vector<3x128xf32>
    %c0_660 = arith.constant 0 : index
    %c640_661 = arith.constant 640 : index
    %396 = vector.load %arg17[%c0_660, %c640_661] : memref<48x1152xf32, #tpu.memory_space<vmem>>, vector<3x128xf32>
    tpu.vector_store %arg17[%c0_660, %c640_661], %395 {strides = array<i32>} : memref<48x1152xf32, #tpu.memory_space<vmem>>, vector<3x128xf32>,
    %c18_662 = arith.constant 18 : index
    %c0_663 = arith.constant 0 : index
    %397 = vector.load %arg16[%c18_662, %c0_663] : memref<80x128xf32, #tpu.memory_space<vmem>>, vector<3x128xf32>
    %c8_664 = arith.constant 8 : index
    %c640_665 = arith.constant 640 : index
    %398 = vector.load %arg17[%c8_664, %c640_665] : memref<48x1152xf32, #tpu.memory_space<vmem>>, vector<3x128xf32>
    tpu.vector_store %arg17[%c8_664, %c640_665], %397 {strides = array<i32>} : memref<48x1152xf32, #tpu.memory_space<vmem>>, vector<3x128xf32>,
    %c26 = arith.constant 26 : index
    %c0_666 = arith.constant 0 : index
    %399 = vector.load %arg16[%c26, %c0_666] : memref<80x128xf32, #tpu.memory_space<vmem>>, vector<3x128xf32>
    %c16_667 = arith.constant 16 : index
    %c640_668 = arith.constant 640 : index
    %400 = vector.load %arg17[%c16_667, %c640_668] : memref<48x1152xf32, #tpu.memory_space<vmem>>, vector<3x128xf32>
    tpu.vector_store %arg17[%c16_667, %c640_668], %399 {strides = array<i32>} : memref<48x1152xf32, #tpu.memory_space<vmem>>, vector<3x128xf32>,
    %c16_669 = arith.constant 16 : index
    %c0_670 = arith.constant 0 : index
    %401 = vector.load %arg16[%c16_669, %c0_670] : memref<80x128xf32, #tpu.memory_space<vmem>>, vector<3x128xf32>
    %c0_671 = arith.constant 0 : index
    %c768_672 = arith.constant 768 : index
    %402 = vector.load %arg17[%c0_671, %c768_672] : memref<48x1152xf32, #tpu.memory_space<vmem>>, vector<3x128xf32>
    tpu.vector_store %arg17[%c0_671, %c768_672], %401 {strides = array<i32>} : memref<48x1152xf32, #tpu.memory_space<vmem>>, vector<3x128xf32>,
    %c24_673 = arith.constant 24 : index
    %c0_674 = arith.constant 0 : index
    %403 = vector.load %arg16[%c24_673, %c0_674] : memref<80x128xf32, #tpu.memory_space<vmem>>, vector<3x128xf32>
    %c8_675 = arith.constant 8 : index
    %c768_676 = arith.constant 768 : index
    %404 = vector.load %arg17[%c8_675, %c768_676] : memref<48x1152xf32, #tpu.memory_space<vmem>>, vector<3x128xf32>
    tpu.vector_store %arg17[%c8_675, %c768_676], %403 {strides = array<i32>} : memref<48x1152xf32, #tpu.memory_space<vmem>>, vector<3x128xf32>,
    %c32_677 = arith.constant 32 : index
    %c0_678 = arith.constant 0 : index
    %405 = vector.load %arg16[%c32_677, %c0_678] : memref<80x128xf32, #tpu.memory_space<vmem>>, vector<3x128xf32>
    %c16_679 = arith.constant 16 : index
    %c768_680 = arith.constant 768 : index
    %406 = vector.load %arg17[%c16_679, %c768_680] : memref<48x1152xf32, #tpu.memory_space<vmem>>, vector<3x128xf32>
    tpu.vector_store %arg17[%c16_679, %c768_680], %405 {strides = array<i32>} : memref<48x1152xf32, #tpu.memory_space<vmem>>, vector<3x128xf32>,
    %c17_681 = arith.constant 17 : index
    %c0_682 = arith.constant 0 : index
    %407 = vector.load %arg16[%c17_681, %c0_682] : memref<80x128xf32, #tpu.memory_space<vmem>>, vector<3x128xf32>
    %c0_683 = arith.constant 0 : index
    %c896_684 = arith.constant 896 : index
    %408 = vector.load %arg17[%c0_683, %c896_684] : memref<48x1152xf32, #tpu.memory_space<vmem>>, vector<3x128xf32>
    tpu.vector_store %arg17[%c0_683, %c896_684], %407 {strides = array<i32>} : memref<48x1152xf32, #tpu.memory_space<vmem>>, vector<3x128xf32>,
    %c25_685 = arith.constant 25 : index
    %c0_686 = arith.constant 0 : index
    %409 = vector.load %arg16[%c25_685, %c0_686] : memref<80x128xf32, #tpu.memory_space<vmem>>, vector<3x128xf32>
    %c8_687 = arith.constant 8 : index
    %c896_688 = arith.constant 896 : index
    %410 = vector.load %arg17[%c8_687, %c896_688] : memref<48x1152xf32, #tpu.memory_space<vmem>>, vector<3x128xf32>
    tpu.vector_store %arg17[%c8_687, %c896_688], %409 {strides = array<i32>} : memref<48x1152xf32, #tpu.memory_space<vmem>>, vector<3x128xf32>,
    %c33_689 = arith.constant 33 : index
    %c0_690 = arith.constant 0 : index
    %411 = vector.load %arg16[%c33_689, %c0_690] : memref<80x128xf32, #tpu.memory_space<vmem>>, vector<3x128xf32>
    %c16_691 = arith.constant 16 : index
    %c896_692 = arith.constant 896 : index
    %412 = vector.load %arg17[%c16_691, %c896_692] : memref<48x1152xf32, #tpu.memory_space<vmem>>, vector<3x128xf32>
    tpu.vector_store %arg17[%c16_691, %c896_692], %411 {strides = array<i32>} : memref<48x1152xf32, #tpu.memory_space<vmem>>, vector<3x128xf32>,
    %c18_693 = arith.constant 18 : index
    %c0_694 = arith.constant 0 : index
    %413 = vector.load %arg16[%c18_693, %c0_694] : memref<80x128xf32, #tpu.memory_space<vmem>>, vector<3x128xf32>
    %c0_695 = arith.constant 0 : index
    %c1024_696 = arith.constant 1024 : index
    %414 = vector.load %arg17[%c0_695, %c1024_696] : memref<48x1152xf32, #tpu.memory_space<vmem>>, vector<3x128xf32>
    tpu.vector_store %arg17[%c0_695, %c1024_696], %413 {strides = array<i32>} : memref<48x1152xf32, #tpu.memory_space<vmem>>, vector<3x128xf32>,
    %c26_697 = arith.constant 26 : index
    %c0_698 = arith.constant 0 : index
    %415 = vector.load %arg16[%c26_697, %c0_698] : memref<80x128xf32, #tpu.memory_space<vmem>>, vector<3x128xf32>
    %c8_699 = arith.constant 8 : index
    %c1024_700 = arith.constant 1024 : index
    %416 = vector.load %arg17[%c8_699, %c1024_700] : memref<48x1152xf32, #tpu.memory_space<vmem>>, vector<3x128xf32>
    tpu.vector_store %arg17[%c8_699, %c1024_700], %415 {strides = array<i32>} : memref<48x1152xf32, #tpu.memory_space<vmem>>, vector<3x128xf32>,
    %c34 = arith.constant 34 : index
    %c0_701 = arith.constant 0 : index
    %417 = vector.load %arg16[%c34, %c0_701] : memref<80x128xf32, #tpu.memory_space<vmem>>, vector<3x128xf32>
    %c16_702 = arith.constant 16 : index
    %c1024_703 = arith.constant 1024 : index
    %418 = vector.load %arg17[%c16_702, %c1024_703] : memref<48x1152xf32, #tpu.memory_space<vmem>>, vector<3x128xf32>
    tpu.vector_store %arg17[%c16_702, %c1024_703], %417 {strides = array<i32>} : memref<48x1152xf32, #tpu.memory_space<vmem>>, vector<3x128xf32>,
    %c40_704 = arith.constant 40 : index
    %c0_705 = arith.constant 0 : index
    %419 = vector.load %arg16[%c40_704, %c0_705] : memref<80x128xf32, #tpu.memory_space<vmem>>, vector<3x128xf32>
    %c24_706 = arith.constant 24 : index
    %c0_707 = arith.constant 0 : index
    %420 = vector.load %arg17[%c24_706, %c0_707] : memref<48x1152xf32, #tpu.memory_space<vmem>>, vector<3x128xf32>
    tpu.vector_store %arg17[%c24_706, %c0_707], %419 {strides = array<i32>} : memref<48x1152xf32, #tpu.memory_space<vmem>>, vector<3x128xf32>,
    %c48_708 = arith.constant 48 : index
    %c0_709 = arith.constant 0 : index
    %421 = vector.load %arg16[%c48_708, %c0_709] : memref<80x128xf32, #tpu.memory_space<vmem>>, vector<3x128xf32>
    %c32_710 = arith.constant 32 : index
    %c0_711 = arith.constant 0 : index
    %422 = vector.load %arg17[%c32_710, %c0_711] : memref<48x1152xf32, #tpu.memory_space<vmem>>, vector<3x128xf32>
    tpu.vector_store %arg17[%c32_710, %c0_711], %421 {strides = array<i32>} : memref<48x1152xf32, #tpu.memory_space<vmem>>, vector<3x128xf32>,
    %c56_712 = arith.constant 56 : index
    %c0_713 = arith.constant 0 : index
    %423 = vector.load %arg16[%c56_712, %c0_713] : memref<80x128xf32, #tpu.memory_space<vmem>>, vector<3x128xf32>
    %c40_714 = arith.constant 40 : index
    %c0_715 = arith.constant 0 : index
    %424 = vector.load %arg17[%c40_714, %c0_715] : memref<48x1152xf32, #tpu.memory_space<vmem>>, vector<3x128xf32>
    tpu.vector_store %arg17[%c40_714, %c0_715], %423 {strides = array<i32>} : memref<48x1152xf32, #tpu.memory_space<vmem>>, vector<3x128xf32>,
    %c41_716 = arith.constant 41 : index
    %c0_717 = arith.constant 0 : index
    %425 = vector.load %arg16[%c41_716, %c0_717] : memref<80x128xf32, #tpu.memory_space<vmem>>, vector<3x128xf32>
    %c24_718 = arith.constant 24 : index
    %c128_719 = arith.constant 128 : index
    %426 = vector.load %arg17[%c24_718, %c128_719] : memref<48x1152xf32, #tpu.memory_space<vmem>>, vector<3x128xf32>
    tpu.vector_store %arg17[%c24_718, %c128_719], %425 {strides = array<i32>} : memref<48x1152xf32, #tpu.memory_space<vmem>>, vector<3x128xf32>,
    %c49_720 = arith.constant 49 : index
    %c0_721 = arith.constant 0 : index
    %427 = vector.load %arg16[%c49_720, %c0_721] : memref<80x128xf32, #tpu.memory_space<vmem>>, vector<3x128xf32>
    %c32_722 = arith.constant 32 : index
    %c128_723 = arith.constant 128 : index
    %428 = vector.load %arg17[%c32_722, %c128_723] : memref<48x1152xf32, #tpu.memory_space<vmem>>, vector<3x128xf32>
    tpu.vector_store %arg17[%c32_722, %c128_723], %427 {strides = array<i32>} : memref<48x1152xf32, #tpu.memory_space<vmem>>, vector<3x128xf32>,
    %c57_724 = arith.constant 57 : index
    %c0_725 = arith.constant 0 : index
    %429 = vector.load %arg16[%c57_724, %c0_725] : memref<80x128xf32, #tpu.memory_space<vmem>>, vector<3x128xf32>
    %c40_726 = arith.constant 40 : index
    %c128_727 = arith.constant 128 : index
    %430 = vector.load %arg17[%c40_726, %c128_727] : memref<48x1152xf32, #tpu.memory_space<vmem>>, vector<3x128xf32>
    tpu.vector_store %arg17[%c40_726, %c128_727], %429 {strides = array<i32>} : memref<48x1152xf32, #tpu.memory_space<vmem>>, vector<3x128xf32>,
    %c42 = arith.constant 42 : index
    %c0_728 = arith.constant 0 : index
    %431 = vector.load %arg16[%c42, %c0_728] : memref<80x128xf32, #tpu.memory_space<vmem>>, vector<3x128xf32>
    %c24_729 = arith.constant 24 : index
    %c256_730 = arith.constant 256 : index
    %432 = vector.load %arg17[%c24_729, %c256_730] : memref<48x1152xf32, #tpu.memory_space<vmem>>, vector<3x128xf32>
    tpu.vector_store %arg17[%c24_729, %c256_730], %431 {strides = array<i32>} : memref<48x1152xf32, #tpu.memory_space<vmem>>, vector<3x128xf32>,
    %c50 = arith.constant 50 : index
    %c0_731 = arith.constant 0 : index
    %433 = vector.load %arg16[%c50, %c0_731] : memref<80x128xf32, #tpu.memory_space<vmem>>, vector<3x128xf32>
    %c32_732 = arith.constant 32 : index
    %c256_733 = arith.constant 256 : index
    %434 = vector.load %arg17[%c32_732, %c256_733] : memref<48x1152xf32, #tpu.memory_space<vmem>>, vector<3x128xf32>
    tpu.vector_store %arg17[%c32_732, %c256_733], %433 {strides = array<i32>} : memref<48x1152xf32, #tpu.memory_space<vmem>>, vector<3x128xf32>,
    %c58 = arith.constant 58 : index
    %c0_734 = arith.constant 0 : index
    %435 = vector.load %arg16[%c58, %c0_734] : memref<80x128xf32, #tpu.memory_space<vmem>>, vector<3x128xf32>
    %c40_735 = arith.constant 40 : index
    %c256_736 = arith.constant 256 : index
    %436 = vector.load %arg17[%c40_735, %c256_736] : memref<48x1152xf32, #tpu.memory_space<vmem>>, vector<3x128xf32>
    tpu.vector_store %arg17[%c40_735, %c256_736], %435 {strides = array<i32>} : memref<48x1152xf32, #tpu.memory_space<vmem>>, vector<3x128xf32>,
    %c48_737 = arith.constant 48 : index
    %c0_738 = arith.constant 0 : index
    %437 = vector.load %arg16[%c48_737, %c0_738] : memref<80x128xf32, #tpu.memory_space<vmem>>, vector<3x128xf32>
    %c24_739 = arith.constant 24 : index
    %c384_740 = arith.constant 384 : index
    %438 = vector.load %arg17[%c24_739, %c384_740] : memref<48x1152xf32, #tpu.memory_space<vmem>>, vector<3x128xf32>
    tpu.vector_store %arg17[%c24_739, %c384_740], %437 {strides = array<i32>} : memref<48x1152xf32, #tpu.memory_space<vmem>>, vector<3x128xf32>,
    %c56_741 = arith.constant 56 : index
    %c0_742 = arith.constant 0 : index
    %439 = vector.load %arg16[%c56_741, %c0_742] : memref<80x128xf32, #tpu.memory_space<vmem>>, vector<3x128xf32>
    %c32_743 = arith.constant 32 : index
    %c384_744 = arith.constant 384 : index
    %440 = vector.load %arg17[%c32_743, %c384_744] : memref<48x1152xf32, #tpu.memory_space<vmem>>, vector<3x128xf32>
    tpu.vector_store %arg17[%c32_743, %c384_744], %439 {strides = array<i32>} : memref<48x1152xf32, #tpu.memory_space<vmem>>, vector<3x128xf32>,
    %c64_745 = arith.constant 64 : index
    %c0_746 = arith.constant 0 : index
    %441 = vector.load %arg16[%c64_745, %c0_746] : memref<80x128xf32, #tpu.memory_space<vmem>>, vector<3x128xf32>
    %c40_747 = arith.constant 40 : index
    %c384_748 = arith.constant 384 : index
    %442 = vector.load %arg17[%c40_747, %c384_748] : memref<48x1152xf32, #tpu.memory_space<vmem>>, vector<3x128xf32>
    tpu.vector_store %arg17[%c40_747, %c384_748], %441 {strides = array<i32>} : memref<48x1152xf32, #tpu.memory_space<vmem>>, vector<3x128xf32>,
    %c49_749 = arith.constant 49 : index
    %c0_750 = arith.constant 0 : index
    %443 = vector.load %arg16[%c49_749, %c0_750] : memref<80x128xf32, #tpu.memory_space<vmem>>, vector<3x128xf32>
    %c24_751 = arith.constant 24 : index
    %c512_752 = arith.constant 512 : index
    %444 = vector.load %arg17[%c24_751, %c512_752] : memref<48x1152xf32, #tpu.memory_space<vmem>>, vector<3x128xf32>
    tpu.vector_store %arg17[%c24_751, %c512_752], %443 {strides = array<i32>} : memref<48x1152xf32, #tpu.memory_space<vmem>>, vector<3x128xf32>,
    %c57_753 = arith.constant 57 : index
    %c0_754 = arith.constant 0 : index
    %445 = vector.load %arg16[%c57_753, %c0_754] : memref<80x128xf32, #tpu.memory_space<vmem>>, vector<3x128xf32>
    %c32_755 = arith.constant 32 : index
    %c512_756 = arith.constant 512 : index
    %446 = vector.load %arg17[%c32_755, %c512_756] : memref<48x1152xf32, #tpu.memory_space<vmem>>, vector<3x128xf32>
    tpu.vector_store %arg17[%c32_755, %c512_756], %445 {strides = array<i32>} : memref<48x1152xf32, #tpu.memory_space<vmem>>, vector<3x128xf32>,
    %c65_757 = arith.constant 65 : index
    %c0_758 = arith.constant 0 : index
    %447 = vector.load %arg16[%c65_757, %c0_758] : memref<80x128xf32, #tpu.memory_space<vmem>>, vector<3x128xf32>
    %c40_759 = arith.constant 40 : index
    %c512_760 = arith.constant 512 : index
    %448 = vector.load %arg17[%c40_759, %c512_760] : memref<48x1152xf32, #tpu.memory_space<vmem>>, vector<3x128xf32>
    tpu.vector_store %arg17[%c40_759, %c512_760], %447 {strides = array<i32>} : memref<48x1152xf32, #tpu.memory_space<vmem>>, vector<3x128xf32>,
    %c50_761 = arith.constant 50 : index
    %c0_762 = arith.constant 0 : index
    %449 = vector.load %arg16[%c50_761, %c0_762] : memref<80x128xf32, #tpu.memory_space<vmem>>, vector<3x128xf32>
    %c24_763 = arith.constant 24 : index
    %c640_764 = arith.constant 640 : index
    %450 = vector.load %arg17[%c24_763, %c640_764] : memref<48x1152xf32, #tpu.memory_space<vmem>>, vector<3x128xf32>
    tpu.vector_store %arg17[%c24_763, %c640_764], %449 {strides = array<i32>} : memref<48x1152xf32, #tpu.memory_space<vmem>>, vector<3x128xf32>,
    %c58_765 = arith.constant 58 : index
    %c0_766 = arith.constant 0 : index
    %451 = vector.load %arg16[%c58_765, %c0_766] : memref<80x128xf32, #tpu.memory_space<vmem>>, vector<3x128xf32>
    %c32_767 = arith.constant 32 : index
    %c640_768 = arith.constant 640 : index
    %452 = vector.load %arg17[%c32_767, %c640_768] : memref<48x1152xf32, #tpu.memory_space<vmem>>, vector<3x128xf32>
    tpu.vector_store %arg17[%c32_767, %c640_768], %451 {strides = array<i32>} : memref<48x1152xf32, #tpu.memory_space<vmem>>, vector<3x128xf32>,
    %c66 = arith.constant 66 : index
    %c0_769 = arith.constant 0 : index
    %453 = vector.load %arg16[%c66, %c0_769] : memref<80x128xf32, #tpu.memory_space<vmem>>, vector<3x128xf32>
    %c40_770 = arith.constant 40 : index
    %c640_771 = arith.constant 640 : index
    %454 = vector.load %arg17[%c40_770, %c640_771] : memref<48x1152xf32, #tpu.memory_space<vmem>>, vector<3x128xf32>
    tpu.vector_store %arg17[%c40_770, %c640_771], %453 {strides = array<i32>} : memref<48x1152xf32, #tpu.memory_space<vmem>>, vector<3x128xf32>,
    %c56_772 = arith.constant 56 : index
    %c0_773 = arith.constant 0 : index
    %455 = vector.load %arg16[%c56_772, %c0_773] : memref<80x128xf32, #tpu.memory_space<vmem>>, vector<3x128xf32>
    %c24_774 = arith.constant 24 : index
    %c768_775 = arith.constant 768 : index
    %456 = vector.load %arg17[%c24_774, %c768_775] : memref<48x1152xf32, #tpu.memory_space<vmem>>, vector<3x128xf32>
    tpu.vector_store %arg17[%c24_774, %c768_775], %455 {strides = array<i32>} : memref<48x1152xf32, #tpu.memory_space<vmem>>, vector<3x128xf32>,
    %c64_776 = arith.constant 64 : index
    %c0_777 = arith.constant 0 : index
    %457 = vector.load %arg16[%c64_776, %c0_777] : memref<80x128xf32, #tpu.memory_space<vmem>>, vector<3x128xf32>
    %c32_778 = arith.constant 32 : index
    %c768_779 = arith.constant 768 : index
    %458 = vector.load %arg17[%c32_778, %c768_779] : memref<48x1152xf32, #tpu.memory_space<vmem>>, vector<3x128xf32>
    tpu.vector_store %arg17[%c32_778, %c768_779], %457 {strides = array<i32>} : memref<48x1152xf32, #tpu.memory_space<vmem>>, vector<3x128xf32>,
    %c72_780 = arith.constant 72 : index
    %c0_781 = arith.constant 0 : index
    %459 = vector.load %arg16[%c72_780, %c0_781] : memref<80x128xf32, #tpu.memory_space<vmem>>, vector<3x128xf32>
    %c40_782 = arith.constant 40 : index
    %c768_783 = arith.constant 768 : index
    %460 = vector.load %arg17[%c40_782, %c768_783] : memref<48x1152xf32, #tpu.memory_space<vmem>>, vector<3x128xf32>
    tpu.vector_store %arg17[%c40_782, %c768_783], %459 {strides = array<i32>} : memref<48x1152xf32, #tpu.memory_space<vmem>>, vector<3x128xf32>,
    %c57_784 = arith.constant 57 : index
    %c0_785 = arith.constant 0 : index
    %461 = vector.load %arg16[%c57_784, %c0_785] : memref<80x128xf32, #tpu.memory_space<vmem>>, vector<3x128xf32>
    %c24_786 = arith.constant 24 : index
    %c896_787 = arith.constant 896 : index
    %462 = vector.load %arg17[%c24_786, %c896_787] : memref<48x1152xf32, #tpu.memory_space<vmem>>, vector<3x128xf32>
    tpu.vector_store %arg17[%c24_786, %c896_787], %461 {strides = array<i32>} : memref<48x1152xf32, #tpu.memory_space<vmem>>, vector<3x128xf32>,
    %c65_788 = arith.constant 65 : index
    %c0_789 = arith.constant 0 : index
    %463 = vector.load %arg16[%c65_788, %c0_789] : memref<80x128xf32, #tpu.memory_space<vmem>>, vector<3x128xf32>
    %c32_790 = arith.constant 32 : index
    %c896_791 = arith.constant 896 : index
    %464 = vector.load %arg17[%c32_790, %c896_791] : memref<48x1152xf32, #tpu.memory_space<vmem>>, vector<3x128xf32>
    tpu.vector_store %arg17[%c32_790, %c896_791], %463 {strides = array<i32>} : memref<48x1152xf32, #tpu.memory_space<vmem>>, vector<3x128xf32>,
    %c73_792 = arith.constant 73 : index
    %c0_793 = arith.constant 0 : index
    %465 = vector.load %arg16[%c73_792, %c0_793] : memref<80x128xf32, #tpu.memory_space<vmem>>, vector<3x128xf32>
    %c40_794 = arith.constant 40 : index
    %c896_795 = arith.constant 896 : index
    %466 = vector.load %arg17[%c40_794, %c896_795] : memref<48x1152xf32, #tpu.memory_space<vmem>>, vector<3x128xf32>
    tpu.vector_store %arg17[%c40_794, %c896_795], %465 {strides = array<i32>} : memref<48x1152xf32, #tpu.memory_space<vmem>>, vector<3x128xf32>,
    %c58_796 = arith.constant 58 : index
    %c0_797 = arith.constant 0 : index
    %467 = vector.load %arg16[%c58_796, %c0_797] : memref<80x128xf32, #tpu.memory_space<vmem>>, vector<3x128xf32>
    %c24_798 = arith.constant 24 : index
    %c1024_799 = arith.constant 1024 : index
    %468 = vector.load %arg17[%c24_798, %c1024_799] : memref<48x1152xf32, #tpu.memory_space<vmem>>, vector<3x128xf32>
    tpu.vector_store %arg17[%c24_798, %c1024_799], %467 {strides = array<i32>} : memref<48x1152xf32, #tpu.memory_space<vmem>>, vector<3x128xf32>,
    %c66_800 = arith.constant 66 : index
    %c0_801 = arith.constant 0 : index
    %469 = vector.load %arg16[%c66_800, %c0_801] : memref<80x128xf32, #tpu.memory_space<vmem>>, vector<3x128xf32>
    %c32_802 = arith.constant 32 : index
    %c1024_803 = arith.constant 1024 : index
    %470 = vector.load %arg17[%c32_802, %c1024_803] : memref<48x1152xf32, #tpu.memory_space<vmem>>, vector<3x128xf32>
    tpu.vector_store %arg17[%c32_802, %c1024_803], %469 {strides = array<i32>} : memref<48x1152xf32, #tpu.memory_space<vmem>>, vector<3x128xf32>,
    %c74 = arith.constant 74 : index
    %c0_804 = arith.constant 0 : index
    %471 = vector.load %arg16[%c74, %c0_804] : memref<80x128xf32, #tpu.memory_space<vmem>>, vector<3x128xf32>
    %c40_805 = arith.constant 40 : index
    %c1024_806 = arith.constant 1024 : index
    %472 = vector.load %arg17[%c40_805, %c1024_806] : memref<48x1152xf32, #tpu.memory_space<vmem>>, vector<3x128xf32>
    tpu.vector_store %arg17[%c40_805, %c1024_806], %471 {strides = array<i32>} : memref<48x1152xf32, #tpu.memory_space<vmem>>, vector<3x128xf32>,
    %c0_807 = arith.constant 0 : index
    %c0_808 = arith.constant 0 : index
    %473 = vector.load %arg17[%c0_807, %c0_808] : memref<48x1152xf32, #tpu.memory_space<vmem>>, vector<48x1152xf32>
    %474 = arith.truncf %473 : vector<48x1152xf32> to vector<48x1152xbf16>
    %c0_809 = arith.constant 0 : index
    %c0_810 = arith.constant 0 : index
    %475 = vector.load %arg5[%c0_809, %c0_810] : memref<1152x128xbf16, #tpu.memory_space<vmem>>, vector<1152x128xbf16>
    %cst_811 = arith.constant dense<0.000000e+00> : vector<48x128xf32>
    %476 = tpu.matmul %474, %475, %cst_811 {dimension_numbers = #tpu.dot_dimension_numbers<[1], [0], [0], [1], [0, 0, 1, 1], [], []>} : vector<48x1152xbf16>, vector<1152x128xbf16>, vector<48x128xf32> -> vector<48x128xf32>
    %c0_812 = arith.constant 0 : index
    %c0_813 = arith.constant 0 : index
    %477 = vector.load %arg6[%c0_812, %c0_813] : memref<1x128xf32, #tpu.memory_space<vmem>>, vector<1x128xf32>
    %478 = vector.broadcast %477 : vector<1x128xf32> to vector<48x128xf32>
    %479 = arith.addf %476, %478 : vector<48x128xf32>
    %cst_814 = arith.constant 0.000000e+00 : f32
    %480 = vector.broadcast %cst_814 : f32 to vector<48x128xf32>
    %481 = arith.maximumf %479, %480 : vector<48x128xf32>
    %c0_815 = arith.constant 0 : index
    %c0_816 = arith.constant 0 : index
    %482 = vector.load %arg18[%c0_815, %c0_816] : memref<48x128xf32, #tpu.memory_space<vmem>>, vector<48x128xf32>
    tpu.vector_store %arg18[%c0_815, %c0_816], %481 {strides = array<i32>} : memref<48x128xf32, #tpu.memory_space<vmem>>, vector<48x128xf32>,
    %c0_817 = arith.constant 0 : index
    %c0_818 = arith.constant 0 : index
    %483 = vector.load %arg18[%c0_817, %c0_818] : memref<48x128xf32, #tpu.memory_space<vmem>>, vector<1x128xf32>
    %c0_819 = arith.constant 0 : index
    %c0_820 = arith.constant 0 : index
    %484 = vector.load %arg19[%c0_819, %c0_820] : memref<2x1152xf32, #tpu.memory_space<vmem>>, vector<1x128xf32>
    tpu.vector_store %arg19[%c0_819, %c0_820], %483 {strides = array<i32>} : memref<2x1152xf32, #tpu.memory_space<vmem>>, vector<1x128xf32>,
    %c1_821 = arith.constant 1 : index
    %c0_822 = arith.constant 0 : index
    %485 = vector.load %arg18[%c1_821, %c0_822] : memref<48x128xf32, #tpu.memory_space<vmem>>, vector<1x128xf32>
    %c0_823 = arith.constant 0 : index
    %c128_824 = arith.constant 128 : index
    %486 = vector.load %arg19[%c0_823, %c128_824] : memref<2x1152xf32, #tpu.memory_space<vmem>>, vector<1x128xf32>
    tpu.vector_store %arg19[%c0_823, %c128_824], %485 {strides = array<i32>} : memref<2x1152xf32, #tpu.memory_space<vmem>>, vector<1x128xf32>,
    %c2_825 = arith.constant 2 : index
    %c0_826 = arith.constant 0 : index
    %487 = vector.load %arg18[%c2_825, %c0_826] : memref<48x128xf32, #tpu.memory_space<vmem>>, vector<1x128xf32>
    %c0_827 = arith.constant 0 : index
    %c256_828 = arith.constant 256 : index
    %488 = vector.load %arg19[%c0_827, %c256_828] : memref<2x1152xf32, #tpu.memory_space<vmem>>, vector<1x128xf32>
    tpu.vector_store %arg19[%c0_827, %c256_828], %487 {strides = array<i32>} : memref<2x1152xf32, #tpu.memory_space<vmem>>, vector<1x128xf32>,
    %c8_829 = arith.constant 8 : index
    %c0_830 = arith.constant 0 : index
    %489 = vector.load %arg18[%c8_829, %c0_830] : memref<48x128xf32, #tpu.memory_space<vmem>>, vector<1x128xf32>
    %c0_831 = arith.constant 0 : index
    %c384_832 = arith.constant 384 : index
    %490 = vector.load %arg19[%c0_831, %c384_832] : memref<2x1152xf32, #tpu.memory_space<vmem>>, vector<1x128xf32>
    tpu.vector_store %arg19[%c0_831, %c384_832], %489 {strides = array<i32>} : memref<2x1152xf32, #tpu.memory_space<vmem>>, vector<1x128xf32>,
    %c9_833 = arith.constant 9 : index
    %c0_834 = arith.constant 0 : index
    %491 = vector.load %arg18[%c9_833, %c0_834] : memref<48x128xf32, #tpu.memory_space<vmem>>, vector<1x128xf32>
    %c0_835 = arith.constant 0 : index
    %c512_836 = arith.constant 512 : index
    %492 = vector.load %arg19[%c0_835, %c512_836] : memref<2x1152xf32, #tpu.memory_space<vmem>>, vector<1x128xf32>
    tpu.vector_store %arg19[%c0_835, %c512_836], %491 {strides = array<i32>} : memref<2x1152xf32, #tpu.memory_space<vmem>>, vector<1x128xf32>,
    %c10_837 = arith.constant 10 : index
    %c0_838 = arith.constant 0 : index
    %493 = vector.load %arg18[%c10_837, %c0_838] : memref<48x128xf32, #tpu.memory_space<vmem>>, vector<1x128xf32>
    %c0_839 = arith.constant 0 : index
    %c640_840 = arith.constant 640 : index
    %494 = vector.load %arg19[%c0_839, %c640_840] : memref<2x1152xf32, #tpu.memory_space<vmem>>, vector<1x128xf32>
    tpu.vector_store %arg19[%c0_839, %c640_840], %493 {strides = array<i32>} : memref<2x1152xf32, #tpu.memory_space<vmem>>, vector<1x128xf32>,
    %c16_841 = arith.constant 16 : index
    %c0_842 = arith.constant 0 : index
    %495 = vector.load %arg18[%c16_841, %c0_842] : memref<48x128xf32, #tpu.memory_space<vmem>>, vector<1x128xf32>
    %c0_843 = arith.constant 0 : index
    %c768_844 = arith.constant 768 : index
    %496 = vector.load %arg19[%c0_843, %c768_844] : memref<2x1152xf32, #tpu.memory_space<vmem>>, vector<1x128xf32>
    tpu.vector_store %arg19[%c0_843, %c768_844], %495 {strides = array<i32>} : memref<2x1152xf32, #tpu.memory_space<vmem>>, vector<1x128xf32>,
    %c17_845 = arith.constant 17 : index
    %c0_846 = arith.constant 0 : index
    %497 = vector.load %arg18[%c17_845, %c0_846] : memref<48x128xf32, #tpu.memory_space<vmem>>, vector<1x128xf32>
    %c0_847 = arith.constant 0 : index
    %c896_848 = arith.constant 896 : index
    %498 = vector.load %arg19[%c0_847, %c896_848] : memref<2x1152xf32, #tpu.memory_space<vmem>>, vector<1x128xf32>
    tpu.vector_store %arg19[%c0_847, %c896_848], %497 {strides = array<i32>} : memref<2x1152xf32, #tpu.memory_space<vmem>>, vector<1x128xf32>,
    %c18_849 = arith.constant 18 : index
    %c0_850 = arith.constant 0 : index
    %499 = vector.load %arg18[%c18_849, %c0_850] : memref<48x128xf32, #tpu.memory_space<vmem>>, vector<1x128xf32>
    %c0_851 = arith.constant 0 : index
    %c1024_852 = arith.constant 1024 : index
    %500 = vector.load %arg19[%c0_851, %c1024_852] : memref<2x1152xf32, #tpu.memory_space<vmem>>, vector<1x128xf32>
    tpu.vector_store %arg19[%c0_851, %c1024_852], %499 {strides = array<i32>} : memref<2x1152xf32, #tpu.memory_space<vmem>>, vector<1x128xf32>,
    %c24_853 = arith.constant 24 : index
    %c0_854 = arith.constant 0 : index
    %501 = vector.load %arg18[%c24_853, %c0_854] : memref<48x128xf32, #tpu.memory_space<vmem>>, vector<1x128xf32>
    %c1_855 = arith.constant 1 : index
    %c0_856 = arith.constant 0 : index
    %502 = vector.load %arg19[%c1_855, %c0_856] : memref<2x1152xf32, #tpu.memory_space<vmem>>, vector<1x128xf32>
    tpu.vector_store %arg19[%c1_855, %c0_856], %501 {strides = array<i32>} : memref<2x1152xf32, #tpu.memory_space<vmem>>, vector<1x128xf32>,
    %c25_857 = arith.constant 25 : index
    %c0_858 = arith.constant 0 : index
    %503 = vector.load %arg18[%c25_857, %c0_858] : memref<48x128xf32, #tpu.memory_space<vmem>>, vector<1x128xf32>
    %c1_859 = arith.constant 1 : index
    %c128_860 = arith.constant 128 : index
    %504 = vector.load %arg19[%c1_859, %c128_860] : memref<2x1152xf32, #tpu.memory_space<vmem>>, vector<1x128xf32>
    tpu.vector_store %arg19[%c1_859, %c128_860], %503 {strides = array<i32>} : memref<2x1152xf32, #tpu.memory_space<vmem>>, vector<1x128xf32>,
    %c26_861 = arith.constant 26 : index
    %c0_862 = arith.constant 0 : index
    %505 = vector.load %arg18[%c26_861, %c0_862] : memref<48x128xf32, #tpu.memory_space<vmem>>, vector<1x128xf32>
    %c1_863 = arith.constant 1 : index
    %c256_864 = arith.constant 256 : index
    %506 = vector.load %arg19[%c1_863, %c256_864] : memref<2x1152xf32, #tpu.memory_space<vmem>>, vector<1x128xf32>
    tpu.vector_store %arg19[%c1_863, %c256_864], %505 {strides = array<i32>} : memref<2x1152xf32, #tpu.memory_space<vmem>>, vector<1x128xf32>,
    %c32_865 = arith.constant 32 : index
    %c0_866 = arith.constant 0 : index
    %507 = vector.load %arg18[%c32_865, %c0_866] : memref<48x128xf32, #tpu.memory_space<vmem>>, vector<1x128xf32>
    %c1_867 = arith.constant 1 : index
    %c384_868 = arith.constant 384 : index
    %508 = vector.load %arg19[%c1_867, %c384_868] : memref<2x1152xf32, #tpu.memory_space<vmem>>, vector<1x128xf32>
    tpu.vector_store %arg19[%c1_867, %c384_868], %507 {strides = array<i32>} : memref<2x1152xf32, #tpu.memory_space<vmem>>, vector<1x128xf32>,
    %c33_869 = arith.constant 33 : index
    %c0_870 = arith.constant 0 : index
    %509 = vector.load %arg18[%c33_869, %c0_870] : memref<48x128xf32, #tpu.memory_space<vmem>>, vector<1x128xf32>
    %c1_871 = arith.constant 1 : index
    %c512_872 = arith.constant 512 : index
    %510 = vector.load %arg19[%c1_871, %c512_872] : memref<2x1152xf32, #tpu.memory_space<vmem>>, vector<1x128xf32>
    tpu.vector_store %arg19[%c1_871, %c512_872], %509 {strides = array<i32>} : memref<2x1152xf32, #tpu.memory_space<vmem>>, vector<1x128xf32>,
    %c34_873 = arith.constant 34 : index
    %c0_874 = arith.constant 0 : index
    %511 = vector.load %arg18[%c34_873, %c0_874] : memref<48x128xf32, #tpu.memory_space<vmem>>, vector<1x128xf32>
    %c1_875 = arith.constant 1 : index
    %c640_876 = arith.constant 640 : index
    %512 = vector.load %arg19[%c1_875, %c640_876] : memref<2x1152xf32, #tpu.memory_space<vmem>>, vector<1x128xf32>
    tpu.vector_store %arg19[%c1_875, %c640_876], %511 {strides = array<i32>} : memref<2x1152xf32, #tpu.memory_space<vmem>>, vector<1x128xf32>,
    %c40_877 = arith.constant 40 : index
    %c0_878 = arith.constant 0 : index
    %513 = vector.load %arg18[%c40_877, %c0_878] : memref<48x128xf32, #tpu.memory_space<vmem>>, vector<1x128xf32>
    %c1_879 = arith.constant 1 : index
    %c768_880 = arith.constant 768 : index
    %514 = vector.load %arg19[%c1_879, %c768_880] : memref<2x1152xf32, #tpu.memory_space<vmem>>, vector<1x128xf32>
    tpu.vector_store %arg19[%c1_879, %c768_880], %513 {strides = array<i32>} : memref<2x1152xf32, #tpu.memory_space<vmem>>, vector<1x128xf32>,
    %c41_881 = arith.constant 41 : index
    %c0_882 = arith.constant 0 : index
    %515 = vector.load %arg18[%c41_881, %c0_882] : memref<48x128xf32, #tpu.memory_space<vmem>>, vector<1x128xf32>
    %c1_883 = arith.constant 1 : index
    %c896_884 = arith.constant 896 : index
    %516 = vector.load %arg19[%c1_883, %c896_884] : memref<2x1152xf32, #tpu.memory_space<vmem>>, vector<1x128xf32>
    tpu.vector_store %arg19[%c1_883, %c896_884], %515 {strides = array<i32>} : memref<2x1152xf32, #tpu.memory_space<vmem>>, vector<1x128xf32>,
    %c42_885 = arith.constant 42 : index
    %c0_886 = arith.constant 0 : index
    %517 = vector.load %arg18[%c42_885, %c0_886] : memref<48x128xf32, #tpu.memory_space<vmem>>, vector<1x128xf32>
    %c1_887 = arith.constant 1 : index
    %c1024_888 = arith.constant 1024 : index
    %518 = vector.load %arg19[%c1_887, %c1024_888] : memref<2x1152xf32, #tpu.memory_space<vmem>>, vector<1x128xf32>
    tpu.vector_store %arg19[%c1_887, %c1024_888], %517 {strides = array<i32>} : memref<2x1152xf32, #tpu.memory_space<vmem>>, vector<1x128xf32>,
    %c0_889 = arith.constant 0 : index
    %c0_890 = arith.constant 0 : index
    %519 = vector.load %arg19[%c0_889, %c0_890] : memref<2x1152xf32, #tpu.memory_space<vmem>>, vector<2x1152xf32>
    %520 = arith.truncf %519 : vector<2x1152xf32> to vector<2x1152xbf16>
    %c0_891 = arith.constant 0 : index
    %c0_892 = arith.constant 0 : index
    %521 = vector.load %arg7[%c0_891, %c0_892] : memref<1152x128xbf16, #tpu.memory_space<vmem>>, vector<1152x128xbf16>
    %cst_893 = arith.constant dense<0.000000e+00> : vector<2x128xf32>
    %522 = tpu.matmul %520, %521, %cst_893 {dimension_numbers = #tpu.dot_dimension_numbers<[1], [0], [0], [1], [0, 0, 1, 1], [], []>} : vector<2x1152xbf16>, vector<1152x128xbf16>, vector<2x128xf32> -> vector<2x128xf32>
    %c0_894 = arith.constant 0 : index
    %c0_895 = arith.constant 0 : index
    %523 = vector.load %arg8[%c0_894, %c0_895] : memref<1x128xf32, #tpu.memory_space<vmem>>, vector<1x128xf32>
    %524 = vector.broadcast %523 : vector<1x128xf32> to vector<2x128xf32>
    %525 = arith.addf %522, %524 : vector<2x128xf32>
    %cst_896 = arith.constant 0.000000e+00 : f32
    %526 = vector.broadcast %cst_896 : f32 to vector<2x128xf32>
    %527 = arith.maximumf %525, %526 : vector<2x128xf32>
    %528 = arith.truncf %527 : vector<2x128xf32> to vector<2x128xbf16>
    %c0_897 = arith.constant 0 : index
    %c0_898 = arith.constant 0 : index
    %529 = vector.load %arg9[%c0_897, %c0_898] : memref<128x512xbf16, #tpu.memory_space<vmem>>, vector<128x512xbf16>
    %cst_899 = arith.constant dense<0.000000e+00> : vector<2x512xf32>
    %530 = tpu.matmul %528, %529, %cst_899 {dimension_numbers = #tpu.dot_dimension_numbers<[1], [0], [0], [1], [0, 0, 1, 1], [], []>} : vector<2x128xbf16>, vector<128x512xbf16>, vector<2x512xf32> -> vector<2x512xf32>
    %c0_900 = arith.constant 0 : index
    %c0_901 = arith.constant 0 : index
    %531 = vector.load %arg10[%c0_900, %c0_901] : memref<1x512xf32, #tpu.memory_space<vmem>>, vector<1x512xf32>
    %532 = vector.broadcast %531 : vector<1x512xf32> to vector<2x512xf32>
    %533 = arith.addf %530, %532 : vector<2x512xf32>
    %cst_902 = arith.constant 0.000000e+00 : f32
    %534 = vector.broadcast %cst_902 : f32 to vector<2x512xf32>
    %535 = arith.maximumf %533, %534 : vector<2x512xf32>
    %536 = arith.truncf %535 : vector<2x512xf32> to vector<2x512xbf16>
    %c0_903 = arith.constant 0 : index
    %c0_904 = arith.constant 0 : index
    %537 = vector.load %arg11[%c0_903, %c0_904] : memref<512x6xbf16, #tpu.memory_space<vmem>>, vector<512x6xbf16>
    %cst_905 = arith.constant dense<0.000000e+00> : vector<2x6xf32>
    %538 = tpu.matmul %536, %537, %cst_905 {dimension_numbers = #tpu.dot_dimension_numbers<[1], [0], [0], [1], [0, 0, 1, 1], [], []>} : vector<2x512xbf16>, vector<512x6xbf16>, vector<2x6xf32> -> vector<2x6xf32>
    %c0_906 = arith.constant 0 : index
    %c0_907 = arith.constant 0 : index
    %539 = vector.load %arg12[%c0_906, %c0_907] : memref<1x6xf32, #tpu.memory_space<vmem>>, vector<1x6xf32>
    %540 = vector.broadcast %539 : vector<1x6xf32> to vector<2x6xf32>
    %541 = arith.addf %538, %540 : vector<2x6xf32>
    %c0_908 = arith.constant 0 : index
    %c0_909 = arith.constant 0 : index
    %542 = vector.load %arg13[%c0_908, %c0_909] : memref<2x6xf32, #tpu.memory_space<vmem>>, vector<2x6xf32>
    tpu.vector_store %arg13[%c0_908, %c0_909], %541 {strides = array<i32>} : memref<2x6xf32, #tpu.memory_space<vmem>>, vector<2x6xf32>,
    return
  }
}

</mosaic_0001>

<llo_original>
// kernel: _forward_impl.1
$region0: #{_forward_impl.1}
  #allocation0 [shape = 'u32[]', space=smem, size = 0x4, offset = 0x4, fixed_abs, tag = 'smem constant byte address 0x4 - core index']
  #allocation1 [shape = 'u32[144,128]{1,0:T(1,128)}', space=vmem, size = 0x12000, scoped, tag = 'internal scratch']
  #allocation2 [shape = 'f32[416,128]{1,0:T(8,128)}', space=vmem, size = 0x34000, scoped, tag = 'scratch operand']
  #allocation3 [shape = 'f32[80,2048]{1,0:T(8,128)}', space=vmem, size = 0xa0000, scoped, tag = 'scratch operand']
  #allocation4 [shape = 'f32[80,128]{1,0:T(8,128)}', space=vmem, size = 0xa000, scoped, tag = 'scratch operand']
  #allocation5 [shape = 'f32[48,1152]{1,0:T(8,128)}', space=vmem, size = 0x36000, scoped, tag = 'scratch operand']
  #allocation6 [shape = 'f32[48,128]{1,0:T(8,128)}', space=vmem, size = 0x6000, scoped, tag = 'scratch operand']
  #allocation7 [shape = 'f32[2,1152]{1,0:T(2,128)}', space=vmem, size = 0x2400, scoped, tag = 'scratch operand']
  %s0 = inlined_call_operand.vmem [shape: bf16[416,256], index: 0, kind: input, shape index: {}]
  %s1 = inlined_call_operand.vmem [shape: bf16[256,128], index: 1, kind: input, shape index: {}]
  %s2 = inlined_call_operand.vmem [shape: f32[1,128], index: 2, kind: input, shape index: {}]
  %s3 = inlined_call_operand.vmem [shape: bf16[2048,128], index: 3, kind: input, shape index: {}]
  %s4 = inlined_call_operand.vmem [shape: f32[1,128], index: 4, kind: input, shape index: {}]
  %s5 = inlined_call_operand.vmem [shape: bf16[1152,128], index: 5, kind: input, shape index: {}]
  %s6 = inlined_call_operand.vmem [shape: f32[1,128], index: 6, kind: input, shape index: {}]
  %s7 = inlined_call_operand.vmem [shape: bf16[1152,128], index: 7, kind: input, shape index: {}]
  %s8 = inlined_call_operand.vmem [shape: f32[1,128], index: 8, kind: input, shape index: {}]
  %s9 = inlined_call_operand.vmem [shape: bf16[128,512], index: 9, kind: input, shape index: {}]
  %s10 = inlined_call_operand.vmem [shape: f32[1,512], index: 10, kind: input, shape index: {}]
  %s11 = inlined_call_operand.vmem [shape: bf16[512,6], index: 11, kind: input, shape index: {}]
  %s12 = inlined_call_operand.vmem [shape: f32[1,6], index: 12, kind: input, shape index: {}]
  %s13 = inlined_call_operand.hbm [shape: f32[2,6], index: 13, kind: output, shape index: {}]
  %s14 = sld [smem:[#allocation0]]
  $region62: #{_forward_impl.1} parent=0
    _
  %s16 = ssub.s32 1, %s14
  %s17 = scalar_select 0, %s16, %s14
  $region1: #{_forward_impl.1} parent=0
    #allocation8 [shape = 'u8[1024]{0}', space=vmem, size = 0x400, scoped, tag = 'output window, operand 0, single buffered']
    #allocation9 [shape = 's32[1]{0}', space=sflag, size = 0x4, scoped, tag = 'scoped memory for _forward_impl.1']
    %18 = vsyncpa [#allocation9], 0
    // Predicated region
    $region2: #{_forward_impl.1} parent=1 // pred_check
      _
    $region3: #{_forward_impl.1} parent=1 // pred_check_branch
      %20 = sbr.rel (0) target = $region5
    $region4: #{_forward_impl.1} parent=1 // pred_region
      _
    $region5: #{_forward_impl.1} parent=1 // pred_fallthru
      _
    // Predicated region
    $region6: #{_forward_impl.1} parent=1 // pred_check
      _
    $region7: #{_forward_impl.1} parent=1 // pred_check_branch
      %22 = sbr.rel (0) target = $region9
    $region8: #{_forward_impl.1} parent=1 // pred_region
      _
    $region9: #{_forward_impl.1} parent=1 // pred_fallthru
      _
    // Predicated region
    $region10: #{_forward_impl.1} parent=1 // pred_check
      _
    $region11: #{_forward_impl.1} parent=1 // pred_check_branch
      %24 = sbr.rel (0) target = $region13
    $region12: #{_forward_impl.1} parent=1 // pred_region
      _
    $region13: #{_forward_impl.1} parent=1 // pred_fallthru
      _
    // Predicated region
    $region14: #{_forward_impl.1} parent=1 // pred_check
      _
    $region15: #{_forward_impl.1} parent=1 // pred_check_branch
      %26 = sbr.rel (0) target = $region17
    $region16: #{_forward_impl.1} parent=1 // pred_region
      _
    $region17: #{_forward_impl.1} parent=1 // pred_fallthru
      _
    // Predicated region
    $region18: #{_forward_impl.1} parent=1 // pred_check
      _
    $region19: #{_forward_impl.1} parent=1 // pred_check_branch
      %28 = sbr.rel (0) target = $region21
    $region20: #{_forward_impl.1} parent=1 // pred_region
      _
    $region21: #{_forward_impl.1} parent=1 // pred_fallthru
      _
    // Predicated region
    $region22: #{_forward_impl.1} parent=1 // pred_check
      _
    $region23: #{_forward_impl.1} parent=1 // pred_check_branch
      %30 = sbr.rel (0) target = $region25
    $region24: #{_forward_impl.1} parent=1 // pred_region
      _
    $region25: #{_forward_impl.1} parent=1 // pred_fallthru
      _
    // Predicated region
    $region26: #{_forward_impl.1} parent=1 // pred_check
      _
    $region27: #{_forward_impl.1} parent=1 // pred_check_branch
      %32 = sbr.rel (0) target = $region29
    $region28: #{_forward_impl.1} parent=1 // pred_region
      _
    $region29: #{_forward_impl.1} parent=1 // pred_fallthru
      _
    // Predicated region
    $region30: #{_forward_impl.1} parent=1 // pred_check
      _
    $region31: #{_forward_impl.1} parent=1 // pred_check_branch
      %34 = sbr.rel (0) target = $region33
    $region32: #{_forward_impl.1} parent=1 // pred_region
      _
    $region33: #{_forward_impl.1} parent=1 // pred_fallthru
      _
    // Predicated region
    $region34: #{_forward_impl.1} parent=1 // pred_check
      _
    $region35: #{_forward_impl.1} parent=1 // pred_check_branch
      %36 = sbr.rel (0) target = $region37
    $region36: #{_forward_impl.1} parent=1 // pred_region
      _
    $region37: #{_forward_impl.1} parent=1 // pred_fallthru
      _
    // Predicated region
    $region38: #{_forward_impl.1} parent=1 // pred_check
      _
    $region39: #{_forward_impl.1} parent=1 // pred_check_branch
      %38 = sbr.rel (0) target = $region41
    $region40: #{_forward_impl.1} parent=1 // pred_region
      _
    $region41: #{_forward_impl.1} parent=1 // pred_fallthru
      _
    // Predicated region
    $region42: #{_forward_impl.1} parent=1 // pred_check
      _
    $region43: #{_forward_impl.1} parent=1 // pred_check_branch
      %40 = sbr.rel (0) target = $region45
    $region44: #{_forward_impl.1} parent=1 // pred_region
      _
    $region45: #{_forward_impl.1} parent=1 // pred_fallthru
      _
    // Predicated region
    $region46: #{_forward_impl.1} parent=1 // pred_check
      _
    $region47: #{_forward_impl.1} parent=1 // pred_check_branch
      %42 = sbr.rel (0) target = $region49
    $region48: #{_forward_impl.1} parent=1 // pred_region
      _
    $region49: #{_forward_impl.1} parent=1 // pred_fallthru
      _
    // Predicated region
    $region50: #{_forward_impl.1} parent=1 // pred_check
      _
    $region51: #{_forward_impl.1} parent=1 // pred_check_branch
      %44 = sbr.rel (0) target = $region53
    $region52: #{_forward_impl.1} parent=1 // pred_region
      _
    $region53: #{_forward_impl.1} parent=1 // pred_fallthru
      _
    %v46 = vld [vmem:[%s0] sm:$0xff]
    %v47 = vld [vmem:[%s0 + $0x8] sm:$0xff]
    %v48 = vld [vmem:[%s0 + $0x10] sm:$0xff]
    %v49 = vld [vmem:[%s0 + $0x18] sm:$0xff]
    %v50 = vld [vmem:[%s0 + $0x20] sm:$0xff]
    %v51 = vld [vmem:[%s0 + $0x28] sm:$0xff]
    %v52 = vld [vmem:[%s0 + $0x30] sm:$0xff]
    %v53 = vld [vmem:[%s0 + $0x38] sm:$0xff]
    %v54 = vld [vmem:[%s0 + $0x40] sm:$0xff]
    %v55 = vld [vmem:[%s0 + $0x48] sm:$0xff]
    %v56 = vld [vmem:[%s0 + $0x50] sm:$0xff]
    %v57 = vld [vmem:[%s0 + $0x58] sm:$0xff]
    %v58 = vld [vmem:[%s0 + $0x60] sm:$0xff]
    %v59 = vld [vmem:[%s0 + $0x68] sm:$0xff]
    %v60 = vld [vmem:[%s0 + $0x70] sm:$0xff]
    %v61 = vld [vmem:[%s0 + $0x78] sm:$0xff]
    %v62 = vld [vmem:[%s0 + $0x80] sm:$0xff]
    %v63 = vld [vmem:[%s0 + $0x88] sm:$0xff]
    %v64 = vld [vmem:[%s0 + $0x90] sm:$0xff]
    %v65 = vld [vmem:[%s0 + $0x98] sm:$0xff]
    %v66 = vld [vmem:[%s0 + $0xa0] sm:$0xff]
    %v67 = vld [vmem:[%s0 + $0xa8] sm:$0xff]
    %v68 = vld [vmem:[%s0 + $0xb0] sm:$0xff]
    %v69 = vld [vmem:[%s0 + $0xb8] sm:$0xff]
    %v70 = vld [vmem:[%s0 + $0xc0] sm:$0xff]
    %v71 = vld [vmem:[%s0 + $0xc8] sm:$0xff]
    %v72 = vld [vmem:[%s0 + $0xd0] sm:$0xff]
    %v73 = vld [vmem:[%s0 + $0xd8] sm:$0xff]
    %v74 = vld [vmem:[%s0 + $0xe0] sm:$0xff]
    %v75 = vld [vmem:[%s0 + $0xe8] sm:$0xff]
    %v76 = vld [vmem:[%s0 + $0xf0] sm:$0xff]
    %v77 = vld [vmem:[%s0 + $0xf8] sm:$0xff]
    %v78 = vld [vmem:[%s0 + $0x100] sm:$0xff]
    %v79 = vld [vmem:[%s0 + $0x108] sm:$0xff]
    %v80 = vld [vmem:[%s0 + $0x110] sm:$0xff]
    %v81 = vld [vmem:[%s0 + $0x118] sm:$0xff]
    %v82 = vld [vmem:[%s0 + $0x120] sm:$0xff]
    %v83 = vld [vmem:[%s0 + $0x128] sm:$0xff]
    %v84 = vld [vmem:[%s0 + $0x130] sm:$0xff]
    %v85 = vld [vmem:[%s0 + $0x138] sm:$0xff]
    %v86 = vld [vmem:[%s0 + $0x140] sm:$0xff]
    %v87 = vld [vmem:[%s0 + $0x148] sm:$0xff]
    %v88 = vld [vmem:[%s0 + $0x150] sm:$0xff]
    %v89 = vld [vmem:[%s0 + $0x158] sm:$0xff]
    %v90 = vld [vmem:[%s0 + $0x160] sm:$0xff]
    %v91 = vld [vmem:[%s0 + $0x168] sm:$0xff]
    %v92 = vld [vmem:[%s0 + $0x170] sm:$0xff]
    %v93 = vld [vmem:[%s0 + $0x178] sm:$0xff]
    %v94 = vld [vmem:[%s0 + $0x180] sm:$0xff]
    %v95 = vld [vmem:[%s0 + $0x188] sm:$0xff]
    %v96 = vld [vmem:[%s0 + $0x190] sm:$0xff]
    %v97 = vld [vmem:[%s0 + $0x198] sm:$0xff]
    %v98 = vld [vmem:[%s1] sm:$0xf]
    %v99 = vld [vmem:[%s1 + $0x4] sm:$0xf]
    %v100 = vld [vmem:[%s1 + $0x8] sm:$0xf]
    %v101 = vld [vmem:[%s1 + $0xc] sm:$0xf]
    %v102 = vld [vmem:[%s1 + $0x10] sm:$0xf]
    %v103 = vld [vmem:[%s1 + $0x14] sm:$0xf]
    %v104 = vld [vmem:[%s1 + $0x18] sm:$0xf]
    %v105 = vld [vmem:[%s1 + $0x1c] sm:$0xf]
    %v106 = vld [vmem:[%s1 + $0x20] sm:$0xf]
    %v107 = vld [vmem:[%s1 + $0x24] sm:$0xf]
    %v108 = vld [vmem:[%s1 + $0x28] sm:$0xf]
    %v109 = vld [vmem:[%s1 + $0x2c] sm:$0xf]
    %v110 = vld [vmem:[%s1 + $0x30] sm:$0xf]
    %v111 = vld [vmem:[%s1 + $0x34] sm:$0xf]
    %v112 = vld [vmem:[%s1 + $0x38] sm:$0xf]
    %v113 = vld [vmem:[%s1 + $0x3c] sm:$0xf]
    %v114 = vld [vmem:[%s1 + $0x40] sm:$0xf]
    %v115 = vld [vmem:[%s1 + $0x44] sm:$0xf]
    %v116 = vld [vmem:[%s1 + $0x48] sm:$0xf]
    %v117 = vld [vmem:[%s1 + $0x4c] sm:$0xf]
    %v118 = vld [vmem:[%s1 + $0x50] sm:$0xf]
    %v119 = vld [vmem:[%s1 + $0x54] sm:$0xf]
    %v120 = vld [vmem:[%s1 + $0x58] sm:$0xf]
    %v121 = vld [vmem:[%s1 + $0x5c] sm:$0xf]
    %v122 = vld [vmem:[%s1 + $0x60] sm:$0xf]
    %v123 = vld [vmem:[%s1 + $0x64] sm:$0xf]
    %v124 = vld [vmem:[%s1 + $0x68] sm:$0xf]
    %v125 = vld [vmem:[%s1 + $0x6c] sm:$0xf]
    %v126 = vld [vmem:[%s1 + $0x70] sm:$0xf]
    %v127 = vld [vmem:[%s1 + $0x74] sm:$0xf]
    %v128 = vld [vmem:[%s1 + $0x78] sm:$0xf]
    %v129 = vld [vmem:[%s1 + $0x7c] sm:$0xf]
    %v130 = vld [vmem:[%s2] sm:$0x1]
    %v132 = vlaneseq
    %v133 = vshrl.u32 %v132, 7
    %v134 = vsub.s32 0, %v133
    %v135 = vrot.slane %v130, %v134
    %v189 = vunpack.c.l.b16 %v46
    %v190 = vunpack.c.h.b16 %v46
    %v191 = vunpack.c.l.b16 %v47
    %v192 = vunpack.c.h.b16 %v47
    %v193 = vunpack.c.l.b16 %v48
    %v194 = vunpack.c.h.b16 %v48
    %v195 = vunpack.c.l.b16 %v49
    %v196 = vunpack.c.h.b16 %v49
    %v197 = vunpack.c.l.b16 %v50
    %v198 = vunpack.c.h.b16 %v50
    %v199 = vunpack.c.l.b16 %v51
    %v200 = vunpack.c.h.b16 %v51
    %v201 = vunpack.c.l.b16 %v52
    %v202 = vunpack.c.h.b16 %v52
    %v203 = vunpack.c.l.b16 %v53
    %v204 = vunpack.c.h.b16 %v53
    %v205 = vunpack.c.l.b16 %v54
    %v206 = vunpack.c.h.b16 %v54
    %v207 = vunpack.c.l.b16 %v55
    %v208 = vunpack.c.h.b16 %v55
    %v209 = vunpack.c.l.b16 %v56
    %v210 = vunpack.c.h.b16 %v56
    %v211 = vunpack.c.l.b16 %v57
    %v212 = vunpack.c.h.b16 %v57
    %v213 = vunpack.c.l.b16 %v58
    %v214 = vunpack.c.h.b16 %v58
    %v215 = vunpack.c.l.b16 %v59
    %v216 = vunpack.c.h.b16 %v59
    %v217 = vunpack.c.l.b16 %v60
    %v218 = vunpack.c.h.b16 %v60
    %v219 = vunpack.c.l.b16 %v61
    %v220 = vunpack.c.h.b16 %v61
    %v221 = vunpack.c.l.b16 %v62
    %v222 = vunpack.c.h.b16 %v62
    %v223 = vunpack.c.l.b16 %v63
    %v224 = vunpack.c.h.b16 %v63
    %v225 = vunpack.c.l.b16 %v64
    %v226 = vunpack.c.h.b16 %v64
    %v227 = vunpack.c.l.b16 %v65
    %v228 = vunpack.c.h.b16 %v65
    %v229 = vunpack.c.l.b16 %v66
    %v230 = vunpack.c.h.b16 %v66
    %v231 = vunpack.c.l.b16 %v67
    %v232 = vunpack.c.h.b16 %v67
    %v233 = vunpack.c.l.b16 %v68
    %v234 = vunpack.c.h.b16 %v68
    %v235 = vunpack.c.l.b16 %v69
    %v236 = vunpack.c.h.b16 %v69
    %v237 = vunpack.c.l.b16 %v70
    %v238 = vunpack.c.h.b16 %v70
    %v239 = vunpack.c.l.b16 %v71
    %v240 = vunpack.c.h.b16 %v71
    %v241 = vunpack.c.l.b16 %v72
    %v242 = vunpack.c.h.b16 %v72
    %v243 = vunpack.c.l.b16 %v73
    %v244 = vunpack.c.h.b16 %v73
    %v245 = vunpack.c.l.b16 %v74
    %v246 = vunpack.c.h.b16 %v74
    %v247 = vunpack.c.l.b16 %v75
    %v248 = vunpack.c.h.b16 %v75
    %v249 = vunpack.c.l.b16 %v76
    %v250 = vunpack.c.h.b16 %v76
    %v251 = vunpack.c.l.b16 %v77
    %v252 = vunpack.c.h.b16 %v77
    %v253 = vunpack.c.l.b16 %v78
    %v254 = vunpack.c.h.b16 %v78
    %v255 = vunpack.c.l.b16 %v79
    %v256 = vunpack.c.h.b16 %v79
    %v257 = vunpack.c.l.b16 %v80
    %v258 = vunpack.c.h.b16 %v80
    %v259 = vunpack.c.l.b16 %v81
    %v260 = vunpack.c.h.b16 %v81
    %v261 = vunpack.c.l.b16 %v82
    %v262 = vunpack.c.h.b16 %v82
    %v263 = vunpack.c.l.b16 %v83
    %v264 = vunpack.c.h.b16 %v83
    %v265 = vunpack.c.l.b16 %v84
    %v266 = vunpack.c.h.b16 %v84
    %v267 = vunpack.c.l.b16 %v85
    %v268 = vunpack.c.h.b16 %v85
    %v269 = vunpack.c.l.b16 %v86
    %v270 = vunpack.c.h.b16 %v86
    %v271 = vunpack.c.l.b16 %v87
    %v272 = vunpack.c.h.b16 %v87
    %v273 = vunpack.c.l.b16 %v88
    %v274 = vunpack.c.h.b16 %v88
    %v275 = vunpack.c.l.b16 %v89
    %v276 = vunpack.c.h.b16 %v89
    %v277 = vunpack.c.l.b16 %v90
    %v278 = vunpack.c.h.b16 %v90
    %v279 = vunpack.c.l.b16 %v91
    %v280 = vunpack.c.h.b16 %v91
    %v281 = vunpack.c.l.b16 %v92
    %v282 = vunpack.c.h.b16 %v92
    %v283 = vunpack.c.l.b16 %v93
    %v284 = vunpack.c.h.b16 %v93
    %v285 = vunpack.c.l.b16 %v94
    %v286 = vunpack.c.h.b16 %v94
    %v287 = vunpack.c.l.b16 %v95
    %v288 = vunpack.c.h.b16 %v95
    %v289 = vunpack.c.l.b16 %v96
    %v290 = vunpack.c.h.b16 %v96
    %v291 = vunpack.c.l.b16 %v97
    %v292 = vunpack.c.h.b16 %v97
    %v293 = vpack.c.b16 %v191, %v189
    %v294 = vpack.c.b16 %v192, %v190
    %v295 = vpack.c.b16 %v195, %v193
    %v296 = vpack.c.b16 %v196, %v194
    %v297 = vpack.c.b16 %v199, %v197
    %v298 = vpack.c.b16 %v200, %v198
    %v299 = vpack.c.b16 %v203, %v201
    %v300 = vpack.c.b16 %v204, %v202
    %v301 = vpack.c.b16 %v207, %v205
    %v302 = vpack.c.b16 %v208, %v206
    %v303 = vpack.c.b16 %v211, %v209
    %v304 = vpack.c.b16 %v212, %v210
    %v305 = vpack.c.b16 %v215, %v213
    %v306 = vpack.c.b16 %v216, %v214
    %v307 = vpack.c.b16 %v219, %v217
    %v308 = vpack.c.b16 %v220, %v218
    %v309 = vpack.c.b16 %v223, %v221
    %v310 = vpack.c.b16 %v224, %v222
    %v311 = vpack.c.b16 %v227, %v225
    %v312 = vpack.c.b16 %v228, %v226
    %v313 = vpack.c.b16 %v231, %v229
    %v314 = vpack.c.b16 %v232, %v230
    %v315 = vpack.c.b16 %v235, %v233
    %v316 = vpack.c.b16 %v236, %v234
    %v317 = vpack.c.b16 %v239, %v237
    %v318 = vpack.c.b16 %v240, %v238
    %v319 = vpack.c.b16 %v243, %v241
    %v320 = vpack.c.b16 %v244, %v242
    %v321 = vpack.c.b16 %v247, %v245
    %v322 = vpack.c.b16 %v248, %v246
    %v323 = vpack.c.b16 %v251, %v249
    %v324 = vpack.c.b16 %v252, %v250
    %v325 = vpack.c.b16 %v255, %v253
    %v326 = vpack.c.b16 %v256, %v254
    %v327 = vpack.c.b16 %v259, %v257
    %v328 = vpack.c.b16 %v260, %v258
    %v329 = vpack.c.b16 %v263, %v261
    %v330 = vpack.c.b16 %v264, %v262
    %v331 = vpack.c.b16 %v267, %v265
    %v332 = vpack.c.b16 %v268, %v266
    %v333 = vpack.c.b16 %v271, %v269
    %v334 = vpack.c.b16 %v272, %v270
    %v335 = vpack.c.b16 %v275, %v273
    %v336 = vpack.c.b16 %v276, %v274
    %v337 = vpack.c.b16 %v279, %v277
    %v338 = vpack.c.b16 %v280, %v278
    %v339 = vpack.c.b16 %v283, %v281
    %v340 = vpack.c.b16 %v284, %v282
    %v341 = vpack.c.b16 %v287, %v285
    %v342 = vpack.c.b16 %v288, %v286
    %v343 = vpack.c.b16 %v291, %v289
    %v344 = vpack.c.b16 %v292, %v290
    %v429 = vunpack.c.l.b16 %v98
    %v430 = vunpack.c.l.b16 %v99
    %v431 = vunpack.c.l.b16 %v100
    %v432 = vunpack.c.l.b16 %v101
    %v433 = vunpack.c.l.b16 %v102
    %v434 = vunpack.c.l.b16 %v103
    %v435 = vunpack.c.l.b16 %v104
    %v436 = vunpack.c.l.b16 %v105
    %v437 = vunpack.c.l.b16 %v106
    %v438 = vunpack.c.l.b16 %v107
    %v439 = vunpack.c.l.b16 %v108
    %v440 = vunpack.c.l.b16 %v109
    %v441 = vunpack.c.l.b16 %v110
    %v442 = vunpack.c.l.b16 %v111
    %v443 = vunpack.c.l.b16 %v112
    %v444 = vunpack.c.l.b16 %v113
    %v445 = vunpack.c.l.b16 %v114
    %v446 = vunpack.c.l.b16 %v115
    %v447 = vunpack.c.l.b16 %v116
    %v448 = vunpack.c.l.b16 %v117
    %v449 = vunpack.c.l.b16 %v118
    %v450 = vunpack.c.l.b16 %v119
    %v451 = vunpack.c.l.b16 %v120
    %v452 = vunpack.c.l.b16 %v121
    %v453 = vunpack.c.l.b16 %v122
    %v454 = vunpack.c.l.b16 %v123
    %v455 = vunpack.c.l.b16 %v124
    %v456 = vunpack.c.l.b16 %v125
    %v457 = vunpack.c.l.b16 %v126
    %v458 = vunpack.c.l.b16 %v127
    %v459 = vunpack.c.l.b16 %v128
    %v460 = vunpack.c.l.b16 %v129
    %v461 = vpack.c.b16 %v430, %v429
    %v462 = vpack.c.b16 %v432, %v431
    %v463 = vpack.c.b16 %v434, %v433
    %v464 = vpack.c.b16 %v436, %v435
    %v465 = vpack.c.b16 %v438, %v437
    %v466 = vpack.c.b16 %v440, %v439
    %v467 = vpack.c.b16 %v442, %v441
    %v468 = vpack.c.b16 %v444, %v443
    %v469 = vpack.c.b16 %v446, %v445
    %v470 = vpack.c.b16 %v448, %v447
    %v471 = vpack.c.b16 %v450, %v449
    %v472 = vpack.c.b16 %v452, %v451
    %v473 = vpack.c.b16 %v454, %v453
    %v474 = vpack.c.b16 %v456, %v455
    %v475 = vpack.c.b16 %v458, %v457
    %v476 = vpack.c.b16 %v460, %v459
    %493 = vmatprep.subr.bf16.mxu0 0
    %494 = vmatpush1.bf16.msra.mxu0 %v461
    %495 = vmatprep.subr.bf16.mxu0 0
    %496 = vmatpush1.bf16.msra.mxu0 %v462
    %497 = vmatprep.subr.bf16.mxu0 0
    %498 = vmatpush1.bf16.msra.mxu0 %v463
    %499 = vmatprep.subr.bf16.mxu0 0
    %500 = vmatpush1.bf16.msra.mxu0 %v464
    %501 = vmatprep.subr.bf16.mxu0 0
    %502 = vmatpush1.bf16.msra.mxu0 %v465
    %503 = vmatprep.subr.bf16.mxu0 0
    %504 = vmatpush1.bf16.msra.mxu0 %v466
    %505 = vmatprep.subr.bf16.mxu0 0
    %506 = vmatpush1.bf16.msra.mxu0 %v467
    %507 = vmatprep.subr.bf16.mxu0 0
    %508 = vmatpush1.bf16.msra.mxu0 %v468
    %509 = vmatprep.subr.bf16.mxu0 0
    %510 = vmatpush1.bf16.msra.mxu0 %v469
    %511 = vmatprep.subr.bf16.mxu0 0
    %512 = vmatpush1.bf16.msra.mxu0 %v470
    %513 = vmatprep.subr.bf16.mxu0 0
    %514 = vmatpush1.bf16.msra.mxu0 %v471
    %515 = vmatprep.subr.bf16.mxu0 0
    %516 = vmatpush1.bf16.msra.mxu0 %v472
    %517 = vmatprep.subr.bf16.mxu0 0
    %518 = vmatpush1.bf16.msra.mxu0 %v473
    %519 = vmatprep.subr.bf16.mxu0 0
    %520 = vmatpush1.bf16.msra.mxu0 %v474
    %521 = vmatprep.subr.bf16.mxu0 0
    %522 = vmatpush1.bf16.msra.mxu0 %v475
    %523 = vmatprep.subr.bf16.mxu0 0
    %524 = vmatpush1.bf16.msra.mxu0 %v476
    %525 = vmatprep.mubr.bf16.mxu0 %v294
    %526 = vmatmul.mubr.bf16.gmra.mrb[0].mxu0 %v293
    %v527 = vpop.f32.mrb[0].mxu0
    %v528 = vadd.f32 %v135, %v527
    %v529 = vpop.f32.mrb[0].mxu0
    %v530 = vpop.f32.mrb[0].mxu0
    %v531 = vadd.f32 %v135, %v530
    %v532 = vpop.f32.mrb[0].mxu0
    %533 = vmatprep.mubr.bf16.mxu0 %v296
    %534 = vmatmul.mubr.bf16.gmra.mrb[0].mxu0 %v295
    %v535 = vpop.f32.mrb[0].mxu0
    %v536 = vadd.f32 %v135, %v535
    %v537 = vpop.f32.mrb[0].mxu0
    %v538 = vpop.f32.mrb[0].mxu0
    %v539 = vadd.f32 %v135, %v538
    %v540 = vpop.f32.mrb[0].mxu0
    %541 = vmatprep.mubr.bf16.mxu0 %v298
    %542 = vmatmul.mubr.bf16.gmra.mrb[0].mxu0 %v297
    %v543 = vpop.f32.mrb[0].mxu0
    %v544 = vadd.f32 %v135, %v543
    %v545 = vpop.f32.mrb[0].mxu0
    %v546 = vpop.f32.mrb[0].mxu0
    %v547 = vadd.f32 %v135, %v546
    %v548 = vpop.f32.mrb[0].mxu0
    %549 = vmatprep.mubr.bf16.mxu0 %v300
    %550 = vmatmul.mubr.bf16.gmra.mrb[0].mxu0 %v299
    %v551 = vpop.f32.mrb[0].mxu0
    %v552 = vadd.f32 %v135, %v551
    %v553 = vpop.f32.mrb[0].mxu0
    %v554 = vpop.f32.mrb[0].mxu0
    %v555 = vadd.f32 %v135, %v554
    %v556 = vpop.f32.mrb[0].mxu0
    %557 = vmatprep.mubr.bf16.mxu0 %v302
    %558 = vmatmul.mubr.bf16.gmra.mrb[0].mxu0 %v301
    %v559 = vpop.f32.mrb[0].mxu0
    %v560 = vadd.f32 %v135, %v559
    %v561 = vpop.f32.mrb[0].mxu0
    %v562 = vpop.f32.mrb[0].mxu0
    %v563 = vadd.f32 %v135, %v562
    %v564 = vpop.f32.mrb[0].mxu0
    %565 = vmatprep.mubr.bf16.mxu0 %v304
    %566 = vmatmul.mubr.bf16.gmra.mrb[0].mxu0 %v303
    %v567 = vpop.f32.mrb[0].mxu0
    %v568 = vadd.f32 %v135, %v567
    %v569 = vpop.f32.mrb[0].mxu0
    %v570 = vpop.f32.mrb[0].mxu0
    %v571 = vadd.f32 %v135, %v570
    %v572 = vpop.f32.mrb[0].mxu0
    %573 = vmatprep.mubr.bf16.mxu0 %v306
    %574 = vmatmul.mubr.bf16.gmra.mrb[0].mxu0 %v305
    %v575 = vpop.f32.mrb[0].mxu0
    %v576 = vadd.f32 %v135, %v575
    %v577 = vpop.f32.mrb[0].mxu0
    %v578 = vpop.f32.mrb[0].mxu0
    %v579 = vadd.f32 %v135, %v578
    %v580 = vpop.f32.mrb[0].mxu0
    %581 = vmatprep.mubr.bf16.mxu0 %v308
    %582 = vmatmul.mubr.bf16.gmra.mrb[0].mxu0 %v307
    %v583 = vpop.f32.mrb[0].mxu0
    %v584 = vadd.f32 %v135, %v583
    %v585 = vpop.f32.mrb[0].mxu0
    %v586 = vpop.f32.mrb[0].mxu0
    %v587 = vadd.f32 %v135, %v586
    %v588 = vpop.f32.mrb[0].mxu0
    %589 = vmatprep.mubr.bf16.mxu0 %v310
    %590 = vmatmul.mubr.bf16.gmra.mrb[0].mxu0 %v309
    %v591 = vpop.f32.mrb[0].mxu0
    %v592 = vadd.f32 %v135, %v591
    %v593 = vpop.f32.mrb[0].mxu0
    %v594 = vpop.f32.mrb[0].mxu0
    %v595 = vadd.f32 %v135, %v594
    %v596 = vpop.f32.mrb[0].mxu0
    %597 = vmatprep.mubr.bf16.mxu0 %v312
    %598 = vmatmul.mubr.bf16.gmra.mrb[0].mxu0 %v311
    %v599 = vpop.f32.mrb[0].mxu0
    %v600 = vadd.f32 %v135, %v599
    %v601 = vpop.f32.mrb[0].mxu0
    %v602 = vpop.f32.mrb[0].mxu0
    %v603 = vadd.f32 %v135, %v602
    %v604 = vpop.f32.mrb[0].mxu0
    %605 = vmatprep.mubr.bf16.mxu0 %v314
    %606 = vmatmul.mubr.bf16.gmra.mrb[0].mxu0 %v313
    %v607 = vpop.f32.mrb[0].mxu0
    %v608 = vadd.f32 %v135, %v607
    %v609 = vpop.f32.mrb[0].mxu0
    %v610 = vpop.f32.mrb[0].mxu0
    %v611 = vadd.f32 %v135, %v610
    %v612 = vpop.f32.mrb[0].mxu0
    %613 = vmatprep.mubr.bf16.mxu0 %v316
    %614 = vmatmul.mubr.bf16.gmra.mrb[0].mxu0 %v315
    %v615 = vpop.f32.mrb[0].mxu0
    %v616 = vadd.f32 %v135, %v615
    %v617 = vpop.f32.mrb[0].mxu0
    %v618 = vpop.f32.mrb[0].mxu0
    %v619 = vadd.f32 %v135, %v618
    %v620 = vpop.f32.mrb[0].mxu0
    %621 = vmatprep.mubr.bf16.mxu0 %v318
    %622 = vmatmul.mubr.bf16.gmra.mrb[0].mxu0 %v317
    %v623 = vpop.f32.mrb[0].mxu0
    %v624 = vadd.f32 %v135, %v623
    %v625 = vpop.f32.mrb[0].mxu0
    %v626 = vpop.f32.mrb[0].mxu0
    %v627 = vadd.f32 %v135, %v626
    %v628 = vpop.f32.mrb[0].mxu0
    %629 = vmatprep.mubr.bf16.mxu0 %v320
    %630 = vmatmul.mubr.bf16.gmra.mrb[0].mxu0 %v319
    %v631 = vpop.f32.mrb[0].mxu0
    %v632 = vadd.f32 %v135, %v631
    %v633 = vpop.f32.mrb[0].mxu0
    %v634 = vpop.f32.mrb[0].mxu0
    %v635 = vadd.f32 %v135, %v634
    %v636 = vpop.f32.mrb[0].mxu0
    %637 = vmatprep.mubr.bf16.mxu0 %v322
    %638 = vmatmul.mubr.bf16.gmra.mrb[0].mxu0 %v321
    %v639 = vpop.f32.mrb[0].mxu0
    %v640 = vadd.f32 %v135, %v639
    %v641 = vpop.f32.mrb[0].mxu0
    %v642 = vpop.f32.mrb[0].mxu0
    %v643 = vadd.f32 %v135, %v642
    %v644 = vpop.f32.mrb[0].mxu0
    %645 = vmatprep.mubr.bf16.mxu0 %v324
    %646 = vmatmul.mubr.bf16.gmra.mrb[0].mxu0 %v323
    %v647 = vpop.f32.mrb[0].mxu0
    %v648 = vadd.f32 %v135, %v647
    %v649 = vpop.f32.mrb[0].mxu0
    %v650 = vpop.f32.mrb[0].mxu0
    %v651 = vadd.f32 %v135, %v650
    %v652 = vpop.f32.mrb[0].mxu0
    %653 = vmatprep.mubr.bf16.mxu0 %v326
    %654 = vmatmul.mubr.bf16.gmra.mrb[0].mxu0 %v325
    %v655 = vpop.f32.mrb[0].mxu0
    %v656 = vadd.f32 %v135, %v655
    %v657 = vpop.f32.mrb[0].mxu0
    %v658 = vpop.f32.mrb[0].mxu0
    %v659 = vadd.f32 %v135, %v658
    %v660 = vpop.f32.mrb[0].mxu0
    %661 = vmatprep.mubr.bf16.mxu0 %v328
    %662 = vmatmul.mubr.bf16.gmra.mrb[0].mxu0 %v327
    %v663 = vpop.f32.mrb[0].mxu0
    %v664 = vadd.f32 %v135, %v663
    %v665 = vpop.f32.mrb[0].mxu0
    %v666 = vpop.f32.mrb[0].mxu0
    %v667 = vadd.f32 %v135, %v666
    %v668 = vpop.f32.mrb[0].mxu0
    %669 = vmatprep.mubr.bf16.mxu0 %v330
    %670 = vmatmul.mubr.bf16.gmra.mrb[0].mxu0 %v329
    %v671 = vpop.f32.mrb[0].mxu0
    %v672 = vadd.f32 %v135, %v671
    %v673 = vpop.f32.mrb[0].mxu0
    %v674 = vpop.f32.mrb[0].mxu0
    %v675 = vadd.f32 %v135, %v674
    %v676 = vpop.f32.mrb[0].mxu0
    %677 = vmatprep.mubr.bf16.mxu0 %v332
    %678 = vmatmul.mubr.bf16.gmra.mrb[0].mxu0 %v331
    %v679 = vpop.f32.mrb[0].mxu0
    %v680 = vadd.f32 %v135, %v679
    %v681 = vpop.f32.mrb[0].mxu0
    %v682 = vpop.f32.mrb[0].mxu0
    %v683 = vadd.f32 %v135, %v682
    %v684 = vpop.f32.mrb[0].mxu0
    %685 = vmatprep.mubr.bf16.mxu0 %v334
    %686 = vmatmul.mubr.bf16.gmra.mrb[0].mxu0 %v333
    %v687 = vpop.f32.mrb[0].mxu0
    %v688 = vadd.f32 %v135, %v687
    %v689 = vpop.f32.mrb[0].mxu0
    %v690 = vpop.f32.mrb[0].mxu0
    %v691 = vadd.f32 %v135, %v690
    %v692 = vpop.f32.mrb[0].mxu0
    %693 = vmatprep.mubr.bf16.mxu0 %v336
    %694 = vmatmul.mubr.bf16.gmra.mrb[0].mxu0 %v335
    %v695 = vpop.f32.mrb[0].mxu0
    %v696 = vadd.f32 %v135, %v695
    %v697 = vpop.f32.mrb[0].mxu0
    %v698 = vpop.f32.mrb[0].mxu0
    %v699 = vadd.f32 %v135, %v698
    %v700 = vpop.f32.mrb[0].mxu0
    %701 = vmatprep.mubr.bf16.mxu0 %v338
    %702 = vmatmul.mubr.bf16.gmra.mrb[0].mxu0 %v337
    %v703 = vpop.f32.mrb[0].mxu0
    %v704 = vadd.f32 %v135, %v703
    %v705 = vpop.f32.mrb[0].mxu0
    %v706 = vpop.f32.mrb[0].mxu0
    %v707 = vadd.f32 %v135, %v706
    %v708 = vpop.f32.mrb[0].mxu0
    %709 = vmatprep.mubr.bf16.mxu0 %v340
    %710 = vmatmul.mubr.bf16.gmra.mrb[0].mxu0 %v339
    %v711 = vpop.f32.mrb[0].mxu0
    %v712 = vadd.f32 %v135, %v711
    %v713 = vpop.f32.mrb[0].mxu0
    %v714 = vpop.f32.mrb[0].mxu0
    %v715 = vadd.f32 %v135, %v714
    %v716 = vpop.f32.mrb[0].mxu0
    %717 = vmatprep.mubr.bf16.mxu0 %v342
    %718 = vmatmul.mubr.bf16.gmra.mrb[0].mxu0 %v341
    %v719 = vpop.f32.mrb[0].mxu0
    %v720 = vadd.f32 %v135, %v719
    %v721 = vpop.f32.mrb[0].mxu0
    %v722 = vpop.f32.mrb[0].mxu0
    %v723 = vadd.f32 %v135, %v722
    %v724 = vpop.f32.mrb[0].mxu0
    %725 = vmatprep.mubr.bf16.mxu0 %v344
    %726 = vmatmul.mubr.bf16.gmra.mrb[0].mxu0 %v343
    %v727 = vpop.f32.mrb[0].mxu0
    %v728 = vadd.f32 %v135, %v727
    %v729 = vpop.f32.mrb[0].mxu0
    %v730 = vpop.f32.mrb[0].mxu0
    %v731 = vadd.f32 %v135, %v730
    %v732 = vpop.f32.mrb[0].mxu0
    %733 = vdwg.mxu0
    %v734 = vmax.f32 %v528, 0.0
    %v735 = vmax.f32 %v531, 0.0
    %v736 = vmax.f32 %v536, 0.0
    %v737 = vmax.f32 %v539, 0.0
    %v738 = vmax.f32 %v544, 0.0
    %v739 = vmax.f32 %v547, 0.0
    %v740 = vmax.f32 %v552, 0.0
    %v741 = vmax.f32 %v555, 0.0
    %v742 = vmax.f32 %v560, 0.0
    %v743 = vmax.f32 %v563, 0.0
    %v744 = vmax.f32 %v568, 0.0
    %v745 = vmax.f32 %v571, 0.0
    %v746 = vmax.f32 %v576, 0.0
    %v747 = vmax.f32 %v579, 0.0
    %v748 = vmax.f32 %v584, 0.0
    %v749 = vmax.f32 %v587, 0.0
    %v750 = vmax.f32 %v592, 0.0
    %v751 = vmax.f32 %v595, 0.0
    %v752 = vmax.f32 %v600, 0.0
    %v753 = vmax.f32 %v603, 0.0
    %v754 = vmax.f32 %v608, 0.0
    %v755 = vmax.f32 %v611, 0.0
    %v756 = vmax.f32 %v616, 0.0
    %v757 = vmax.f32 %v619, 0.0
    %v758 = vmax.f32 %v624, 0.0
    %v759 = vmax.f32 %v627, 0.0
    %v760 = vmax.f32 %v632, 0.0
    %v761 = vmax.f32 %v635, 0.0
    %v762 = vmax.f32 %v640, 0.0
    %v763 = vmax.f32 %v643, 0.0
    %v764 = vmax.f32 %v648, 0.0
    %v765 = vmax.f32 %v651, 0.0
    %v766 = vmax.f32 %v656, 0.0
    %v767 = vmax.f32 %v659, 0.0
    %v768 = vmax.f32 %v664, 0.0
    %v769 = vmax.f32 %v667, 0.0
    %v770 = vmax.f32 %v672, 0.0
    %v771 = vmax.f32 %v675, 0.0
    %v772 = vmax.f32 %v680, 0.0
    %v773 = vmax.f32 %v683, 0.0
    %v774 = vmax.f32 %v688, 0.0
    %v775 = vmax.f32 %v691, 0.0
    %v776 = vmax.f32 %v696, 0.0
    %v777 = vmax.f32 %v699, 0.0
    %v778 = vmax.f32 %v704, 0.0
    %v779 = vmax.f32 %v707, 0.0
    %v780 = vmax.f32 %v712, 0.0
    %v781 = vmax.f32 %v715, 0.0
    %v782 = vmax.f32 %v720, 0.0
    %v783 = vmax.f32 %v723, 0.0
    %v784 = vmax.f32 %v728, 0.0
    %v785 = vmax.f32 %v731, 0.0
    %786 = vst [vmem:[#allocation2] sm:$0xff] %v734
    %787 = vst [vmem:[#allocation2 + $0x8] sm:$0xff] %v735
    %788 = vst [vmem:[#allocation2 + $0x10] sm:$0xff] %v736
    %789 = vst [vmem:[#allocation2 + $0x18] sm:$0xff] %v737
    %790 = vst [vmem:[#allocation2 + $0x20] sm:$0xff] %v738
    %791 = vst [vmem:[#allocation2 + $0x28] sm:$0xff] %v739
    %792 = vst [vmem:[#allocation2 + $0x30] sm:$0xff] %v740
    %793 = vst [vmem:[#allocation2 + $0x38] sm:$0xff] %v741
    %794 = vst [vmem:[#allocation2 + $0x40] sm:$0xff] %v742
    %795 = vst [vmem:[#allocation2 + $0x48] sm:$0xff] %v743
    %796 = vst [vmem:[#allocation2 + $0x50] sm:$0xff] %v744
    %797 = vst [vmem:[#allocation2 + $0x58] sm:$0xff] %v745
    %798 = vst [vmem:[#allocation2 + $0x60] sm:$0xff] %v746
    %799 = vst [vmem:[#allocation2 + $0x68] sm:$0xff] %v747
    %800 = vst [vmem:[#allocation2 + $0x70] sm:$0xff] %v748
    %801 = vst [vmem:[#allocation2 + $0x78] sm:$0xff] %v749
    %802 = vst [vmem:[#allocation2 + $0x80] sm:$0xff] %v750
    %803 = vst [vmem:[#allocation2 + $0x88] sm:$0xff] %v751
    %804 = vst [vmem:[#allocation2 + $0x90] sm:$0xff] %v752
    %805 = vst [vmem:[#allocation2 + $0x98] sm:$0xff] %v753
    %806 = vst [vmem:[#allocation2 + $0xa0] sm:$0xff] %v754
    %807 = vst [vmem:[#allocation2 + $0xa8] sm:$0xff] %v755
    %808 = vst [vmem:[#allocation2 + $0xb0] sm:$0xff] %v756
    %809 = vst [vmem:[#allocation2 + $0xb8] sm:$0xff] %v757
    %810 = vst [vmem:[#allocation2 + $0xc0] sm:$0xff] %v758
    %811 = vst [vmem:[#allocation2 + $0xc8] sm:$0xff] %v759
    %812 = vst [vmem:[#allocation2 + $0xd0] sm:$0xff] %v760
    %813 = vst [vmem:[#allocation2 + $0xd8] sm:$0xff] %v761
    %814 = vst [vmem:[#allocation2 + $0xe0] sm:$0xff] %v762
    %815 = vst [vmem:[#allocation2 + $0xe8] sm:$0xff] %v763
    %816 = vst [vmem:[#allocation2 + $0xf0] sm:$0xff] %v764
    %817 = vst [vmem:[#allocation2 + $0xf8] sm:$0xff] %v765
    %818 = vst [vmem:[#allocation2 + $0x100] sm:$0xff] %v766
    %819 = vst [vmem:[#allocation2 + $0x108] sm:$0xff] %v767
    %820 = vst [vmem:[#allocation2 + $0x110] sm:$0xff] %v768
    %821 = vst [vmem:[#allocation2 + $0x118] sm:$0xff] %v769
    %822 = vst [vmem:[#allocation2 + $0x120] sm:$0xff] %v770
    %823 = vst [vmem:[#allocation2 + $0x128] sm:$0xff] %v771
    %824 = vst [vmem:[#allocation2 + $0x130] sm:$0xff] %v772
    %825 = vst [vmem:[#allocation2 + $0x138] sm:$0xff] %v773
    %826 = vst [vmem:[#allocation2 + $0x140] sm:$0xff] %v774
    %827 = vst [vmem:[#allocation2 + $0x148] sm:$0xff] %v775
    %828 = vst [vmem:[#allocation2 + $0x150] sm:$0xff] %v776
    %829 = vst [vmem:[#allocation2 + $0x158] sm:$0xff] %v777
    %830 = vst [vmem:[#allocation2 + $0x160] sm:$0xff] %v778
    %831 = vst [vmem:[#allocation2 + $0x168] sm:$0xff] %v779
    %832 = vst [vmem:[#allocation2 + $0x170] sm:$0xff] %v780
    %833 = vst [vmem:[#allocation2 + $0x178] sm:$0xff] %v781
    %834 = vst [vmem:[#allocation2 + $0x180] sm:$0xff] %v782
    %835 = vst [vmem:[#allocation2 + $0x188] sm:$0xff] %v783
    %836 = vst [vmem:[#allocation2 + $0x190] sm:$0xff] %v784
    %837 = vst [vmem:[#allocation2 + $0x198] sm:$0xff] %v785
    %838 = vst [vmem:[#allocation2] sm:$0xff] 0.0
    %839 = vst [vmem:[#allocation2 + $0x8] sm:$0xff] 0.0
    %840 = vst [vmem:[#allocation2 + $0x10] sm:$0x1] 0.0
    %841 = vst [vmem:[#allocation2 + $0x20] sm:$0x1] 0.0
    %842 = vst [vmem:[#allocation2 + $0x30] sm:$0x1] 0.0
    %843 = vst [vmem:[#allocation2 + $0x40] sm:$0x1] 0.0
    %844 = vst [vmem:[#allocation2 + $0x50] sm:$0x1] 0.0
    %845 = vst [vmem:[#allocation2 + $0x60] sm:$0x1] 0.0
    %846 = vst [vmem:[#allocation2 + $0x70] sm:$0x1] 0.0
    %847 = vst [vmem:[#allocation2 + $0x80] sm:$0x1] 0.0
    %848 = vst [vmem:[#allocation2 + $0x90] sm:$0x1] 0.0
    %849 = vst [vmem:[#allocation2 + $0xa0] sm:$0x1] 0.0
    %850 = vst [vmem:[#allocation2 + $0xb0] sm:$0x1] 0.0
    %851 = vst [vmem:[#allocation2 + $0xd0] sm:$0xff] 0.0
    %852 = vst [vmem:[#allocation2 + $0xd8] sm:$0xff] 0.0
    %853 = vst [vmem:[#allocation2 + $0xe0] sm:$0x1] 0.0
    %854 = vst [vmem:[#allocation2 + $0xf0] sm:$0x1] 0.0
    %855 = vst [vmem:[#allocation2 + $0x100] sm:$0x1] 0.0
    %856 = vst [vmem:[#allocation2 + $0x110] sm:$0x1] 0.0
    %857 = vst [vmem:[#allocation2 + $0x120] sm:$0x1] 0.0
    %858 = vst [vmem:[#allocation2 + $0x130] sm:$0x1] 0.0
    %859 = vst [vmem:[#allocation2 + $0x140] sm:$0x1] 0.0
    %860 = vst [vmem:[#allocation2 + $0x150] sm:$0x1] 0.0
    %861 = vst [vmem:[#allocation2 + $0x160] sm:$0x1] 0.0
    %862 = vst [vmem:[#allocation2 + $0x170] sm:$0x1] 0.0
    %863 = vst [vmem:[#allocation2 + $0x180] sm:$0x1] 0.0
    %v864 = vld [vmem:[#allocation2] sm:$0x1f]
    %865 = vst [vmem:[#allocation3] sm:$0x1f] %v864
    %v866 = vld [vmem:[#allocation2 + $0x20] sm:$0x1f]
    %867 = vst [vmem:[#allocation3 + $0x80] sm:$0x1f] %v866
    %v868 = vld [vmem:[#allocation2 + $0x40] sm:$0x1f]
    %869 = vst [vmem:[#allocation3 + $0x100] sm:$0x1f] %v868
    %v870 = vld [vmem:[#allocation2 + $0x60] sm:$0x1f]
    %871 = vst [vmem:[#allocation3 + $0x180] sm:$0x1f] %v870
    %v872 = vld [vmem:[#allocation2 + $0x80] sm:$0x1f]
    %873 = vst [vmem:[#allocation3 + $0x200] sm:$0x1f] %v872
    %v874 = vld [vmem:[#allocation2 + $0x8] sm:$0x1f]
    %875 = vst [vmem:[#allocation3 + $0x8] sm:$0x1f] %v874
    %v876 = vld [vmem:[#allocation2 + $0x28] sm:$0x1f]
    %877 = vst [vmem:[#allocation3 + $0x88] sm:$0x1f] %v876
    %v878 = vld [vmem:[#allocation2 + $0x48] sm:$0x1f]
    %879 = vst [vmem:[#allocation3 + $0x108] sm:$0x1f] %v878
    %v880 = vld [vmem:[#allocation2 + $0x68] sm:$0x1f]
    %881 = vst [vmem:[#allocation3 + $0x188] sm:$0x1f] %v880
    %v882 = vld [vmem:[#allocation2 + $0x88] sm:$0x1f]
    %883 = vst [vmem:[#allocation3 + $0x208] sm:$0x1f] %v882
    %v884 = vld [vmem:[#allocation2 + $0x1] sm:$0x1f]
    %885 = vst [vmem:[#allocation3 + $0x10] sm:$0x1f] %v884
    %v886 = vld [vmem:[#allocation2 + $0x21] sm:$0x1f]
    %887 = vst [vmem:[#allocation3 + $0x90] sm:$0x1f] %v886
    %v888 = vld [vmem:[#allocation2 + $0x41] sm:$0x1f]
    %889 = vst [vmem:[#allocation3 + $0x110] sm:$0x1f] %v888
    %v890 = vld [vmem:[#allocation2 + $0x61] sm:$0x1f]
    %891 = vst [vmem:[#allocation3 + $0x190] sm:$0x1f] %v890
    %v892 = vld [vmem:[#allocation2 + $0x81] sm:$0x1f]
    %893 = vst [vmem:[#allocation3 + $0x210] sm:$0x1f] %v892
    %v894 = vld [vmem:[#allocation2 + $0x9] sm:$0x1f]
    %895 = vst [vmem:[#allocation3 + $0x18] sm:$0x1f] %v894
    %v896 = vld [vmem:[#allocation2 + $0x29] sm:$0x1f]
    %897 = vst [vmem:[#allocation3 + $0x98] sm:$0x1f] %v896
    %v898 = vld [vmem:[#allocation2 + $0x49] sm:$0x1f]
    %899 = vst [vmem:[#allocation3 + $0x118] sm:$0x1f] %v898
    %v900 = vld [vmem:[#allocation2 + $0x69] sm:$0x1f]
    %901 = vst [vmem:[#allocation3 + $0x198] sm:$0x1f] %v900
    %v902 = vld [vmem:[#allocation2 + $0x89] sm:$0x1f]
    %903 = vst [vmem:[#allocation3 + $0x218] sm:$0x1f] %v902
    %v904 = vld [vmem:[#allocation2 + $0x10] sm:$0x1f]
    %905 = vst [vmem:[#allocation3 + $0x20] sm:$0x1f] %v904
    %v906 = vld [vmem:[#allocation2 + $0x30] sm:$0x1f]
    %907 = vst [vmem:[#allocation3 + $0xa0] sm:$0x1f] %v906
    %v908 = vld [vmem:[#allocation2 + $0x50] sm:$0x1f]
    %909 = vst [vmem:[#allocation3 + $0x120] sm:$0x1f] %v908
    %v910 = vld [vmem:[#allocation2 + $0x70] sm:$0x1f]
    %911 = vst [vmem:[#allocation3 + $0x1a0] sm:$0x1f] %v910
    %v912 = vld [vmem:[#allocation2 + $0x90] sm:$0x1f]
    %913 = vst [vmem:[#allocation3 + $0x220] sm:$0x1f] %v912
    %v914 = vld [vmem:[#allocation2 + $0x18] sm:$0x1f]
    %915 = vst [vmem:[#allocation3 + $0x28] sm:$0x1f] %v914
    %v916 = vld [vmem:[#allocation2 + $0x38] sm:$0x1f]
    %917 = vst [vmem:[#allocation3 + $0xa8] sm:$0x1f] %v916
    %v918 = vld [vmem:[#allocation2 + $0x58] sm:$0x1f]
    %919 = vst [vmem:[#allocation3 + $0x128] sm:$0x1f] %v918
    %v920 = vld [vmem:[#allocation2 + $0x78] sm:$0x1f]
    %921 = vst [vmem:[#allocation3 + $0x1a8] sm:$0x1f] %v920
    %v922 = vld [vmem:[#allocation2 + $0x98] sm:$0x1f]
    %923 = vst [vmem:[#allocation3 + $0x228] sm:$0x1f] %v922
    %v924 = vld [vmem:[#allocation2 + $0x11] sm:$0x1f]
    %925 = vst [vmem:[#allocation3 + $0x30] sm:$0x1f] %v924
    %v926 = vld [vmem:[#allocation2 + $0x31] sm:$0x1f]
    %927 = vst [vmem:[#allocation3 + $0xb0] sm:$0x1f] %v926
    %v928 = vld [vmem:[#allocation2 + $0x51] sm:$0x1f]
    %929 = vst [vmem:[#allocation3 + $0x130] sm:$0x1f] %v928
    %v930 = vld [vmem:[#allocation2 + $0x71] sm:$0x1f]
    %931 = vst [vmem:[#allocation3 + $0x1b0] sm:$0x1f] %v930
    %v932 = vld [vmem:[#allocation2 + $0x91] sm:$0x1f]
    %933 = vst [vmem:[#allocation3 + $0x230] sm:$0x1f] %v932
    %v934 = vld [vmem:[#allocation2 + $0x19] sm:$0x1f]
    %935 = vst [vmem:[#allocation3 + $0x38] sm:$0x1f] %v934
    %v936 = vld [vmem:[#allocation2 + $0x39] sm:$0x1f]
    %937 = vst [vmem:[#allocation3 + $0xb8] sm:$0x1f] %v936
    %v938 = vld [vmem:[#allocation2 + $0x59] sm:$0x1f]
    %939 = vst [vmem:[#allocation3 + $0x138] sm:$0x1f] %v938
    %v940 = vld [vmem:[#allocation2 + $0x79] sm:$0x1f]
    %941 = vst [vmem:[#allocation3 + $0x1b8] sm:$0x1f] %v940
    %v942 = vld [vmem:[#allocation2 + $0x99] sm:$0x1f]
    %943 = vst [vmem:[#allocation3 + $0x238] sm:$0x1f] %v942
    %v944 = vld [vmem:[#allocation2 + $0x20] sm:$0x1f]
    %945 = vst [vmem:[#allocation3 + $0x40] sm:$0x1f] %v944
    %v946 = vld [vmem:[#allocation2 + $0x40] sm:$0x1f]
    %947 = vst [vmem:[#allocation3 + $0xc0] sm:$0x1f] %v946
    %v948 = vld [vmem:[#allocation2 + $0x60] sm:$0x1f]
    %949 = vst [vmem:[#allocation3 + $0x140] sm:$0x1f] %v948
    %v950 = vld [vmem:[#allocation2 + $0x80] sm:$0x1f]
    %951 = vst [vmem:[#allocation3 + $0x1c0] sm:$0x1f] %v950
    %v952 = vld [vmem:[#allocation2 + $0xa0] sm:$0x1f]
    %953 = vst [vmem:[#allocation3 + $0x240] sm:$0x1f] %v952
    %v954 = vld [vmem:[#allocation2 + $0x28] sm:$0x1f]
    %955 = vst [vmem:[#allocation3 + $0x48] sm:$0x1f] %v954
    %v956 = vld [vmem:[#allocation2 + $0x48] sm:$0x1f]
    %957 = vst [vmem:[#allocation3 + $0xc8] sm:$0x1f] %v956
    %v958 = vld [vmem:[#allocation2 + $0x68] sm:$0x1f]
    %959 = vst [vmem:[#allocation3 + $0x148] sm:$0x1f] %v958
    %v960 = vld [vmem:[#allocation2 + $0x88] sm:$0x1f]
    %961 = vst [vmem:[#allocation3 + $0x1c8] sm:$0x1f] %v960
    %v962 = vld [vmem:[#allocation2 + $0xa8] sm:$0x1f]
    %963 = vst [vmem:[#allocation3 + $0x248] sm:$0x1f] %v962
    %v964 = vld [vmem:[#allocation2 + $0x21] sm:$0x1f]
    %965 = vst [vmem:[#allocation3 + $0x50] sm:$0x1f] %v964
    %v966 = vld [vmem:[#allocation2 + $0x41] sm:$0x1f]
    %967 = vst [vmem:[#allocation3 + $0xd0] sm:$0x1f] %v966
    %v968 = vld [vmem:[#allocation2 + $0x61] sm:$0x1f]
    %969 = vst [vmem:[#allocation3 + $0x150] sm:$0x1f] %v968
    %v970 = vld [vmem:[#allocation2 + $0x81] sm:$0x1f]
    %971 = vst [vmem:[#allocation3 + $0x1d0] sm:$0x1f] %v970
    %v972 = vld [vmem:[#allocation2 + $0xa1] sm:$0x1f]
    %973 = vst [vmem:[#allocation3 + $0x250] sm:$0x1f] %v972
    %v974 = vld [vmem:[#allocation2 + $0x29] sm:$0x1f]
    %975 = vst [vmem:[#allocation3 + $0x58] sm:$0x1f] %v974
    %v976 = vld [vmem:[#allocation2 + $0x49] sm:$0x1f]
    %977 = vst [vmem:[#allocation3 + $0xd8] sm:$0x1f] %v976
    %v978 = vld [vmem:[#allocation2 + $0x69] sm:$0x1f]
    %979 = vst [vmem:[#allocation3 + $0x158] sm:$0x1f] %v978
    %v980 = vld [vmem:[#allocation2 + $0x89] sm:$0x1f]
    %981 = vst [vmem:[#allocation3 + $0x1d8] sm:$0x1f] %v980
    %v982 = vld [vmem:[#allocation2 + $0xa9] sm:$0x1f]
    %983 = vst [vmem:[#allocation3 + $0x258] sm:$0x1f] %v982
    %v984 = vld [vmem:[#allocation2 + $0x30] sm:$0x1f]
    %985 = vst [vmem:[#allocation3 + $0x60] sm:$0x1f] %v984
    %v986 = vld [vmem:[#allocation2 + $0x50] sm:$0x1f]
    %987 = vst [vmem:[#allocation3 + $0xe0] sm:$0x1f] %v986
    %v988 = vld [vmem:[#allocation2 + $0x70] sm:$0x1f]
    %989 = vst [vmem:[#allocation3 + $0x160] sm:$0x1f] %v988
    %v990 = vld [vmem:[#allocation2 + $0x90] sm:$0x1f]
    %991 = vst [vmem:[#allocation3 + $0x1e0] sm:$0x1f] %v990
    %v992 = vld [vmem:[#allocation2 + $0xb0] sm:$0x1f]
    %993 = vst [vmem:[#allocation3 + $0x260] sm:$0x1f] %v992
    %v994 = vld [vmem:[#allocation2 + $0x38] sm:$0x1f]
    %995 = vst [vmem:[#allocation3 + $0x68] sm:$0x1f] %v994
    %v996 = vld [vmem:[#allocation2 + $0x58] sm:$0x1f]
    %997 = vst [vmem:[#allocation3 + $0xe8] sm:$0x1f] %v996
    %v998 = vld [vmem:[#allocation2 + $0x78] sm:$0x1f]
    %999 = vst [vmem:[#allocation3 + $0x168] sm:$0x1f] %v998
    %v1000 = vld [vmem:[#allocation2 + $0x98] sm:$0x1f]
    %1001 = vst [vmem:[#allocation3 + $0x1e8] sm:$0x1f] %v1000
    %v1002 = vld [vmem:[#allocation2 + $0xb8] sm:$0x1f]
    %1003 = vst [vmem:[#allocation3 + $0x268] sm:$0x1f] %v1002
    %v1004 = vld [vmem:[#allocation2 + $0x31] sm:$0x1f]
    %1005 = vst [vmem:[#allocation3 + $0x70] sm:$0x1f] %v1004
    %v1006 = vld [vmem:[#allocation2 + $0x51] sm:$0x1f]
    %1007 = vst [vmem:[#allocation3 + $0xf0] sm:$0x1f] %v1006
    %v1008 = vld [vmem:[#allocation2 + $0x71] sm:$0x1f]
    %1009 = vst [vmem:[#allocation3 + $0x170] sm:$0x1f] %v1008
    %v1010 = vld [vmem:[#allocation2 + $0x91] sm:$0x1f]
    %1011 = vst [vmem:[#allocation3 + $0x1f0] sm:$0x1f] %v1010
    %v1012 = vld [vmem:[#allocation2 + $0xb1] sm:$0x1f]
    %1013 = vst [vmem:[#allocation3 + $0x270] sm:$0x1f] %v1012
    %v1014 = vld [vmem:[#allocation2 + $0x39] sm:$0x1f]
    %1015 = vst [vmem:[#allocation3 + $0x78] sm:$0x1f] %v1014
    %v1016 = vld [vmem:[#allocation2 + $0x59] sm:$0x1f]
    %1017 = vst [vmem:[#allocation3 + $0xf8] sm:$0x1f] %v1016
    %v1018 = vld [vmem:[#allocation2 + $0x79] sm:$0x1f]
    %1019 = vst [vmem:[#allocation3 + $0x178] sm:$0x1f] %v1018
    %v1020 = vld [vmem:[#allocation2 + $0x99] sm:$0x1f]
    %1021 = vst [vmem:[#allocation3 + $0x1f8] sm:$0x1f] %v1020
    %v1022 = vld [vmem:[#allocation2 + $0xb9] sm:$0x1f]
    %1023 = vst [vmem:[#allocation3 + $0x278] sm:$0x1f] %v1022
    %v1024 = vld [vmem:[#allocation2 + $0xd0] sm:$0x1f]
    %1025 = vst [vmem:[#allocation3 + $0x280] sm:$0x1f] %v1024
    %v1026 = vld [vmem:[#allocation2 + $0xf0] sm:$0x1f]
    %1027 = vst [vmem:[#allocation3 + $0x300] sm:$0x1f] %v1026
    %v1028 = vld [vmem:[#allocation2 + $0x110] sm:$0x1f]
    %1029 = vst [vmem:[#allocation3 + $0x380] sm:$0x1f] %v1028
    %v1030 = vld [vmem:[#allocation2 + $0x130] sm:$0x1f]
    %1031 = vst [vmem:[#allocation3 + $0x400] sm:$0x1f] %v1030
    %v1032 = vld [vmem:[#allocation2 + $0x150] sm:$0x1f]
    %1033 = vst [vmem:[#allocation3 + $0x480] sm:$0x1f] %v1032
    %v1034 = vld [vmem:[#allocation2 + $0xd8] sm:$0x1f]
    %1035 = vst [vmem:[#allocation3 + $0x288] sm:$0x1f] %v1034
    %v1036 = vld [vmem:[#allocation2 + $0xf8] sm:$0x1f]
    %1037 = vst [vmem:[#allocation3 + $0x308] sm:$0x1f] %v1036
    %v1038 = vld [vmem:[#allocation2 + $0x118] sm:$0x1f]
    %1039 = vst [vmem:[#allocation3 + $0x388] sm:$0x1f] %v1038
    %v1040 = vld [vmem:[#allocation2 + $0x138] sm:$0x1f]
    %1041 = vst [vmem:[#allocation3 + $0x408] sm:$0x1f] %v1040
    %v1042 = vld [vmem:[#allocation2 + $0x158] sm:$0x1f]
    %1043 = vst [vmem:[#allocation3 + $0x488] sm:$0x1f] %v1042
    %v1044 = vld [vmem:[#allocation2 + $0xd1] sm:$0x1f]
    %1045 = vst [vmem:[#allocation3 + $0x290] sm:$0x1f] %v1044
    %v1046 = vld [vmem:[#allocation2 + $0xf1] sm:$0x1f]
    %1047 = vst [vmem:[#allocation3 + $0x310] sm:$0x1f] %v1046
    %v1048 = vld [vmem:[#allocation2 + $0x111] sm:$0x1f]
    %1049 = vst [vmem:[#allocation3 + $0x390] sm:$0x1f] %v1048
    %v1050 = vld [vmem:[#allocation2 + $0x131] sm:$0x1f]
    %1051 = vst [vmem:[#allocation3 + $0x410] sm:$0x1f] %v1050
    %v1052 = vld [vmem:[#allocation2 + $0x151] sm:$0x1f]
    %1053 = vst [vmem:[#allocation3 + $0x490] sm:$0x1f] %v1052
    %v1054 = vld [vmem:[#allocation2 + $0xd9] sm:$0x1f]
    %1055 = vst [vmem:[#allocation3 + $0x298] sm:$0x1f] %v1054
    %v1056 = vld [vmem:[#allocation2 + $0xf9] sm:$0x1f]
    %1057 = vst [vmem:[#allocation3 + $0x318] sm:$0x1f] %v1056
    %v1058 = vld [vmem:[#allocation2 + $0x119] sm:$0x1f]
    %1059 = vst [vmem:[#allocation3 + $0x398] sm:$0x1f] %v1058
    %v1060 = vld [vmem:[#allocation2 + $0x139] sm:$0x1f]
    %1061 = vst [vmem:[#allocation3 + $0x418] sm:$0x1f] %v1060
    %v1062 = vld [vmem:[#allocation2 + $0x159] sm:$0x1f]
    %1063 = vst [vmem:[#allocation3 + $0x498] sm:$0x1f] %v1062
    %v1064 = vld [vmem:[#allocation2 + $0xe0] sm:$0x1f]
    %1065 = vst [vmem:[#allocation3 + $0x2a0] sm:$0x1f] %v1064
    %v1066 = vld [vmem:[#allocation2 + $0x100] sm:$0x1f]
    %1067 = vst [vmem:[#allocation3 + $0x320] sm:$0x1f] %v1066
    %v1068 = vld [vmem:[#allocation2 + $0x120] sm:$0x1f]
    %1069 = vst [vmem:[#allocation3 + $0x3a0] sm:$0x1f] %v1068
    %v1070 = vld [vmem:[#allocation2 + $0x140] sm:$0x1f]
    %1071 = vst [vmem:[#allocation3 + $0x420] sm:$0x1f] %v1070
    %v1072 = vld [vmem:[#allocation2 + $0x160] sm:$0x1f]
    %1073 = vst [vmem:[#allocation3 + $0x4a0] sm:$0x1f] %v1072
    %v1074 = vld [vmem:[#allocation2 + $0xe8] sm:$0x1f]
    %1075 = vst [vmem:[#allocation3 + $0x2a8] sm:$0x1f] %v1074
    %v1076 = vld [vmem:[#allocation2 + $0x108] sm:$0x1f]
    %1077 = vst [vmem:[#allocation3 + $0x328] sm:$0x1f] %v1076
    %v1078 = vld [vmem:[#allocation2 + $0x128] sm:$0x1f]
    %1079 = vst [vmem:[#allocation3 + $0x3a8] sm:$0x1f] %v1078
    %v1080 = vld [vmem:[#allocation2 + $0x148] sm:$0x1f]
    %1081 = vst [vmem:[#allocation3 + $0x428] sm:$0x1f] %v1080
    %v1082 = vld [vmem:[#allocation2 + $0x168] sm:$0x1f]
    %1083 = vst [vmem:[#allocation3 + $0x4a8] sm:$0x1f] %v1082
    %v1084 = vld [vmem:[#allocation2 + $0xe1] sm:$0x1f]
    %1085 = vst [vmem:[#allocation3 + $0x2b0] sm:$0x1f] %v1084
    %v1086 = vld [vmem:[#allocation2 + $0x101] sm:$0x1f]
    %1087 = vst [vmem:[#allocation3 + $0x330] sm:$0x1f] %v1086
    %v1088 = vld [vmem:[#allocation2 + $0x121] sm:$0x1f]
    %1089 = vst [vmem:[#allocation3 + $0x3b0] sm:$0x1f] %v1088
    %v1090 = vld [vmem:[#allocation2 + $0x141] sm:$0x1f]
    %1091 = vst [vmem:[#allocation3 + $0x430] sm:$0x1f] %v1090
    %v1092 = vld [vmem:[#allocation2 + $0x161] sm:$0x1f]
    %1093 = vst [vmem:[#allocation3 + $0x4b0] sm:$0x1f] %v1092
    %v1094 = vld [vmem:[#allocation2 + $0xe9] sm:$0x1f]
    %1095 = vst [vmem:[#allocation3 + $0x2b8] sm:$0x1f] %v1094
    %v1096 = vld [vmem:[#allocation2 + $0x109] sm:$0x1f]
    %1097 = vst [vmem:[#allocation3 + $0x338] sm:$0x1f] %v1096
    %v1098 = vld [vmem:[#allocation2 + $0x129] sm:$0x1f]
    %1099 = vst [vmem:[#allocation3 + $0x3b8] sm:$0x1f] %v1098
    %v1100 = vld [vmem:[#allocation2 + $0x149] sm:$0x1f]
    %1101 = vst [vmem:[#allocation3 + $0x438] sm:$0x1f] %v1100
    %v1102 = vld [vmem:[#allocation2 + $0x169] sm:$0x1f]
    %1103 = vst [vmem:[#allocation3 + $0x4b8] sm:$0x1f] %v1102
    %v1104 = vld [vmem:[#allocation2 + $0xf0] sm:$0x1f]
    %1105 = vst [vmem:[#allocation3 + $0x2c0] sm:$0x1f] %v1104
    %v1106 = vld [vmem:[#allocation2 + $0x110] sm:$0x1f]
    %1107 = vst [vmem:[#allocation3 + $0x340] sm:$0x1f] %v1106
    %v1108 = vld [vmem:[#allocation2 + $0x130] sm:$0x1f]
    %1109 = vst [vmem:[#allocation3 + $0x3c0] sm:$0x1f] %v1108
    %v1110 = vld [vmem:[#allocation2 + $0x150] sm:$0x1f]
    %1111 = vst [vmem:[#allocation3 + $0x440] sm:$0x1f] %v1110
    %v1112 = vld [vmem:[#allocation2 + $0x170] sm:$0x1f]
    %1113 = vst [vmem:[#allocation3 + $0x4c0] sm:$0x1f] %v1112
    %v1114 = vld [vmem:[#allocation2 + $0xf8] sm:$0x1f]
    %1115 = vst [vmem:[#allocation3 + $0x2c8] sm:$0x1f] %v1114
    %v1116 = vld [vmem:[#allocation2 + $0x118] sm:$0x1f]
    %1117 = vst [vmem:[#allocation3 + $0x348] sm:$0x1f] %v1116
    %v1118 = vld [vmem:[#allocation2 + $0x138] sm:$0x1f]
    %1119 = vst [vmem:[#allocation3 + $0x3c8] sm:$0x1f] %v1118
    %v1120 = vld [vmem:[#allocation2 + $0x158] sm:$0x1f]
    %1121 = vst [vmem:[#allocation3 + $0x448] sm:$0x1f] %v1120
    %v1122 = vld [vmem:[#allocation2 + $0x178] sm:$0x1f]
    %1123 = vst [vmem:[#allocation3 + $0x4c8] sm:$0x1f] %v1122
    %v1124 = vld [vmem:[#allocation2 + $0xf1] sm:$0x1f]
    %1125 = vst [vmem:[#allocation3 + $0x2d0] sm:$0x1f] %v1124
    %v1126 = vld [vmem:[#allocation2 + $0x111] sm:$0x1f]
    %1127 = vst [vmem:[#allocation3 + $0x350] sm:$0x1f] %v1126
    %v1128 = vld [vmem:[#allocation2 + $0x131] sm:$0x1f]
    %1129 = vst [vmem:[#allocation3 + $0x3d0] sm:$0x1f] %v1128
    %v1130 = vld [vmem:[#allocation2 + $0x151] sm:$0x1f]
    %1131 = vst [vmem:[#allocation3 + $0x450] sm:$0x1f] %v1130
    %v1132 = vld [vmem:[#allocation2 + $0x171] sm:$0x1f]
    %1133 = vst [vmem:[#allocation3 + $0x4d0] sm:$0x1f] %v1132
    %v1134 = vld [vmem:[#allocation2 + $0xf9] sm:$0x1f]
    %1135 = vst [vmem:[#allocation3 + $0x2d8] sm:$0x1f] %v1134
    %v1136 = vld [vmem:[#allocation2 + $0x119] sm:$0x1f]
    %1137 = vst [vmem:[#allocation3 + $0x358] sm:$0x1f] %v1136
    %v1138 = vld [vmem:[#allocation2 + $0x139] sm:$0x1f]
    %1139 = vst [vmem:[#allocation3 + $0x3d8] sm:$0x1f] %v1138
    %v1140 = vld [vmem:[#allocation2 + $0x159] sm:$0x1f]
    %1141 = vst [vmem:[#allocation3 + $0x458] sm:$0x1f] %v1140
    %v1142 = vld [vmem:[#allocation2 + $0x179] sm:$0x1f]
    %1143 = vst [vmem:[#allocation3 + $0x4d8] sm:$0x1f] %v1142
    %v1144 = vld [vmem:[#allocation2 + $0x100] sm:$0x1f]
    %1145 = vst [vmem:[#allocation3 + $0x2e0] sm:$0x1f] %v1144
    %v1146 = vld [vmem:[#allocation2 + $0x120] sm:$0x1f]
    %1147 = vst [vmem:[#allocation3 + $0x360] sm:$0x1f] %v1146
    %v1148 = vld [vmem:[#allocation2 + $0x140] sm:$0x1f]
    %1149 = vst [vmem:[#allocation3 + $0x3e0] sm:$0x1f] %v1148
    %v1150 = vld [vmem:[#allocation2 + $0x160] sm:$0x1f]
    %1151 = vst [vmem:[#allocation3 + $0x460] sm:$0x1f] %v1150
    %v1152 = vld [vmem:[#allocation2 + $0x180] sm:$0x1f]
    %1153 = vst [vmem:[#allocation3 + $0x4e0] sm:$0x1f] %v1152
    %v1154 = vld [vmem:[#allocation2 + $0x108] sm:$0x1f]
    %1155 = vst [vmem:[#allocation3 + $0x2e8] sm:$0x1f] %v1154
    %v1156 = vld [vmem:[#allocation2 + $0x128] sm:$0x1f]
    %1157 = vst [vmem:[#allocation3 + $0x368] sm:$0x1f] %v1156
    %v1158 = vld [vmem:[#allocation2 + $0x148] sm:$0x1f]
    %1159 = vst [vmem:[#allocation3 + $0x3e8] sm:$0x1f] %v1158
    %v1160 = vld [vmem:[#allocation2 + $0x168] sm:$0x1f]
    %1161 = vst [vmem:[#allocation3 + $0x468] sm:$0x1f] %v1160
    %v1162 = vld [vmem:[#allocation2 + $0x188] sm:$0x1f]
    %1163 = vst [vmem:[#allocation3 + $0x4e8] sm:$0x1f] %v1162
    %v1164 = vld [vmem:[#allocation2 + $0x101] sm:$0x1f]
    %1165 = vst [vmem:[#allocation3 + $0x2f0] sm:$0x1f] %v1164
    %v1166 = vld [vmem:[#allocation2 + $0x121] sm:$0x1f]
    %1167 = vst [vmem:[#allocation3 + $0x370] sm:$0x1f] %v1166
    %v1168 = vld [vmem:[#allocation2 + $0x141] sm:$0x1f]
    %1169 = vst [vmem:[#allocation3 + $0x3f0] sm:$0x1f] %v1168
    %v1170 = vld [vmem:[#allocation2 + $0x161] sm:$0x1f]
    %1171 = vst [vmem:[#allocation3 + $0x470] sm:$0x1f] %v1170
    %v1172 = vld [vmem:[#allocation2 + $0x181] sm:$0x1f]
    %1173 = vst [vmem:[#allocation3 + $0x4f0] sm:$0x1f] %v1172
    %v1174 = vld [vmem:[#allocation2 + $0x109] sm:$0x1f]
    %1175 = vst [vmem:[#allocation3 + $0x2f8] sm:$0x1f] %v1174
    %v1176 = vld [vmem:[#allocation2 + $0x129] sm:$0x1f]
    %1177 = vst [vmem:[#allocation3 + $0x378] sm:$0x1f] %v1176
    %v1178 = vld [vmem:[#allocation2 + $0x149] sm:$0x1f]
    %1179 = vst [vmem:[#allocation3 + $0x3f8] sm:$0x1f] %v1178
    %v1180 = vld [vmem:[#allocation2 + $0x169] sm:$0x1f]
    %1181 = vst [vmem:[#allocation3 + $0x478] sm:$0x1f] %v1180
    %v1182 = vld [vmem:[#allocation2 + $0x189] sm:$0x1f]
    %1183 = vst [vmem:[#allocation3 + $0x4f8] sm:$0x1f] %v1182
    %v1184 = vld [vmem:[#allocation3] sm:$0xff]
    %v1185 = vld [vmem:[#allocation3 + $0x8] sm:$0xff]
    %v1186 = vld [vmem:[#allocation3 + $0x10] sm:$0xff]
    %v1187 = vld [vmem:[#allocation3 + $0x18] sm:$0xff]
    %v1188 = vld [vmem:[#allocation3 + $0x20] sm:$0xff]
    %v1189 = vld [vmem:[#allocation3 + $0x28] sm:$0xff]
    %v1190 = vld [vmem:[#allocation3 + $0x30] sm:$0xff]
    %v1191 = vld [vmem:[#allocation3 + $0x38] sm:$0xff]
    %v1192 = vld [vmem:[#allocation3 + $0x40] sm:$0xff]
    %v1193 = vld [vmem:[#allocation3 + $0x48] sm:$0xff]
    %v1194 = vld [vmem:[#allocation3 + $0x50] sm:$0xff]
    %v1195 = vld [vmem:[#allocation3 + $0x58] sm:$0xff]
    %v1196 = vld [vmem:[#allocation3 + $0x60] sm:$0xff]
    %v1197 = vld [vmem:[#allocation3 + $0x68] sm:$0xff]
    %v1198 = vld [vmem:[#allocation3 + $0x70] sm:$0xff]
    %v1199 = vld [vmem:[#allocation3 + $0x78] sm:$0xff]
    %v1200 = vld [vmem:[#allocation3 + $0x80] sm:$0xff]
    %v1201 = vld [vmem:[#allocation3 + $0x88] sm:$0xff]
    %v1202 = vld [vmem:[#allocation3 + $0x90] sm:$0xff]
    %v1203 = vld [vmem:[#allocation3 + $0x98] sm:$0xff]
    %v1204 = vld [vmem:[#allocation3 + $0xa0] sm:$0xff]
    %v1205 = vld [vmem:[#allocation3 + $0xa8] sm:$0xff]
    %v1206 = vld [vmem:[#allocation3 + $0xb0] sm:$0xff]
    %v1207 = vld [vmem:[#allocation3 + $0xb8] sm:$0xff]
    %v1208 = vld [vmem:[#allocation3 + $0xc0] sm:$0xff]
    %v1209 = vld [vmem:[#allocation3 + $0xc8] sm:$0xff]
    %v1210 = vld [vmem:[#allocation3 + $0xd0] sm:$0xff]
    %v1211 = vld [vmem:[#allocation3 + $0xd8] sm:$0xff]
    %v1212 = vld [vmem:[#allocation3 + $0xe0] sm:$0xff]
    %v1213 = vld [vmem:[#allocation3 + $0xe8] sm:$0xff]
    %v1214 = vld [vmem:[#allocation3 + $0xf0] sm:$0xff]
    %v1215 = vld [vmem:[#allocation3 + $0xf8] sm:$0xff]
    %v1216 = vld [vmem:[#allocation3 + $0x100] sm:$0xff]
    %v1217 = vld [vmem:[#allocation3 + $0x108] sm:$0xff]
    %v1218 = vld [vmem:[#allocation3 + $0x110] sm:$0xff]
    %v1219 = vld [vmem:[#allocation3 + $0x118] sm:$0xff]
    %v1220 = vld [vmem:[#allocation3 + $0x120] sm:$0xff]
    %v1221 = vld [vmem:[#allocation3 + $0x128] sm:$0xff]
    %v1222 = vld [vmem:[#allocation3 + $0x130] sm:$0xff]
    %v1223 = vld [vmem:[#allocation3 + $0x138] sm:$0xff]
    %v1224 = vld [vmem:[#allocation3 + $0x140] sm:$0xff]
    %v1225 = vld [vmem:[#allocation3 + $0x148] sm:$0xff]
    %v1226 = vld [vmem:[#allocation3 + $0x150] sm:$0xff]
    %v1227 = vld [vmem:[#allocation3 + $0x158] sm:$0xff]
    %v1228 = vld [vmem:[#allocation3 + $0x160] sm:$0xff]
    %v1229 = vld [vmem:[#allocation3 + $0x168] sm:$0xff]
    %v1230 = vld [vmem:[#allocation3 + $0x170] sm:$0xff]
    %v1231 = vld [vmem:[#allocation3 + $0x178] sm:$0xff]
    %v1232 = vld [vmem:[#allocation3 + $0x180] sm:$0xff]
    %v1233 = vld [vmem:[#allocation3 + $0x188] sm:$0xff]
    %v1234 = vld [vmem:[#allocation3 + $0x190] sm:$0xff]
    %v1235 = vld [vmem:[#allocation3 + $0x198] sm:$0xff]
    %v1236 = vld [vmem:[#allocation3 + $0x1a0] sm:$0xff]
    %v1237 = vld [vmem:[#allocation3 + $0x1a8] sm:$0xff]
    %v1238 = vld [vmem:[#allocation3 + $0x1b0] sm:$0xff]
    %v1239 = vld [vmem:[#allocation3 + $0x1b8] sm:$0xff]
    %v1240 = vld [vmem:[#allocation3 + $0x1c0] sm:$0xff]
    %v1241 = vld [vmem:[#allocation3 + $0x1c8] sm:$0xff]
    %v1242 = vld [vmem:[#allocation3 + $0x1d0] sm:$0xff]
    %v1243 = vld [vmem:[#allocation3 + $0x1d8] sm:$0xff]
    %v1244 = vld [vmem:[#allocation3 + $0x1e0] sm:$0xff]
    %v1245 = vld [vmem:[#allocation3 + $0x1e8] sm:$0xff]
    %v1246 = vld [vmem:[#allocation3 + $0x1f0] sm:$0xff]
    %v1247 = vld [vmem:[#allocation3 + $0x1f8] sm:$0xff]
    %v1248 = vld [vmem:[#allocation3 + $0x200] sm:$0xff]
    %v1249 = vld [vmem:[#allocation3 + $0x208] sm:$0xff]
    %v1250 = vld [vmem:[#allocation3 + $0x210] sm:$0xff]
    %v1251 = vld [vmem:[#allocation3 + $0x218] sm:$0xff]
    %v1252 = vld [vmem:[#allocation3 + $0x220] sm:$0xff]
    %v1253 = vld [vmem:[#allocation3 + $0x228] sm:$0xff]
    %v1254 = vld [vmem:[#allocation3 + $0x230] sm:$0xff]
    %v1255 = vld [vmem:[#allocation3 + $0x238] sm:$0xff]
    %v1256 = vld [vmem:[#allocation3 + $0x240] sm:$0xff]
    %v1257 = vld [vmem:[#allocation3 + $0x248] sm:$0xff]
    %v1258 = vld [vmem:[#allocation3 + $0x250] sm:$0xff]
    %v1259 = vld [vmem:[#allocation3 + $0x258] sm:$0xff]
    %v1260 = vld [vmem:[#allocation3 + $0x260] sm:$0xff]
    %v1261 = vld [vmem:[#allocation3 + $0x268] sm:$0xff]
    %v1262 = vld [vmem:[#allocation3 + $0x270] sm:$0xff]
    %v1263 = vld [vmem:[#allocation3 + $0x278] sm:$0xff]
    %v1264 = vld [vmem:[#allocation3 + $0x280] sm:$0xff]
    %v1265 = vld [vmem:[#allocation3 + $0x288] sm:$0xff]
    %v1266 = vld [vmem:[#allocation3 + $0x290] sm:$0xff]
    %v1267 = vld [vmem:[#allocation3 + $0x298] sm:$0xff]
    %v1268 = vld [vmem:[#allocation3 + $0x2a0] sm:$0xff]
    %v1269 = vld [vmem:[#allocation3 + $0x2a8] sm:$0xff]
    %v1270 = vld [vmem:[#allocation3 + $0x2b0] sm:$0xff]
    %v1271 = vld [vmem:[#allocation3 + $0x2b8] sm:$0xff]
    %v1272 = vld [vmem:[#allocation3 + $0x2c0] sm:$0xff]
    %v1273 = vld [vmem:[#allocation3 + $0x2c8] sm:$0xff]
    %v1274 = vld [vmem:[#allocation3 + $0x2d0] sm:$0xff]
    %v1275 = vld [vmem:[#allocation3 + $0x2d8] sm:$0xff]
    %v1276 = vld [vmem:[#allocation3 + $0x2e0] sm:$0xff]
    %v1277 = vld [vmem:[#allocation3 + $0x2e8] sm:$0xff]
    %v1278 = vld [vmem:[#allocation3 + $0x2f0] sm:$0xff]
    %v1279 = vld [vmem:[#allocation3 + $0x2f8] sm:$0xff]
    %v1280 = vld [vmem:[#allocation3 + $0x300] sm:$0xff]
    %v1281 = vld [vmem:[#allocation3 + $0x308] sm:$0xff]
    %v1282 = vld [vmem:[#allocation3 + $0x310] sm:$0xff]
    %v1283 = vld [vmem:[#allocation3 + $0x318] sm:$0xff]
    %v1284 = vld [vmem:[#allocation3 + $0x320] sm:$0xff]
    %v1285 = vld [vmem:[#allocation3 + $0x328] sm:$0xff]
    %v1286 = vld [vmem:[#allocation3 + $0x330] sm:$0xff]
    %v1287 = vld [vmem:[#allocation3 + $0x338] sm:$0xff]
    %v1288 = vld [vmem:[#allocation3 + $0x340] sm:$0xff]
    %v1289 = vld [vmem:[#allocation3 + $0x348] sm:$0xff]
    %v1290 = vld [vmem:[#allocation3 + $0x350] sm:$0xff]
    %v1291 = vld [vmem:[#allocation3 + $0x358] sm:$0xff]
    %v1292 = vld [vmem:[#allocation3 + $0x360] sm:$0xff]
    %v1293 = vld [vmem:[#allocation3 + $0x368] sm:$0xff]
    %v1294 = vld [vmem:[#allocation3 + $0x370] sm:$0xff]
    %v1295 = vld [vmem:[#allocation3 + $0x378] sm:$0xff]
    %v1296 = vld [vmem:[#allocation3 + $0x380] sm:$0xff]
    %v1297 = vld [vmem:[#allocation3 + $0x388] sm:$0xff]
    %v1298 = vld [vmem:[#allocation3 + $0x390] sm:$0xff]
    %v1299 = vld [vmem:[#allocation3 + $0x398] sm:$0xff]
    %v1300 = vld [vmem:[#allocation3 + $0x3a0] sm:$0xff]
    %v1301 = vld [vmem:[#allocation3 + $0x3a8] sm:$0xff]
    %v1302 = vld [vmem:[#allocation3 + $0x3b0] sm:$0xff]
    %v1303 = vld [vmem:[#allocation3 + $0x3b8] sm:$0xff]
    %v1304 = vld [vmem:[#allocation3 + $0x3c0] sm:$0xff]
    %v1305 = vld [vmem:[#allocation3 + $0x3c8] sm:$0xff]
    %v1306 = vld [vmem:[#allocation3 + $0x3d0] sm:$0xff]
    %v1307 = vld [vmem:[#allocation3 + $0x3d8] sm:$0xff]
    %v1308 = vld [vmem:[#allocation3 + $0x3e0] sm:$0xff]
    %v1309 = vld [vmem:[#allocation3 + $0x3e8] sm:$0xff]
    %v1310 = vld [vmem:[#allocation3 + $0x3f0] sm:$0xff]
    %v1311 = vld [vmem:[#allocation3 + $0x3f8] sm:$0xff]
    %v1312 = vld [vmem:[#allocation3 + $0x400] sm:$0xff]
    %v1313 = vld [vmem:[#allocation3 + $0x408] sm:$0xff]
    %v1314 = vld [vmem:[#allocation3 + $0x410] sm:$0xff]
    %v1315 = vld [vmem:[#allocation3 + $0x418] sm:$0xff]
    %v1316 = vld [vmem:[#allocation3 + $0x420] sm:$0xff]
    %v1317 = vld [vmem:[#allocation3 + $0x428] sm:$0xff]
    %v1318 = vld [vmem:[#allocation3 + $0x430] sm:$0xff]
    %v1319 = vld [vmem:[#allocation3 + $0x438] sm:$0xff]
    %v1320 = vld [vmem:[#allocation3 + $0x440] sm:$0xff]
    %v1321 = vld [vmem:[#allocation3 + $0x448] sm:$0xff]
    %v1322 = vld [vmem:[#allocation3 + $0x450] sm:$0xff]
    %v1323 = vld [vmem:[#allocation3 + $0x458] sm:$0xff]
    %v1324 = vld [vmem:[#allocation3 + $0x460] sm:$0xff]
    %v1325 = vld [vmem:[#allocation3 + $0x468] sm:$0xff]
    %v1326 = vld [vmem:[#allocation3 + $0x470] sm:$0xff]
    %v1327 = vld [vmem:[#allocation3 + $0x478] sm:$0xff]
    %v1328 = vld [vmem:[#allocation3 + $0x480] sm:$0xff]
    %v1329 = vld [vmem:[#allocation3 + $0x488] sm:$0xff]
    %v1330 = vld [vmem:[#allocation3 + $0x490] sm:$0xff]
    %v1331 = vld [vmem:[#allocation3 + $0x498] sm:$0xff]
    %v1332 = vld [vmem:[#allocation3 + $0x4a0] sm:$0xff]
    %v1333 = vld [vmem:[#allocation3 + $0x4a8] sm:$0xff]
    %v1334 = vld [vmem:[#allocation3 + $0x4b0] sm:$0xff]
    %v1335 = vld [vmem:[#allocation3 + $0x4b8] sm:$0xff]
    %v1336 = vld [vmem:[#allocation3 + $0x4c0] sm:$0xff]
    %v1337 = vld [vmem:[#allocation3 + $0x4c8] sm:$0xff]
    %v1338 = vld [vmem:[#allocation3 + $0x4d0] sm:$0xff]
    %v1339 = vld [vmem:[#allocation3 + $0x4d8] sm:$0xff]
    %v1340 = vld [vmem:[#allocation3 + $0x4e0] sm:$0xff]
    %v1341 = vld [vmem:[#allocation3 + $0x4e8] sm:$0xff]
    %v1342 = vld [vmem:[#allocation3 + $0x4f0] sm:$0xff]
    %v1343 = vld [vmem:[#allocation3 + $0x4f8] sm:$0xff]
    %v1344 = vpack.c.bf16 %v1200, %v1184
    %v1345 = vpack.c.bf16 %v1201, %v1185
    %v1346 = vpack.c.bf16 %v1202, %v1186
    %v1347 = vpack.c.bf16 %v1203, %v1187
    %v1348 = vpack.c.bf16 %v1204, %v1188
    %v1349 = vpack.c.bf16 %v1205, %v1189
    %v1350 = vpack.c.bf16 %v1206, %v1190
    %v1351 = vpack.c.bf16 %v1207, %v1191
    %v1352 = vpack.c.bf16 %v1208, %v1192
    %v1353 = vpack.c.bf16 %v1209, %v1193
    %v1354 = vpack.c.bf16 %v1210, %v1194
    %v1355 = vpack.c.bf16 %v1211, %v1195
    %v1356 = vpack.c.bf16 %v1212, %v1196
    %v1357 = vpack.c.bf16 %v1213, %v1197
    %v1358 = vpack.c.bf16 %v1214, %v1198
    %v1359 = vpack.c.bf16 %v1215, %v1199
    %v1360 = vpack.c.bf16 %v1232, %v1216
    %v1361 = vpack.c.bf16 %v1233, %v1217
    %v1362 = vpack.c.bf16 %v1234, %v1218
    %v1363 = vpack.c.bf16 %v1235, %v1219
    %v1364 = vpack.c.bf16 %v1236, %v1220
    %v1365 = vpack.c.bf16 %v1237, %v1221
    %v1366 = vpack.c.bf16 %v1238, %v1222
    %v1367 = vpack.c.bf16 %v1239, %v1223
    %v1368 = vpack.c.bf16 %v1240, %v1224
    %v1369 = vpack.c.bf16 %v1241, %v1225
    %v1370 = vpack.c.bf16 %v1242, %v1226
    %v1371 = vpack.c.bf16 %v1243, %v1227
    %v1372 = vpack.c.bf16 %v1244, %v1228
    %v1373 = vpack.c.bf16 %v1245, %v1229
    %v1374 = vpack.c.bf16 %v1246, %v1230
    %v1375 = vpack.c.bf16 %v1247, %v1231
    %v1376 = vpack.c.bf16 %v1264, %v1248
    %v1377 = vpack.c.bf16 %v1265, %v1249
    %v1378 = vpack.c.bf16 %v1266, %v1250
    %v1379 = vpack.c.bf16 %v1267, %v1251
    %v1380 = vpack.c.bf16 %v1268, %v1252
    %v1381 = vpack.c.bf16 %v1269, %v1253
    %v1382 = vpack.c.bf16 %v1270, %v1254
    %v1383 = vpack.c.bf16 %v1271, %v1255
    %v1384 = vpack.c.bf16 %v1272, %v1256
    %v1385 = vpack.c.bf16 %v1273, %v1257
    %v1386 = vpack.c.bf16 %v1274, %v1258
    %v1387 = vpack.c.bf16 %v1275, %v1259
    %v1388 = vpack.c.bf16 %v1276, %v1260
    %v1389 = vpack.c.bf16 %v1277, %v1261
    %v1390 = vpack.c.bf16 %v1278, %v1262
    %v1391 = vpack.c.bf16 %v1279, %v1263
    %v1392 = vpack.c.bf16 %v1296, %v1280
    %v1393 = vpack.c.bf16 %v1297, %v1281
    %v1394 = vpack.c.bf16 %v1298, %v1282
    %v1395 = vpack.c.bf16 %v1299, %v1283
    %v1396 = vpack.c.bf16 %v1300, %v1284
    %v1397 = vpack.c.bf16 %v1301, %v1285
    %v1398 = vpack.c.bf16 %v1302, %v1286
    %v1399 = vpack.c.bf16 %v1303, %v1287
    %v1400 = vpack.c.bf16 %v1304, %v1288
    %v1401 = vpack.c.bf16 %v1305, %v1289
    %v1402 = vpack.c.bf16 %v1306, %v1290
    %v1403 = vpack.c.bf16 %v1307, %v1291
    %v1404 = vpack.c.bf16 %v1308, %v1292
    %v1405 = vpack.c.bf16 %v1309, %v1293
    %v1406 = vpack.c.bf16 %v1310, %v1294
    %v1407 = vpack.c.bf16 %v1311, %v1295
    %v1408 = vpack.c.bf16 %v1328, %v1312
    %v1409 = vpack.c.bf16 %v1329, %v1313
    %v1410 = vpack.c.bf16 %v1330, %v1314
    %v1411 = vpack.c.bf16 %v1331, %v1315
    %v1412 = vpack.c.bf16 %v1332, %v1316
    %v1413 = vpack.c.bf16 %v1333, %v1317
    %v1414 = vpack.c.bf16 %v1334, %v1318
    %v1415 = vpack.c.bf16 %v1335, %v1319
    %v1416 = vpack.c.bf16 %v1336, %v1320
    %v1417 = vpack.c.bf16 %v1337, %v1321
    %v1418 = vpack.c.bf16 %v1338, %v1322
    %v1419 = vpack.c.bf16 %v1339, %v1323
    %v1420 = vpack.c.bf16 %v1340, %v1324
    %v1421 = vpack.c.bf16 %v1341, %v1325
    %v1422 = vpack.c.bf16 %v1342, %v1326
    %v1423 = vpack.c.bf16 %v1343, %v1327
    %v1424 = vld [vmem:[%s3] sm:$0xf]
    %v1425 = vld [vmem:[%s3 + $0x4] sm:$0xf]
    %v1426 = vld [vmem:[%s3 + $0x8] sm:$0xf]
    %v1427 = vld [vmem:[%s3 + $0xc] sm:$0xf]
    %v1428 = vld [vmem:[%s3 + $0x10] sm:$0xf]
    %v1429 = vld [vmem:[%s3 + $0x14] sm:$0xf]
    %v1430 = vld [vmem:[%s3 + $0x18] sm:$0xf]
    %v1431 = vld [vmem:[%s3 + $0x1c] sm:$0xf]
    %v1432 = vld [vmem:[%s3 + $0x20] sm:$0xf]
    %v1433 = vld [vmem:[%s3 + $0x24] sm:$0xf]
    %v1434 = vld [vmem:[%s3 + $0x28] sm:$0xf]
    %v1435 = vld [vmem:[%s3 + $0x2c] sm:$0xf]
    %v1436 = vld [vmem:[%s3 + $0x30] sm:$0xf]
    %v1437 = vld [vmem:[%s3 + $0x34] sm:$0xf]
    %v1438 = vld [vmem:[%s3 + $0x38] sm:$0xf]
    %v1439 = vld [vmem:[%s3 + $0x3c] sm:$0xf]
    %v1440 = vld [vmem:[%s3 + $0x40] sm:$0xf]
    %v1441 = vld [vmem:[%s3 + $0x44] sm:$0xf]
    %v1442 = vld [vmem:[%s3 + $0x48] sm:$0xf]
    %v1443 = vld [vmem:[%s3 + $0x4c] sm:$0xf]
    %v1444 = vld [vmem:[%s3 + $0x50] sm:$0xf]
    %v1445 = vld [vmem:[%s3 + $0x54] sm:$0xf]
    %v1446 = vld [vmem:[%s3 + $0x58] sm:$0xf]
    %v1447 = vld [vmem:[%s3 + $0x5c] sm:$0xf]
    %v1448 = vld [vmem:[%s3 + $0x60] sm:$0xf]
    %v1449 = vld [vmem:[%s3 + $0x64] sm:$0xf]
    %v1450 = vld [vmem:[%s3 + $0x68] sm:$0xf]
    %v1451 = vld [vmem:[%s3 + $0x6c] sm:$0xf]
    %v1452 = vld [vmem:[%s3 + $0x70] sm:$0xf]
    %v1453 = vld [vmem:[%s3 + $0x74] sm:$0xf]
    %v1454 = vld [vmem:[%s3 + $0x78] sm:$0xf]
    %v1455 = vld [vmem:[%s3 + $0x7c] sm:$0xf]
    %v1456 = vld [vmem:[%s3 + $0x80] sm:$0xf]
    %v1457 = vld [vmem:[%s3 + $0x84] sm:$0xf]
    %v1458 = vld [vmem:[%s3 + $0x88] sm:$0xf]
    %v1459 = vld [vmem:[%s3 + $0x8c] sm:$0xf]
    %v1460 = vld [vmem:[%s3 + $0x90] sm:$0xf]
    %v1461 = vld [vmem:[%s3 + $0x94] sm:$0xf]
    %v1462 = vld [vmem:[%s3 + $0x98] sm:$0xf]
    %v1463 = vld [vmem:[%s3 + $0x9c] sm:$0xf]
    %v1464 = vld [vmem:[%s3 + $0xa0] sm:$0xf]
    %v1465 = vld [vmem:[%s3 + $0xa4] sm:$0xf]
    %v1466 = vld [vmem:[%s3 + $0xa8] sm:$0xf]
    %v1467 = vld [vmem:[%s3 + $0xac] sm:$0xf]
    %v1468 = vld [vmem:[%s3 + $0xb0] sm:$0xf]
    %v1469 = vld [vmem:[%s3 + $0xb4] sm:$0xf]
    %v1470 = vld [vmem:[%s3 + $0xb8] sm:$0xf]
    %v1471 = vld [vmem:[%s3 + $0xbc] sm:$0xf]
    %v1472 = vld [vmem:[%s3 + $0xc0] sm:$0xf]
    %v1473 = vld [vmem:[%s3 + $0xc4] sm:$0xf]
    %v1474 = vld [vmem:[%s3 + $0xc8] sm:$0xf]
    %v1475 = vld [vmem:[%s3 + $0xcc] sm:$0xf]
    %v1476 = vld [vmem:[%s3 + $0xd0] sm:$0xf]
    %v1477 = vld [vmem:[%s3 + $0xd4] sm:$0xf]
    %v1478 = vld [vmem:[%s3 + $0xd8] sm:$0xf]
    %v1479 = vld [vmem:[%s3 + $0xdc] sm:$0xf]
    %v1480 = vld [vmem:[%s3 + $0xe0] sm:$0xf]
    %v1481 = vld [vmem:[%s3 + $0xe4] sm:$0xf]
    %v1482 = vld [vmem:[%s3 + $0xe8] sm:$0xf]
    %v1483 = vld [vmem:[%s3 + $0xec] sm:$0xf]
    %v1484 = vld [vmem:[%s3 + $0xf0] sm:$0xf]
    %v1485 = vld [vmem:[%s3 + $0xf4] sm:$0xf]
    %v1486 = vld [vmem:[%s3 + $0xf8] sm:$0xf]
    %v1487 = vld [vmem:[%s3 + $0xfc] sm:$0xf]
    %v1488 = vld [vmem:[%s3 + $0x100] sm:$0xf]
    %v1489 = vld [vmem:[%s3 + $0x104] sm:$0xf]
    %v1490 = vld [vmem:[%s3 + $0x108] sm:$0xf]
    %v1491 = vld [vmem:[%s3 + $0x10c] sm:$0xf]
    %v1492 = vld [vmem:[%s3 + $0x110] sm:$0xf]
    %v1493 = vld [vmem:[%s3 + $0x114] sm:$0xf]
    %v1494 = vld [vmem:[%s3 + $0x118] sm:$0xf]
    %v1495 = vld [vmem:[%s3 + $0x11c] sm:$0xf]
    %v1496 = vld [vmem:[%s3 + $0x120] sm:$0xf]
    %v1497 = vld [vmem:[%s3 + $0x124] sm:$0xf]
    %v1498 = vld [vmem:[%s3 + $0x128] sm:$0xf]
    %v1499 = vld [vmem:[%s3 + $0x12c] sm:$0xf]
    %v1500 = vld [vmem:[%s3 + $0x130] sm:$0xf]
    %v1501 = vld [vmem:[%s3 + $0x134] sm:$0xf]
    %v1502 = vld [vmem:[%s3 + $0x138] sm:$0xf]
    %v1503 = vld [vmem:[%s3 + $0x13c] sm:$0xf]
    %v1504 = vld [vmem:[%s3 + $0x140] sm:$0xf]
    %v1505 = vld [vmem:[%s3 + $0x144] sm:$0xf]
    %v1506 = vld [vmem:[%s3 + $0x148] sm:$0xf]
    %v1507 = vld [vmem:[%s3 + $0x14c] sm:$0xf]
    %v1508 = vld [vmem:[%s3 + $0x150] sm:$0xf]
    %v1509 = vld [vmem:[%s3 + $0x154] sm:$0xf]
    %v1510 = vld [vmem:[%s3 + $0x158] sm:$0xf]
    %v1511 = vld [vmem:[%s3 + $0x15c] sm:$0xf]
    %v1512 = vld [vmem:[%s3 + $0x160] sm:$0xf]
    %v1513 = vld [vmem:[%s3 + $0x164] sm:$0xf]
    %v1514 = vld [vmem:[%s3 + $0x168] sm:$0xf]
    %v1515 = vld [vmem:[%s3 + $0x16c] sm:$0xf]
    %v1516 = vld [vmem:[%s3 + $0x170] sm:$0xf]
    %v1517 = vld [vmem:[%s3 + $0x174] sm:$0xf]
    %v1518 = vld [vmem:[%s3 + $0x178] sm:$0xf]
    %v1519 = vld [vmem:[%s3 + $0x17c] sm:$0xf]
    %v1520 = vld [vmem:[%s3 + $0x180] sm:$0xf]
    %v1521 = vld [vmem:[%s3 + $0x184] sm:$0xf]
    %v1522 = vld [vmem:[%s3 + $0x188] sm:$0xf]
    %v1523 = vld [vmem:[%s3 + $0x18c] sm:$0xf]
    %v1524 = vld [vmem:[%s3 + $0x190] sm:$0xf]
    %v1525 = vld [vmem:[%s3 + $0x194] sm:$0xf]
    %v1526 = vld [vmem:[%s3 + $0x198] sm:$0xf]
    %v1527 = vld [vmem:[%s3 + $0x19c] sm:$0xf]
    %v1528 = vld [vmem:[%s3 + $0x1a0] sm:$0xf]
    %v1529 = vld [vmem:[%s3 + $0x1a4] sm:$0xf]
    %v1530 = vld [vmem:[%s3 + $0x1a8] sm:$0xf]
    %v1531 = vld [vmem:[%s3 + $0x1ac] sm:$0xf]
    %v1532 = vld [vmem:[%s3 + $0x1b0] sm:$0xf]
    %v1533 = vld [vmem:[%s3 + $0x1b4] sm:$0xf]
    %v1534 = vld [vmem:[%s3 + $0x1b8] sm:$0xf]
    %v1535 = vld [vmem:[%s3 + $0x1bc] sm:$0xf]
    %v1536 = vld [vmem:[%s3 + $0x1c0] sm:$0xf]
    %v1537 = vld [vmem:[%s3 + $0x1c4] sm:$0xf]
    %v1538 = vld [vmem:[%s3 + $0x1c8] sm:$0xf]
    %v1539 = vld [vmem:[%s3 + $0x1cc] sm:$0xf]
    %v1540 = vld [vmem:[%s3 + $0x1d0] sm:$0xf]
    %v1541 = vld [vmem:[%s3 + $0x1d4] sm:$0xf]
    %v1542 = vld [vmem:[%s3 + $0x1d8] sm:$0xf]
    %v1543 = vld [vmem:[%s3 + $0x1dc] sm:$0xf]
    %v1544 = vld [vmem:[%s3 + $0x1e0] sm:$0xf]
    %v1545 = vld [vmem:[%s3 + $0x1e4] sm:$0xf]
    %v1546 = vld [vmem:[%s3 + $0x1e8] sm:$0xf]
    %v1547 = vld [vmem:[%s3 + $0x1ec] sm:$0xf]
    %v1548 = vld [vmem:[%s3 + $0x1f0] sm:$0xf]
    %v1549 = vld [vmem:[%s3 + $0x1f4] sm:$0xf]
    %v1550 = vld [vmem:[%s3 + $0x1f8] sm:$0xf]
    %v1551 = vld [vmem:[%s3 + $0x1fc] sm:$0xf]
    %v1552 = vld [vmem:[%s3 + $0x200] sm:$0xf]
    %v1553 = vld [vmem:[%s3 + $0x204] sm:$0xf]
    %v1554 = vld [vmem:[%s3 + $0x208] sm:$0xf]
    %v1555 = vld [vmem:[%s3 + $0x20c] sm:$0xf]
    %v1556 = vld [vmem:[%s3 + $0x210] sm:$0xf]
    %v1557 = vld [vmem:[%s3 + $0x214] sm:$0xf]
    %v1558 = vld [vmem:[%s3 + $0x218] sm:$0xf]
    %v1559 = vld [vmem:[%s3 + $0x21c] sm:$0xf]
    %v1560 = vld [vmem:[%s3 + $0x220] sm:$0xf]
    %v1561 = vld [vmem:[%s3 + $0x224] sm:$0xf]
    %v1562 = vld [vmem:[%s3 + $0x228] sm:$0xf]
    %v1563 = vld [vmem:[%s3 + $0x22c] sm:$0xf]
    %v1564 = vld [vmem:[%s3 + $0x230] sm:$0xf]
    %v1565 = vld [vmem:[%s3 + $0x234] sm:$0xf]
    %v1566 = vld [vmem:[%s3 + $0x238] sm:$0xf]
    %v1567 = vld [vmem:[%s3 + $0x23c] sm:$0xf]
    %v1568 = vld [vmem:[%s3 + $0x240] sm:$0xf]
    %v1569 = vld [vmem:[%s3 + $0x244] sm:$0xf]
    %v1570 = vld [vmem:[%s3 + $0x248] sm:$0xf]
    %v1571 = vld [vmem:[%s3 + $0x24c] sm:$0xf]
    %v1572 = vld [vmem:[%s3 + $0x250] sm:$0xf]
    %v1573 = vld [vmem:[%s3 + $0x254] sm:$0xf]
    %v1574 = vld [vmem:[%s3 + $0x258] sm:$0xf]
    %v1575 = vld [vmem:[%s3 + $0x25c] sm:$0xf]
    %v1576 = vld [vmem:[%s3 + $0x260] sm:$0xf]
    %v1577 = vld [vmem:[%s3 + $0x264] sm:$0xf]
    %v1578 = vld [vmem:[%s3 + $0x268] sm:$0xf]
    %v1579 = vld [vmem:[%s3 + $0x26c] sm:$0xf]
    %v1580 = vld [vmem:[%s3 + $0x270] sm:$0xf]
    %v1581 = vld [vmem:[%s3 + $0x274] sm:$0xf]
    %v1582 = vld [vmem:[%s3 + $0x278] sm:$0xf]
    %v1583 = vld [vmem:[%s3 + $0x27c] sm:$0xf]
    %v1584 = vld [vmem:[%s3 + $0x280] sm:$0xf]
    %v1585 = vld [vmem:[%s3 + $0x284] sm:$0xf]
    %v1586 = vld [vmem:[%s3 + $0x288] sm:$0xf]
    %v1587 = vld [vmem:[%s3 + $0x28c] sm:$0xf]
    %v1588 = vld [vmem:[%s3 + $0x290] sm:$0xf]
    %v1589 = vld [vmem:[%s3 + $0x294] sm:$0xf]
    %v1590 = vld [vmem:[%s3 + $0x298] sm:$0xf]
    %v1591 = vld [vmem:[%s3 + $0x29c] sm:$0xf]
    %v1592 = vld [vmem:[%s3 + $0x2a0] sm:$0xf]
    %v1593 = vld [vmem:[%s3 + $0x2a4] sm:$0xf]
    %v1594 = vld [vmem:[%s3 + $0x2a8] sm:$0xf]
    %v1595 = vld [vmem:[%s3 + $0x2ac] sm:$0xf]
    %v1596 = vld [vmem:[%s3 + $0x2b0] sm:$0xf]
    %v1597 = vld [vmem:[%s3 + $0x2b4] sm:$0xf]
    %v1598 = vld [vmem:[%s3 + $0x2b8] sm:$0xf]
    %v1599 = vld [vmem:[%s3 + $0x2bc] sm:$0xf]
    %v1600 = vld [vmem:[%s3 + $0x2c0] sm:$0xf]
    %v1601 = vld [vmem:[%s3 + $0x2c4] sm:$0xf]
    %v1602 = vld [vmem:[%s3 + $0x2c8] sm:$0xf]
    %v1603 = vld [vmem:[%s3 + $0x2cc] sm:$0xf]
    %v1604 = vld [vmem:[%s3 + $0x2d0] sm:$0xf]
    %v1605 = vld [vmem:[%s3 + $0x2d4] sm:$0xf]
    %v1606 = vld [vmem:[%s3 + $0x2d8] sm:$0xf]
    %v1607 = vld [vmem:[%s3 + $0x2dc] sm:$0xf]
    %v1608 = vld [vmem:[%s3 + $0x2e0] sm:$0xf]
    %v1609 = vld [vmem:[%s3 + $0x2e4] sm:$0xf]
    %v1610 = vld [vmem:[%s3 + $0x2e8] sm:$0xf]
    %v1611 = vld [vmem:[%s3 + $0x2ec] sm:$0xf]
    %v1612 = vld [vmem:[%s3 + $0x2f0] sm:$0xf]
    %v1613 = vld [vmem:[%s3 + $0x2f4] sm:$0xf]
    %v1614 = vld [vmem:[%s3 + $0x2f8] sm:$0xf]
    %v1615 = vld [vmem:[%s3 + $0x2fc] sm:$0xf]
    %v1616 = vld [vmem:[%s3 + $0x300] sm:$0xf]
    %v1617 = vld [vmem:[%s3 + $0x304] sm:$0xf]
    %v1618 = vld [vmem:[%s3 + $0x308] sm:$0xf]
    %v1619 = vld [vmem:[%s3 + $0x30c] sm:$0xf]
    %v1620 = vld [vmem:[%s3 + $0x310] sm:$0xf]
    %v1621 = vld [vmem:[%s3 + $0x314] sm:$0xf]
    %v1622 = vld [vmem:[%s3 + $0x318] sm:$0xf]
    %v1623 = vld [vmem:[%s3 + $0x31c] sm:$0xf]
    %v1624 = vld [vmem:[%s3 + $0x320] sm:$0xf]
    %v1625 = vld [vmem:[%s3 + $0x324] sm:$0xf]
    %v1626 = vld [vmem:[%s3 + $0x328] sm:$0xf]
    %v1627 = vld [vmem:[%s3 + $0x32c] sm:$0xf]
    %v1628 = vld [vmem:[%s3 + $0x330] sm:$0xf]
    %v1629 = vld [vmem:[%s3 + $0x334] sm:$0xf]
    %v1630 = vld [vmem:[%s3 + $0x338] sm:$0xf]
    %v1631 = vld [vmem:[%s3 + $0x33c] sm:$0xf]
    %v1632 = vld [vmem:[%s3 + $0x340] sm:$0xf]
    %v1633 = vld [vmem:[%s3 + $0x344] sm:$0xf]
    %v1634 = vld [vmem:[%s3 + $0x348] sm:$0xf]
    %v1635 = vld [vmem:[%s3 + $0x34c] sm:$0xf]
    %v1636 = vld [vmem:[%s3 + $0x350] sm:$0xf]
    %v1637 = vld [vmem:[%s3 + $0x354] sm:$0xf]
    %v1638 = vld [vmem:[%s3 + $0x358] sm:$0xf]
    %v1639 = vld [vmem:[%s3 + $0x35c] sm:$0xf]
    %v1640 = vld [vmem:[%s3 + $0x360] sm:$0xf]
    %v1641 = vld [vmem:[%s3 + $0x364] sm:$0xf]
    %v1642 = vld [vmem:[%s3 + $0x368] sm:$0xf]
    %v1643 = vld [vmem:[%s3 + $0x36c] sm:$0xf]
    %v1644 = vld [vmem:[%s3 + $0x370] sm:$0xf]
    %v1645 = vld [vmem:[%s3 + $0x374] sm:$0xf]
    %v1646 = vld [vmem:[%s3 + $0x378] sm:$0xf]
    %v1647 = vld [vmem:[%s3 + $0x37c] sm:$0xf]
    %v1648 = vld [vmem:[%s3 + $0x380] sm:$0xf]
    %v1649 = vld [vmem:[%s3 + $0x384] sm:$0xf]
    %v1650 = vld [vmem:[%s3 + $0x388] sm:$0xf]
    %v1651 = vld [vmem:[%s3 + $0x38c] sm:$0xf]
    %v1652 = vld [vmem:[%s3 + $0x390] sm:$0xf]
    %v1653 = vld [vmem:[%s3 + $0x394] sm:$0xf]
    %v1654 = vld [vmem:[%s3 + $0x398] sm:$0xf]
    %v1655 = vld [vmem:[%s3 + $0x39c] sm:$0xf]
    %v1656 = vld [vmem:[%s3 + $0x3a0] sm:$0xf]
    %v1657 = vld [vmem:[%s3 + $0x3a4] sm:$0xf]
    %v1658 = vld [vmem:[%s3 + $0x3a8] sm:$0xf]
    %v1659 = vld [vmem:[%s3 + $0x3ac] sm:$0xf]
    %v1660 = vld [vmem:[%s3 + $0x3b0] sm:$0xf]
    %v1661 = vld [vmem:[%s3 + $0x3b4] sm:$0xf]
    %v1662 = vld [vmem:[%s3 + $0x3b8] sm:$0xf]
    %v1663 = vld [vmem:[%s3 + $0x3bc] sm:$0xf]
    %v1664 = vld [vmem:[%s3 + $0x3c0] sm:$0xf]
    %v1665 = vld [vmem:[%s3 + $0x3c4] sm:$0xf]
    %v1666 = vld [vmem:[%s3 + $0x3c8] sm:$0xf]
    %v1667 = vld [vmem:[%s3 + $0x3cc] sm:$0xf]
    %v1668 = vld [vmem:[%s3 + $0x3d0] sm:$0xf]
    %v1669 = vld [vmem:[%s3 + $0x3d4] sm:$0xf]
    %v1670 = vld [vmem:[%s3 + $0x3d8] sm:$0xf]
    %v1671 = vld [vmem:[%s3 + $0x3dc] sm:$0xf]
    %v1672 = vld [vmem:[%s3 + $0x3e0] sm:$0xf]
    %v1673 = vld [vmem:[%s3 + $0x3e4] sm:$0xf]
    %v1674 = vld [vmem:[%s3 + $0x3e8] sm:$0xf]
    %v1675 = vld [vmem:[%s3 + $0x3ec] sm:$0xf]
    %v1676 = vld [vmem:[%s3 + $0x3f0] sm:$0xf]
    %v1677 = vld [vmem:[%s3 + $0x3f4] sm:$0xf]
    %v1678 = vld [vmem:[%s3 + $0x3f8] sm:$0xf]
    %v1679 = vld [vmem:[%s3 + $0x3fc] sm:$0xf]
    %v1680 = vld [vmem:[%s4] sm:$0x1]
    %v1682 = vlaneseq
    %v1683 = vshrl.u32 %v1682, 7
    %v1684 = vsub.s32 0, %v1683
    %v1685 = vrot.slane %v1680, %v1684
    %v1943 = vunpack.c.l.b16 %v1424
    %v1944 = vunpack.c.l.b16 %v1425
    %v1945 = vunpack.c.l.b16 %v1426
    %v1946 = vunpack.c.l.b16 %v1427
    %v1947 = vunpack.c.l.b16 %v1428
    %v1948 = vunpack.c.l.b16 %v1429
    %v1949 = vunpack.c.l.b16 %v1430
    %v1950 = vunpack.c.l.b16 %v1431
    %v1951 = vunpack.c.l.b16 %v1432
    %v1952 = vunpack.c.l.b16 %v1433
    %v1953 = vunpack.c.l.b16 %v1434
    %v1954 = vunpack.c.l.b16 %v1435
    %v1955 = vunpack.c.l.b16 %v1436
    %v1956 = vunpack.c.l.b16 %v1437
    %v1957 = vunpack.c.l.b16 %v1438
    %v1958 = vunpack.c.l.b16 %v1439
    %v1959 = vunpack.c.l.b16 %v1440
    %v1960 = vunpack.c.l.b16 %v1441
    %v1961 = vunpack.c.l.b16 %v1442
    %v1962 = vunpack.c.l.b16 %v1443
    %v1963 = vunpack.c.l.b16 %v1444
    %v1964 = vunpack.c.l.b16 %v1445
    %v1965 = vunpack.c.l.b16 %v1446
    %v1966 = vunpack.c.l.b16 %v1447
    %v1967 = vunpack.c.l.b16 %v1448
    %v1968 = vunpack.c.l.b16 %v1449
    %v1969 = vunpack.c.l.b16 %v1450
    %v1970 = vunpack.c.l.b16 %v1451
    %v1971 = vunpack.c.l.b16 %v1452
    %v1972 = vunpack.c.l.b16 %v1453
    %v1973 = vunpack.c.l.b16 %v1454
    %v1974 = vunpack.c.l.b16 %v1455
    %v1975 = vunpack.c.l.b16 %v1456
    %v1976 = vunpack.c.l.b16 %v1457
    %v1977 = vunpack.c.l.b16 %v1458
    %v1978 = vunpack.c.l.b16 %v1459
    %v1979 = vunpack.c.l.b16 %v1460
    %v1980 = vunpack.c.l.b16 %v1461
    %v1981 = vunpack.c.l.b16 %v1462
    %v1982 = vunpack.c.l.b16 %v1463
    %v1983 = vunpack.c.l.b16 %v1464
    %v1984 = vunpack.c.l.b16 %v1465
    %v1985 = vunpack.c.l.b16 %v1466
    %v1986 = vunpack.c.l.b16 %v1467
    %v1987 = vunpack.c.l.b16 %v1468
    %v1988 = vunpack.c.l.b16 %v1469
    %v1989 = vunpack.c.l.b16 %v1470
    %v1990 = vunpack.c.l.b16 %v1471
    %v1991 = vunpack.c.l.b16 %v1472
    %v1992 = vunpack.c.l.b16 %v1473
    %v1993 = vunpack.c.l.b16 %v1474
    %v1994 = vunpack.c.l.b16 %v1475
    %v1995 = vunpack.c.l.b16 %v1476
    %v1996 = vunpack.c.l.b16 %v1477
    %v1997 = vunpack.c.l.b16 %v1478
    %v1998 = vunpack.c.l.b16 %v1479
    %v1999 = vunpack.c.l.b16 %v1480
    %v2000 = vunpack.c.l.b16 %v1481
    %v2001 = vunpack.c.l.b16 %v1482
    %v2002 = vunpack.c.l.b16 %v1483
    %v2003 = vunpack.c.l.b16 %v1484
    %v2004 = vunpack.c.l.b16 %v1485
    %v2005 = vunpack.c.l.b16 %v1486
    %v2006 = vunpack.c.l.b16 %v1487
    %v2007 = vunpack.c.l.b16 %v1488
    %v2008 = vunpack.c.l.b16 %v1489
    %v2009 = vunpack.c.l.b16 %v1490
    %v2010 = vunpack.c.l.b16 %v1491
    %v2011 = vunpack.c.l.b16 %v1492
    %v2012 = vunpack.c.l.b16 %v1493
    %v2013 = vunpack.c.l.b16 %v1494
    %v2014 = vunpack.c.l.b16 %v1495
    %v2015 = vunpack.c.l.b16 %v1496
    %v2016 = vunpack.c.l.b16 %v1497
    %v2017 = vunpack.c.l.b16 %v1498
    %v2018 = vunpack.c.l.b16 %v1499
    %v2019 = vunpack.c.l.b16 %v1500
    %v2020 = vunpack.c.l.b16 %v1501
    %v2021 = vunpack.c.l.b16 %v1502
    %v2022 = vunpack.c.l.b16 %v1503
    %v2023 = vunpack.c.l.b16 %v1504
    %v2024 = vunpack.c.l.b16 %v1505
    %v2025 = vunpack.c.l.b16 %v1506
    %v2026 = vunpack.c.l.b16 %v1507
    %v2027 = vunpack.c.l.b16 %v1508
    %v2028 = vunpack.c.l.b16 %v1509
    %v2029 = vunpack.c.l.b16 %v1510
    %v2030 = vunpack.c.l.b16 %v1511
    %v2031 = vunpack.c.l.b16 %v1512
    %v2032 = vunpack.c.l.b16 %v1513
    %v2033 = vunpack.c.l.b16 %v1514
    %v2034 = vunpack.c.l.b16 %v1515
    %v2035 = vunpack.c.l.b16 %v1516
    %v2036 = vunpack.c.l.b16 %v1517
    %v2037 = vunpack.c.l.b16 %v1518
    %v2038 = vunpack.c.l.b16 %v1519
    %v2039 = vunpack.c.l.b16 %v1520
    %v2040 = vunpack.c.l.b16 %v1521
    %v2041 = vunpack.c.l.b16 %v1522
    %v2042 = vunpack.c.l.b16 %v1523
    %v2043 = vunpack.c.l.b16 %v1524
    %v2044 = vunpack.c.l.b16 %v1525
    %v2045 = vunpack.c.l.b16 %v1526
    %v2046 = vunpack.c.l.b16 %v1527
    %v2047 = vunpack.c.l.b16 %v1528
    %v2048 = vunpack.c.l.b16 %v1529
    %v2049 = vunpack.c.l.b16 %v1530
    %v2050 = vunpack.c.l.b16 %v1531
    %v2051 = vunpack.c.l.b16 %v1532
    %v2052 = vunpack.c.l.b16 %v1533
    %v2053 = vunpack.c.l.b16 %v1534
    %v2054 = vunpack.c.l.b16 %v1535
    %v2055 = vunpack.c.l.b16 %v1536
    %v2056 = vunpack.c.l.b16 %v1537
    %v2057 = vunpack.c.l.b16 %v1538
    %v2058 = vunpack.c.l.b16 %v1539
    %v2059 = vunpack.c.l.b16 %v1540
    %v2060 = vunpack.c.l.b16 %v1541
    %v2061 = vunpack.c.l.b16 %v1542
    %v2062 = vunpack.c.l.b16 %v1543
    %v2063 = vunpack.c.l.b16 %v1544
    %v2064 = vunpack.c.l.b16 %v1545
    %v2065 = vunpack.c.l.b16 %v1546
    %v2066 = vunpack.c.l.b16 %v1547
    %v2067 = vunpack.c.l.b16 %v1548
    %v2068 = vunpack.c.l.b16 %v1549
    %v2069 = vunpack.c.l.b16 %v1550
    %v2070 = vunpack.c.l.b16 %v1551
    %v2071 = vunpack.c.l.b16 %v1552
    %v2072 = vunpack.c.l.b16 %v1553
    %v2073 = vunpack.c.l.b16 %v1554
    %v2074 = vunpack.c.l.b16 %v1555
    %v2075 = vunpack.c.l.b16 %v1556
    %v2076 = vunpack.c.l.b16 %v1557
    %v2077 = vunpack.c.l.b16 %v1558
    %v2078 = vunpack.c.l.b16 %v1559
    %v2079 = vunpack.c.l.b16 %v1560
    %v2080 = vunpack.c.l.b16 %v1561
    %v2081 = vunpack.c.l.b16 %v1562
    %v2082 = vunpack.c.l.b16 %v1563
    %v2083 = vunpack.c.l.b16 %v1564
    %v2084 = vunpack.c.l.b16 %v1565
    %v2085 = vunpack.c.l.b16 %v1566
    %v2086 = vunpack.c.l.b16 %v1567
    %v2087 = vunpack.c.l.b16 %v1568
    %v2088 = vunpack.c.l.b16 %v1569
    %v2089 = vunpack.c.l.b16 %v1570
    %v2090 = vunpack.c.l.b16 %v1571
    %v2091 = vunpack.c.l.b16 %v1572
    %v2092 = vunpack.c.l.b16 %v1573
    %v2093 = vunpack.c.l.b16 %v1574
    %v2094 = vunpack.c.l.b16 %v1575
    %v2095 = vunpack.c.l.b16 %v1576
    %v2096 = vunpack.c.l.b16 %v1577
    %v2097 = vunpack.c.l.b16 %v1578
    %v2098 = vunpack.c.l.b16 %v1579
    %v2099 = vunpack.c.l.b16 %v1580
    %v2100 = vunpack.c.l.b16 %v1581
    %v2101 = vunpack.c.l.b16 %v1582
    %v2102 = vunpack.c.l.b16 %v1583
    %v2103 = vunpack.c.l.b16 %v1584
    %v2104 = vunpack.c.l.b16 %v1585
    %v2105 = vunpack.c.l.b16 %v1586
    %v2106 = vunpack.c.l.b16 %v1587
    %v2107 = vunpack.c.l.b16 %v1588
    %v2108 = vunpack.c.l.b16 %v1589
    %v2109 = vunpack.c.l.b16 %v1590
    %v2110 = vunpack.c.l.b16 %v1591
    %v2111 = vunpack.c.l.b16 %v1592
    %v2112 = vunpack.c.l.b16 %v1593
    %v2113 = vunpack.c.l.b16 %v1594
    %v2114 = vunpack.c.l.b16 %v1595
    %v2115 = vunpack.c.l.b16 %v1596
    %v2116 = vunpack.c.l.b16 %v1597
    %v2117 = vunpack.c.l.b16 %v1598
    %v2118 = vunpack.c.l.b16 %v1599
    %v2119 = vunpack.c.l.b16 %v1600
    %v2120 = vunpack.c.l.b16 %v1601
    %v2121 = vunpack.c.l.b16 %v1602
    %v2122 = vunpack.c.l.b16 %v1603
    %v2123 = vunpack.c.l.b16 %v1604
    %v2124 = vunpack.c.l.b16 %v1605
    %v2125 = vunpack.c.l.b16 %v1606
    %v2126 = vunpack.c.l.b16 %v1607
    %v2127 = vunpack.c.l.b16 %v1608
    %v2128 = vunpack.c.l.b16 %v1609
    %v2129 = vunpack.c.l.b16 %v1610
    %v2130 = vunpack.c.l.b16 %v1611
    %v2131 = vunpack.c.l.b16 %v1612
    %v2132 = vunpack.c.l.b16 %v1613
    %v2133 = vunpack.c.l.b16 %v1614
    %v2134 = vunpack.c.l.b16 %v1615
    %v2135 = vunpack.c.l.b16 %v1616
    %v2136 = vunpack.c.l.b16 %v1617
    %v2137 = vunpack.c.l.b16 %v1618
    %v2138 = vunpack.c.l.b16 %v1619
    %v2139 = vunpack.c.l.b16 %v1620
    %v2140 = vunpack.c.l.b16 %v1621
    %v2141 = vunpack.c.l.b16 %v1622
    %v2142 = vunpack.c.l.b16 %v1623
    %v2143 = vunpack.c.l.b16 %v1624
    %v2144 = vunpack.c.l.b16 %v1625
    %v2145 = vunpack.c.l.b16 %v1626
    %v2146 = vunpack.c.l.b16 %v1627
    %v2147 = vunpack.c.l.b16 %v1628
    %v2148 = vunpack.c.l.b16 %v1629
    %v2149 = vunpack.c.l.b16 %v1630
    %v2150 = vunpack.c.l.b16 %v1631
    %v2151 = vunpack.c.l.b16 %v1632
    %v2152 = vunpack.c.l.b16 %v1633
    %v2153 = vunpack.c.l.b16 %v1634
    %v2154 = vunpack.c.l.b16 %v1635
    %v2155 = vunpack.c.l.b16 %v1636
    %v2156 = vunpack.c.l.b16 %v1637
    %v2157 = vunpack.c.l.b16 %v1638
    %v2158 = vunpack.c.l.b16 %v1639
    %v2159 = vunpack.c.l.b16 %v1640
    %v2160 = vunpack.c.l.b16 %v1641
    %v2161 = vunpack.c.l.b16 %v1642
    %v2162 = vunpack.c.l.b16 %v1643
    %v2163 = vunpack.c.l.b16 %v1644
    %v2164 = vunpack.c.l.b16 %v1645
    %v2165 = vunpack.c.l.b16 %v1646
    %v2166 = vunpack.c.l.b16 %v1647
    %v2167 = vunpack.c.l.b16 %v1648
    %v2168 = vunpack.c.l.b16 %v1649
    %v2169 = vunpack.c.l.b16 %v1650
    %v2170 = vunpack.c.l.b16 %v1651
    %v2171 = vunpack.c.l.b16 %v1652
    %v2172 = vunpack.c.l.b16 %v1653
    %v2173 = vunpack.c.l.b16 %v1654
    %v2174 = vunpack.c.l.b16 %v1655
    %v2175 = vunpack.c.l.b16 %v1656
    %v2176 = vunpack.c.l.b16 %v1657
    %v2177 = vunpack.c.l.b16 %v1658
    %v2178 = vunpack.c.l.b16 %v1659
    %v2179 = vunpack.c.l.b16 %v1660
    %v2180 = vunpack.c.l.b16 %v1661
    %v2181 = vunpack.c.l.b16 %v1662
    %v2182 = vunpack.c.l.b16 %v1663
    %v2183 = vunpack.c.l.b16 %v1664
    %v2184 = vunpack.c.l.b16 %v1665
    %v2185 = vunpack.c.l.b16 %v1666
    %v2186 = vunpack.c.l.b16 %v1667
    %v2187 = vunpack.c.l.b16 %v1668
    %v2188 = vunpack.c.l.b16 %v1669
    %v2189 = vunpack.c.l.b16 %v1670
    %v2190 = vunpack.c.l.b16 %v1671
    %v2191 = vunpack.c.l.b16 %v1672
    %v2192 = vunpack.c.l.b16 %v1673
    %v2193 = vunpack.c.l.b16 %v1674
    %v2194 = vunpack.c.l.b16 %v1675
    %v2195 = vunpack.c.l.b16 %v1676
    %v2196 = vunpack.c.l.b16 %v1677
    %v2197 = vunpack.c.l.b16 %v1678
    %v2198 = vunpack.c.l.b16 %v1679
    %v2199 = vpack.c.b16 %v1944, %v1943
    %v2200 = vpack.c.b16 %v1946, %v1945
    %v2201 = vpack.c.b16 %v1948, %v1947
    %v2202 = vpack.c.b16 %v1950, %v1949
    %v2203 = vpack.c.b16 %v1952, %v1951
    %v2204 = vpack.c.b16 %v1954, %v1953
    %v2205 = vpack.c.b16 %v1956, %v1955
    %v2206 = vpack.c.b16 %v1958, %v1957
    %v2207 = vpack.c.b16 %v1960, %v1959
    %v2208 = vpack.c.b16 %v1962, %v1961
    %v2209 = vpack.c.b16 %v1964, %v1963
    %v2210 = vpack.c.b16 %v1966, %v1965
    %v2211 = vpack.c.b16 %v1968, %v1967
    %v2212 = vpack.c.b16 %v1970, %v1969
    %v2213 = vpack.c.b16 %v1972, %v1971
    %v2214 = vpack.c.b16 %v1974, %v1973
    %v2215 = vpack.c.b16 %v1976, %v1975
    %v2216 = vpack.c.b16 %v1978, %v1977
    %v2217 = vpack.c.b16 %v1980, %v1979
    %v2218 = vpack.c.b16 %v1982, %v1981
    %v2219 = vpack.c.b16 %v1984, %v1983
    %v2220 = vpack.c.b16 %v1986, %v1985
    %v2221 = vpack.c.b16 %v1988, %v1987
    %v2222 = vpack.c.b16 %v1990, %v1989
    %v2223 = vpack.c.b16 %v1992, %v1991
    %v2224 = vpack.c.b16 %v1994, %v1993
    %v2225 = vpack.c.b16 %v1996, %v1995
    %v2226 = vpack.c.b16 %v1998, %v1997
    %v2227 = vpack.c.b16 %v2000, %v1999
    %v2228 = vpack.c.b16 %v2002, %v2001
    %v2229 = vpack.c.b16 %v2004, %v2003
    %v2230 = vpack.c.b16 %v2006, %v2005
    %v2231 = vpack.c.b16 %v2008, %v2007
    %v2232 = vpack.c.b16 %v2010, %v2009
    %v2233 = vpack.c.b16 %v2012, %v2011
    %v2234 = vpack.c.b16 %v2014, %v2013
    %v2235 = vpack.c.b16 %v2016, %v2015
    %v2236 = vpack.c.b16 %v2018, %v2017
    %v2237 = vpack.c.b16 %v2020, %v2019
    %v2238 = vpack.c.b16 %v2022, %v2021
    %v2239 = vpack.c.b16 %v2024, %v2023
    %v2240 = vpack.c.b16 %v2026, %v2025
    %v2241 = vpack.c.b16 %v2028, %v2027
    %v2242 = vpack.c.b16 %v2030, %v2029
    %v2243 = vpack.c.b16 %v2032, %v2031
    %v2244 = vpack.c.b16 %v2034, %v2033
    %v2245 = vpack.c.b16 %v2036, %v2035
    %v2246 = vpack.c.b16 %v2038, %v2037
    %v2247 = vpack.c.b16 %v2040, %v2039
    %v2248 = vpack.c.b16 %v2042, %v2041
    %v2249 = vpack.c.b16 %v2044, %v2043
    %v2250 = vpack.c.b16 %v2046, %v2045
    %v2251 = vpack.c.b16 %v2048, %v2047
    %v2252 = vpack.c.b16 %v2050, %v2049
    %v2253 = vpack.c.b16 %v2052, %v2051
    %v2254 = vpack.c.b16 %v2054, %v2053
    %v2255 = vpack.c.b16 %v2056, %v2055
    %v2256 = vpack.c.b16 %v2058, %v2057
    %v2257 = vpack.c.b16 %v2060, %v2059
    %v2258 = vpack.c.b16 %v2062, %v2061
    %v2259 = vpack.c.b16 %v2064, %v2063
    %v2260 = vpack.c.b16 %v2066, %v2065
    %v2261 = vpack.c.b16 %v2068, %v2067
    %v2262 = vpack.c.b16 %v2070, %v2069
    %v2263 = vpack.c.b16 %v2072, %v2071
    %v2264 = vpack.c.b16 %v2074, %v2073
    %v2265 = vpack.c.b16 %v2076, %v2075
    %v2266 = vpack.c.b16 %v2078, %v2077
    %v2267 = vpack.c.b16 %v2080, %v2079
    %v2268 = vpack.c.b16 %v2082, %v2081
    %v2269 = vpack.c.b16 %v2084, %v2083
    %v2270 = vpack.c.b16 %v2086, %v2085
    %v2271 = vpack.c.b16 %v2088, %v2087
    %v2272 = vpack.c.b16 %v2090, %v2089
    %v2273 = vpack.c.b16 %v2092, %v2091
    %v2274 = vpack.c.b16 %v2094, %v2093
    %v2275 = vpack.c.b16 %v2096, %v2095
    %v2276 = vpack.c.b16 %v2098, %v2097
    %v2277 = vpack.c.b16 %v2100, %v2099
    %v2278 = vpack.c.b16 %v2102, %v2101
    %v2279 = vpack.c.b16 %v2104, %v2103
    %v2280 = vpack.c.b16 %v2106, %v2105
    %v2281 = vpack.c.b16 %v2108, %v2107
    %v2282 = vpack.c.b16 %v2110, %v2109
    %v2283 = vpack.c.b16 %v2112, %v2111
    %v2284 = vpack.c.b16 %v2114, %v2113
    %v2285 = vpack.c.b16 %v2116, %v2115
    %v2286 = vpack.c.b16 %v2118, %v2117
    %v2287 = vpack.c.b16 %v2120, %v2119
    %v2288 = vpack.c.b16 %v2122, %v2121
    %v2289 = vpack.c.b16 %v2124, %v2123
    %v2290 = vpack.c.b16 %v2126, %v2125
    %v2291 = vpack.c.b16 %v2128, %v2127
    %v2292 = vpack.c.b16 %v2130, %v2129
    %v2293 = vpack.c.b16 %v2132, %v2131
    %v2294 = vpack.c.b16 %v2134, %v2133
    %v2295 = vpack.c.b16 %v2136, %v2135
    %v2296 = vpack.c.b16 %v2138, %v2137
    %v2297 = vpack.c.b16 %v2140, %v2139
    %v2298 = vpack.c.b16 %v2142, %v2141
    %v2299 = vpack.c.b16 %v2144, %v2143
    %v2300 = vpack.c.b16 %v2146, %v2145
    %v2301 = vpack.c.b16 %v2148, %v2147
    %v2302 = vpack.c.b16 %v2150, %v2149
    %v2303 = vpack.c.b16 %v2152, %v2151
    %v2304 = vpack.c.b16 %v2154, %v2153
    %v2305 = vpack.c.b16 %v2156, %v2155
    %v2306 = vpack.c.b16 %v2158, %v2157
    %v2307 = vpack.c.b16 %v2160, %v2159
    %v2308 = vpack.c.b16 %v2162, %v2161
    %v2309 = vpack.c.b16 %v2164, %v2163
    %v2310 = vpack.c.b16 %v2166, %v2165
    %v2311 = vpack.c.b16 %v2168, %v2167
    %v2312 = vpack.c.b16 %v2170, %v2169
    %v2313 = vpack.c.b16 %v2172, %v2171
    %v2314 = vpack.c.b16 %v2174, %v2173
    %v2315 = vpack.c.b16 %v2176, %v2175
    %v2316 = vpack.c.b16 %v2178, %v2177
    %v2317 = vpack.c.b16 %v2180, %v2179
    %v2318 = vpack.c.b16 %v2182, %v2181
    %v2319 = vpack.c.b16 %v2184, %v2183
    %v2320 = vpack.c.b16 %v2186, %v2185
    %v2321 = vpack.c.b16 %v2188, %v2187
    %v2322 = vpack.c.b16 %v2190, %v2189
    %v2323 = vpack.c.b16 %v2192, %v2191
    %v2324 = vpack.c.b16 %v2194, %v2193
    %v2325 = vpack.c.b16 %v2196, %v2195
    %v2326 = vpack.c.b16 %v2198, %v2197
    %2455 = vmatprep.subr.bf16.mxu0 0
    %2456 = vmatpush1.bf16.msra.mxu0 %v2199
    %2457 = vmatprep.subr.bf16.mxu0 0
    %2458 = vmatpush1.bf16.msra.mxu0 %v2200
    %2459 = vmatprep.subr.bf16.mxu0 0
    %2460 = vmatpush1.bf16.msra.mxu0 %v2201
    %2461 = vmatprep.subr.bf16.mxu0 0
    %2462 = vmatpush1.bf16.msra.mxu0 %v2202
    %2463 = vmatprep.subr.bf16.mxu0 0
    %2464 = vmatpush1.bf16.msra.mxu0 %v2203
    %2465 = vmatprep.subr.bf16.mxu0 0
    %2466 = vmatpush1.bf16.msra.mxu0 %v2204
    %2467 = vmatprep.subr.bf16.mxu0 0
    %2468 = vmatpush1.bf16.msra.mxu0 %v2205
    %2469 = vmatprep.subr.bf16.mxu0 0
    %2470 = vmatpush1.bf16.msra.mxu0 %v2206
    %2471 = vmatprep.subr.bf16.mxu0 0
    %2472 = vmatpush1.bf16.msra.mxu0 %v2207
    %2473 = vmatprep.subr.bf16.mxu0 0
    %2474 = vmatpush1.bf16.msra.mxu0 %v2208
    %2475 = vmatprep.subr.bf16.mxu0 0
    %2476 = vmatpush1.bf16.msra.mxu0 %v2209
    %2477 = vmatprep.subr.bf16.mxu0 0
    %2478 = vmatpush1.bf16.msra.mxu0 %v2210
    %2479 = vmatprep.subr.bf16.mxu0 0
    %2480 = vmatpush1.bf16.msra.mxu0 %v2211
    %2481 = vmatprep.subr.bf16.mxu0 0
    %2482 = vmatpush1.bf16.msra.mxu0 %v2212
    %2483 = vmatprep.subr.bf16.mxu0 0
    %2484 = vmatpush1.bf16.msra.mxu0 %v2213
    %2485 = vmatprep.subr.bf16.mxu0 0
    %2486 = vmatpush1.bf16.msra.mxu0 %v2214
    %2487 = vmatprep.mubr.bf16.mxu0 %v1345
    %2488 = vmatmul.mubr.bf16.gmra.mrb[0].mxu0 %v1344
    %v2489 = vpop.f32.mrb[0].mxu0
    %v2490 = vadd.f32 %v1685, %v2489
    %v2491 = vpop.f32.mrb[0].mxu0
    %v2492 = vpop.f32.mrb[0].mxu0
    %v2493 = vadd.f32 %v1685, %v2492
    %v2494 = vpop.f32.mrb[0].mxu0
    %2495 = vmatprep.mubr.bf16.mxu0 %v1361
    %2496 = vmatmul.mubr.bf16.gmra.mrb[0].mxu0 %v1360
    %v2497 = vpop.f32.mrb[0].mxu0
    %v2498 = vadd.f32 %v1685, %v2497
    %v2499 = vpop.f32.mrb[0].mxu0
    %v2500 = vpop.f32.mrb[0].mxu0
    %v2501 = vadd.f32 %v1685, %v2500
    %v2502 = vpop.f32.mrb[0].mxu0
    %2503 = vmatprep.mubr.bf16.mxu0 %v1377
    %2504 = vmatmul.mubr.bf16.gmra.mrb[0].mxu0 %v1376
    %v2505 = vpop.f32.mrb[0].mxu0
    %v2506 = vadd.f32 %v1685, %v2505
    %v2507 = vpop.f32.mrb[0].mxu0
    %v2508 = vpop.f32.mrb[0].mxu0
    %v2509 = vadd.f32 %v1685, %v2508
    %v2510 = vpop.f32.mrb[0].mxu0
    %2511 = vmatprep.mubr.bf16.mxu0 %v1393
    %2512 = vmatmul.mubr.bf16.gmra.mrb[0].mxu0 %v1392
    %v2513 = vpop.f32.mrb[0].mxu0
    %v2514 = vadd.f32 %v1685, %v2513
    %v2515 = vpop.f32.mrb[0].mxu0
    %v2516 = vpop.f32.mrb[0].mxu0
    %v2517 = vadd.f32 %v1685, %v2516
    %v2518 = vpop.f32.mrb[0].mxu0
    %2519 = vmatprep.mubr.bf16.mxu0 %v1409
    %2520 = vmatmul.mubr.bf16.gmra.mrb[0].mxu0 %v1408
    %v2521 = vpop.f32.mrb[0].mxu0
    %v2522 = vadd.f32 %v1685, %v2521
    %v2523 = vpop.f32.mrb[0].mxu0
    %v2524 = vpop.f32.mrb[0].mxu0
    %v2525 = vadd.f32 %v1685, %v2524
    %v2526 = vpop.f32.mrb[0].mxu0
    %2527 = vdwg.mxu0
    %2528 = vmatprep.subr.bf16.mxu0 0
    %2529 = vmatpush1.bf16.msra.mxu0 %v2215
    %2530 = vmatprep.subr.bf16.mxu0 0
    %2531 = vmatpush1.bf16.msra.mxu0 %v2216
    %2532 = vmatprep.subr.bf16.mxu0 0
    %2533 = vmatpush1.bf16.msra.mxu0 %v2217
    %2534 = vmatprep.subr.bf16.mxu0 0
    %2535 = vmatpush1.bf16.msra.mxu0 %v2218
    %2536 = vmatprep.subr.bf16.mxu0 0
    %2537 = vmatpush1.bf16.msra.mxu0 %v2219
    %2538 = vmatprep.subr.bf16.mxu0 0
    %2539 = vmatpush1.bf16.msra.mxu0 %v2220
    %2540 = vmatprep.subr.bf16.mxu0 0
    %2541 = vmatpush1.bf16.msra.mxu0 %v2221
    %2542 = vmatprep.subr.bf16.mxu0 0
    %2543 = vmatpush1.bf16.msra.mxu0 %v2222
    %2544 = vmatprep.subr.bf16.mxu0 0
    %2545 = vmatpush1.bf16.msra.mxu0 %v2223
    %2546 = vmatprep.subr.bf16.mxu0 0
    %2547 = vmatpush1.bf16.msra.mxu0 %v2224
    %2548 = vmatprep.subr.bf16.mxu0 0
    %2549 = vmatpush1.bf16.msra.mxu0 %v2225
    %2550 = vmatprep.subr.bf16.mxu0 0
    %2551 = vmatpush1.bf16.msra.mxu0 %v2226
    %2552 = vmatprep.subr.bf16.mxu0 0
    %2553 = vmatpush1.bf16.msra.mxu0 %v2227
    %2554 = vmatprep.subr.bf16.mxu0 0
    %2555 = vmatpush1.bf16.msra.mxu0 %v2228
    %2556 = vmatprep.subr.bf16.mxu0 0
    %2557 = vmatpush1.bf16.msra.mxu0 %v2229
    %2558 = vmatprep.subr.bf16.mxu0 0
    %2559 = vmatpush1.bf16.msra.mxu0 %v2230
    %2560 = vmatprep.mubr.bf16.mxu0 %v1347
    %2561 = vmatmul.mubr.bf16.gmra.mrb[0].mxu0 %v1346
    %v2562 = vpop.f32.mrb[0].mxu0
    %v2563 = vadd.f32 %v2490, %v2562
    %v2564 = vpop.f32.mrb[0].mxu0
    %v2565 = vpop.f32.mrb[0].mxu0
    %v2566 = vadd.f32 %v2493, %v2565
    %v2567 = vpop.f32.mrb[0].mxu0
    %2568 = vmatprep.mubr.bf16.mxu0 %v1363
    %2569 = vmatmul.mubr.bf16.gmra.mrb[0].mxu0 %v1362
    %v2570 = vpop.f32.mrb[0].mxu0
    %v2571 = vadd.f32 %v2498, %v2570
    %v2572 = vpop.f32.mrb[0].mxu0
    %v2573 = vpop.f32.mrb[0].mxu0
    %v2574 = vadd.f32 %v2501, %v2573
    %v2575 = vpop.f32.mrb[0].mxu0
    %2576 = vmatprep.mubr.bf16.mxu0 %v1379
    %2577 = vmatmul.mubr.bf16.gmra.mrb[0].mxu0 %v1378
    %v2578 = vpop.f32.mrb[0].mxu0
    %v2579 = vadd.f32 %v2506, %v2578
    %v2580 = vpop.f32.mrb[0].mxu0
    %v2581 = vpop.f32.mrb[0].mxu0
    %v2582 = vadd.f32 %v2509, %v2581
    %v2583 = vpop.f32.mrb[0].mxu0
    %2584 = vmatprep.mubr.bf16.mxu0 %v1395
    %2585 = vmatmul.mubr.bf16.gmra.mrb[0].mxu0 %v1394
    %v2586 = vpop.f32.mrb[0].mxu0
    %v2587 = vadd.f32 %v2514, %v2586
    %v2588 = vpop.f32.mrb[0].mxu0
    %v2589 = vpop.f32.mrb[0].mxu0
    %v2590 = vadd.f32 %v2517, %v2589
    %v2591 = vpop.f32.mrb[0].mxu0
    %2592 = vmatprep.mubr.bf16.mxu0 %v1411
    %2593 = vmatmul.mubr.bf16.gmra.mrb[0].mxu0 %v1410
    %v2594 = vpop.f32.mrb[0].mxu0
    %v2595 = vadd.f32 %v2522, %v2594
    %v2596 = vpop.f32.mrb[0].mxu0
    %v2597 = vpop.f32.mrb[0].mxu0
    %v2598 = vadd.f32 %v2525, %v2597
    %v2599 = vpop.f32.mrb[0].mxu0
    %2600 = vdwg.mxu0
    %2601 = vmatprep.subr.bf16.mxu0 0
    %2602 = vmatpush1.bf16.msra.mxu0 %v2231
    %2603 = vmatprep.subr.bf16.mxu0 0
    %2604 = vmatpush1.bf16.msra.mxu0 %v2232
    %2605 = vmatprep.subr.bf16.mxu0 0
    %2606 = vmatpush1.bf16.msra.mxu0 %v2233
    %2607 = vmatprep.subr.bf16.mxu0 0
    %2608 = vmatpush1.bf16.msra.mxu0 %v2234
    %2609 = vmatprep.subr.bf16.mxu0 0
    %2610 = vmatpush1.bf16.msra.mxu0 %v2235
    %2611 = vmatprep.subr.bf16.mxu0 0
    %2612 = vmatpush1.bf16.msra.mxu0 %v2236
    %2613 = vmatprep.subr.bf16.mxu0 0
    %2614 = vmatpush1.bf16.msra.mxu0 %v2237
    %2615 = vmatprep.subr.bf16.mxu0 0
    %2616 = vmatpush1.bf16.msra.mxu0 %v2238
    %2617 = vmatprep.subr.bf16.mxu0 0
    %2618 = vmatpush1.bf16.msra.mxu0 %v2239
    %2619 = vmatprep.subr.bf16.mxu0 0
    %2620 = vmatpush1.bf16.msra.mxu0 %v2240
    %2621 = vmatprep.subr.bf16.mxu0 0
    %2622 = vmatpush1.bf16.msra.mxu0 %v2241
    %2623 = vmatprep.subr.bf16.mxu0 0
    %2624 = vmatpush1.bf16.msra.mxu0 %v2242
    %2625 = vmatprep.subr.bf16.mxu0 0
    %2626 = vmatpush1.bf16.msra.mxu0 %v2243
    %2627 = vmatprep.subr.bf16.mxu0 0
    %2628 = vmatpush1.bf16.msra.mxu0 %v2244
    %2629 = vmatprep.subr.bf16.mxu0 0
    %2630 = vmatpush1.bf16.msra.mxu0 %v2245
    %2631 = vmatprep.subr.bf16.mxu0 0
    %2632 = vmatpush1.bf16.msra.mxu0 %v2246
    %2633 = vmatprep.mubr.bf16.mxu0 %v1349
    %2634 = vmatmul.mubr.bf16.gmra.mrb[0].mxu0 %v1348
    %v2635 = vpop.f32.mrb[0].mxu0
    %v2636 = vadd.f32 %v2563, %v2635
    %v2637 = vpop.f32.mrb[0].mxu0
    %v2638 = vpop.f32.mrb[0].mxu0
    %v2639 = vadd.f32 %v2566, %v2638
    %v2640 = vpop.f32.mrb[0].mxu0
    %2641 = vmatprep.mubr.bf16.mxu0 %v1365
    %2642 = vmatmul.mubr.bf16.gmra.mrb[0].mxu0 %v1364
    %v2643 = vpop.f32.mrb[0].mxu0
    %v2644 = vadd.f32 %v2571, %v2643
    %v2645 = vpop.f32.mrb[0].mxu0
    %v2646 = vpop.f32.mrb[0].mxu0
    %v2647 = vadd.f32 %v2574, %v2646
    %v2648 = vpop.f32.mrb[0].mxu0
    %2649 = vmatprep.mubr.bf16.mxu0 %v1381
    %2650 = vmatmul.mubr.bf16.gmra.mrb[0].mxu0 %v1380
    %v2651 = vpop.f32.mrb[0].mxu0
    %v2652 = vadd.f32 %v2579, %v2651
    %v2653 = vpop.f32.mrb[0].mxu0
    %v2654 = vpop.f32.mrb[0].mxu0
    %v2655 = vadd.f32 %v2582, %v2654
    %v2656 = vpop.f32.mrb[0].mxu0
    %2657 = vmatprep.mubr.bf16.mxu0 %v1397
    %2658 = vmatmul.mubr.bf16.gmra.mrb[0].mxu0 %v1396
    %v2659 = vpop.f32.mrb[0].mxu0
    %v2660 = vadd.f32 %v2587, %v2659
    %v2661 = vpop.f32.mrb[0].mxu0
    %v2662 = vpop.f32.mrb[0].mxu0
    %v2663 = vadd.f32 %v2590, %v2662
    %v2664 = vpop.f32.mrb[0].mxu0
    %2665 = vmatprep.mubr.bf16.mxu0 %v1413
    %2666 = vmatmul.mubr.bf16.gmra.mrb[0].mxu0 %v1412
    %v2667 = vpop.f32.mrb[0].mxu0
    %v2668 = vadd.f32 %v2595, %v2667
    %v2669 = vpop.f32.mrb[0].mxu0
    %v2670 = vpop.f32.mrb[0].mxu0
    %v2671 = vadd.f32 %v2598, %v2670
    %v2672 = vpop.f32.mrb[0].mxu0
    %2673 = vdwg.mxu0
    %2674 = vmatprep.subr.bf16.mxu0 0
    %2675 = vmatpush1.bf16.msra.mxu0 %v2247
    %2676 = vmatprep.subr.bf16.mxu0 0
    %2677 = vmatpush1.bf16.msra.mxu0 %v2248
    %2678 = vmatprep.subr.bf16.mxu0 0
    %2679 = vmatpush1.bf16.msra.mxu0 %v2249
    %2680 = vmatprep.subr.bf16.mxu0 0
    %2681 = vmatpush1.bf16.msra.mxu0 %v2250
    %2682 = vmatprep.subr.bf16.mxu0 0
    %2683 = vmatpush1.bf16.msra.mxu0 %v2251
    %2684 = vmatprep.subr.bf16.mxu0 0
    %2685 = vmatpush1.bf16.msra.mxu0 %v2252
    %2686 = vmatprep.subr.bf16.mxu0 0
    %2687 = vmatpush1.bf16.msra.mxu0 %v2253
    %2688 = vmatprep.subr.bf16.mxu0 0
    %2689 = vmatpush1.bf16.msra.mxu0 %v2254
    %2690 = vmatprep.subr.bf16.mxu0 0
    %2691 = vmatpush1.bf16.msra.mxu0 %v2255
    %2692 = vmatprep.subr.bf16.mxu0 0
    %2693 = vmatpush1.bf16.msra.mxu0 %v2256
    %2694 = vmatprep.subr.bf16.mxu0 0
    %2695 = vmatpush1.bf16.msra.mxu0 %v2257
    %2696 = vmatprep.subr.bf16.mxu0 0
    %2697 = vmatpush1.bf16.msra.mxu0 %v2258
    %2698 = vmatprep.subr.bf16.mxu0 0
    %2699 = vmatpush1.bf16.msra.mxu0 %v2259
    %2700 = vmatprep.subr.bf16.mxu0 0
    %2701 = vmatpush1.bf16.msra.mxu0 %v2260
    %2702 = vmatprep.subr.bf16.mxu0 0
    %2703 = vmatpush1.bf16.msra.mxu0 %v2261
    %2704 = vmatprep.subr.bf16.mxu0 0
    %2705 = vmatpush1.bf16.msra.mxu0 %v2262
    %2706 = vmatprep.mubr.bf16.mxu0 %v1351
    %2707 = vmatmul.mubr.bf16.gmra.mrb[0].mxu0 %v1350
    %v2708 = vpop.f32.mrb[0].mxu0
    %v2709 = vadd.f32 %v2636, %v2708
    %v2710 = vpop.f32.mrb[0].mxu0
    %v2711 = vpop.f32.mrb[0].mxu0
    %v2712 = vadd.f32 %v2639, %v2711
    %v2713 = vpop.f32.mrb[0].mxu0
    %2714 = vmatprep.mubr.bf16.mxu0 %v1367
    %2715 = vmatmul.mubr.bf16.gmra.mrb[0].mxu0 %v1366
    %v2716 = vpop.f32.mrb[0].mxu0
    %v2717 = vadd.f32 %v2644, %v2716
    %v2718 = vpop.f32.mrb[0].mxu0
    %v2719 = vpop.f32.mrb[0].mxu0
    %v2720 = vadd.f32 %v2647, %v2719
    %v2721 = vpop.f32.mrb[0].mxu0
    %2722 = vmatprep.mubr.bf16.mxu0 %v1383
    %2723 = vmatmul.mubr.bf16.gmra.mrb[0].mxu0 %v1382
    %v2724 = vpop.f32.mrb[0].mxu0
    %v2725 = vadd.f32 %v2652, %v2724
    %v2726 = vpop.f32.mrb[0].mxu0
    %v2727 = vpop.f32.mrb[0].mxu0
    %v2728 = vadd.f32 %v2655, %v2727
    %v2729 = vpop.f32.mrb[0].mxu0
    %2730 = vmatprep.mubr.bf16.mxu0 %v1399
    %2731 = vmatmul.mubr.bf16.gmra.mrb[0].mxu0 %v1398
    %v2732 = vpop.f32.mrb[0].mxu0
    %v2733 = vadd.f32 %v2660, %v2732
    %v2734 = vpop.f32.mrb[0].mxu0
    %v2735 = vpop.f32.mrb[0].mxu0
    %v2736 = vadd.f32 %v2663, %v2735
    %v2737 = vpop.f32.mrb[0].mxu0
    %2738 = vmatprep.mubr.bf16.mxu0 %v1415
    %2739 = vmatmul.mubr.bf16.gmra.mrb[0].mxu0 %v1414
    %v2740 = vpop.f32.mrb[0].mxu0
    %v2741 = vadd.f32 %v2668, %v2740
    %v2742 = vpop.f32.mrb[0].mxu0
    %v2743 = vpop.f32.mrb[0].mxu0
    %v2744 = vadd.f32 %v2671, %v2743
    %v2745 = vpop.f32.mrb[0].mxu0
    %2746 = vdwg.mxu0
    %2747 = vmatprep.subr.bf16.mxu0 0
    %2748 = vmatpush1.bf16.msra.mxu0 %v2263
    %2749 = vmatprep.subr.bf16.mxu0 0
    %2750 = vmatpush1.bf16.msra.mxu0 %v2264
    %2751 = vmatprep.subr.bf16.mxu0 0
    %2752 = vmatpush1.bf16.msra.mxu0 %v2265
    %2753 = vmatprep.subr.bf16.mxu0 0
    %2754 = vmatpush1.bf16.msra.mxu0 %v2266
    %2755 = vmatprep.subr.bf16.mxu0 0
    %2756 = vmatpush1.bf16.msra.mxu0 %v2267
    %2757 = vmatprep.subr.bf16.mxu0 0
    %2758 = vmatpush1.bf16.msra.mxu0 %v2268
    %2759 = vmatprep.subr.bf16.mxu0 0
    %2760 = vmatpush1.bf16.msra.mxu0 %v2269
    %2761 = vmatprep.subr.bf16.mxu0 0
    %2762 = vmatpush1.bf16.msra.mxu0 %v2270
    %2763 = vmatprep.subr.bf16.mxu0 0
    %2764 = vmatpush1.bf16.msra.mxu0 %v2271
    %2765 = vmatprep.subr.bf16.mxu0 0
    %2766 = vmatpush1.bf16.msra.mxu0 %v2272
    %2767 = vmatprep.subr.bf16.mxu0 0
    %2768 = vmatpush1.bf16.msra.mxu0 %v2273
    %2769 = vmatprep.subr.bf16.mxu0 0
    %2770 = vmatpush1.bf16.msra.mxu0 %v2274
    %2771 = vmatprep.subr.bf16.mxu0 0
    %2772 = vmatpush1.bf16.msra.mxu0 %v2275
    %2773 = vmatprep.subr.bf16.mxu0 0
    %2774 = vmatpush1.bf16.msra.mxu0 %v2276
    %2775 = vmatprep.subr.bf16.mxu0 0
    %2776 = vmatpush1.bf16.msra.mxu0 %v2277
    %2777 = vmatprep.subr.bf16.mxu0 0
    %2778 = vmatpush1.bf16.msra.mxu0 %v2278
    %2779 = vmatprep.mubr.bf16.mxu0 %v1353
    %2780 = vmatmul.mubr.bf16.gmra.mrb[0].mxu0 %v1352
    %v2781 = vpop.f32.mrb[0].mxu0
    %v2782 = vadd.f32 %v2709, %v2781
    %v2783 = vpop.f32.mrb[0].mxu0
    %v2784 = vpop.f32.mrb[0].mxu0
    %v2785 = vadd.f32 %v2712, %v2784
    %v2786 = vpop.f32.mrb[0].mxu0
    %2787 = vmatprep.mubr.bf16.mxu0 %v1369
    %2788 = vmatmul.mubr.bf16.gmra.mrb[0].mxu0 %v1368
    %v2789 = vpop.f32.mrb[0].mxu0
    %v2790 = vadd.f32 %v2717, %v2789
    %v2791 = vpop.f32.mrb[0].mxu0
    %v2792 = vpop.f32.mrb[0].mxu0
    %v2793 = vadd.f32 %v2720, %v2792
    %v2794 = vpop.f32.mrb[0].mxu0
    %2795 = vmatprep.mubr.bf16.mxu0 %v1385
    %2796 = vmatmul.mubr.bf16.gmra.mrb[0].mxu0 %v1384
    %v2797 = vpop.f32.mrb[0].mxu0
    %v2798 = vadd.f32 %v2725, %v2797
    %v2799 = vpop.f32.mrb[0].mxu0
    %v2800 = vpop.f32.mrb[0].mxu0
    %v2801 = vadd.f32 %v2728, %v2800
    %v2802 = vpop.f32.mrb[0].mxu0
    %2803 = vmatprep.mubr.bf16.mxu0 %v1401
    %2804 = vmatmul.mubr.bf16.gmra.mrb[0].mxu0 %v1400
    %v2805 = vpop.f32.mrb[0].mxu0
    %v2806 = vadd.f32 %v2733, %v2805
    %v2807 = vpop.f32.mrb[0].mxu0
    %v2808 = vpop.f32.mrb[0].mxu0
    %v2809 = vadd.f32 %v2736, %v2808
    %v2810 = vpop.f32.mrb[0].mxu0
    %2811 = vmatprep.mubr.bf16.mxu0 %v1417
    %2812 = vmatmul.mubr.bf16.gmra.mrb[0].mxu0 %v1416
    %v2813 = vpop.f32.mrb[0].mxu0
    %v2814 = vadd.f32 %v2741, %v2813
    %v2815 = vpop.f32.mrb[0].mxu0
    %v2816 = vpop.f32.mrb[0].mxu0
    %v2817 = vadd.f32 %v2744, %v2816
    %v2818 = vpop.f32.mrb[0].mxu0
    %2819 = vdwg.mxu0
    %2820 = vmatprep.subr.bf16.mxu0 0
    %2821 = vmatpush1.bf16.msra.mxu0 %v2279
    %2822 = vmatprep.subr.bf16.mxu0 0
    %2823 = vmatpush1.bf16.msra.mxu0 %v2280
    %2824 = vmatprep.subr.bf16.mxu0 0
    %2825 = vmatpush1.bf16.msra.mxu0 %v2281
    %2826 = vmatprep.subr.bf16.mxu0 0
    %2827 = vmatpush1.bf16.msra.mxu0 %v2282
    %2828 = vmatprep.subr.bf16.mxu0 0
    %2829 = vmatpush1.bf16.msra.mxu0 %v2283
    %2830 = vmatprep.subr.bf16.mxu0 0
    %2831 = vmatpush1.bf16.msra.mxu0 %v2284
    %2832 = vmatprep.subr.bf16.mxu0 0
    %2833 = vmatpush1.bf16.msra.mxu0 %v2285
    %2834 = vmatprep.subr.bf16.mxu0 0
    %2835 = vmatpush1.bf16.msra.mxu0 %v2286
    %2836 = vmatprep.subr.bf16.mxu0 0
    %2837 = vmatpush1.bf16.msra.mxu0 %v2287
    %2838 = vmatprep.subr.bf16.mxu0 0
    %2839 = vmatpush1.bf16.msra.mxu0 %v2288
    %2840 = vmatprep.subr.bf16.mxu0 0
    %2841 = vmatpush1.bf16.msra.mxu0 %v2289
    %2842 = vmatprep.subr.bf16.mxu0 0
    %2843 = vmatpush1.bf16.msra.mxu0 %v2290
    %2844 = vmatprep.subr.bf16.mxu0 0
    %2845 = vmatpush1.bf16.msra.mxu0 %v2291
    %2846 = vmatprep.subr.bf16.mxu0 0
    %2847 = vmatpush1.bf16.msra.mxu0 %v2292
    %2848 = vmatprep.subr.bf16.mxu0 0
    %2849 = vmatpush1.bf16.msra.mxu0 %v2293
    %2850 = vmatprep.subr.bf16.mxu0 0
    %2851 = vmatpush1.bf16.msra.mxu0 %v2294
    %2852 = vmatprep.mubr.bf16.mxu0 %v1355
    %2853 = vmatmul.mubr.bf16.gmra.mrb[0].mxu0 %v1354
    %v2854 = vpop.f32.mrb[0].mxu0
    %v2855 = vadd.f32 %v2782, %v2854
    %v2856 = vpop.f32.mrb[0].mxu0
    %v2857 = vpop.f32.mrb[0].mxu0
    %v2858 = vadd.f32 %v2785, %v2857
    %v2859 = vpop.f32.mrb[0].mxu0
    %2860 = vmatprep.mubr.bf16.mxu0 %v1371
    %2861 = vmatmul.mubr.bf16.gmra.mrb[0].mxu0 %v1370
    %v2862 = vpop.f32.mrb[0].mxu0
    %v2863 = vadd.f32 %v2790, %v2862
    %v2864 = vpop.f32.mrb[0].mxu0
    %v2865 = vpop.f32.mrb[0].mxu0
    %v2866 = vadd.f32 %v2793, %v2865
    %v2867 = vpop.f32.mrb[0].mxu0
    %2868 = vmatprep.mubr.bf16.mxu0 %v1387
    %2869 = vmatmul.mubr.bf16.gmra.mrb[0].mxu0 %v1386
    %v2870 = vpop.f32.mrb[0].mxu0
    %v2871 = vadd.f32 %v2798, %v2870
    %v2872 = vpop.f32.mrb[0].mxu0
    %v2873 = vpop.f32.mrb[0].mxu0
    %v2874 = vadd.f32 %v2801, %v2873
    %v2875 = vpop.f32.mrb[0].mxu0
    %2876 = vmatprep.mubr.bf16.mxu0 %v1403
    %2877 = vmatmul.mubr.bf16.gmra.mrb[0].mxu0 %v1402
    %v2878 = vpop.f32.mrb[0].mxu0
    %v2879 = vadd.f32 %v2806, %v2878
    %v2880 = vpop.f32.mrb[0].mxu0
    %v2881 = vpop.f32.mrb[0].mxu0
    %v2882 = vadd.f32 %v2809, %v2881
    %v2883 = vpop.f32.mrb[0].mxu0
    %2884 = vmatprep.mubr.bf16.mxu0 %v1419
    %2885 = vmatmul.mubr.bf16.gmra.mrb[0].mxu0 %v1418
    %v2886 = vpop.f32.mrb[0].mxu0
    %v2887 = vadd.f32 %v2814, %v2886
    %v2888 = vpop.f32.mrb[0].mxu0
    %v2889 = vpop.f32.mrb[0].mxu0
    %v2890 = vadd.f32 %v2817, %v2889
    %v2891 = vpop.f32.mrb[0].mxu0
    %2892 = vdwg.mxu0
    %2893 = vmatprep.subr.bf16.mxu0 0
    %2894 = vmatpush1.bf16.msra.mxu0 %v2295
    %2895 = vmatprep.subr.bf16.mxu0 0
    %2896 = vmatpush1.bf16.msra.mxu0 %v2296
    %2897 = vmatprep.subr.bf16.mxu0 0
    %2898 = vmatpush1.bf16.msra.mxu0 %v2297
    %2899 = vmatprep.subr.bf16.mxu0 0
    %2900 = vmatpush1.bf16.msra.mxu0 %v2298
    %2901 = vmatprep.subr.bf16.mxu0 0
    %2902 = vmatpush1.bf16.msra.mxu0 %v2299
    %2903 = vmatprep.subr.bf16.mxu0 0
    %2904 = vmatpush1.bf16.msra.mxu0 %v2300
    %2905 = vmatprep.subr.bf16.mxu0 0
    %2906 = vmatpush1.bf16.msra.mxu0 %v2301
    %2907 = vmatprep.subr.bf16.mxu0 0
    %2908 = vmatpush1.bf16.msra.mxu0 %v2302
    %2909 = vmatprep.subr.bf16.mxu0 0
    %2910 = vmatpush1.bf16.msra.mxu0 %v2303
    %2911 = vmatprep.subr.bf16.mxu0 0
    %2912 = vmatpush1.bf16.msra.mxu0 %v2304
    %2913 = vmatprep.subr.bf16.mxu0 0
    %2914 = vmatpush1.bf16.msra.mxu0 %v2305
    %2915 = vmatprep.subr.bf16.mxu0 0
    %2916 = vmatpush1.bf16.msra.mxu0 %v2306
    %2917 = vmatprep.subr.bf16.mxu0 0
    %2918 = vmatpush1.bf16.msra.mxu0 %v2307
    %2919 = vmatprep.subr.bf16.mxu0 0
    %2920 = vmatpush1.bf16.msra.mxu0 %v2308
    %2921 = vmatprep.subr.bf16.mxu0 0
    %2922 = vmatpush1.bf16.msra.mxu0 %v2309
    %2923 = vmatprep.subr.bf16.mxu0 0
    %2924 = vmatpush1.bf16.msra.mxu0 %v2310
    %2925 = vmatprep.mubr.bf16.mxu0 %v1357
    %2926 = vmatmul.mubr.bf16.gmra.mrb[0].mxu0 %v1356
    %v2927 = vpop.f32.mrb[0].mxu0
    %v2928 = vadd.f32 %v2855, %v2927
    %v2929 = vpop.f32.mrb[0].mxu0
    %v2930 = vpop.f32.mrb[0].mxu0
    %v2931 = vadd.f32 %v2858, %v2930
    %v2932 = vpop.f32.mrb[0].mxu0
    %2933 = vmatprep.mubr.bf16.mxu0 %v1373
    %2934 = vmatmul.mubr.bf16.gmra.mrb[0].mxu0 %v1372
    %v2935 = vpop.f32.mrb[0].mxu0
    %v2936 = vadd.f32 %v2863, %v2935
    %v2937 = vpop.f32.mrb[0].mxu0
    %v2938 = vpop.f32.mrb[0].mxu0
    %v2939 = vadd.f32 %v2866, %v2938
    %v2940 = vpop.f32.mrb[0].mxu0
    %2941 = vmatprep.mubr.bf16.mxu0 %v1389
    %2942 = vmatmul.mubr.bf16.gmra.mrb[0].mxu0 %v1388
    %v2943 = vpop.f32.mrb[0].mxu0
    %v2944 = vadd.f32 %v2871, %v2943
    %v2945 = vpop.f32.mrb[0].mxu0
    %v2946 = vpop.f32.mrb[0].mxu0
    %v2947 = vadd.f32 %v2874, %v2946
    %v2948 = vpop.f32.mrb[0].mxu0
    %2949 = vmatprep.mubr.bf16.mxu0 %v1405
    %2950 = vmatmul.mubr.bf16.gmra.mrb[0].mxu0 %v1404
    %v2951 = vpop.f32.mrb[0].mxu0
    %v2952 = vadd.f32 %v2879, %v2951
    %v2953 = vpop.f32.mrb[0].mxu0
    %v2954 = vpop.f32.mrb[0].mxu0
    %v2955 = vadd.f32 %v2882, %v2954
    %v2956 = vpop.f32.mrb[0].mxu0
    %2957 = vmatprep.mubr.bf16.mxu0 %v1421
    %2958 = vmatmul.mubr.bf16.gmra.mrb[0].mxu0 %v1420
    %v2959 = vpop.f32.mrb[0].mxu0
    %v2960 = vadd.f32 %v2887, %v2959
    %v2961 = vpop.f32.mrb[0].mxu0
    %v2962 = vpop.f32.mrb[0].mxu0
    %v2963 = vadd.f32 %v2890, %v2962
    %v2964 = vpop.f32.mrb[0].mxu0
    %2965 = vdwg.mxu0
    %2966 = vmatprep.subr.bf16.mxu0 0
    %2967 = vmatpush1.bf16.msra.mxu0 %v2311
    %2968 = vmatprep.subr.bf16.mxu0 0
    %2969 = vmatpush1.bf16.msra.mxu0 %v2312
    %2970 = vmatprep.subr.bf16.mxu0 0
    %2971 = vmatpush1.bf16.msra.mxu0 %v2313
    %2972 = vmatprep.subr.bf16.mxu0 0
    %2973 = vmatpush1.bf16.msra.mxu0 %v2314
    %2974 = vmatprep.subr.bf16.mxu0 0
    %2975 = vmatpush1.bf16.msra.mxu0 %v2315
    %2976 = vmatprep.subr.bf16.mxu0 0
    %2977 = vmatpush1.bf16.msra.mxu0 %v2316
    %2978 = vmatprep.subr.bf16.mxu0 0
    %2979 = vmatpush1.bf16.msra.mxu0 %v2317
    %2980 = vmatprep.subr.bf16.mxu0 0
    %2981 = vmatpush1.bf16.msra.mxu0 %v2318
    %2982 = vmatprep.subr.bf16.mxu0 0
    %2983 = vmatpush1.bf16.msra.mxu0 %v2319
    %2984 = vmatprep.subr.bf16.mxu0 0
    %2985 = vmatpush1.bf16.msra.mxu0 %v2320
    %2986 = vmatprep.subr.bf16.mxu0 0
    %2987 = vmatpush1.bf16.msra.mxu0 %v2321
    %2988 = vmatprep.subr.bf16.mxu0 0
    %2989 = vmatpush1.bf16.msra.mxu0 %v2322
    %2990 = vmatprep.subr.bf16.mxu0 0
    %2991 = vmatpush1.bf16.msra.mxu0 %v2323
    %2992 = vmatprep.subr.bf16.mxu0 0
    %2993 = vmatpush1.bf16.msra.mxu0 %v2324
    %2994 = vmatprep.subr.bf16.mxu0 0
    %2995 = vmatpush1.bf16.msra.mxu0 %v2325
    %2996 = vmatprep.subr.bf16.mxu0 0
    %2997 = vmatpush1.bf16.msra.mxu0 %v2326
    %2998 = vmatprep.mubr.bf16.mxu0 %v1359
    %2999 = vmatmul.mubr.bf16.gmra.mrb[0].mxu0 %v1358
    %v3000 = vpop.f32.mrb[0].mxu0
    %v3001 = vadd.f32 %v2928, %v3000
    %v3002 = vpop.f32.mrb[0].mxu0
    %v3003 = vpop.f32.mrb[0].mxu0
    %v3004 = vadd.f32 %v2931, %v3003
    %v3005 = vpop.f32.mrb[0].mxu0
    %3006 = vmatprep.mubr.bf16.mxu0 %v1375
    %3007 = vmatmul.mubr.bf16.gmra.mrb[0].mxu0 %v1374
    %v3008 = vpop.f32.mrb[0].mxu0
    %v3009 = vadd.f32 %v2936, %v3008
    %v3010 = vpop.f32.mrb[0].mxu0
    %v3011 = vpop.f32.mrb[0].mxu0
    %v3012 = vadd.f32 %v2939, %v3011
    %v3013 = vpop.f32.mrb[0].mxu0
    %3014 = vmatprep.mubr.bf16.mxu0 %v1391
    %3015 = vmatmul.mubr.bf16.gmra.mrb[0].mxu0 %v1390
    %v3016 = vpop.f32.mrb[0].mxu0
    %v3017 = vadd.f32 %v2944, %v3016
    %v3018 = vpop.f32.mrb[0].mxu0
    %v3019 = vpop.f32.mrb[0].mxu0
    %v3020 = vadd.f32 %v2947, %v3019
    %v3021 = vpop.f32.mrb[0].mxu0
    %3022 = vmatprep.mubr.bf16.mxu0 %v1407
    %3023 = vmatmul.mubr.bf16.gmra.mrb[0].mxu0 %v1406
    %v3024 = vpop.f32.mrb[0].mxu0
    %v3025 = vadd.f32 %v2952, %v3024
    %v3026 = vpop.f32.mrb[0].mxu0
    %v3027 = vpop.f32.mrb[0].mxu0
    %v3028 = vadd.f32 %v2955, %v3027
    %v3029 = vpop.f32.mrb[0].mxu0
    %3030 = vmatprep.mubr.bf16.mxu0 %v1423
    %3031 = vmatmul.mubr.bf16.gmra.mrb[0].mxu0 %v1422
    %v3032 = vpop.f32.mrb[0].mxu0
    %v3033 = vadd.f32 %v2960, %v3032
    %v3034 = vpop.f32.mrb[0].mxu0
    %v3035 = vpop.f32.mrb[0].mxu0
    %v3036 = vadd.f32 %v2963, %v3035
    %v3037 = vpop.f32.mrb[0].mxu0
    %3038 = vdwg.mxu0
    %v3039 = vmax.f32 %v3001, 0.0
    %v3040 = vmax.f32 %v3004, 0.0
    %v3041 = vmax.f32 %v3009, 0.0
    %v3042 = vmax.f32 %v3012, 0.0
    %v3043 = vmax.f32 %v3017, 0.0
    %v3044 = vmax.f32 %v3020, 0.0
    %v3045 = vmax.f32 %v3025, 0.0
    %v3046 = vmax.f32 %v3028, 0.0
    %v3047 = vmax.f32 %v3033, 0.0
    %v3048 = vmax.f32 %v3036, 0.0
    %3049 = vst [vmem:[#allocation4] sm:$0xff] %v3039
    %3050 = vst [vmem:[#allocation4 + $0x8] sm:$0xff] %v3040
    %3051 = vst [vmem:[#allocation4 + $0x10] sm:$0xff] %v3041
    %3052 = vst [vmem:[#allocation4 + $0x18] sm:$0xff] %v3042
    %3053 = vst [vmem:[#allocation4 + $0x20] sm:$0xff] %v3043
    %3054 = vst [vmem:[#allocation4 + $0x28] sm:$0xff] %v3044
    %3055 = vst [vmem:[#allocation4 + $0x30] sm:$0xff] %v3045
    %3056 = vst [vmem:[#allocation4 + $0x38] sm:$0xff] %v3046
    %3057 = vst [vmem:[#allocation4 + $0x40] sm:$0xff] %v3047
    %3058 = vst [vmem:[#allocation4 + $0x48] sm:$0xff] %v3048
    %v3059 = vld [vmem:[#allocation4] sm:$0x7]
    %3060 = vst [vmem:[#allocation5] sm:$0x7] %v3059
    %v3061 = vld [vmem:[#allocation4 + $0x8] sm:$0x7]
    %3062 = vst [vmem:[#allocation5 + $0x48] sm:$0x7] %v3061
    %v3063 = vld [vmem:[#allocation4 + $0x10] sm:$0x7]
    %3064 = vst [vmem:[#allocation5 + $0x90] sm:$0x7] %v3063
    %v3065 = vld [vmem:[#allocation4 + $0x1] sm:$0x7]
    %3066 = vst [vmem:[#allocation5 + $0x8] sm:$0x7] %v3065
    %v3067 = vld [vmem:[#allocation4 + $0x9] sm:$0x7]
    %3068 = vst [vmem:[#allocation5 + $0x50] sm:$0x7] %v3067
    %v3069 = vld [vmem:[#allocation4 + $0x11] sm:$0x7]
    %3070 = vst [vmem:[#allocation5 + $0x98] sm:$0x7] %v3069
    %v3071 = vld [vmem:[#allocation4 + $0x2] sm:$0x7]
    %3072 = vst [vmem:[#allocation5 + $0x10] sm:$0x7] %v3071
    %v3073 = vld [vmem:[#allocation4 + $0xa] sm:$0x7]
    %3074 = vst [vmem:[#allocation5 + $0x58] sm:$0x7] %v3073
    %v3075 = vld [vmem:[#allocation4 + $0x12] sm:$0x7]
    %3076 = vst [vmem:[#allocation5 + $0xa0] sm:$0x7] %v3075
    %v3077 = vld [vmem:[#allocation4 + $0x8] sm:$0x7]
    %3078 = vst [vmem:[#allocation5 + $0x18] sm:$0x7] %v3077
    %v3079 = vld [vmem:[#allocation4 + $0x10] sm:$0x7]
    %3080 = vst [vmem:[#allocation5 + $0x60] sm:$0x7] %v3079
    %v3081 = vld [vmem:[#allocation4 + $0x18] sm:$0x7]
    %3082 = vst [vmem:[#allocation5 + $0xa8] sm:$0x7] %v3081
    %v3083 = vld [vmem:[#allocation4 + $0x9] sm:$0x7]
    %3084 = vst [vmem:[#allocation5 + $0x20] sm:$0x7] %v3083
    %v3085 = vld [vmem:[#allocation4 + $0x11] sm:$0x7]
    %3086 = vst [vmem:[#allocation5 + $0x68] sm:$0x7] %v3085
    %v3087 = vld [vmem:[#allocation4 + $0x19] sm:$0x7]
    %3088 = vst [vmem:[#allocation5 + $0xb0] sm:$0x7] %v3087
    %v3089 = vld [vmem:[#allocation4 + $0xa] sm:$0x7]
    %3090 = vst [vmem:[#allocation5 + $0x28] sm:$0x7] %v3089
    %v3091 = vld [vmem:[#allocation4 + $0x12] sm:$0x7]
    %3092 = vst [vmem:[#allocation5 + $0x70] sm:$0x7] %v3091
    %v3093 = vld [vmem:[#allocation4 + $0x1a] sm:$0x7]
    %3094 = vst [vmem:[#allocation5 + $0xb8] sm:$0x7] %v3093
    %v3095 = vld [vmem:[#allocation4 + $0x10] sm:$0x7]
    %3096 = vst [vmem:[#allocation5 + $0x30] sm:$0x7] %v3095
    %v3097 = vld [vmem:[#allocation4 + $0x18] sm:$0x7]
    %3098 = vst [vmem:[#allocation5 + $0x78] sm:$0x7] %v3097
    %v3099 = vld [vmem:[#allocation4 + $0x20] sm:$0x7]
    %3100 = vst [vmem:[#allocation5 + $0xc0] sm:$0x7] %v3099
    %v3101 = vld [vmem:[#allocation4 + $0x11] sm:$0x7]
    %3102 = vst [vmem:[#allocation5 + $0x38] sm:$0x7] %v3101
    %v3103 = vld [vmem:[#allocation4 + $0x19] sm:$0x7]
    %3104 = vst [vmem:[#allocation5 + $0x80] sm:$0x7] %v3103
    %v3105 = vld [vmem:[#allocation4 + $0x21] sm:$0x7]
    %3106 = vst [vmem:[#allocation5 + $0xc8] sm:$0x7] %v3105
    %v3107 = vld [vmem:[#allocation4 + $0x12] sm:$0x7]
    %3108 = vst [vmem:[#allocation5 + $0x40] sm:$0x7] %v3107
    %v3109 = vld [vmem:[#allocation4 + $0x1a] sm:$0x7]
    %3110 = vst [vmem:[#allocation5 + $0x88] sm:$0x7] %v3109
    %v3111 = vld [vmem:[#allocation4 + $0x22] sm:$0x7]
    %3112 = vst [vmem:[#allocation5 + $0xd0] sm:$0x7] %v3111
    %v3113 = vld [vmem:[#allocation4 + $0x28] sm:$0x7]
    %3114 = vst [vmem:[#allocation5 + $0xd8] sm:$0x7] %v3113
    %v3115 = vld [vmem:[#allocation4 + $0x30] sm:$0x7]
    %3116 = vst [vmem:[#allocation5 + $0x120] sm:$0x7] %v3115
    %v3117 = vld [vmem:[#allocation4 + $0x38] sm:$0x7]
    %3118 = vst [vmem:[#allocation5 + $0x168] sm:$0x7] %v3117
    %v3119 = vld [vmem:[#allocation4 + $0x29] sm:$0x7]
    %3120 = vst [vmem:[#allocation5 + $0xe0] sm:$0x7] %v3119
    %v3121 = vld [vmem:[#allocation4 + $0x31] sm:$0x7]
    %3122 = vst [vmem:[#allocation5 + $0x128] sm:$0x7] %v3121
    %v3123 = vld [vmem:[#allocation4 + $0x39] sm:$0x7]
    %3124 = vst [vmem:[#allocation5 + $0x170] sm:$0x7] %v3123
    %v3125 = vld [vmem:[#allocation4 + $0x2a] sm:$0x7]
    %3126 = vst [vmem:[#allocation5 + $0xe8] sm:$0x7] %v3125
    %v3127 = vld [vmem:[#allocation4 + $0x32] sm:$0x7]
    %3128 = vst [vmem:[#allocation5 + $0x130] sm:$0x7] %v3127
    %v3129 = vld [vmem:[#allocation4 + $0x3a] sm:$0x7]
    %3130 = vst [vmem:[#allocation5 + $0x178] sm:$0x7] %v3129
    %v3131 = vld [vmem:[#allocation4 + $0x30] sm:$0x7]
    %3132 = vst [vmem:[#allocation5 + $0xf0] sm:$0x7] %v3131
    %v3133 = vld [vmem:[#allocation4 + $0x38] sm:$0x7]
    %3134 = vst [vmem:[#allocation5 + $0x138] sm:$0x7] %v3133
    %v3135 = vld [vmem:[#allocation4 + $0x40] sm:$0x7]
    %3136 = vst [vmem:[#allocation5 + $0x180] sm:$0x7] %v3135
    %v3137 = vld [vmem:[#allocation4 + $0x31] sm:$0x7]
    %3138 = vst [vmem:[#allocation5 + $0xf8] sm:$0x7] %v3137
    %v3139 = vld [vmem:[#allocation4 + $0x39] sm:$0x7]
    %3140 = vst [vmem:[#allocation5 + $0x140] sm:$0x7] %v3139
    %v3141 = vld [vmem:[#allocation4 + $0x41] sm:$0x7]
    %3142 = vst [vmem:[#allocation5 + $0x188] sm:$0x7] %v3141
    %v3143 = vld [vmem:[#allocation4 + $0x32] sm:$0x7]
    %3144 = vst [vmem:[#allocation5 + $0x100] sm:$0x7] %v3143
    %v3145 = vld [vmem:[#allocation4 + $0x3a] sm:$0x7]
    %3146 = vst [vmem:[#allocation5 + $0x148] sm:$0x7] %v3145
    %v3147 = vld [vmem:[#allocation4 + $0x42] sm:$0x7]
    %3148 = vst [vmem:[#allocation5 + $0x190] sm:$0x7] %v3147
    %v3149 = vld [vmem:[#allocation4 + $0x38] sm:$0x7]
    %3150 = vst [vmem:[#allocation5 + $0x108] sm:$0x7] %v3149
    %v3151 = vld [vmem:[#allocation4 + $0x40] sm:$0x7]
    %3152 = vst [vmem:[#allocation5 + $0x150] sm:$0x7] %v3151
    %v3153 = vld [vmem:[#allocation4 + $0x48] sm:$0x7]
    %3154 = vst [vmem:[#allocation5 + $0x198] sm:$0x7] %v3153
    %v3155 = vld [vmem:[#allocation4 + $0x39] sm:$0x7]
    %3156 = vst [vmem:[#allocation5 + $0x110] sm:$0x7] %v3155
    %v3157 = vld [vmem:[#allocation4 + $0x41] sm:$0x7]
    %3158 = vst [vmem:[#allocation5 + $0x158] sm:$0x7] %v3157
    %v3159 = vld [vmem:[#allocation4 + $0x49] sm:$0x7]
    %3160 = vst [vmem:[#allocation5 + $0x1a0] sm:$0x7] %v3159
    %v3161 = vld [vmem:[#allocation4 + $0x3a] sm:$0x7]
    %3162 = vst [vmem:[#allocation5 + $0x118] sm:$0x7] %v3161
    %v3163 = vld [vmem:[#allocation4 + $0x42] sm:$0x7]
    %3164 = vst [vmem:[#allocation5 + $0x160] sm:$0x7] %v3163
    %v3165 = vld [vmem:[#allocation4 + $0x4a] sm:$0x7]
    %3166 = vst [vmem:[#allocation5 + $0x1a8] sm:$0x7] %v3165
    %v3167 = vld [vmem:[#allocation5] sm:$0xff]
    %v3168 = vld [vmem:[#allocation5 + $0x8] sm:$0xff]
    %v3169 = vld [vmem:[#allocation5 + $0x10] sm:$0xff]
    %v3170 = vld [vmem:[#allocation5 + $0x18] sm:$0xff]
    %v3171 = vld [vmem:[#allocation5 + $0x20] sm:$0xff]
    %v3172 = vld [vmem:[#allocation5 + $0x28] sm:$0xff]
    %v3173 = vld [vmem:[#allocation5 + $0x30] sm:$0xff]
    %v3174 = vld [vmem:[#allocation5 + $0x38] sm:$0xff]
    %v3175 = vld [vmem:[#allocation5 + $0x40] sm:$0xff]
    %v3176 = vld [vmem:[#allocation5 + $0x48] sm:$0xff]
    %v3177 = vld [vmem:[#allocation5 + $0x50] sm:$0xff]
    %v3178 = vld [vmem:[#allocation5 + $0x58] sm:$0xff]
    %v3179 = vld [vmem:[#allocation5 + $0x60] sm:$0xff]
    %v3180 = vld [vmem:[#allocation5 + $0x68] sm:$0xff]
    %v3181 = vld [vmem:[#allocation5 + $0x70] sm:$0xff]
    %v3182 = vld [vmem:[#allocation5 + $0x78] sm:$0xff]
    %v3183 = vld [vmem:[#allocation5 + $0x80] sm:$0xff]
    %v3184 = vld [vmem:[#allocation5 + $0x88] sm:$0xff]
    %v3185 = vld [vmem:[#allocation5 + $0x90] sm:$0xff]
    %v3186 = vld [vmem:[#allocation5 + $0x98] sm:$0xff]
    %v3187 = vld [vmem:[#allocation5 + $0xa0] sm:$0xff]
    %v3188 = vld [vmem:[#allocation5 + $0xa8] sm:$0xff]
    %v3189 = vld [vmem:[#allocation5 + $0xb0] sm:$0xff]
    %v3190 = vld [vmem:[#allocation5 + $0xb8] sm:$0xff]
    %v3191 = vld [vmem:[#allocation5 + $0xc0] sm:$0xff]
    %v3192 = vld [vmem:[#allocation5 + $0xc8] sm:$0xff]
    %v3193 = vld [vmem:[#allocation5 + $0xd0] sm:$0xff]
    %v3194 = vld [vmem:[#allocation5 + $0xd8] sm:$0xff]
    %v3195 = vld [vmem:[#allocation5 + $0xe0] sm:$0xff]
    %v3196 = vld [vmem:[#allocation5 + $0xe8] sm:$0xff]
    %v3197 = vld [vmem:[#allocation5 + $0xf0] sm:$0xff]
    %v3198 = vld [vmem:[#allocation5 + $0xf8] sm:$0xff]
    %v3199 = vld [vmem:[#allocation5 + $0x100] sm:$0xff]
    %v3200 = vld [vmem:[#allocation5 + $0x108] sm:$0xff]
    %v3201 = vld [vmem:[#allocation5 + $0x110] sm:$0xff]
    %v3202 = vld [vmem:[#allocation5 + $0x118] sm:$0xff]
    %v3203 = vld [vmem:[#allocation5 + $0x120] sm:$0xff]
    %v3204 = vld [vmem:[#allocation5 + $0x128] sm:$0xff]
    %v3205 = vld [vmem:[#allocation5 + $0x130] sm:$0xff]
    %v3206 = vld [vmem:[#allocation5 + $0x138] sm:$0xff]
    %v3207 = vld [vmem:[#allocation5 + $0x140] sm:$0xff]
    %v3208 = vld [vmem:[#allocation5 + $0x148] sm:$0xff]
    %v3209 = vld [vmem:[#allocation5 + $0x150] sm:$0xff]
    %v3210 = vld [vmem:[#allocation5 + $0x158] sm:$0xff]
    %v3211 = vld [vmem:[#allocation5 + $0x160] sm:$0xff]
    %v3212 = vld [vmem:[#allocation5 + $0x168] sm:$0xff]
    %v3213 = vld [vmem:[#allocation5 + $0x170] sm:$0xff]
    %v3214 = vld [vmem:[#allocation5 + $0x178] sm:$0xff]
    %v3215 = vld [vmem:[#allocation5 + $0x180] sm:$0xff]
    %v3216 = vld [vmem:[#allocation5 + $0x188] sm:$0xff]
    %v3217 = vld [vmem:[#allocation5 + $0x190] sm:$0xff]
    %v3218 = vld [vmem:[#allocation5 + $0x198] sm:$0xff]
    %v3219 = vld [vmem:[#allocation5 + $0x1a0] sm:$0xff]
    %v3220 = vld [vmem:[#allocation5 + $0x1a8] sm:$0xff]
    %v3221 = vpack.c.bf16 %v3176, %v3167
    %v3222 = vpack.c.bf16 %v3177, %v3168
    %v3223 = vpack.c.bf16 %v3178, %v3169
    %v3224 = vpack.c.bf16 %v3179, %v3170
    %v3225 = vpack.c.bf16 %v3180, %v3171
    %v3226 = vpack.c.bf16 %v3181, %v3172
    %v3227 = vpack.c.bf16 %v3182, %v3173
    %v3228 = vpack.c.bf16 %v3183, %v3174
    %v3229 = vpack.c.bf16 %v3184, %v3175
    %v3230 = vpack.c.bf16 %v3194, %v3185
    %v3231 = vpack.c.bf16 %v3195, %v3186
    %v3232 = vpack.c.bf16 %v3196, %v3187
    %v3233 = vpack.c.bf16 %v3197, %v3188
    %v3234 = vpack.c.bf16 %v3198, %v3189
    %v3235 = vpack.c.bf16 %v3199, %v3190
    %v3236 = vpack.c.bf16 %v3200, %v3191
    %v3237 = vpack.c.bf16 %v3201, %v3192
    %v3238 = vpack.c.bf16 %v3202, %v3193
    %v3239 = vpack.c.bf16 %v3212, %v3203
    %v3240 = vpack.c.bf16 %v3213, %v3204
    %v3241 = vpack.c.bf16 %v3214, %v3205
    %v3242 = vpack.c.bf16 %v3215, %v3206
    %v3243 = vpack.c.bf16 %v3216, %v3207
    %v3244 = vpack.c.bf16 %v3217, %v3208
    %v3245 = vpack.c.bf16 %v3218, %v3209
    %v3246 = vpack.c.bf16 %v3219, %v3210
    %v3247 = vpack.c.bf16 %v3220, %v3211
    %v3248 = vld [vmem:[%s5] sm:$0xf]
    %v3249 = vld [vmem:[%s5 + $0x4] sm:$0xf]
    %v3250 = vld [vmem:[%s5 + $0x8] sm:$0xf]
    %v3251 = vld [vmem:[%s5 + $0xc] sm:$0xf]
    %v3252 = vld [vmem:[%s5 + $0x10] sm:$0xf]
    %v3253 = vld [vmem:[%s5 + $0x14] sm:$0xf]
    %v3254 = vld [vmem:[%s5 + $0x18] sm:$0xf]
    %v3255 = vld [vmem:[%s5 + $0x1c] sm:$0xf]
    %v3256 = vld [vmem:[%s5 + $0x20] sm:$0xf]
    %v3257 = vld [vmem:[%s5 + $0x24] sm:$0xf]
    %v3258 = vld [vmem:[%s5 + $0x28] sm:$0xf]
    %v3259 = vld [vmem:[%s5 + $0x2c] sm:$0xf]
    %v3260 = vld [vmem:[%s5 + $0x30] sm:$0xf]
    %v3261 = vld [vmem:[%s5 + $0x34] sm:$0xf]
    %v3262 = vld [vmem:[%s5 + $0x38] sm:$0xf]
    %v3263 = vld [vmem:[%s5 + $0x3c] sm:$0xf]
    %v3264 = vld [vmem:[%s5 + $0x40] sm:$0xf]
    %v3265 = vld [vmem:[%s5 + $0x44] sm:$0xf]
    %v3266 = vld [vmem:[%s5 + $0x48] sm:$0xf]
    %v3267 = vld [vmem:[%s5 + $0x4c] sm:$0xf]
    %v3268 = vld [vmem:[%s5 + $0x50] sm:$0xf]
    %v3269 = vld [vmem:[%s5 + $0x54] sm:$0xf]
    %v3270 = vld [vmem:[%s5 + $0x58] sm:$0xf]
    %v3271 = vld [vmem:[%s5 + $0x5c] sm:$0xf]
    %v3272 = vld [vmem:[%s5 + $0x60] sm:$0xf]
    %v3273 = vld [vmem:[%s5 + $0x64] sm:$0xf]
    %v3274 = vld [vmem:[%s5 + $0x68] sm:$0xf]
    %v3275 = vld [vmem:[%s5 + $0x6c] sm:$0xf]
    %v3276 = vld [vmem:[%s5 + $0x70] sm:$0xf]
    %v3277 = vld [vmem:[%s5 + $0x74] sm:$0xf]
    %v3278 = vld [vmem:[%s5 + $0x78] sm:$0xf]
    %v3279 = vld [vmem:[%s5 + $0x7c] sm:$0xf]
    %v3280 = vld [vmem:[%s5 + $0x80] sm:$0xf]
    %v3281 = vld [vmem:[%s5 + $0x84] sm:$0xf]
    %v3282 = vld [vmem:[%s5 + $0x88] sm:$0xf]
    %v3283 = vld [vmem:[%s5 + $0x8c] sm:$0xf]
    %v3284 = vld [vmem:[%s5 + $0x90] sm:$0xf]
    %v3285 = vld [vmem:[%s5 + $0x94] sm:$0xf]
    %v3286 = vld [vmem:[%s5 + $0x98] sm:$0xf]
    %v3287 = vld [vmem:[%s5 + $0x9c] sm:$0xf]
    %v3288 = vld [vmem:[%s5 + $0xa0] sm:$0xf]
    %v3289 = vld [vmem:[%s5 + $0xa4] sm:$0xf]
    %v3290 = vld [vmem:[%s5 + $0xa8] sm:$0xf]
    %v3291 = vld [vmem:[%s5 + $0xac] sm:$0xf]
    %v3292 = vld [vmem:[%s5 + $0xb0] sm:$0xf]
    %v3293 = vld [vmem:[%s5 + $0xb4] sm:$0xf]
    %v3294 = vld [vmem:[%s5 + $0xb8] sm:$0xf]
    %v3295 = vld [vmem:[%s5 + $0xbc] sm:$0xf]
    %v3296 = vld [vmem:[%s5 + $0xc0] sm:$0xf]
    %v3297 = vld [vmem:[%s5 + $0xc4] sm:$0xf]
    %v3298 = vld [vmem:[%s5 + $0xc8] sm:$0xf]
    %v3299 = vld [vmem:[%s5 + $0xcc] sm:$0xf]
    %v3300 = vld [vmem:[%s5 + $0xd0] sm:$0xf]
    %v3301 = vld [vmem:[%s5 + $0xd4] sm:$0xf]
    %v3302 = vld [vmem:[%s5 + $0xd8] sm:$0xf]
    %v3303 = vld [vmem:[%s5 + $0xdc] sm:$0xf]
    %v3304 = vld [vmem:[%s5 + $0xe0] sm:$0xf]
    %v3305 = vld [vmem:[%s5 + $0xe4] sm:$0xf]
    %v3306 = vld [vmem:[%s5 + $0xe8] sm:$0xf]
    %v3307 = vld [vmem:[%s5 + $0xec] sm:$0xf]
    %v3308 = vld [vmem:[%s5 + $0xf0] sm:$0xf]
    %v3309 = vld [vmem:[%s5 + $0xf4] sm:$0xf]
    %v3310 = vld [vmem:[%s5 + $0xf8] sm:$0xf]
    %v3311 = vld [vmem:[%s5 + $0xfc] sm:$0xf]
    %v3312 = vld [vmem:[%s5 + $0x100] sm:$0xf]
    %v3313 = vld [vmem:[%s5 + $0x104] sm:$0xf]
    %v3314 = vld [vmem:[%s5 + $0x108] sm:$0xf]
    %v3315 = vld [vmem:[%s5 + $0x10c] sm:$0xf]
    %v3316 = vld [vmem:[%s5 + $0x110] sm:$0xf]
    %v3317 = vld [vmem:[%s5 + $0x114] sm:$0xf]
    %v3318 = vld [vmem:[%s5 + $0x118] sm:$0xf]
    %v3319 = vld [vmem:[%s5 + $0x11c] sm:$0xf]
    %v3320 = vld [vmem:[%s5 + $0x120] sm:$0xf]
    %v3321 = vld [vmem:[%s5 + $0x124] sm:$0xf]
    %v3322 = vld [vmem:[%s5 + $0x128] sm:$0xf]
    %v3323 = vld [vmem:[%s5 + $0x12c] sm:$0xf]
    %v3324 = vld [vmem:[%s5 + $0x130] sm:$0xf]
    %v3325 = vld [vmem:[%s5 + $0x134] sm:$0xf]
    %v3326 = vld [vmem:[%s5 + $0x138] sm:$0xf]
    %v3327 = vld [vmem:[%s5 + $0x13c] sm:$0xf]
    %v3328 = vld [vmem:[%s5 + $0x140] sm:$0xf]
    %v3329 = vld [vmem:[%s5 + $0x144] sm:$0xf]
    %v3330 = vld [vmem:[%s5 + $0x148] sm:$0xf]
    %v3331 = vld [vmem:[%s5 + $0x14c] sm:$0xf]
    %v3332 = vld [vmem:[%s5 + $0x150] sm:$0xf]
    %v3333 = vld [vmem:[%s5 + $0x154] sm:$0xf]
    %v3334 = vld [vmem:[%s5 + $0x158] sm:$0xf]
    %v3335 = vld [vmem:[%s5 + $0x15c] sm:$0xf]
    %v3336 = vld [vmem:[%s5 + $0x160] sm:$0xf]
    %v3337 = vld [vmem:[%s5 + $0x164] sm:$0xf]
    %v3338 = vld [vmem:[%s5 + $0x168] sm:$0xf]
    %v3339 = vld [vmem:[%s5 + $0x16c] sm:$0xf]
    %v3340 = vld [vmem:[%s5 + $0x170] sm:$0xf]
    %v3341 = vld [vmem:[%s5 + $0x174] sm:$0xf]
    %v3342 = vld [vmem:[%s5 + $0x178] sm:$0xf]
    %v3343 = vld [vmem:[%s5 + $0x17c] sm:$0xf]
    %v3344 = vld [vmem:[%s5 + $0x180] sm:$0xf]
    %v3345 = vld [vmem:[%s5 + $0x184] sm:$0xf]
    %v3346 = vld [vmem:[%s5 + $0x188] sm:$0xf]
    %v3347 = vld [vmem:[%s5 + $0x18c] sm:$0xf]
    %v3348 = vld [vmem:[%s5 + $0x190] sm:$0xf]
    %v3349 = vld [vmem:[%s5 + $0x194] sm:$0xf]
    %v3350 = vld [vmem:[%s5 + $0x198] sm:$0xf]
    %v3351 = vld [vmem:[%s5 + $0x19c] sm:$0xf]
    %v3352 = vld [vmem:[%s5 + $0x1a0] sm:$0xf]
    %v3353 = vld [vmem:[%s5 + $0x1a4] sm:$0xf]
    %v3354 = vld [vmem:[%s5 + $0x1a8] sm:$0xf]
    %v3355 = vld [vmem:[%s5 + $0x1ac] sm:$0xf]
    %v3356 = vld [vmem:[%s5 + $0x1b0] sm:$0xf]
    %v3357 = vld [vmem:[%s5 + $0x1b4] sm:$0xf]
    %v3358 = vld [vmem:[%s5 + $0x1b8] sm:$0xf]
    %v3359 = vld [vmem:[%s5 + $0x1bc] sm:$0xf]
    %v3360 = vld [vmem:[%s5 + $0x1c0] sm:$0xf]
    %v3361 = vld [vmem:[%s5 + $0x1c4] sm:$0xf]
    %v3362 = vld [vmem:[%s5 + $0x1c8] sm:$0xf]
    %v3363 = vld [vmem:[%s5 + $0x1cc] sm:$0xf]
    %v3364 = vld [vmem:[%s5 + $0x1d0] sm:$0xf]
    %v3365 = vld [vmem:[%s5 + $0x1d4] sm:$0xf]
    %v3366 = vld [vmem:[%s5 + $0x1d8] sm:$0xf]
    %v3367 = vld [vmem:[%s5 + $0x1dc] sm:$0xf]
    %v3368 = vld [vmem:[%s5 + $0x1e0] sm:$0xf]
    %v3369 = vld [vmem:[%s5 + $0x1e4] sm:$0xf]
    %v3370 = vld [vmem:[%s5 + $0x1e8] sm:$0xf]
    %v3371 = vld [vmem:[%s5 + $0x1ec] sm:$0xf]
    %v3372 = vld [vmem:[%s5 + $0x1f0] sm:$0xf]
    %v3373 = vld [vmem:[%s5 + $0x1f4] sm:$0xf]
    %v3374 = vld [vmem:[%s5 + $0x1f8] sm:$0xf]
    %v3375 = vld [vmem:[%s5 + $0x1fc] sm:$0xf]
    %v3376 = vld [vmem:[%s5 + $0x200] sm:$0xf]
    %v3377 = vld [vmem:[%s5 + $0x204] sm:$0xf]
    %v3378 = vld [vmem:[%s5 + $0x208] sm:$0xf]
    %v3379 = vld [vmem:[%s5 + $0x20c] sm:$0xf]
    %v3380 = vld [vmem:[%s5 + $0x210] sm:$0xf]
    %v3381 = vld [vmem:[%s5 + $0x214] sm:$0xf]
    %v3382 = vld [vmem:[%s5 + $0x218] sm:$0xf]
    %v3383 = vld [vmem:[%s5 + $0x21c] sm:$0xf]
    %v3384 = vld [vmem:[%s5 + $0x220] sm:$0xf]
    %v3385 = vld [vmem:[%s5 + $0x224] sm:$0xf]
    %v3386 = vld [vmem:[%s5 + $0x228] sm:$0xf]
    %v3387 = vld [vmem:[%s5 + $0x22c] sm:$0xf]
    %v3388 = vld [vmem:[%s5 + $0x230] sm:$0xf]
    %v3389 = vld [vmem:[%s5 + $0x234] sm:$0xf]
    %v3390 = vld [vmem:[%s5 + $0x238] sm:$0xf]
    %v3391 = vld [vmem:[%s5 + $0x23c] sm:$0xf]
    %v3392 = vld [vmem:[%s6] sm:$0x1]
    %v3394 = vlaneseq
    %v3395 = vshrl.u32 %v3394, 7
    %v3396 = vsub.s32 0, %v3395
    %v3397 = vrot.slane %v3392, %v3396
    %v3543 = vunpack.c.l.b16 %v3248
    %v3544 = vunpack.c.l.b16 %v3249
    %v3545 = vunpack.c.l.b16 %v3250
    %v3546 = vunpack.c.l.b16 %v3251
    %v3547 = vunpack.c.l.b16 %v3252
    %v3548 = vunpack.c.l.b16 %v3253
    %v3549 = vunpack.c.l.b16 %v3254
    %v3550 = vunpack.c.l.b16 %v3255
    %v3551 = vunpack.c.l.b16 %v3256
    %v3552 = vunpack.c.l.b16 %v3257
    %v3553 = vunpack.c.l.b16 %v3258
    %v3554 = vunpack.c.l.b16 %v3259
    %v3555 = vunpack.c.l.b16 %v3260
    %v3556 = vunpack.c.l.b16 %v3261
    %v3557 = vunpack.c.l.b16 %v3262
    %v3558 = vunpack.c.l.b16 %v3263
    %v3559 = vunpack.c.l.b16 %v3264
    %v3560 = vunpack.c.l.b16 %v3265
    %v3561 = vunpack.c.l.b16 %v3266
    %v3562 = vunpack.c.l.b16 %v3267
    %v3563 = vunpack.c.l.b16 %v3268
    %v3564 = vunpack.c.l.b16 %v3269
    %v3565 = vunpack.c.l.b16 %v3270
    %v3566 = vunpack.c.l.b16 %v3271
    %v3567 = vunpack.c.l.b16 %v3272
    %v3568 = vunpack.c.l.b16 %v3273
    %v3569 = vunpack.c.l.b16 %v3274
    %v3570 = vunpack.c.l.b16 %v3275
    %v3571 = vunpack.c.l.b16 %v3276
    %v3572 = vunpack.c.l.b16 %v3277
    %v3573 = vunpack.c.l.b16 %v3278
    %v3574 = vunpack.c.l.b16 %v3279
    %v3575 = vunpack.c.l.b16 %v3280
    %v3576 = vunpack.c.l.b16 %v3281
    %v3577 = vunpack.c.l.b16 %v3282
    %v3578 = vunpack.c.l.b16 %v3283
    %v3579 = vunpack.c.l.b16 %v3284
    %v3580 = vunpack.c.l.b16 %v3285
    %v3581 = vunpack.c.l.b16 %v3286
    %v3582 = vunpack.c.l.b16 %v3287
    %v3583 = vunpack.c.l.b16 %v3288
    %v3584 = vunpack.c.l.b16 %v3289
    %v3585 = vunpack.c.l.b16 %v3290
    %v3586 = vunpack.c.l.b16 %v3291
    %v3587 = vunpack.c.l.b16 %v3292
    %v3588 = vunpack.c.l.b16 %v3293
    %v3589 = vunpack.c.l.b16 %v3294
    %v3590 = vunpack.c.l.b16 %v3295
    %v3591 = vunpack.c.l.b16 %v3296
    %v3592 = vunpack.c.l.b16 %v3297
    %v3593 = vunpack.c.l.b16 %v3298
    %v3594 = vunpack.c.l.b16 %v3299
    %v3595 = vunpack.c.l.b16 %v3300
    %v3596 = vunpack.c.l.b16 %v3301
    %v3597 = vunpack.c.l.b16 %v3302
    %v3598 = vunpack.c.l.b16 %v3303
    %v3599 = vunpack.c.l.b16 %v3304
    %v3600 = vunpack.c.l.b16 %v3305
    %v3601 = vunpack.c.l.b16 %v3306
    %v3602 = vunpack.c.l.b16 %v3307
    %v3603 = vunpack.c.l.b16 %v3308
    %v3604 = vunpack.c.l.b16 %v3309
    %v3605 = vunpack.c.l.b16 %v3310
    %v3606 = vunpack.c.l.b16 %v3311
    %v3607 = vunpack.c.l.b16 %v3312
    %v3608 = vunpack.c.l.b16 %v3313
    %v3609 = vunpack.c.l.b16 %v3314
    %v3610 = vunpack.c.l.b16 %v3315
    %v3611 = vunpack.c.l.b16 %v3316
    %v3612 = vunpack.c.l.b16 %v3317
    %v3613 = vunpack.c.l.b16 %v3318
    %v3614 = vunpack.c.l.b16 %v3319
    %v3615 = vunpack.c.l.b16 %v3320
    %v3616 = vunpack.c.l.b16 %v3321
    %v3617 = vunpack.c.l.b16 %v3322
    %v3618 = vunpack.c.l.b16 %v3323
    %v3619 = vunpack.c.l.b16 %v3324
    %v3620 = vunpack.c.l.b16 %v3325
    %v3621 = vunpack.c.l.b16 %v3326
    %v3622 = vunpack.c.l.b16 %v3327
    %v3623 = vunpack.c.l.b16 %v3328
    %v3624 = vunpack.c.l.b16 %v3329
    %v3625 = vunpack.c.l.b16 %v3330
    %v3626 = vunpack.c.l.b16 %v3331
    %v3627 = vunpack.c.l.b16 %v3332
    %v3628 = vunpack.c.l.b16 %v3333
    %v3629 = vunpack.c.l.b16 %v3334
    %v3630 = vunpack.c.l.b16 %v3335
    %v3631 = vunpack.c.l.b16 %v3336
    %v3632 = vunpack.c.l.b16 %v3337
    %v3633 = vunpack.c.l.b16 %v3338
    %v3634 = vunpack.c.l.b16 %v3339
    %v3635 = vunpack.c.l.b16 %v3340
    %v3636 = vunpack.c.l.b16 %v3341
    %v3637 = vunpack.c.l.b16 %v3342
    %v3638 = vunpack.c.l.b16 %v3343
    %v3639 = vunpack.c.l.b16 %v3344
    %v3640 = vunpack.c.l.b16 %v3345
    %v3641 = vunpack.c.l.b16 %v3346
    %v3642 = vunpack.c.l.b16 %v3347
    %v3643 = vunpack.c.l.b16 %v3348
    %v3644 = vunpack.c.l.b16 %v3349
    %v3645 = vunpack.c.l.b16 %v3350
    %v3646 = vunpack.c.l.b16 %v3351
    %v3647 = vunpack.c.l.b16 %v3352
    %v3648 = vunpack.c.l.b16 %v3353
    %v3649 = vunpack.c.l.b16 %v3354
    %v3650 = vunpack.c.l.b16 %v3355
    %v3651 = vunpack.c.l.b16 %v3356
    %v3652 = vunpack.c.l.b16 %v3357
    %v3653 = vunpack.c.l.b16 %v3358
    %v3654 = vunpack.c.l.b16 %v3359
    %v3655 = vunpack.c.l.b16 %v3360
    %v3656 = vunpack.c.l.b16 %v3361
    %v3657 = vunpack.c.l.b16 %v3362
    %v3658 = vunpack.c.l.b16 %v3363
    %v3659 = vunpack.c.l.b16 %v3364
    %v3660 = vunpack.c.l.b16 %v3365
    %v3661 = vunpack.c.l.b16 %v3366
    %v3662 = vunpack.c.l.b16 %v3367
    %v3663 = vunpack.c.l.b16 %v3368
    %v3664 = vunpack.c.l.b16 %v3369
    %v3665 = vunpack.c.l.b16 %v3370
    %v3666 = vunpack.c.l.b16 %v3371
    %v3667 = vunpack.c.l.b16 %v3372
    %v3668 = vunpack.c.l.b16 %v3373
    %v3669 = vunpack.c.l.b16 %v3374
    %v3670 = vunpack.c.l.b16 %v3375
    %v3671 = vunpack.c.l.b16 %v3376
    %v3672 = vunpack.c.l.b16 %v3377
    %v3673 = vunpack.c.l.b16 %v3378
    %v3674 = vunpack.c.l.b16 %v3379
    %v3675 = vunpack.c.l.b16 %v3380
    %v3676 = vunpack.c.l.b16 %v3381
    %v3677 = vunpack.c.l.b16 %v3382
    %v3678 = vunpack.c.l.b16 %v3383
    %v3679 = vunpack.c.l.b16 %v3384
    %v3680 = vunpack.c.l.b16 %v3385
    %v3681 = vunpack.c.l.b16 %v3386
    %v3682 = vunpack.c.l.b16 %v3387
    %v3683 = vunpack.c.l.b16 %v3388
    %v3684 = vunpack.c.l.b16 %v3389
    %v3685 = vunpack.c.l.b16 %v3390
    %v3686 = vunpack.c.l.b16 %v3391
    %v3687 = vpack.c.b16 %v3544, %v3543
    %v3688 = vpack.c.b16 %v3546, %v3545
    %v3689 = vpack.c.b16 %v3548, %v3547
    %v3690 = vpack.c.b16 %v3550, %v3549
    %v3691 = vpack.c.b16 %v3552, %v3551
    %v3692 = vpack.c.b16 %v3554, %v3553
    %v3693 = vpack.c.b16 %v3556, %v3555
    %v3694 = vpack.c.b16 %v3558, %v3557
    %v3695 = vpack.c.b16 %v3560, %v3559
    %v3696 = vpack.c.b16 %v3562, %v3561
    %v3697 = vpack.c.b16 %v3564, %v3563
    %v3698 = vpack.c.b16 %v3566, %v3565
    %v3699 = vpack.c.b16 %v3568, %v3567
    %v3700 = vpack.c.b16 %v3570, %v3569
    %v3701 = vpack.c.b16 %v3572, %v3571
    %v3702 = vpack.c.b16 %v3574, %v3573
    %v3703 = vpack.c.b16 %v3576, %v3575
    %v3704 = vpack.c.b16 %v3578, %v3577
    %v3705 = vpack.c.b16 %v3580, %v3579
    %v3706 = vpack.c.b16 %v3582, %v3581
    %v3707 = vpack.c.b16 %v3584, %v3583
    %v3708 = vpack.c.b16 %v3586, %v3585
    %v3709 = vpack.c.b16 %v3588, %v3587
    %v3710 = vpack.c.b16 %v3590, %v3589
    %v3711 = vpack.c.b16 %v3592, %v3591
    %v3712 = vpack.c.b16 %v3594, %v3593
    %v3713 = vpack.c.b16 %v3596, %v3595
    %v3714 = vpack.c.b16 %v3598, %v3597
    %v3715 = vpack.c.b16 %v3600, %v3599
    %v3716 = vpack.c.b16 %v3602, %v3601
    %v3717 = vpack.c.b16 %v3604, %v3603
    %v3718 = vpack.c.b16 %v3606, %v3605
    %v3719 = vpack.c.b16 %v3608, %v3607
    %v3720 = vpack.c.b16 %v3610, %v3609
    %v3721 = vpack.c.b16 %v3612, %v3611
    %v3722 = vpack.c.b16 %v3614, %v3613
    %v3723 = vpack.c.b16 %v3616, %v3615
    %v3724 = vpack.c.b16 %v3618, %v3617
    %v3725 = vpack.c.b16 %v3620, %v3619
    %v3726 = vpack.c.b16 %v3622, %v3621
    %v3727 = vpack.c.b16 %v3624, %v3623
    %v3728 = vpack.c.b16 %v3626, %v3625
    %v3729 = vpack.c.b16 %v3628, %v3627
    %v3730 = vpack.c.b16 %v3630, %v3629
    %v3731 = vpack.c.b16 %v3632, %v3631
    %v3732 = vpack.c.b16 %v3634, %v3633
    %v3733 = vpack.c.b16 %v3636, %v3635
    %v3734 = vpack.c.b16 %v3638, %v3637
    %v3735 = vpack.c.b16 %v3640, %v3639
    %v3736 = vpack.c.b16 %v3642, %v3641
    %v3737 = vpack.c.b16 %v3644, %v3643
    %v3738 = vpack.c.b16 %v3646, %v3645
    %v3739 = vpack.c.b16 %v3648, %v3647
    %v3740 = vpack.c.b16 %v3650, %v3649
    %v3741 = vpack.c.b16 %v3652, %v3651
    %v3742 = vpack.c.b16 %v3654, %v3653
    %v3743 = vpack.c.b16 %v3656, %v3655
    %v3744 = vpack.c.b16 %v3658, %v3657
    %v3745 = vpack.c.b16 %v3660, %v3659
    %v3746 = vpack.c.b16 %v3662, %v3661
    %v3747 = vpack.c.b16 %v3664, %v3663
    %v3748 = vpack.c.b16 %v3666, %v3665
    %v3749 = vpack.c.b16 %v3668, %v3667
    %v3750 = vpack.c.b16 %v3670, %v3669
    %v3751 = vpack.c.b16 %v3672, %v3671
    %v3752 = vpack.c.b16 %v3674, %v3673
    %v3753 = vpack.c.b16 %v3676, %v3675
    %v3754 = vpack.c.b16 %v3678, %v3677
    %v3755 = vpack.c.b16 %v3680, %v3679
    %v3756 = vpack.c.b16 %v3682, %v3681
    %v3757 = vpack.c.b16 %v3684, %v3683
    %v3758 = vpack.c.b16 %v3686, %v3685
    %3831 = vmatprep.subr.bf16.mxu0 0
    %3832 = vmatpush1.bf16.msra.mxu0 %v3687
    %3833 = vmatprep.subr.bf16.mxu0 0
    %3834 = vmatpush1.bf16.msra.mxu0 %v3688
    %3835 = vmatprep.subr.bf16.mxu0 0
    %3836 = vmatpush1.bf16.msra.mxu0 %v3689
    %3837 = vmatprep.subr.bf16.mxu0 0
    %3838 = vmatpush1.bf16.msra.mxu0 %v3690
    %3839 = vmatprep.subr.bf16.mxu0 0
    %3840 = vmatpush1.bf16.msra.mxu0 %v3691
    %3841 = vmatprep.subr.bf16.mxu0 0
    %3842 = vmatpush1.bf16.msra.mxu0 %v3692
    %3843 = vmatprep.subr.bf16.mxu0 0
    %3844 = vmatpush1.bf16.msra.mxu0 %v3693
    %3845 = vmatprep.subr.bf16.mxu0 0
    %3846 = vmatpush1.bf16.msra.mxu0 %v3694
    %3847 = vmatprep.subr.bf16.mxu0 0
    %3848 = vmatpush1.bf16.msra.mxu0 %v3695
    %3849 = vmatprep.subr.bf16.mxu0 0
    %3850 = vmatpush1.bf16.msra.mxu0 %v3696
    %3851 = vmatprep.subr.bf16.mxu0 0
    %3852 = vmatpush1.bf16.msra.mxu0 %v3697
    %3853 = vmatprep.subr.bf16.mxu0 0
    %3854 = vmatpush1.bf16.msra.mxu0 %v3698
    %3855 = vmatprep.subr.bf16.mxu0 0
    %3856 = vmatpush1.bf16.msra.mxu0 %v3699
    %3857 = vmatprep.subr.bf16.mxu0 0
    %3858 = vmatpush1.bf16.msra.mxu0 %v3700
    %3859 = vmatprep.subr.bf16.mxu0 0
    %3860 = vmatpush1.bf16.msra.mxu0 %v3701
    %3861 = vmatprep.subr.bf16.mxu0 0
    %3862 = vmatpush1.bf16.msra.mxu0 %v3702
    %3863 = vmatprep.mubr.bf16.mxu0 %v3222
    %3864 = vmatmul.mubr.bf16.gmra.mrb[0].mxu0 %v3221
    %v3865 = vpop.f32.mrb[0].mxu0
    %v3866 = vadd.f32 %v3397, %v3865
    %v3867 = vpop.f32.mrb[0].mxu0
    %v3868 = vpop.f32.mrb[0].mxu0
    %v3869 = vadd.f32 %v3397, %v3868
    %v3870 = vpop.f32.mrb[0].mxu0
    %3871 = vmatprep.mubr.bf16.mxu0 %v3231
    %3872 = vmatmul.mubr.bf16.gmra.mrb[0].mxu0 %v3230
    %v3873 = vpop.f32.mrb[0].mxu0
    %v3874 = vadd.f32 %v3397, %v3873
    %v3875 = vpop.f32.mrb[0].mxu0
    %v3876 = vpop.f32.mrb[0].mxu0
    %v3877 = vadd.f32 %v3397, %v3876
    %v3878 = vpop.f32.mrb[0].mxu0
    %3879 = vmatprep.mubr.bf16.mxu0 %v3240
    %3880 = vmatmul.mubr.bf16.gmra.mrb[0].mxu0 %v3239
    %v3881 = vpop.f32.mrb[0].mxu0
    %v3882 = vadd.f32 %v3397, %v3881
    %v3883 = vpop.f32.mrb[0].mxu0
    %v3884 = vpop.f32.mrb[0].mxu0
    %v3885 = vadd.f32 %v3397, %v3884
    %v3886 = vpop.f32.mrb[0].mxu0
    %3887 = vdwg.mxu0
    %3888 = vmatprep.subr.bf16.mxu0 0
    %3889 = vmatpush1.bf16.msra.mxu0 %v3703
    %3890 = vmatprep.subr.bf16.mxu0 0
    %3891 = vmatpush1.bf16.msra.mxu0 %v3704
    %3892 = vmatprep.subr.bf16.mxu0 0
    %3893 = vmatpush1.bf16.msra.mxu0 %v3705
    %3894 = vmatprep.subr.bf16.mxu0 0
    %3895 = vmatpush1.bf16.msra.mxu0 %v3706
    %3896 = vmatprep.subr.bf16.mxu0 0
    %3897 = vmatpush1.bf16.msra.mxu0 %v3707
    %3898 = vmatprep.subr.bf16.mxu0 0
    %3899 = vmatpush1.bf16.msra.mxu0 %v3708
    %3900 = vmatprep.subr.bf16.mxu0 0
    %3901 = vmatpush1.bf16.msra.mxu0 %v3709
    %3902 = vmatprep.subr.bf16.mxu0 0
    %3903 = vmatpush1.bf16.msra.mxu0 %v3710
    %3904 = vmatprep.subr.bf16.mxu0 0
    %3905 = vmatpush1.bf16.msra.mxu0 %v3711
    %3906 = vmatprep.subr.bf16.mxu0 0
    %3907 = vmatpush1.bf16.msra.mxu0 %v3712
    %3908 = vmatprep.subr.bf16.mxu0 0
    %3909 = vmatpush1.bf16.msra.mxu0 %v3713
    %3910 = vmatprep.subr.bf16.mxu0 0
    %3911 = vmatpush1.bf16.msra.mxu0 %v3714
    %3912 = vmatprep.subr.bf16.mxu0 0
    %3913 = vmatpush1.bf16.msra.mxu0 %v3715
    %3914 = vmatprep.subr.bf16.mxu0 0
    %3915 = vmatpush1.bf16.msra.mxu0 %v3716
    %3916 = vmatprep.subr.bf16.mxu0 0
    %3917 = vmatpush1.bf16.msra.mxu0 %v3717
    %3918 = vmatprep.subr.bf16.mxu0 0
    %3919 = vmatpush1.bf16.msra.mxu0 %v3718
    %3920 = vmatprep.mubr.bf16.mxu0 %v3224
    %3921 = vmatmul.mubr.bf16.gmra.mrb[0].mxu0 %v3223
    %v3922 = vpop.f32.mrb[0].mxu0
    %v3923 = vadd.f32 %v3866, %v3922
    %v3924 = vpop.f32.mrb[0].mxu0
    %v3925 = vpop.f32.mrb[0].mxu0
    %v3926 = vadd.f32 %v3869, %v3925
    %v3927 = vpop.f32.mrb[0].mxu0
    %3928 = vmatprep.mubr.bf16.mxu0 %v3233
    %3929 = vmatmul.mubr.bf16.gmra.mrb[0].mxu0 %v3232
    %v3930 = vpop.f32.mrb[0].mxu0
    %v3931 = vadd.f32 %v3874, %v3930
    %v3932 = vpop.f32.mrb[0].mxu0
    %v3933 = vpop.f32.mrb[0].mxu0
    %v3934 = vadd.f32 %v3877, %v3933
    %v3935 = vpop.f32.mrb[0].mxu0
    %3936 = vmatprep.mubr.bf16.mxu0 %v3242
    %3937 = vmatmul.mubr.bf16.gmra.mrb[0].mxu0 %v3241
    %v3938 = vpop.f32.mrb[0].mxu0
    %v3939 = vadd.f32 %v3882, %v3938
    %v3940 = vpop.f32.mrb[0].mxu0
    %v3941 = vpop.f32.mrb[0].mxu0
    %v3942 = vadd.f32 %v3885, %v3941
    %v3943 = vpop.f32.mrb[0].mxu0
    %3944 = vdwg.mxu0
    %3945 = vmatprep.subr.bf16.mxu0 0
    %3946 = vmatpush1.bf16.msra.mxu0 %v3719
    %3947 = vmatprep.subr.bf16.mxu0 0
    %3948 = vmatpush1.bf16.msra.mxu0 %v3720
    %3949 = vmatprep.subr.bf16.mxu0 0
    %3950 = vmatpush1.bf16.msra.mxu0 %v3721
    %3951 = vmatprep.subr.bf16.mxu0 0
    %3952 = vmatpush1.bf16.msra.mxu0 %v3722
    %3953 = vmatprep.subr.bf16.mxu0 0
    %3954 = vmatpush1.bf16.msra.mxu0 %v3723
    %3955 = vmatprep.subr.bf16.mxu0 0
    %3956 = vmatpush1.bf16.msra.mxu0 %v3724
    %3957 = vmatprep.subr.bf16.mxu0 0
    %3958 = vmatpush1.bf16.msra.mxu0 %v3725
    %3959 = vmatprep.subr.bf16.mxu0 0
    %3960 = vmatpush1.bf16.msra.mxu0 %v3726
    %3961 = vmatprep.subr.bf16.mxu0 0
    %3962 = vmatpush1.bf16.msra.mxu0 %v3727
    %3963 = vmatprep.subr.bf16.mxu0 0
    %3964 = vmatpush1.bf16.msra.mxu0 %v3728
    %3965 = vmatprep.subr.bf16.mxu0 0
    %3966 = vmatpush1.bf16.msra.mxu0 %v3729
    %3967 = vmatprep.subr.bf16.mxu0 0
    %3968 = vmatpush1.bf16.msra.mxu0 %v3730
    %3969 = vmatprep.subr.bf16.mxu0 0
    %3970 = vmatpush1.bf16.msra.mxu0 %v3731
    %3971 = vmatprep.subr.bf16.mxu0 0
    %3972 = vmatpush1.bf16.msra.mxu0 %v3732
    %3973 = vmatprep.subr.bf16.mxu0 0
    %3974 = vmatpush1.bf16.msra.mxu0 %v3733
    %3975 = vmatprep.subr.bf16.mxu0 0
    %3976 = vmatpush1.bf16.msra.mxu0 %v3734
    %3977 = vmatprep.mubr.bf16.mxu0 %v3226
    %3978 = vmatmul.mubr.bf16.gmra.mrb[0].mxu0 %v3225
    %v3979 = vpop.f32.mrb[0].mxu0
    %v3980 = vadd.f32 %v3923, %v3979
    %v3981 = vpop.f32.mrb[0].mxu0
    %v3982 = vpop.f32.mrb[0].mxu0
    %v3983 = vadd.f32 %v3926, %v3982
    %v3984 = vpop.f32.mrb[0].mxu0
    %3985 = vmatprep.mubr.bf16.mxu0 %v3235
    %3986 = vmatmul.mubr.bf16.gmra.mrb[0].mxu0 %v3234
    %v3987 = vpop.f32.mrb[0].mxu0
    %v3988 = vadd.f32 %v3931, %v3987
    %v3989 = vpop.f32.mrb[0].mxu0
    %v3990 = vpop.f32.mrb[0].mxu0
    %v3991 = vadd.f32 %v3934, %v3990
    %v3992 = vpop.f32.mrb[0].mxu0
    %3993 = vmatprep.mubr.bf16.mxu0 %v3244
    %3994 = vmatmul.mubr.bf16.gmra.mrb[0].mxu0 %v3243
    %v3995 = vpop.f32.mrb[0].mxu0
    %v3996 = vadd.f32 %v3939, %v3995
    %v3997 = vpop.f32.mrb[0].mxu0
    %v3998 = vpop.f32.mrb[0].mxu0
    %v3999 = vadd.f32 %v3942, %v3998
    %v4000 = vpop.f32.mrb[0].mxu0
    %4001 = vdwg.mxu0
    %4002 = vmatprep.subr.bf16.mxu0 0
    %4003 = vmatpush1.bf16.msra.mxu0 %v3735
    %4004 = vmatprep.subr.bf16.mxu0 0
    %4005 = vmatpush1.bf16.msra.mxu0 %v3736
    %4006 = vmatprep.subr.bf16.mxu0 0
    %4007 = vmatpush1.bf16.msra.mxu0 %v3737
    %4008 = vmatprep.subr.bf16.mxu0 0
    %4009 = vmatpush1.bf16.msra.mxu0 %v3738
    %4010 = vmatprep.subr.bf16.mxu0 0
    %4011 = vmatpush1.bf16.msra.mxu0 %v3739
    %4012 = vmatprep.subr.bf16.mxu0 0
    %4013 = vmatpush1.bf16.msra.mxu0 %v3740
    %4014 = vmatprep.subr.bf16.mxu0 0
    %4015 = vmatpush1.bf16.msra.mxu0 %v3741
    %4016 = vmatprep.subr.bf16.mxu0 0
    %4017 = vmatpush1.bf16.msra.mxu0 %v3742
    %4018 = vmatprep.subr.bf16.mxu0 0
    %4019 = vmatpush1.bf16.msra.mxu0 %v3743
    %4020 = vmatprep.subr.bf16.mxu0 0
    %4021 = vmatpush1.bf16.msra.mxu0 %v3744
    %4022 = vmatprep.subr.bf16.mxu0 0
    %4023 = vmatpush1.bf16.msra.mxu0 %v3745
    %4024 = vmatprep.subr.bf16.mxu0 0
    %4025 = vmatpush1.bf16.msra.mxu0 %v3746
    %4026 = vmatprep.subr.bf16.mxu0 0
    %4027 = vmatpush1.bf16.msra.mxu0 %v3747
    %4028 = vmatprep.subr.bf16.mxu0 0
    %4029 = vmatpush1.bf16.msra.mxu0 %v3748
    %4030 = vmatprep.subr.bf16.mxu0 0
    %4031 = vmatpush1.bf16.msra.mxu0 %v3749
    %4032 = vmatprep.subr.bf16.mxu0 0
    %4033 = vmatpush1.bf16.msra.mxu0 %v3750
    %4034 = vmatprep.mubr.bf16.mxu0 %v3228
    %4035 = vmatmul.mubr.bf16.gmra.mrb[0].mxu0 %v3227
    %v4036 = vpop.f32.mrb[0].mxu0
    %v4037 = vadd.f32 %v3980, %v4036
    %v4038 = vpop.f32.mrb[0].mxu0
    %v4039 = vpop.f32.mrb[0].mxu0
    %v4040 = vadd.f32 %v3983, %v4039
    %v4041 = vpop.f32.mrb[0].mxu0
    %4042 = vmatprep.mubr.bf16.mxu0 %v3237
    %4043 = vmatmul.mubr.bf16.gmra.mrb[0].mxu0 %v3236
    %v4044 = vpop.f32.mrb[0].mxu0
    %v4045 = vadd.f32 %v3988, %v4044
    %v4046 = vpop.f32.mrb[0].mxu0
    %v4047 = vpop.f32.mrb[0].mxu0
    %v4048 = vadd.f32 %v3991, %v4047
    %v4049 = vpop.f32.mrb[0].mxu0
    %4050 = vmatprep.mubr.bf16.mxu0 %v3246
    %4051 = vmatmul.mubr.bf16.gmra.mrb[0].mxu0 %v3245
    %v4052 = vpop.f32.mrb[0].mxu0
    %v4053 = vadd.f32 %v3996, %v4052
    %v4054 = vpop.f32.mrb[0].mxu0
    %v4055 = vpop.f32.mrb[0].mxu0
    %v4056 = vadd.f32 %v3999, %v4055
    %v4057 = vpop.f32.mrb[0].mxu0
    %4058 = vdwg.mxu0
    %4059 = vmatprep.subr.bf16.mxu0 0
    %4060 = vmatpush1.bf16.msra.mxu0 %v3751
    %4061 = vmatprep.subr.bf16.mxu0 0
    %4062 = vmatpush1.bf16.msra.mxu0 %v3752
    %4063 = vmatprep.subr.bf16.mxu0 0
    %4064 = vmatpush1.bf16.msra.mxu0 %v3753
    %4065 = vmatprep.subr.bf16.mxu0 0
    %4066 = vmatpush1.bf16.msra.mxu0 %v3754
    %4067 = vmatprep.subr.bf16.mxu0 0
    %4068 = vmatpush1.bf16.msra.mxu0 %v3755
    %4069 = vmatprep.subr.bf16.mxu0 0
    %4070 = vmatpush1.bf16.msra.mxu0 %v3756
    %4071 = vmatprep.subr.bf16.mxu0 0
    %4072 = vmatpush1.bf16.msra.mxu0 %v3757
    %4073 = vmatprep.subr.bf16.mxu0 0
    %4074 = vmatpush1.bf16.msra.mxu0 %v3758
    %4075 = vmatprep.subr.bf16.mxu0 0
    %4076 = vmatpush1.bf16.msra.mxu0 0
    %4077 = vmatprep.subr.bf16.mxu0 0
    %4078 = vmatpush1.bf16.msra.mxu0 0
    %4079 = vmatprep.subr.bf16.mxu0 0
    %4080 = vmatpush1.bf16.msra.mxu0 0
    %4081 = vmatprep.subr.bf16.mxu0 0
    %4082 = vmatpush1.bf16.msra.mxu0 0
    %4083 = vmatprep.subr.bf16.mxu0 0
    %4084 = vmatpush1.bf16.msra.mxu0 0
    %4085 = vmatprep.subr.bf16.mxu0 0
    %4086 = vmatpush1.bf16.msra.mxu0 0
    %4087 = vmatprep.subr.bf16.mxu0 0
    %4088 = vmatpush1.bf16.msra.mxu0 0
    %4089 = vmatprep.subr.bf16.mxu0 0
    %4090 = vmatpush1.bf16.msra.mxu0 0
    %4091 = vmatprep.mubr.bf16.mxu0 0
    %4092 = vmatmul.mubr.bf16.gmra.mrb[0].mxu0 %v3229
    %v4093 = vpop.f32.mrb[0].mxu0
    %v4094 = vadd.f32 %v4037, %v4093
    %v4095 = vpop.f32.mrb[0].mxu0
    %v4096 = vpop.f32.mrb[0].mxu0
    %v4097 = vadd.f32 %v4040, %v4096
    %v4098 = vpop.f32.mrb[0].mxu0
    %4099 = vmatprep.mubr.bf16.mxu0 0
    %4100 = vmatmul.mubr.bf16.gmra.mrb[0].mxu0 %v3238
    %v4101 = vpop.f32.mrb[0].mxu0
    %v4102 = vadd.f32 %v4045, %v4101
    %v4103 = vpop.f32.mrb[0].mxu0
    %v4104 = vpop.f32.mrb[0].mxu0
    %v4105 = vadd.f32 %v4048, %v4104
    %v4106 = vpop.f32.mrb[0].mxu0
    %4107 = vmatprep.mubr.bf16.mxu0 0
    %4108 = vmatmul.mubr.bf16.gmra.mrb[0].mxu0 %v3247
    %v4109 = vpop.f32.mrb[0].mxu0
    %v4110 = vadd.f32 %v4053, %v4109
    %v4111 = vpop.f32.mrb[0].mxu0
    %v4112 = vpop.f32.mrb[0].mxu0
    %v4113 = vadd.f32 %v4056, %v4112
    %v4114 = vpop.f32.mrb[0].mxu0
    %4115 = vdwg.mxu0
    %v4116 = vmax.f32 %v4094, 0.0
    %v4117 = vmax.f32 %v4097, 0.0
    %v4118 = vmax.f32 %v4102, 0.0
    %v4119 = vmax.f32 %v4105, 0.0
    %v4120 = vmax.f32 %v4110, 0.0
    %v4121 = vmax.f32 %v4113, 0.0
    %4122 = vst [vmem:[#allocation6] sm:$0xff] %v4116
    %4123 = vst [vmem:[#allocation6 + $0x8] sm:$0xff] %v4117
    %4124 = vst [vmem:[#allocation6 + $0x10] sm:$0xff] %v4118
    %4125 = vst [vmem:[#allocation6 + $0x18] sm:$0xff] %v4119
    %4126 = vst [vmem:[#allocation6 + $0x20] sm:$0xff] %v4120
    %4127 = vst [vmem:[#allocation6 + $0x28] sm:$0xff] %v4121
    %v4128 = vld [vmem:[#allocation6] sm:$0x1]
    %4129 = vst [vmem:[#allocation7] sm:$0x1] %v4128
    %v4130 = vld [vmem:[#allocation6 + $0x1] sm:$0x1]
    %4131 = vst [vmem:[#allocation7 + $0x2] sm:$0x1] %v4130
    %v4132 = vld [vmem:[#allocation6 + $0x2] sm:$0x1]
    %4133 = vst [vmem:[#allocation7 + $0x4] sm:$0x1] %v4132
    %v4134 = vld [vmem:[#allocation6 + $0x8] sm:$0x1]
    %4135 = vst [vmem:[#allocation7 + $0x6] sm:$0x1] %v4134
    %v4136 = vld [vmem:[#allocation6 + $0x9] sm:$0x1]
    %4137 = vst [vmem:[#allocation7 + $0x8] sm:$0x1] %v4136
    %v4138 = vld [vmem:[#allocation6 + $0xa] sm:$0x1]
    %4139 = vst [vmem:[#allocation7 + $0xa] sm:$0x1] %v4138
    %v4140 = vld [vmem:[#allocation6 + $0x10] sm:$0x1]
    %4141 = vst [vmem:[#allocation7 + $0xc] sm:$0x1] %v4140
    %v4142 = vld [vmem:[#allocation6 + $0x11] sm:$0x1]
    %4143 = vst [vmem:[#allocation7 + $0xe] sm:$0x1] %v4142
    %v4144 = vld [vmem:[#allocation6 + $0x12] sm:$0x1]
    %4145 = vst [vmem:[#allocation7 + $0x10] sm:$0x1] %v4144
    %v4146 = vld [vmem:[#allocation6 + $0x18] sm:$0x1]
    %4147 = vst [vmem:[#allocation7 + $0x1] sm:$0x1] %v4146
    %v4148 = vld [vmem:[#allocation6 + $0x19] sm:$0x1]
    %4149 = vst [vmem:[#allocation7 + $0x3] sm:$0x1] %v4148
    %v4150 = vld [vmem:[#allocation6 + $0x1a] sm:$0x1]
    %4151 = vst [vmem:[#allocation7 + $0x5] sm:$0x1] %v4150
    %v4152 = vld [vmem:[#allocation6 + $0x20] sm:$0x1]
    %4153 = vst [vmem:[#allocation7 + $0x7] sm:$0x1] %v4152
    %v4154 = vld [vmem:[#allocation6 + $0x21] sm:$0x1]
    %4155 = vst [vmem:[#allocation7 + $0x9] sm:$0x1] %v4154
    %v4156 = vld [vmem:[#allocation6 + $0x22] sm:$0x1]
    %4157 = vst [vmem:[#allocation7 + $0xb] sm:$0x1] %v4156
    %v4158 = vld [vmem:[#allocation6 + $0x28] sm:$0x1]
    %4159 = vst [vmem:[#allocation7 + $0xd] sm:$0x1] %v4158
    %v4160 = vld [vmem:[#allocation6 + $0x29] sm:$0x1]
    %4161 = vst [vmem:[#allocation7 + $0xf] sm:$0x1] %v4160
    %v4162 = vld [vmem:[#allocation6 + $0x2a] sm:$0x1]
    %4163 = vst [vmem:[#allocation7 + $0x11] sm:$0x1] %v4162
    %v4164 = vld [vmem:[#allocation7] sm:$0xff]
    %v4165 = vld [vmem:[#allocation7 + $0x8] sm:$0xff]
    %v4166 = vld [vmem:[#allocation7 + $0x10] sm:$0x3]
    %v4170 = vcombine.high %v4164, %v4164
    %v4172 = vunpack.c.l.s4 1983009808
    %v4173 = vunpack.c.0.s8 %v4172
    %v4174 = vlaneseq
    %v4175 = vshrl.u32 %v4174, 7
    %v4176 = vsub.s32 %v4173, %v4175
    %v4177 = vrot.slane %v4164, %v4176
    %v4179 = vunpack.c.l.s4 1983009808
    %v4180 = vunpack.c.0.s8 %v4179
    %v4181 = vlaneseq
    %v4182 = vshrl.u32 %v4181, 7
    %v4183 = vsub.s32 %v4180, %v4182
    %v4184 = vrot.slane %v4170, %v4183
    %v4185 = vcombine.high %v4177, %v4177
    %v4186 = vcombine.high %v4184, %v4184
    %v4187 = vcombine.high %v4165, %v4165
    %v4189 = vunpack.c.l.s4 1983009808
    %v4190 = vunpack.c.0.s8 %v4189
    %v4191 = vlaneseq
    %v4192 = vshrl.u32 %v4191, 7
    %v4193 = vsub.s32 %v4190, %v4192
    %v4194 = vrot.slane %v4165, %v4193
    %v4196 = vunpack.c.l.s4 1983009808
    %v4197 = vunpack.c.0.s8 %v4196
    %v4198 = vlaneseq
    %v4199 = vshrl.u32 %v4198, 7
    %v4200 = vsub.s32 %v4197, %v4199
    %v4201 = vrot.slane %v4187, %v4200
    %v4202 = vcombine.high %v4194, %v4194
    %v4203 = vcombine.high %v4201, %v4201
    %v4205 = vunpack.c.l.s4 1983009808
    %v4206 = vunpack.c.0.s8 %v4205
    %v4207 = vlaneseq
    %v4208 = vshrl.u32 %v4207, 7
    %v4209 = vsub.s32 %v4206, %v4208
    %v4210 = vrot.slane %v4166, %v4209
    %v4220 = vpack.c.bf16 %v4177, %v4177
    %v4221 = vpack.c.bf16 %v4185, %v4185
    %v4222 = vpack.c.bf16 %v4184, %v4184
    %v4223 = vpack.c.bf16 %v4186, %v4186
    %v4224 = vpack.c.bf16 %v4194, %v4194
    %v4225 = vpack.c.bf16 %v4202, %v4202
    %v4226 = vpack.c.bf16 %v4201, %v4201
    %v4227 = vpack.c.bf16 %v4203, %v4203
    %v4228 = vpack.c.bf16 %v4210, %v4210
    %v4229 = vld [vmem:[%s7] sm:$0xf]
    %v4230 = vld [vmem:[%s7 + $0x4] sm:$0xf]
    %v4231 = vld [vmem:[%s7 + $0x8] sm:$0xf]
    %v4232 = vld [vmem:[%s7 + $0xc] sm:$0xf]
    %v4233 = vld [vmem:[%s7 + $0x10] sm:$0xf]
    %v4234 = vld [vmem:[%s7 + $0x14] sm:$0xf]
    %v4235 = vld [vmem:[%s7 + $0x18] sm:$0xf]
    %v4236 = vld [vmem:[%s7 + $0x1c] sm:$0xf]
    %v4237 = vld [vmem:[%s7 + $0x20] sm:$0xf]
    %v4238 = vld [vmem:[%s7 + $0x24] sm:$0xf]
    %v4239 = vld [vmem:[%s7 + $0x28] sm:$0xf]
    %v4240 = vld [vmem:[%s7 + $0x2c] sm:$0xf]
    %v4241 = vld [vmem:[%s7 + $0x30] sm:$0xf]
    %v4242 = vld [vmem:[%s7 + $0x34] sm:$0xf]
    %v4243 = vld [vmem:[%s7 + $0x38] sm:$0xf]
    %v4244 = vld [vmem:[%s7 + $0x3c] sm:$0xf]
    %v4245 = vld [vmem:[%s7 + $0x40] sm:$0xf]
    %v4246 = vld [vmem:[%s7 + $0x44] sm:$0xf]
    %v4247 = vld [vmem:[%s7 + $0x48] sm:$0xf]
    %v4248 = vld [vmem:[%s7 + $0x4c] sm:$0xf]
    %v4249 = vld [vmem:[%s7 + $0x50] sm:$0xf]
    %v4250 = vld [vmem:[%s7 + $0x54] sm:$0xf]
    %v4251 = vld [vmem:[%s7 + $0x58] sm:$0xf]
    %v4252 = vld [vmem:[%s7 + $0x5c] sm:$0xf]
    %v4253 = vld [vmem:[%s7 + $0x60] sm:$0xf]
    %v4254 = vld [vmem:[%s7 + $0x64] sm:$0xf]
    %v4255 = vld [vmem:[%s7 + $0x68] sm:$0xf]
    %v4256 = vld [vmem:[%s7 + $0x6c] sm:$0xf]
    %v4257 = vld [vmem:[%s7 + $0x70] sm:$0xf]
    %v4258 = vld [vmem:[%s7 + $0x74] sm:$0xf]
    %v4259 = vld [vmem:[%s7 + $0x78] sm:$0xf]
    %v4260 = vld [vmem:[%s7 + $0x7c] sm:$0xf]
    %v4261 = vld [vmem:[%s7 + $0x80] sm:$0xf]
    %v4262 = vld [vmem:[%s7 + $0x84] sm:$0xf]
    %v4263 = vld [vmem:[%s7 + $0x88] sm:$0xf]
    %v4264 = vld [vmem:[%s7 + $0x8c] sm:$0xf]
    %v4265 = vld [vmem:[%s7 + $0x90] sm:$0xf]
    %v4266 = vld [vmem:[%s7 + $0x94] sm:$0xf]
    %v4267 = vld [vmem:[%s7 + $0x98] sm:$0xf]
    %v4268 = vld [vmem:[%s7 + $0x9c] sm:$0xf]
    %v4269 = vld [vmem:[%s7 + $0xa0] sm:$0xf]
    %v4270 = vld [vmem:[%s7 + $0xa4] sm:$0xf]
    %v4271 = vld [vmem:[%s7 + $0xa8] sm:$0xf]
    %v4272 = vld [vmem:[%s7 + $0xac] sm:$0xf]
    %v4273 = vld [vmem:[%s7 + $0xb0] sm:$0xf]
    %v4274 = vld [vmem:[%s7 + $0xb4] sm:$0xf]
    %v4275 = vld [vmem:[%s7 + $0xb8] sm:$0xf]
    %v4276 = vld [vmem:[%s7 + $0xbc] sm:$0xf]
    %v4277 = vld [vmem:[%s7 + $0xc0] sm:$0xf]
    %v4278 = vld [vmem:[%s7 + $0xc4] sm:$0xf]
    %v4279 = vld [vmem:[%s7 + $0xc8] sm:$0xf]
    %v4280 = vld [vmem:[%s7 + $0xcc] sm:$0xf]
    %v4281 = vld [vmem:[%s7 + $0xd0] sm:$0xf]
    %v4282 = vld [vmem:[%s7 + $0xd4] sm:$0xf]
    %v4283 = vld [vmem:[%s7 + $0xd8] sm:$0xf]
    %v4284 = vld [vmem:[%s7 + $0xdc] sm:$0xf]
    %v4285 = vld [vmem:[%s7 + $0xe0] sm:$0xf]
    %v4286 = vld [vmem:[%s7 + $0xe4] sm:$0xf]
    %v4287 = vld [vmem:[%s7 + $0xe8] sm:$0xf]
    %v4288 = vld [vmem:[%s7 + $0xec] sm:$0xf]
    %v4289 = vld [vmem:[%s7 + $0xf0] sm:$0xf]
    %v4290 = vld [vmem:[%s7 + $0xf4] sm:$0xf]
    %v4291 = vld [vmem:[%s7 + $0xf8] sm:$0xf]
    %v4292 = vld [vmem:[%s7 + $0xfc] sm:$0xf]
    %v4293 = vld [vmem:[%s7 + $0x100] sm:$0xf]
    %v4294 = vld [vmem:[%s7 + $0x104] sm:$0xf]
    %v4295 = vld [vmem:[%s7 + $0x108] sm:$0xf]
    %v4296 = vld [vmem:[%s7 + $0x10c] sm:$0xf]
    %v4297 = vld [vmem:[%s7 + $0x110] sm:$0xf]
    %v4298 = vld [vmem:[%s7 + $0x114] sm:$0xf]
    %v4299 = vld [vmem:[%s7 + $0x118] sm:$0xf]
    %v4300 = vld [vmem:[%s7 + $0x11c] sm:$0xf]
    %v4301 = vld [vmem:[%s7 + $0x120] sm:$0xf]
    %v4302 = vld [vmem:[%s7 + $0x124] sm:$0xf]
    %v4303 = vld [vmem:[%s7 + $0x128] sm:$0xf]
    %v4304 = vld [vmem:[%s7 + $0x12c] sm:$0xf]
    %v4305 = vld [vmem:[%s7 + $0x130] sm:$0xf]
    %v4306 = vld [vmem:[%s7 + $0x134] sm:$0xf]
    %v4307 = vld [vmem:[%s7 + $0x138] sm:$0xf]
    %v4308 = vld [vmem:[%s7 + $0x13c] sm:$0xf]
    %v4309 = vld [vmem:[%s7 + $0x140] sm:$0xf]
    %v4310 = vld [vmem:[%s7 + $0x144] sm:$0xf]
    %v4311 = vld [vmem:[%s7 + $0x148] sm:$0xf]
    %v4312 = vld [vmem:[%s7 + $0x14c] sm:$0xf]
    %v4313 = vld [vmem:[%s7 + $0x150] sm:$0xf]
    %v4314 = vld [vmem:[%s7 + $0x154] sm:$0xf]
    %v4315 = vld [vmem:[%s7 + $0x158] sm:$0xf]
    %v4316 = vld [vmem:[%s7 + $0x15c] sm:$0xf]
    %v4317 = vld [vmem:[%s7 + $0x160] sm:$0xf]
    %v4318 = vld [vmem:[%s7 + $0x164] sm:$0xf]
    %v4319 = vld [vmem:[%s7 + $0x168] sm:$0xf]
    %v4320 = vld [vmem:[%s7 + $0x16c] sm:$0xf]
    %v4321 = vld [vmem:[%s7 + $0x170] sm:$0xf]
    %v4322 = vld [vmem:[%s7 + $0x174] sm:$0xf]
    %v4323 = vld [vmem:[%s7 + $0x178] sm:$0xf]
    %v4324 = vld [vmem:[%s7 + $0x17c] sm:$0xf]
    %v4325 = vld [vmem:[%s7 + $0x180] sm:$0xf]
    %v4326 = vld [vmem:[%s7 + $0x184] sm:$0xf]
    %v4327 = vld [vmem:[%s7 + $0x188] sm:$0xf]
    %v4328 = vld [vmem:[%s7 + $0x18c] sm:$0xf]
    %v4329 = vld [vmem:[%s7 + $0x190] sm:$0xf]
    %v4330 = vld [vmem:[%s7 + $0x194] sm:$0xf]
    %v4331 = vld [vmem:[%s7 + $0x198] sm:$0xf]
    %v4332 = vld [vmem:[%s7 + $0x19c] sm:$0xf]
    %v4333 = vld [vmem:[%s7 + $0x1a0] sm:$0xf]
    %v4334 = vld [vmem:[%s7 + $0x1a4] sm:$0xf]
    %v4335 = vld [vmem:[%s7 + $0x1a8] sm:$0xf]
    %v4336 = vld [vmem:[%s7 + $0x1ac] sm:$0xf]
    %v4337 = vld [vmem:[%s7 + $0x1b0] sm:$0xf]
    %v4338 = vld [vmem:[%s7 + $0x1b4] sm:$0xf]
    %v4339 = vld [vmem:[%s7 + $0x1b8] sm:$0xf]
    %v4340 = vld [vmem:[%s7 + $0x1bc] sm:$0xf]
    %v4341 = vld [vmem:[%s7 + $0x1c0] sm:$0xf]
    %v4342 = vld [vmem:[%s7 + $0x1c4] sm:$0xf]
    %v4343 = vld [vmem:[%s7 + $0x1c8] sm:$0xf]
    %v4344 = vld [vmem:[%s7 + $0x1cc] sm:$0xf]
    %v4345 = vld [vmem:[%s7 + $0x1d0] sm:$0xf]
    %v4346 = vld [vmem:[%s7 + $0x1d4] sm:$0xf]
    %v4347 = vld [vmem:[%s7 + $0x1d8] sm:$0xf]
    %v4348 = vld [vmem:[%s7 + $0x1dc] sm:$0xf]
    %v4349 = vld [vmem:[%s7 + $0x1e0] sm:$0xf]
    %v4350 = vld [vmem:[%s7 + $0x1e4] sm:$0xf]
    %v4351 = vld [vmem:[%s7 + $0x1e8] sm:$0xf]
    %v4352 = vld [vmem:[%s7 + $0x1ec] sm:$0xf]
    %v4353 = vld [vmem:[%s7 + $0x1f0] sm:$0xf]
    %v4354 = vld [vmem:[%s7 + $0x1f4] sm:$0xf]
    %v4355 = vld [vmem:[%s7 + $0x1f8] sm:$0xf]
    %v4356 = vld [vmem:[%s7 + $0x1fc] sm:$0xf]
    %v4357 = vld [vmem:[%s7 + $0x200] sm:$0xf]
    %v4358 = vld [vmem:[%s7 + $0x204] sm:$0xf]
    %v4359 = vld [vmem:[%s7 + $0x208] sm:$0xf]
    %v4360 = vld [vmem:[%s7 + $0x20c] sm:$0xf]
    %v4361 = vld [vmem:[%s7 + $0x210] sm:$0xf]
    %v4362 = vld [vmem:[%s7 + $0x214] sm:$0xf]
    %v4363 = vld [vmem:[%s7 + $0x218] sm:$0xf]
    %v4364 = vld [vmem:[%s7 + $0x21c] sm:$0xf]
    %v4365 = vld [vmem:[%s7 + $0x220] sm:$0xf]
    %v4366 = vld [vmem:[%s7 + $0x224] sm:$0xf]
    %v4367 = vld [vmem:[%s7 + $0x228] sm:$0xf]
    %v4368 = vld [vmem:[%s7 + $0x22c] sm:$0xf]
    %v4369 = vld [vmem:[%s7 + $0x230] sm:$0xf]
    %v4370 = vld [vmem:[%s7 + $0x234] sm:$0xf]
    %v4371 = vld [vmem:[%s7 + $0x238] sm:$0xf]
    %v4372 = vld [vmem:[%s7 + $0x23c] sm:$0xf]
    %v4373 = vld [vmem:[%s8] sm:$0x1]
    %v4375 = vlaneseq
    %v4376 = vshrl.u32 %v4375, 7
    %v4377 = vsub.s32 0, %v4376
    %v4378 = vrot.slane %v4373, %v4377
    %v4524 = vunpack.c.l.b16 %v4229
    %v4525 = vunpack.c.l.b16 %v4230
    %v4526 = vunpack.c.l.b16 %v4231
    %v4527 = vunpack.c.l.b16 %v4232
    %v4528 = vunpack.c.l.b16 %v4233
    %v4529 = vunpack.c.l.b16 %v4234
    %v4530 = vunpack.c.l.b16 %v4235
    %v4531 = vunpack.c.l.b16 %v4236
    %v4532 = vunpack.c.l.b16 %v4237
    %v4533 = vunpack.c.l.b16 %v4238
    %v4534 = vunpack.c.l.b16 %v4239
    %v4535 = vunpack.c.l.b16 %v4240
    %v4536 = vunpack.c.l.b16 %v4241
    %v4537 = vunpack.c.l.b16 %v4242
    %v4538 = vunpack.c.l.b16 %v4243
    %v4539 = vunpack.c.l.b16 %v4244
    %v4540 = vunpack.c.l.b16 %v4245
    %v4541 = vunpack.c.l.b16 %v4246
    %v4542 = vunpack.c.l.b16 %v4247
    %v4543 = vunpack.c.l.b16 %v4248
    %v4544 = vunpack.c.l.b16 %v4249
    %v4545 = vunpack.c.l.b16 %v4250
    %v4546 = vunpack.c.l.b16 %v4251
    %v4547 = vunpack.c.l.b16 %v4252
    %v4548 = vunpack.c.l.b16 %v4253
    %v4549 = vunpack.c.l.b16 %v4254
    %v4550 = vunpack.c.l.b16 %v4255
    %v4551 = vunpack.c.l.b16 %v4256
    %v4552 = vunpack.c.l.b16 %v4257
    %v4553 = vunpack.c.l.b16 %v4258
    %v4554 = vunpack.c.l.b16 %v4259
    %v4555 = vunpack.c.l.b16 %v4260
    %v4556 = vunpack.c.l.b16 %v4261
    %v4557 = vunpack.c.l.b16 %v4262
    %v4558 = vunpack.c.l.b16 %v4263
    %v4559 = vunpack.c.l.b16 %v4264
    %v4560 = vunpack.c.l.b16 %v4265
    %v4561 = vunpack.c.l.b16 %v4266
    %v4562 = vunpack.c.l.b16 %v4267
    %v4563 = vunpack.c.l.b16 %v4268
    %v4564 = vunpack.c.l.b16 %v4269
    %v4565 = vunpack.c.l.b16 %v4270
    %v4566 = vunpack.c.l.b16 %v4271
    %v4567 = vunpack.c.l.b16 %v4272
    %v4568 = vunpack.c.l.b16 %v4273
    %v4569 = vunpack.c.l.b16 %v4274
    %v4570 = vunpack.c.l.b16 %v4275
    %v4571 = vunpack.c.l.b16 %v4276
    %v4572 = vunpack.c.l.b16 %v4277
    %v4573 = vunpack.c.l.b16 %v4278
    %v4574 = vunpack.c.l.b16 %v4279
    %v4575 = vunpack.c.l.b16 %v4280
    %v4576 = vunpack.c.l.b16 %v4281
    %v4577 = vunpack.c.l.b16 %v4282
    %v4578 = vunpack.c.l.b16 %v4283
    %v4579 = vunpack.c.l.b16 %v4284
    %v4580 = vunpack.c.l.b16 %v4285
    %v4581 = vunpack.c.l.b16 %v4286
    %v4582 = vunpack.c.l.b16 %v4287
    %v4583 = vunpack.c.l.b16 %v4288
    %v4584 = vunpack.c.l.b16 %v4289
    %v4585 = vunpack.c.l.b16 %v4290
    %v4586 = vunpack.c.l.b16 %v4291
    %v4587 = vunpack.c.l.b16 %v4292
    %v4588 = vunpack.c.l.b16 %v4293
    %v4589 = vunpack.c.l.b16 %v4294
    %v4590 = vunpack.c.l.b16 %v4295
    %v4591 = vunpack.c.l.b16 %v4296
    %v4592 = vunpack.c.l.b16 %v4297
    %v4593 = vunpack.c.l.b16 %v4298
    %v4594 = vunpack.c.l.b16 %v4299
    %v4595 = vunpack.c.l.b16 %v4300
    %v4596 = vunpack.c.l.b16 %v4301
    %v4597 = vunpack.c.l.b16 %v4302
    %v4598 = vunpack.c.l.b16 %v4303
    %v4599 = vunpack.c.l.b16 %v4304
    %v4600 = vunpack.c.l.b16 %v4305
    %v4601 = vunpack.c.l.b16 %v4306
    %v4602 = vunpack.c.l.b16 %v4307
    %v4603 = vunpack.c.l.b16 %v4308
    %v4604 = vunpack.c.l.b16 %v4309
    %v4605 = vunpack.c.l.b16 %v4310
    %v4606 = vunpack.c.l.b16 %v4311
    %v4607 = vunpack.c.l.b16 %v4312
    %v4608 = vunpack.c.l.b16 %v4313
    %v4609 = vunpack.c.l.b16 %v4314
    %v4610 = vunpack.c.l.b16 %v4315
    %v4611 = vunpack.c.l.b16 %v4316
    %v4612 = vunpack.c.l.b16 %v4317
    %v4613 = vunpack.c.l.b16 %v4318
    %v4614 = vunpack.c.l.b16 %v4319
    %v4615 = vunpack.c.l.b16 %v4320
    %v4616 = vunpack.c.l.b16 %v4321
    %v4617 = vunpack.c.l.b16 %v4322
    %v4618 = vunpack.c.l.b16 %v4323
    %v4619 = vunpack.c.l.b16 %v4324
    %v4620 = vunpack.c.l.b16 %v4325
    %v4621 = vunpack.c.l.b16 %v4326
    %v4622 = vunpack.c.l.b16 %v4327
    %v4623 = vunpack.c.l.b16 %v4328
    %v4624 = vunpack.c.l.b16 %v4329
    %v4625 = vunpack.c.l.b16 %v4330
    %v4626 = vunpack.c.l.b16 %v4331
    %v4627 = vunpack.c.l.b16 %v4332
    %v4628 = vunpack.c.l.b16 %v4333
    %v4629 = vunpack.c.l.b16 %v4334
    %v4630 = vunpack.c.l.b16 %v4335
    %v4631 = vunpack.c.l.b16 %v4336
    %v4632 = vunpack.c.l.b16 %v4337
    %v4633 = vunpack.c.l.b16 %v4338
    %v4634 = vunpack.c.l.b16 %v4339
    %v4635 = vunpack.c.l.b16 %v4340
    %v4636 = vunpack.c.l.b16 %v4341
    %v4637 = vunpack.c.l.b16 %v4342
    %v4638 = vunpack.c.l.b16 %v4343
    %v4639 = vunpack.c.l.b16 %v4344
    %v4640 = vunpack.c.l.b16 %v4345
    %v4641 = vunpack.c.l.b16 %v4346
    %v4642 = vunpack.c.l.b16 %v4347
    %v4643 = vunpack.c.l.b16 %v4348
    %v4644 = vunpack.c.l.b16 %v4349
    %v4645 = vunpack.c.l.b16 %v4350
    %v4646 = vunpack.c.l.b16 %v4351
    %v4647 = vunpack.c.l.b16 %v4352
    %v4648 = vunpack.c.l.b16 %v4353
    %v4649 = vunpack.c.l.b16 %v4354
    %v4650 = vunpack.c.l.b16 %v4355
    %v4651 = vunpack.c.l.b16 %v4356
    %v4652 = vunpack.c.l.b16 %v4357
    %v4653 = vunpack.c.l.b16 %v4358
    %v4654 = vunpack.c.l.b16 %v4359
    %v4655 = vunpack.c.l.b16 %v4360
    %v4656 = vunpack.c.l.b16 %v4361
    %v4657 = vunpack.c.l.b16 %v4362
    %v4658 = vunpack.c.l.b16 %v4363
    %v4659 = vunpack.c.l.b16 %v4364
    %v4660 = vunpack.c.l.b16 %v4365
    %v4661 = vunpack.c.l.b16 %v4366
    %v4662 = vunpack.c.l.b16 %v4367
    %v4663 = vunpack.c.l.b16 %v4368
    %v4664 = vunpack.c.l.b16 %v4369
    %v4665 = vunpack.c.l.b16 %v4370
    %v4666 = vunpack.c.l.b16 %v4371
    %v4667 = vunpack.c.l.b16 %v4372
    %v4668 = vpack.c.b16 %v4525, %v4524
    %v4669 = vpack.c.b16 %v4527, %v4526
    %v4670 = vpack.c.b16 %v4529, %v4528
    %v4671 = vpack.c.b16 %v4531, %v4530
    %v4672 = vpack.c.b16 %v4533, %v4532
    %v4673 = vpack.c.b16 %v4535, %v4534
    %v4674 = vpack.c.b16 %v4537, %v4536
    %v4675 = vpack.c.b16 %v4539, %v4538
    %v4676 = vpack.c.b16 %v4541, %v4540
    %v4677 = vpack.c.b16 %v4543, %v4542
    %v4678 = vpack.c.b16 %v4545, %v4544
    %v4679 = vpack.c.b16 %v4547, %v4546
    %v4680 = vpack.c.b16 %v4549, %v4548
    %v4681 = vpack.c.b16 %v4551, %v4550
    %v4682 = vpack.c.b16 %v4553, %v4552
    %v4683 = vpack.c.b16 %v4555, %v4554
    %v4684 = vpack.c.b16 %v4557, %v4556
    %v4685 = vpack.c.b16 %v4559, %v4558
    %v4686 = vpack.c.b16 %v4561, %v4560
    %v4687 = vpack.c.b16 %v4563, %v4562
    %v4688 = vpack.c.b16 %v4565, %v4564
    %v4689 = vpack.c.b16 %v4567, %v4566
    %v4690 = vpack.c.b16 %v4569, %v4568
    %v4691 = vpack.c.b16 %v4571, %v4570
    %v4692 = vpack.c.b16 %v4573, %v4572
    %v4693 = vpack.c.b16 %v4575, %v4574
    %v4694 = vpack.c.b16 %v4577, %v4576
    %v4695 = vpack.c.b16 %v4579, %v4578
    %v4696 = vpack.c.b16 %v4581, %v4580
    %v4697 = vpack.c.b16 %v4583, %v4582
    %v4698 = vpack.c.b16 %v4585, %v4584
    %v4699 = vpack.c.b16 %v4587, %v4586
    %v4700 = vpack.c.b16 %v4589, %v4588
    %v4701 = vpack.c.b16 %v4591, %v4590
    %v4702 = vpack.c.b16 %v4593, %v4592
    %v4703 = vpack.c.b16 %v4595, %v4594
    %v4704 = vpack.c.b16 %v4597, %v4596
    %v4705 = vpack.c.b16 %v4599, %v4598
    %v4706 = vpack.c.b16 %v4601, %v4600
    %v4707 = vpack.c.b16 %v4603, %v4602
    %v4708 = vpack.c.b16 %v4605, %v4604
    %v4709 = vpack.c.b16 %v4607, %v4606
    %v4710 = vpack.c.b16 %v4609, %v4608
    %v4711 = vpack.c.b16 %v4611, %v4610
    %v4712 = vpack.c.b16 %v4613, %v4612
    %v4713 = vpack.c.b16 %v4615, %v4614
    %v4714 = vpack.c.b16 %v4617, %v4616
    %v4715 = vpack.c.b16 %v4619, %v4618
    %v4716 = vpack.c.b16 %v4621, %v4620
    %v4717 = vpack.c.b16 %v4623, %v4622
    %v4718 = vpack.c.b16 %v4625, %v4624
    %v4719 = vpack.c.b16 %v4627, %v4626
    %v4720 = vpack.c.b16 %v4629, %v4628
    %v4721 = vpack.c.b16 %v4631, %v4630
    %v4722 = vpack.c.b16 %v4633, %v4632
    %v4723 = vpack.c.b16 %v4635, %v4634
    %v4724 = vpack.c.b16 %v4637, %v4636
    %v4725 = vpack.c.b16 %v4639, %v4638
    %v4726 = vpack.c.b16 %v4641, %v4640
    %v4727 = vpack.c.b16 %v4643, %v4642
    %v4728 = vpack.c.b16 %v4645, %v4644
    %v4729 = vpack.c.b16 %v4647, %v4646
    %v4730 = vpack.c.b16 %v4649, %v4648
    %v4731 = vpack.c.b16 %v4651, %v4650
    %v4732 = vpack.c.b16 %v4653, %v4652
    %v4733 = vpack.c.b16 %v4655, %v4654
    %v4734 = vpack.c.b16 %v4657, %v4656
    %v4735 = vpack.c.b16 %v4659, %v4658
    %v4736 = vpack.c.b16 %v4661, %v4660
    %v4737 = vpack.c.b16 %v4663, %v4662
    %v4738 = vpack.c.b16 %v4665, %v4664
    %v4739 = vpack.c.b16 %v4667, %v4666
    %4812 = vmatprep.subr.bf16.mxu0 0
    %4813 = vmatpush1.bf16.msra.mxu0 %v4668
    %4814 = vmatprep.subr.bf16.mxu0 0
    %4815 = vmatpush1.bf16.msra.mxu0 %v4669
    %4816 = vmatprep.subr.bf16.mxu0 0
    %4817 = vmatpush1.bf16.msra.mxu0 %v4670
    %4818 = vmatprep.subr.bf16.mxu0 0
    %4819 = vmatpush1.bf16.msra.mxu0 %v4671
    %4820 = vmatprep.subr.bf16.mxu0 0
    %4821 = vmatpush1.bf16.msra.mxu0 %v4672
    %4822 = vmatprep.subr.bf16.mxu0 0
    %4823 = vmatpush1.bf16.msra.mxu0 %v4673
    %4824 = vmatprep.subr.bf16.mxu0 0
    %4825 = vmatpush1.bf16.msra.mxu0 %v4674
    %4826 = vmatprep.subr.bf16.mxu0 0
    %4827 = vmatpush1.bf16.msra.mxu0 %v4675
    %4828 = vmatprep.subr.bf16.mxu0 0
    %4829 = vmatpush1.bf16.msra.mxu0 %v4676
    %4830 = vmatprep.subr.bf16.mxu0 0
    %4831 = vmatpush1.bf16.msra.mxu0 %v4677
    %4832 = vmatprep.subr.bf16.mxu0 0
    %4833 = vmatpush1.bf16.msra.mxu0 %v4678
    %4834 = vmatprep.subr.bf16.mxu0 0
    %4835 = vmatpush1.bf16.msra.mxu0 %v4679
    %4836 = vmatprep.subr.bf16.mxu0 0
    %4837 = vmatpush1.bf16.msra.mxu0 %v4680
    %4838 = vmatprep.subr.bf16.mxu0 0
    %4839 = vmatpush1.bf16.msra.mxu0 %v4681
    %4840 = vmatprep.subr.bf16.mxu0 0
    %4841 = vmatpush1.bf16.msra.mxu0 %v4682
    %4842 = vmatprep.subr.bf16.mxu0 0
    %4843 = vmatpush1.bf16.msra.mxu0 %v4683
    %4844 = vmatprep.mubr.bf16.mxu0 %v4221
    %4845 = vmatmul.mubr.bf16.gmra.mrb[0].mxu0 %v4220
    %v4846 = vpop.f32.mrb[0].mxu0
    %v4847 = vadd.f32 %v4378, %v4846
    %v4848 = vpop.f32.mrb[0].mxu0
    %v4849 = vpop.f32.mrb[0].mxu0
    %v4850 = vpop.f32.mrb[0].mxu0
    %4851 = vdwg.mxu0
    %4852 = vmatprep.subr.bf16.mxu0 0
    %4853 = vmatpush1.bf16.msra.mxu0 %v4684
    %4854 = vmatprep.subr.bf16.mxu0 0
    %4855 = vmatpush1.bf16.msra.mxu0 %v4685
    %4856 = vmatprep.subr.bf16.mxu0 0
    %4857 = vmatpush1.bf16.msra.mxu0 %v4686
    %4858 = vmatprep.subr.bf16.mxu0 0
    %4859 = vmatpush1.bf16.msra.mxu0 %v4687
    %4860 = vmatprep.subr.bf16.mxu0 0
    %4861 = vmatpush1.bf16.msra.mxu0 %v4688
    %4862 = vmatprep.subr.bf16.mxu0 0
    %4863 = vmatpush1.bf16.msra.mxu0 %v4689
    %4864 = vmatprep.subr.bf16.mxu0 0
    %4865 = vmatpush1.bf16.msra.mxu0 %v4690
    %4866 = vmatprep.subr.bf16.mxu0 0
    %4867 = vmatpush1.bf16.msra.mxu0 %v4691
    %4868 = vmatprep.subr.bf16.mxu0 0
    %4869 = vmatpush1.bf16.msra.mxu0 %v4692
    %4870 = vmatprep.subr.bf16.mxu0 0
    %4871 = vmatpush1.bf16.msra.mxu0 %v4693
    %4872 = vmatprep.subr.bf16.mxu0 0
    %4873 = vmatpush1.bf16.msra.mxu0 %v4694
    %4874 = vmatprep.subr.bf16.mxu0 0
    %4875 = vmatpush1.bf16.msra.mxu0 %v4695
    %4876 = vmatprep.subr.bf16.mxu0 0
    %4877 = vmatpush1.bf16.msra.mxu0 %v4696
    %4878 = vmatprep.subr.bf16.mxu0 0
    %4879 = vmatpush1.bf16.msra.mxu0 %v4697
    %4880 = vmatprep.subr.bf16.mxu0 0
    %4881 = vmatpush1.bf16.msra.mxu0 %v4698
    %4882 = vmatprep.subr.bf16.mxu0 0
    %4883 = vmatpush1.bf16.msra.mxu0 %v4699
    %4884 = vmatprep.mubr.bf16.mxu0 %v4223
    %4885 = vmatmul.mubr.bf16.gmra.mrb[0].mxu0 %v4222
    %v4886 = vpop.f32.mrb[0].mxu0
    %v4887 = vadd.f32 %v4847, %v4886
    %v4888 = vpop.f32.mrb[0].mxu0
    %v4889 = vpop.f32.mrb[0].mxu0
    %v4890 = vpop.f32.mrb[0].mxu0
    %4891 = vdwg.mxu0
    %4892 = vmatprep.subr.bf16.mxu0 0
    %4893 = vmatpush1.bf16.msra.mxu0 %v4700
    %4894 = vmatprep.subr.bf16.mxu0 0
    %4895 = vmatpush1.bf16.msra.mxu0 %v4701
    %4896 = vmatprep.subr.bf16.mxu0 0
    %4897 = vmatpush1.bf16.msra.mxu0 %v4702
    %4898 = vmatprep.subr.bf16.mxu0 0
    %4899 = vmatpush1.bf16.msra.mxu0 %v4703
    %4900 = vmatprep.subr.bf16.mxu0 0
    %4901 = vmatpush1.bf16.msra.mxu0 %v4704
    %4902 = vmatprep.subr.bf16.mxu0 0
    %4903 = vmatpush1.bf16.msra.mxu0 %v4705
    %4904 = vmatprep.subr.bf16.mxu0 0
    %4905 = vmatpush1.bf16.msra.mxu0 %v4706
    %4906 = vmatprep.subr.bf16.mxu0 0
    %4907 = vmatpush1.bf16.msra.mxu0 %v4707
    %4908 = vmatprep.subr.bf16.mxu0 0
    %4909 = vmatpush1.bf16.msra.mxu0 %v4708
    %4910 = vmatprep.subr.bf16.mxu0 0
    %4911 = vmatpush1.bf16.msra.mxu0 %v4709
    %4912 = vmatprep.subr.bf16.mxu0 0
    %4913 = vmatpush1.bf16.msra.mxu0 %v4710
    %4914 = vmatprep.subr.bf16.mxu0 0
    %4915 = vmatpush1.bf16.msra.mxu0 %v4711
    %4916 = vmatprep.subr.bf16.mxu0 0
    %4917 = vmatpush1.bf16.msra.mxu0 %v4712
    %4918 = vmatprep.subr.bf16.mxu0 0
    %4919 = vmatpush1.bf16.msra.mxu0 %v4713
    %4920 = vmatprep.subr.bf16.mxu0 0
    %4921 = vmatpush1.bf16.msra.mxu0 %v4714
    %4922 = vmatprep.subr.bf16.mxu0 0
    %4923 = vmatpush1.bf16.msra.mxu0 %v4715
    %4924 = vmatprep.mubr.bf16.mxu0 %v4225
    %4925 = vmatmul.mubr.bf16.gmra.mrb[0].mxu0 %v4224
    %v4926 = vpop.f32.mrb[0].mxu0
    %v4927 = vadd.f32 %v4887, %v4926
    %v4928 = vpop.f32.mrb[0].mxu0
    %v4929 = vpop.f32.mrb[0].mxu0
    %v4930 = vpop.f32.mrb[0].mxu0
    %4931 = vdwg.mxu0
    %4932 = vmatprep.subr.bf16.mxu0 0
    %4933 = vmatpush1.bf16.msra.mxu0 %v4716
    %4934 = vmatprep.subr.bf16.mxu0 0
    %4935 = vmatpush1.bf16.msra.mxu0 %v4717
    %4936 = vmatprep.subr.bf16.mxu0 0
    %4937 = vmatpush1.bf16.msra.mxu0 %v4718
    %4938 = vmatprep.subr.bf16.mxu0 0
    %4939 = vmatpush1.bf16.msra.mxu0 %v4719
    %4940 = vmatprep.subr.bf16.mxu0 0
    %4941 = vmatpush1.bf16.msra.mxu0 %v4720
    %4942 = vmatprep.subr.bf16.mxu0 0
    %4943 = vmatpush1.bf16.msra.mxu0 %v4721
    %4944 = vmatprep.subr.bf16.mxu0 0
    %4945 = vmatpush1.bf16.msra.mxu0 %v4722
    %4946 = vmatprep.subr.bf16.mxu0 0
    %4947 = vmatpush1.bf16.msra.mxu0 %v4723
    %4948 = vmatprep.subr.bf16.mxu0 0
    %4949 = vmatpush1.bf16.msra.mxu0 %v4724
    %4950 = vmatprep.subr.bf16.mxu0 0
    %4951 = vmatpush1.bf16.msra.mxu0 %v4725
    %4952 = vmatprep.subr.bf16.mxu0 0
    %4953 = vmatpush1.bf16.msra.mxu0 %v4726
    %4954 = vmatprep.subr.bf16.mxu0 0
    %4955 = vmatpush1.bf16.msra.mxu0 %v4727
    %4956 = vmatprep.subr.bf16.mxu0 0
    %4957 = vmatpush1.bf16.msra.mxu0 %v4728
    %4958 = vmatprep.subr.bf16.mxu0 0
    %4959 = vmatpush1.bf16.msra.mxu0 %v4729
    %4960 = vmatprep.subr.bf16.mxu0 0
    %4961 = vmatpush1.bf16.msra.mxu0 %v4730
    %4962 = vmatprep.subr.bf16.mxu0 0
    %4963 = vmatpush1.bf16.msra.mxu0 %v4731
    %4964 = vmatprep.mubr.bf16.mxu0 %v4227
    %4965 = vmatmul.mubr.bf16.gmra.mrb[0].mxu0 %v4226
    %v4966 = vpop.f32.mrb[0].mxu0
    %v4967 = vadd.f32 %v4927, %v4966
    %v4968 = vpop.f32.mrb[0].mxu0
    %v4969 = vpop.f32.mrb[0].mxu0
    %v4970 = vpop.f32.mrb[0].mxu0
    %4971 = vdwg.mxu0
    %4972 = vmatprep.subr.bf16.mxu0 0
    %4973 = vmatpush1.bf16.msra.mxu0 %v4732
    %4974 = vmatprep.subr.bf16.mxu0 0
    %4975 = vmatpush1.bf16.msra.mxu0 %v4733
    %4976 = vmatprep.subr.bf16.mxu0 0
    %4977 = vmatpush1.bf16.msra.mxu0 %v4734
    %4978 = vmatprep.subr.bf16.mxu0 0
    %4979 = vmatpush1.bf16.msra.mxu0 %v4735
    %4980 = vmatprep.subr.bf16.mxu0 0
    %4981 = vmatpush1.bf16.msra.mxu0 %v4736
    %4982 = vmatprep.subr.bf16.mxu0 0
    %4983 = vmatpush1.bf16.msra.mxu0 %v4737
    %4984 = vmatprep.subr.bf16.mxu0 0
    %4985 = vmatpush1.bf16.msra.mxu0 %v4738
    %4986 = vmatprep.subr.bf16.mxu0 0
    %4987 = vmatpush1.bf16.msra.mxu0 %v4739
    %4988 = vmatprep.subr.bf16.mxu0 0
    %4989 = vmatpush1.bf16.msra.mxu0 0
    %4990 = vmatprep.subr.bf16.mxu0 0
    %4991 = vmatpush1.bf16.msra.mxu0 0
    %4992 = vmatprep.subr.bf16.mxu0 0
    %4993 = vmatpush1.bf16.msra.mxu0 0
    %4994 = vmatprep.subr.bf16.mxu0 0
    %4995 = vmatpush1.bf16.msra.mxu0 0
    %4996 = vmatprep.subr.bf16.mxu0 0
    %4997 = vmatpush1.bf16.msra.mxu0 0
    %4998 = vmatprep.subr.bf16.mxu0 0
    %4999 = vmatpush1.bf16.msra.mxu0 0
    %5000 = vmatprep.subr.bf16.mxu0 0
    %5001 = vmatpush1.bf16.msra.mxu0 0
    %5002 = vmatprep.subr.bf16.mxu0 0
    %5003 = vmatpush1.bf16.msra.mxu0 0
    %5004 = vmatprep.mubr.bf16.mxu0 0
    %5005 = vmatmul.mubr.bf16.gmra.mrb[0].mxu0 %v4228
    %v5006 = vpop.f32.mrb[0].mxu0
    %v5007 = vadd.f32 %v4967, %v5006
    %v5008 = vpop.f32.mrb[0].mxu0
    %v5009 = vpop.f32.mrb[0].mxu0
    %v5010 = vpop.f32.mrb[0].mxu0
    %5011 = vdwg.mxu0
    %v5012 = vmax.f32 %v5007, 0.0
    %v5013 = vpack.c.bf16 %v5012, %v5012
    %v5014 = vld [vmem:[%s9] sm:$0xff]
    %v5015 = vld [vmem:[%s9 + $0x8] sm:$0xff]
    %v5016 = vld [vmem:[%s9 + $0x10] sm:$0xff]
    %v5017 = vld [vmem:[%s9 + $0x18] sm:$0xff]
    %v5018 = vld [vmem:[%s9 + $0x20] sm:$0xff]
    %v5019 = vld [vmem:[%s9 + $0x28] sm:$0xff]
    %v5020 = vld [vmem:[%s9 + $0x30] sm:$0xff]
    %v5021 = vld [vmem:[%s9 + $0x38] sm:$0xff]
    %v5022 = vld [vmem:[%s9 + $0x40] sm:$0xff]
    %v5023 = vld [vmem:[%s9 + $0x48] sm:$0xff]
    %v5024 = vld [vmem:[%s9 + $0x50] sm:$0xff]
    %v5025 = vld [vmem:[%s9 + $0x58] sm:$0xff]
    %v5026 = vld [vmem:[%s9 + $0x60] sm:$0xff]
    %v5027 = vld [vmem:[%s9 + $0x68] sm:$0xff]
    %v5028 = vld [vmem:[%s9 + $0x70] sm:$0xff]
    %v5029 = vld [vmem:[%s9 + $0x78] sm:$0xff]
    %v5030 = vld [vmem:[%s9 + $0x80] sm:$0xff]
    %v5031 = vld [vmem:[%s9 + $0x88] sm:$0xff]
    %v5032 = vld [vmem:[%s9 + $0x90] sm:$0xff]
    %v5033 = vld [vmem:[%s9 + $0x98] sm:$0xff]
    %v5034 = vld [vmem:[%s9 + $0xa0] sm:$0xff]
    %v5035 = vld [vmem:[%s9 + $0xa8] sm:$0xff]
    %v5036 = vld [vmem:[%s9 + $0xb0] sm:$0xff]
    %v5037 = vld [vmem:[%s9 + $0xb8] sm:$0xff]
    %v5038 = vld [vmem:[%s9 + $0xc0] sm:$0xff]
    %v5039 = vld [vmem:[%s9 + $0xc8] sm:$0xff]
    %v5040 = vld [vmem:[%s9 + $0xd0] sm:$0xff]
    %v5041 = vld [vmem:[%s9 + $0xd8] sm:$0xff]
    %v5042 = vld [vmem:[%s9 + $0xe0] sm:$0xff]
    %v5043 = vld [vmem:[%s9 + $0xe8] sm:$0xff]
    %v5044 = vld [vmem:[%s9 + $0xf0] sm:$0xff]
    %v5045 = vld [vmem:[%s9 + $0xf8] sm:$0xff]
    %v5046 = vld [vmem:[%s10] sm:$0xf]
    %v5048 = vlaneseq
    %v5049 = vshrl.u32 %v5048, 7
    %v5050 = vsub.s32 0, %v5049
    %v5051 = vrot.slane %v5046, %v5050
    %v5052 = vlaneseq
    %v5053 = vshrl.u32 %v5052, 7
    %v5054 = vsub.s32 1, %v5053
    %v5055 = vrot.slane %v5046, %v5054
    %v5056 = vlaneseq
    %v5057 = vshrl.u32 %v5056, 7
    %v5058 = vsub.s32 2, %v5057
    %v5059 = vrot.slane %v5046, %v5058
    %v5060 = vlaneseq
    %v5061 = vshrl.u32 %v5060, 7
    %v5062 = vsub.s32 3, %v5061
    %v5063 = vrot.slane %v5046, %v5062
    %v5100 = vunpack.c.l.b16 %v5014
    %v5101 = vunpack.c.h.b16 %v5014
    %v5102 = vunpack.c.l.b16 %v5015
    %v5103 = vunpack.c.h.b16 %v5015
    %v5104 = vunpack.c.l.b16 %v5016
    %v5105 = vunpack.c.h.b16 %v5016
    %v5106 = vunpack.c.l.b16 %v5017
    %v5107 = vunpack.c.h.b16 %v5017
    %v5108 = vunpack.c.l.b16 %v5018
    %v5109 = vunpack.c.h.b16 %v5018
    %v5110 = vunpack.c.l.b16 %v5019
    %v5111 = vunpack.c.h.b16 %v5019
    %v5112 = vunpack.c.l.b16 %v5020
    %v5113 = vunpack.c.h.b16 %v5020
    %v5114 = vunpack.c.l.b16 %v5021
    %v5115 = vunpack.c.h.b16 %v5021
    %v5116 = vunpack.c.l.b16 %v5022
    %v5117 = vunpack.c.h.b16 %v5022
    %v5118 = vunpack.c.l.b16 %v5023
    %v5119 = vunpack.c.h.b16 %v5023
    %v5120 = vunpack.c.l.b16 %v5024
    %v5121 = vunpack.c.h.b16 %v5024
    %v5122 = vunpack.c.l.b16 %v5025
    %v5123 = vunpack.c.h.b16 %v5025
    %v5124 = vunpack.c.l.b16 %v5026
    %v5125 = vunpack.c.h.b16 %v5026
    %v5126 = vunpack.c.l.b16 %v5027
    %v5127 = vunpack.c.h.b16 %v5027
    %v5128 = vunpack.c.l.b16 %v5028
    %v5129 = vunpack.c.h.b16 %v5028
    %v5130 = vunpack.c.l.b16 %v5029
    %v5131 = vunpack.c.h.b16 %v5029
    %v5132 = vunpack.c.l.b16 %v5030
    %v5133 = vunpack.c.h.b16 %v5030
    %v5134 = vunpack.c.l.b16 %v5031
    %v5135 = vunpack.c.h.b16 %v5031
    %v5136 = vunpack.c.l.b16 %v5032
    %v5137 = vunpack.c.h.b16 %v5032
    %v5138 = vunpack.c.l.b16 %v5033
    %v5139 = vunpack.c.h.b16 %v5033
    %v5140 = vunpack.c.l.b16 %v5034
    %v5141 = vunpack.c.h.b16 %v5034
    %v5142 = vunpack.c.l.b16 %v5035
    %v5143 = vunpack.c.h.b16 %v5035
    %v5144 = vunpack.c.l.b16 %v5036
    %v5145 = vunpack.c.h.b16 %v5036
    %v5146 = vunpack.c.l.b16 %v5037
    %v5147 = vunpack.c.h.b16 %v5037
    %v5148 = vunpack.c.l.b16 %v5038
    %v5149 = vunpack.c.h.b16 %v5038
    %v5150 = vunpack.c.l.b16 %v5039
    %v5151 = vunpack.c.h.b16 %v5039
    %v5152 = vunpack.c.l.b16 %v5040
    %v5153 = vunpack.c.h.b16 %v5040
    %v5154 = vunpack.c.l.b16 %v5041
    %v5155 = vunpack.c.h.b16 %v5041
    %v5156 = vunpack.c.l.b16 %v5042
    %v5157 = vunpack.c.h.b16 %v5042
    %v5158 = vunpack.c.l.b16 %v5043
    %v5159 = vunpack.c.h.b16 %v5043
    %v5160 = vunpack.c.l.b16 %v5044
    %v5161 = vunpack.c.h.b16 %v5044
    %v5162 = vunpack.c.l.b16 %v5045
    %v5163 = vunpack.c.h.b16 %v5045
    %v5164 = vpack.c.b16 %v5104, %v5100
    %v5165 = vpack.c.b16 %v5105, %v5101
    %v5166 = vpack.c.b16 %v5106, %v5102
    %v5167 = vpack.c.b16 %v5107, %v5103
    %v5168 = vpack.c.b16 %v5112, %v5108
    %v5169 = vpack.c.b16 %v5113, %v5109
    %v5170 = vpack.c.b16 %v5114, %v5110
    %v5171 = vpack.c.b16 %v5115, %v5111
    %v5172 = vpack.c.b16 %v5120, %v5116
    %v5173 = vpack.c.b16 %v5121, %v5117
    %v5174 = vpack.c.b16 %v5122, %v5118
    %v5175 = vpack.c.b16 %v5123, %v5119
    %v5176 = vpack.c.b16 %v5128, %v5124
    %v5177 = vpack.c.b16 %v5129, %v5125
    %v5178 = vpack.c.b16 %v5130, %v5126
    %v5179 = vpack.c.b16 %v5131, %v5127
    %v5180 = vpack.c.b16 %v5136, %v5132
    %v5181 = vpack.c.b16 %v5137, %v5133
    %v5182 = vpack.c.b16 %v5138, %v5134
    %v5183 = vpack.c.b16 %v5139, %v5135
    %v5184 = vpack.c.b16 %v5144, %v5140
    %v5185 = vpack.c.b16 %v5145, %v5141
    %v5186 = vpack.c.b16 %v5146, %v5142
    %v5187 = vpack.c.b16 %v5147, %v5143
    %v5188 = vpack.c.b16 %v5152, %v5148
    %v5189 = vpack.c.b16 %v5153, %v5149
    %v5190 = vpack.c.b16 %v5154, %v5150
    %v5191 = vpack.c.b16 %v5155, %v5151
    %v5192 = vpack.c.b16 %v5160, %v5156
    %v5193 = vpack.c.b16 %v5161, %v5157
    %v5194 = vpack.c.b16 %v5162, %v5158
    %v5195 = vpack.c.b16 %v5163, %v5159
    %5228 = vmatprep.subr.bf16.mxu0 %v5165
    %5229 = vmatpush1.bf16.msra.mxu0 %v5164
    %5230 = vmatprep.subr.bf16.mxu0 %v5169
    %5231 = vmatpush1.bf16.msra.mxu0 %v5168
    %5232 = vmatprep.subr.bf16.mxu0 %v5173
    %5233 = vmatpush1.bf16.msra.mxu0 %v5172
    %5234 = vmatprep.subr.bf16.mxu0 %v5177
    %5235 = vmatpush1.bf16.msra.mxu0 %v5176
    %5236 = vmatprep.subr.bf16.mxu0 %v5181
    %5237 = vmatpush1.bf16.msra.mxu0 %v5180
    %5238 = vmatprep.subr.bf16.mxu0 %v5185
    %5239 = vmatpush1.bf16.msra.mxu0 %v5184
    %5240 = vmatprep.subr.bf16.mxu0 %v5189
    %5241 = vmatpush1.bf16.msra.mxu0 %v5188
    %5242 = vmatprep.subr.bf16.mxu0 %v5193
    %5243 = vmatpush1.bf16.msra.mxu0 %v5192
    %5244 = vmatprep.subr.bf16.mxu0 0
    %5245 = vmatpush1.bf16.msra.mxu0 0
    %5246 = vmatprep.subr.bf16.mxu0 0
    %5247 = vmatpush1.bf16.msra.mxu0 0
    %5248 = vmatprep.subr.bf16.mxu0 0
    %5249 = vmatpush1.bf16.msra.mxu0 0
    %5250 = vmatprep.subr.bf16.mxu0 0
    %5251 = vmatpush1.bf16.msra.mxu0 0
    %5252 = vmatprep.subr.bf16.mxu0 0
    %5253 = vmatpush1.bf16.msra.mxu0 0
    %5254 = vmatprep.subr.bf16.mxu0 0
    %5255 = vmatpush1.bf16.msra.mxu0 0
    %5256 = vmatprep.subr.bf16.mxu0 0
    %5257 = vmatpush1.bf16.msra.mxu0 0
    %5258 = vmatprep.subr.bf16.mxu0 0
    %5259 = vmatpush1.bf16.msra.mxu0 0
    %5260 = vmatprep.mubr.bf16.mxu0 0
    %5261 = vmatmul.mubr.bf16.gmra.mrb[0].mxu0 %v5013
    %v5262 = vpop.f32.mrb[0].mxu0
    %v5263 = vadd.f32 %v5051, %v5262
    %v5264 = vpop.f32.mrb[0].mxu0
    %v5265 = vadd.f32 %v5055, %v5264
    %v5266 = vpop.f32.mrb[0].mxu0
    %v5267 = vpop.f32.mrb[0].mxu0
    %5268 = vdwg.mxu0
    %5269 = vmatprep.subr.bf16.mxu0 %v5167
    %5270 = vmatpush1.bf16.msra.mxu0 %v5166
    %5271 = vmatprep.subr.bf16.mxu0 %v5171
    %5272 = vmatpush1.bf16.msra.mxu0 %v5170
    %5273 = vmatprep.subr.bf16.mxu0 %v5175
    %5274 = vmatpush1.bf16.msra.mxu0 %v5174
    %5275 = vmatprep.subr.bf16.mxu0 %v5179
    %5276 = vmatpush1.bf16.msra.mxu0 %v5178
    %5277 = vmatprep.subr.bf16.mxu0 %v5183
    %5278 = vmatpush1.bf16.msra.mxu0 %v5182
    %5279 = vmatprep.subr.bf16.mxu0 %v5187
    %5280 = vmatpush1.bf16.msra.mxu0 %v5186
    %5281 = vmatprep.subr.bf16.mxu0 %v5191
    %5282 = vmatpush1.bf16.msra.mxu0 %v5190
    %5283 = vmatprep.subr.bf16.mxu0 %v5195
    %5284 = vmatpush1.bf16.msra.mxu0 %v5194
    %5285 = vmatprep.subr.bf16.mxu0 0
    %5286 = vmatpush1.bf16.msra.mxu0 0
    %5287 = vmatprep.subr.bf16.mxu0 0
    %5288 = vmatpush1.bf16.msra.mxu0 0
    %5289 = vmatprep.subr.bf16.mxu0 0
    %5290 = vmatpush1.bf16.msra.mxu0 0
    %5291 = vmatprep.subr.bf16.mxu0 0
    %5292 = vmatpush1.bf16.msra.mxu0 0
    %5293 = vmatprep.subr.bf16.mxu0 0
    %5294 = vmatpush1.bf16.msra.mxu0 0
    %5295 = vmatprep.subr.bf16.mxu0 0
    %5296 = vmatpush1.bf16.msra.mxu0 0
    %5297 = vmatprep.subr.bf16.mxu0 0
    %5298 = vmatpush1.bf16.msra.mxu0 0
    %5299 = vmatprep.subr.bf16.mxu0 0
    %5300 = vmatpush1.bf16.msra.mxu0 0
    %5301 = vmatprep.mubr.bf16.mxu0 0
    %5302 = vmatmul.mubr.bf16.gmra.mrb[0].mxu0 %v5013
    %v5303 = vpop.f32.mrb[0].mxu0
    %v5304 = vadd.f32 %v5059, %v5303
    %v5305 = vpop.f32.mrb[0].mxu0
    %v5306 = vadd.f32 %v5063, %v5305
    %v5307 = vpop.f32.mrb[0].mxu0
    %v5308 = vpop.f32.mrb[0].mxu0
    %5309 = vdwg.mxu0
    %v5310 = vmax.f32 %v5263, 0.0
    %v5311 = vmax.f32 %v5265, 0.0
    %v5312 = vmax.f32 %v5304, 0.0
    %v5313 = vmax.f32 %v5306, 0.0
    %v5314 = vpack.c.bf16 %v5310, %v5310
    %v5315 = vpack.c.bf16 %v5311, %v5311
    %v5316 = vpack.c.bf16 %v5312, %v5312
    %v5317 = vpack.c.bf16 %v5313, %v5313
    %v5318 = vld [vmem:[%s11] sm:$0xf]
    %v5319 = vld [vmem:[%s11 + $0x4] sm:$0xf]
    %v5320 = vld [vmem:[%s11 + $0x8] sm:$0xf]
    %v5321 = vld [vmem:[%s11 + $0xc] sm:$0xf]
    %v5322 = vld [vmem:[%s11 + $0x10] sm:$0xf]
    %v5323 = vld [vmem:[%s11 + $0x14] sm:$0xf]
    %v5324 = vld [vmem:[%s11 + $0x18] sm:$0xf]
    %v5325 = vld [vmem:[%s11 + $0x1c] sm:$0xf]
    %v5326 = vld [vmem:[%s11 + $0x20] sm:$0xf]
    %v5327 = vld [vmem:[%s11 + $0x24] sm:$0xf]
    %v5328 = vld [vmem:[%s11 + $0x28] sm:$0xf]
    %v5329 = vld [vmem:[%s11 + $0x2c] sm:$0xf]
    %v5330 = vld [vmem:[%s11 + $0x30] sm:$0xf]
    %v5331 = vld [vmem:[%s11 + $0x34] sm:$0xf]
    %v5332 = vld [vmem:[%s11 + $0x38] sm:$0xf]
    %v5333 = vld [vmem:[%s11 + $0x3c] sm:$0xf]
    %v5334 = vld [vmem:[%s11 + $0x40] sm:$0xf]
    %v5335 = vld [vmem:[%s11 + $0x44] sm:$0xf]
    %v5336 = vld [vmem:[%s11 + $0x48] sm:$0xf]
    %v5337 = vld [vmem:[%s11 + $0x4c] sm:$0xf]
    %v5338 = vld [vmem:[%s11 + $0x50] sm:$0xf]
    %v5339 = vld [vmem:[%s11 + $0x54] sm:$0xf]
    %v5340 = vld [vmem:[%s11 + $0x58] sm:$0xf]
    %v5341 = vld [vmem:[%s11 + $0x5c] sm:$0xf]
    %v5342 = vld [vmem:[%s11 + $0x60] sm:$0xf]
    %v5343 = vld [vmem:[%s11 + $0x64] sm:$0xf]
    %v5344 = vld [vmem:[%s11 + $0x68] sm:$0xf]
    %v5345 = vld [vmem:[%s11 + $0x6c] sm:$0xf]
    %v5346 = vld [vmem:[%s11 + $0x70] sm:$0xf]
    %v5347 = vld [vmem:[%s11 + $0x74] sm:$0xf]
    %v5348 = vld [vmem:[%s11 + $0x78] sm:$0xf]
    %v5349 = vld [vmem:[%s11 + $0x7c] sm:$0xf]
    %v5350 = vld [vmem:[%s11 + $0x80] sm:$0xf]
    %v5351 = vld [vmem:[%s11 + $0x84] sm:$0xf]
    %v5352 = vld [vmem:[%s11 + $0x88] sm:$0xf]
    %v5353 = vld [vmem:[%s11 + $0x8c] sm:$0xf]
    %v5354 = vld [vmem:[%s11 + $0x90] sm:$0xf]
    %v5355 = vld [vmem:[%s11 + $0x94] sm:$0xf]
    %v5356 = vld [vmem:[%s11 + $0x98] sm:$0xf]
    %v5357 = vld [vmem:[%s11 + $0x9c] sm:$0xf]
    %v5358 = vld [vmem:[%s11 + $0xa0] sm:$0xf]
    %v5359 = vld [vmem:[%s11 + $0xa4] sm:$0xf]
    %v5360 = vld [vmem:[%s11 + $0xa8] sm:$0xf]
    %v5361 = vld [vmem:[%s11 + $0xac] sm:$0xf]
    %v5362 = vld [vmem:[%s11 + $0xb0] sm:$0xf]
    %v5363 = vld [vmem:[%s11 + $0xb4] sm:$0xf]
    %v5364 = vld [vmem:[%s11 + $0xb8] sm:$0xf]
    %v5365 = vld [vmem:[%s11 + $0xbc] sm:$0xf]
    %v5366 = vld [vmem:[%s11 + $0xc0] sm:$0xf]
    %v5367 = vld [vmem:[%s11 + $0xc4] sm:$0xf]
    %v5368 = vld [vmem:[%s11 + $0xc8] sm:$0xf]
    %v5369 = vld [vmem:[%s11 + $0xcc] sm:$0xf]
    %v5370 = vld [vmem:[%s11 + $0xd0] sm:$0xf]
    %v5371 = vld [vmem:[%s11 + $0xd4] sm:$0xf]
    %v5372 = vld [vmem:[%s11 + $0xd8] sm:$0xf]
    %v5373 = vld [vmem:[%s11 + $0xdc] sm:$0xf]
    %v5374 = vld [vmem:[%s11 + $0xe0] sm:$0xf]
    %v5375 = vld [vmem:[%s11 + $0xe4] sm:$0xf]
    %v5376 = vld [vmem:[%s11 + $0xe8] sm:$0xf]
    %v5377 = vld [vmem:[%s11 + $0xec] sm:$0xf]
    %v5378 = vld [vmem:[%s11 + $0xf0] sm:$0xf]
    %v5379 = vld [vmem:[%s11 + $0xf4] sm:$0xf]
    %v5380 = vld [vmem:[%s11 + $0xf8] sm:$0xf]
    %v5381 = vld [vmem:[%s11 + $0xfc] sm:$0xf]
    %v5382 = vld [vmem:[%s12] sm:$0x1]
    %v5384 = vlaneseq
    %v5385 = vshrl.u32 %v5384, 7
    %v5386 = vsub.s32 0, %v5385
    %v5387 = vrot.slane %v5382, %v5386
    %v5453 = vunpack.c.l.b16 %v5318
    %v5454 = vunpack.c.l.b16 %v5319
    %v5455 = vunpack.c.l.b16 %v5320
    %v5456 = vunpack.c.l.b16 %v5321
    %v5457 = vunpack.c.l.b16 %v5322
    %v5458 = vunpack.c.l.b16 %v5323
    %v5459 = vunpack.c.l.b16 %v5324
    %v5460 = vunpack.c.l.b16 %v5325
    %v5461 = vunpack.c.l.b16 %v5326
    %v5462 = vunpack.c.l.b16 %v5327
    %v5463 = vunpack.c.l.b16 %v5328
    %v5464 = vunpack.c.l.b16 %v5329
    %v5465 = vunpack.c.l.b16 %v5330
    %v5466 = vunpack.c.l.b16 %v5331
    %v5467 = vunpack.c.l.b16 %v5332
    %v5468 = vunpack.c.l.b16 %v5333
    %v5469 = vunpack.c.l.b16 %v5334
    %v5470 = vunpack.c.l.b16 %v5335
    %v5471 = vunpack.c.l.b16 %v5336
    %v5472 = vunpack.c.l.b16 %v5337
    %v5473 = vunpack.c.l.b16 %v5338
    %v5474 = vunpack.c.l.b16 %v5339
    %v5475 = vunpack.c.l.b16 %v5340
    %v5476 = vunpack.c.l.b16 %v5341
    %v5477 = vunpack.c.l.b16 %v5342
    %v5478 = vunpack.c.l.b16 %v5343
    %v5479 = vunpack.c.l.b16 %v5344
    %v5480 = vunpack.c.l.b16 %v5345
    %v5481 = vunpack.c.l.b16 %v5346
    %v5482 = vunpack.c.l.b16 %v5347
    %v5483 = vunpack.c.l.b16 %v5348
    %v5484 = vunpack.c.l.b16 %v5349
    %v5485 = vunpack.c.l.b16 %v5350
    %v5486 = vunpack.c.l.b16 %v5351
    %v5487 = vunpack.c.l.b16 %v5352
    %v5488 = vunpack.c.l.b16 %v5353
    %v5489 = vunpack.c.l.b16 %v5354
    %v5490 = vunpack.c.l.b16 %v5355
    %v5491 = vunpack.c.l.b16 %v5356
    %v5492 = vunpack.c.l.b16 %v5357
    %v5493 = vunpack.c.l.b16 %v5358
    %v5494 = vunpack.c.l.b16 %v5359
    %v5495 = vunpack.c.l.b16 %v5360
    %v5496 = vunpack.c.l.b16 %v5361
    %v5497 = vunpack.c.l.b16 %v5362
    %v5498 = vunpack.c.l.b16 %v5363
    %v5499 = vunpack.c.l.b16 %v5364
    %v5500 = vunpack.c.l.b16 %v5365
    %v5501 = vunpack.c.l.b16 %v5366
    %v5502 = vunpack.c.l.b16 %v5367
    %v5503 = vunpack.c.l.b16 %v5368
    %v5504 = vunpack.c.l.b16 %v5369
    %v5505 = vunpack.c.l.b16 %v5370
    %v5506 = vunpack.c.l.b16 %v5371
    %v5507 = vunpack.c.l.b16 %v5372
    %v5508 = vunpack.c.l.b16 %v5373
    %v5509 = vunpack.c.l.b16 %v5374
    %v5510 = vunpack.c.l.b16 %v5375
    %v5511 = vunpack.c.l.b16 %v5376
    %v5512 = vunpack.c.l.b16 %v5377
    %v5513 = vunpack.c.l.b16 %v5378
    %v5514 = vunpack.c.l.b16 %v5379
    %v5515 = vunpack.c.l.b16 %v5380
    %v5516 = vunpack.c.l.b16 %v5381
    %v5517 = vpack.c.b16 %v5454, %v5453
    %v5518 = vpack.c.b16 %v5456, %v5455
    %v5519 = vpack.c.b16 %v5458, %v5457
    %v5520 = vpack.c.b16 %v5460, %v5459
    %v5521 = vpack.c.b16 %v5462, %v5461
    %v5522 = vpack.c.b16 %v5464, %v5463
    %v5523 = vpack.c.b16 %v5466, %v5465
    %v5524 = vpack.c.b16 %v5468, %v5467
    %v5525 = vpack.c.b16 %v5470, %v5469
    %v5526 = vpack.c.b16 %v5472, %v5471
    %v5527 = vpack.c.b16 %v5474, %v5473
    %v5528 = vpack.c.b16 %v5476, %v5475
    %v5529 = vpack.c.b16 %v5478, %v5477
    %v5530 = vpack.c.b16 %v5480, %v5479
    %v5531 = vpack.c.b16 %v5482, %v5481
    %v5532 = vpack.c.b16 %v5484, %v5483
    %v5533 = vpack.c.b16 %v5486, %v5485
    %v5534 = vpack.c.b16 %v5488, %v5487
    %v5535 = vpack.c.b16 %v5490, %v5489
    %v5536 = vpack.c.b16 %v5492, %v5491
    %v5537 = vpack.c.b16 %v5494, %v5493
    %v5538 = vpack.c.b16 %v5496, %v5495
    %v5539 = vpack.c.b16 %v5498, %v5497
    %v5540 = vpack.c.b16 %v5500, %v5499
    %v5541 = vpack.c.b16 %v5502, %v5501
    %v5542 = vpack.c.b16 %v5504, %v5503
    %v5543 = vpack.c.b16 %v5506, %v5505
    %v5544 = vpack.c.b16 %v5508, %v5507
    %v5545 = vpack.c.b16 %v5510, %v5509
    %v5546 = vpack.c.b16 %v5512, %v5511
    %v5547 = vpack.c.b16 %v5514, %v5513
    %v5548 = vpack.c.b16 %v5516, %v5515
    %5581 = vmatprep.subr.bf16.mxu0 0
    %5582 = vmatpush1.bf16.msra.mxu0 %v5517
    %5583 = vmatprep.subr.bf16.mxu0 0
    %5584 = vmatpush1.bf16.msra.mxu0 %v5518
    %5585 = vmatprep.subr.bf16.mxu0 0
    %5586 = vmatpush1.bf16.msra.mxu0 %v5519
    %5587 = vmatprep.subr.bf16.mxu0 0
    %5588 = vmatpush1.bf16.msra.mxu0 %v5520
    %5589 = vmatprep.subr.bf16.mxu0 0
    %5590 = vmatpush1.bf16.msra.mxu0 %v5521
    %5591 = vmatprep.subr.bf16.mxu0 0
    %5592 = vmatpush1.bf16.msra.mxu0 %v5522
    %5593 = vmatprep.subr.bf16.mxu0 0
    %5594 = vmatpush1.bf16.msra.mxu0 %v5523
    %5595 = vmatprep.subr.bf16.mxu0 0
    %5596 = vmatpush1.bf16.msra.mxu0 %v5524
    %5597 = vmatprep.subr.bf16.mxu0 0
    %5598 = vmatpush1.bf16.msra.mxu0 %v5525
    %5599 = vmatprep.subr.bf16.mxu0 0
    %5600 = vmatpush1.bf16.msra.mxu0 %v5526
    %5601 = vmatprep.subr.bf16.mxu0 0
    %5602 = vmatpush1.bf16.msra.mxu0 %v5527
    %5603 = vmatprep.subr.bf16.mxu0 0
    %5604 = vmatpush1.bf16.msra.mxu0 %v5528
    %5605 = vmatprep.subr.bf16.mxu0 0
    %5606 = vmatpush1.bf16.msra.mxu0 %v5529
    %5607 = vmatprep.subr.bf16.mxu0 0
    %5608 = vmatpush1.bf16.msra.mxu0 %v5530
    %5609 = vmatprep.subr.bf16.mxu0 0
    %5610 = vmatpush1.bf16.msra.mxu0 %v5531
    %5611 = vmatprep.subr.bf16.mxu0 0
    %5612 = vmatpush1.bf16.msra.mxu0 %v5532
    %5613 = vmatprep.mubr.bf16.mxu0 %v5315
    %5614 = vmatmul.mubr.bf16.gmra.mrb[0].mxu0 %v5314
    %v5615 = vpop.f32.mrb[0].mxu0
    %v5616 = vadd.f32 %v5387, %v5615
    %v5617 = vpop.f32.mrb[0].mxu0
    %v5618 = vpop.f32.mrb[0].mxu0
    %v5619 = vpop.f32.mrb[0].mxu0
    %5620 = vdwg.mxu0
    %5621 = vmatprep.subr.bf16.mxu0 0
    %5622 = vmatpush1.bf16.msra.mxu0 %v5533
    %5623 = vmatprep.subr.bf16.mxu0 0
    %5624 = vmatpush1.bf16.msra.mxu0 %v5534
    %5625 = vmatprep.subr.bf16.mxu0 0
    %5626 = vmatpush1.bf16.msra.mxu0 %v5535
    %5627 = vmatprep.subr.bf16.mxu0 0
    %5628 = vmatpush1.bf16.msra.mxu0 %v5536
    %5629 = vmatprep.subr.bf16.mxu0 0
    %5630 = vmatpush1.bf16.msra.mxu0 %v5537
    %5631 = vmatprep.subr.bf16.mxu0 0
    %5632 = vmatpush1.bf16.msra.mxu0 %v5538
    %5633 = vmatprep.subr.bf16.mxu0 0
    %5634 = vmatpush1.bf16.msra.mxu0 %v5539
    %5635 = vmatprep.subr.bf16.mxu0 0
    %5636 = vmatpush1.bf16.msra.mxu0 %v5540
    %5637 = vmatprep.subr.bf16.mxu0 0
    %5638 = vmatpush1.bf16.msra.mxu0 %v5541
    %5639 = vmatprep.subr.bf16.mxu0 0
    %5640 = vmatpush1.bf16.msra.mxu0 %v5542
    %5641 = vmatprep.subr.bf16.mxu0 0
    %5642 = vmatpush1.bf16.msra.mxu0 %v5543
    %5643 = vmatprep.subr.bf16.mxu0 0
    %5644 = vmatpush1.bf16.msra.mxu0 %v5544
    %5645 = vmatprep.subr.bf16.mxu0 0
    %5646 = vmatpush1.bf16.msra.mxu0 %v5545
    %5647 = vmatprep.subr.bf16.mxu0 0
    %5648 = vmatpush1.bf16.msra.mxu0 %v5546
    %5649 = vmatprep.subr.bf16.mxu0 0
    %5650 = vmatpush1.bf16.msra.mxu0 %v5547
    %5651 = vmatprep.subr.bf16.mxu0 0
    %5652 = vmatpush1.bf16.msra.mxu0 %v5548
    %5653 = vmatprep.mubr.bf16.mxu0 %v5317
    %5654 = vmatmul.mubr.bf16.gmra.mrb[0].mxu0 %v5316
    %v5655 = vpop.f32.mrb[0].mxu0
    %v5656 = vadd.f32 %v5616, %v5655
    %v5657 = vpop.f32.mrb[0].mxu0
    %v5658 = vpop.f32.mrb[0].mxu0
    %v5659 = vpop.f32.mrb[0].mxu0
    %5660 = vdwg.mxu0
    %vm5661 = vcmask 41984
    %5662 = vst.msk [vmem:[#allocation8] sm:$0x3] %vm5661, %v5656
    // Predicated region
    $region54: #{_forward_impl.1} parent=1 // pred_check
      _
    $region55: #{_forward_impl.1} parent=1 // pred_check_branch
      %5664 = sbr.rel (0) target = $region57
    $region56: #{_forward_impl.1} parent=1 // pred_region
      %s5666 = ssub.s32 32, 32
      %5667 = vsyncadd [#allocation9], %s5666
      %s5669 = sshll.u32 [#allocation8], 4
      %s5670 = int_to_ptr.vmem [resolvable:$true] %s5669
      %5672 = dma.vmem_to_hbm [thread:$0]  %s5670, 32, %s13, [#allocation9]
    $region57: #{_forward_impl.1} parent=1 // pred_fallthru
      _
    // Predicated region
    $region58: #{_forward_impl.1} parent=1 // pred_check
      _
    $region59: #{_forward_impl.1} parent=1 // pred_check_branch
      %5674 = sbr.rel (0) target = $region61
    $region60: #{_forward_impl.1} parent=1 // pred_region
      %5675 = dma.done [#allocation9], 32
    $region61: #{_forward_impl.1} parent=1 // pred_fallthru
      _
    %5676 = vsyncpa [#allocation9], 1

</llo_original>
